<compile_context>
chip_gen: v7x
topology: tpu7x:2x2x1
jax: 0.10.0
libtpu: 0.0.40
codegen_flags: <defaults>
</compile_context>

<pallas_src>
import math

import jax
import jax.numpy as jnp
from jax.experimental import pallas as pl
from jax.experimental.pallas import tpu as pltpu

# ---------------- model hyper-parameters (small, consistent with the module) ----------------
N_NODES = 8
HIDDEN = 32          # hidden_dim == out_dim
OUT_DIM = 32
POS_ENC_DIM = 8
NUM_HEADS = 4
N_GCN_LAYERS = 2     # net_params['L']
NUM_SAT_LAYERS = 2   # net_params['num_layers']
K_HOP = 2
NUM_ATOM_TYPE = 10
NUM_BOND_TYPE = 5

_BN_INV = 1.0 / math.sqrt(1.0 + 1e-5)   # eval BatchNorm with running_mean=0, running_var=1


# ---------------- the fused whole-model kernel ----------------
def fused_forward_kernel(
    # graph / features
    h0_ref, pin_ref, e0_ref, adj_ref, adjn_ref,
    # embedding_p
    wp_ref, bp_ref,
    # GatedGCN-LSPE layers (stacked over layer axis, projections concatenated)
    g_wh_ref, g_wp_ref, g_b_ref, g_wB3_ref, g_bB3_ref,
    g_gh_ref, g_bh_ref, g_ge_ref, g_be_ref,
    # SAT encoder layers (stacked over layer axis)
    s_wgnn_ref, s_bgnn_ref, s_wsp_ref, s_bsp_ref,
    s_wqk_ref, s_wv_ref, s_wo_ref, s_bo_ref,
    s_w1_ref, s_b1_ref, s_w2_ref, s_b2_ref,
    s_g1_ref, s_be1_ref, s_g2_ref, s_be2_ref,
    # LSPE readout
    r_wpo_ref, r_bpo_ref, r_whph_ref, r_whpp_ref, r_bhp_ref,
    r_w0_ref, r_b0_ref, r_w1_ref, r_b1_ref, r_w2_ref, r_b2_ref,
    # outputs
    score_ref, hout_ref, pout_ref,
):
    f32 = jnp.float32
    h = h0_ref[...]                               # [N, D]
    adj = adj_ref[...]                            # [N, N]
    E = e0_ref[...]                               # [N, N, D] (dst, src, feat), zero at non-edges
    N, _, D = E.shape
    mask = adj[:, :, None]                        # [N, N, 1]

    # embedding_p linear (in_feat_dropout on h = identity in eval mode)
    p = jnp.dot(pin_ref[...], wp_ref[...], preferred_element_type=f32) + bp_ref[...]

    # ---------------- GatedGCN-LSPE layers ----------------
    n_gcn = g_wh_ref.shape[0]
    for l in range(n_gcn):
        # one lane-dense (192-wide) node projection per input; columns = [A1 | A2 | B1 | B2 | C1 | C2]
        Y = (jnp.dot(h, g_wh_ref[l], preferred_element_type=f32)
             + jnp.dot(p, g_wp_ref[l], preferred_element_type=f32)
             + g_b_ref[l])                        # [N, 6D]
        A1h = Y[:, 0 * D:1 * D]                   # A1([h_i || p_i])
        V   = Y[:, 1 * D:2 * D]                   # A2([h_j || p_j])
        B1h = Y[:, 2 * D:3 * D]
        B2h = Y[:, 3 * D:4 * D]
        C1p = Y[:, 4 * D:5 * D]
        C2p = Y[:, 5 * D:6 * D]

        B3e = (jnp.dot(E.reshape(N * N, D), g_wB3_ref[l], preferred_element_type=f32)
               + g_bB3_ref[l]).reshape(N, N, D)

        # hat_eta[i,j] = B1 h_src(j) + B2 h_dst(i) + B3 e_ij
        hat_eta = B1h[None, :, :] + B2h[:, None, :] + B3e
        sigma = jax.nn.sigmoid(hat_eta) * mask
        inv_den = pl.reciprocal(jnp.sum(sigma, axis=1) + 1e-6, approx=True)   # [N, D]

        h_new = A1h + jnp.sum(sigma * V[None, :, :], axis=1) * inv_den
        p_new = C1p + jnp.sum(sigma * C2p[None, :, :], axis=1) * inv_den

        # BatchNorm (eval; 1/sqrt(var+eps) folded into gamma) + activation + residual
        h = h + jnp.maximum(h_new * g_gh_ref[l] + g_bh_ref[l], 0.0)
        p = p + jnp.tanh(p_new)
        e_upd = jnp.maximum(hat_eta * g_ge_ref[l] + g_be_ref[l], 0.0)
        E = (E + e_upd) * mask                    # keep non-edge entries zero (matches sparse ref)

    # ---------------- SAT transformer encoder layers ----------------
    adjn = adjn_ref[...]                          # normalised adjacency (+ self loops)
    num_sat = s_wsp_ref.shape[0]
    k_hop = s_wgnn_ref.shape[1]
    dh = D // NUM_HEADS
    scale = 1.0 / math.sqrt(dh)
    for l in range(num_sat):
        x = h
        # structure extractor: k_hop dense GCN hops + output projection
        xs = x
        for k in range(k_hop):
            msg = jnp.dot(adjn, xs, preferred_element_type=f32)
            xs = jnp.maximum(
                jnp.dot(msg, s_wgnn_ref[l, k], preferred_element_type=f32)
                + s_bgnn_ref[l, k], 0.0)
        xs = jnp.dot(xs, s_wsp_ref[l], preferred_element_type=f32) + s_bsp_ref[l]

        # structure-aware attention: Q,K from structure-aware repr (one stacked matmul), V from x
        qk = jnp.dot(xs, s_wqk_ref[l], preferred_element_type=f32)   # [N, 2D]
        q, kmat = qk[:, :D], qk[:, D:]
        v = jnp.dot(x, s_wv_ref[l], preferred_element_type=f32)

        # single-graph batch => complete attention, no mask needed
        heads = []
        for hd in range(NUM_HEADS):
            sl = slice(hd * dh, (hd + 1) * dh)
            s = jax.lax.dot_general(q[:, sl], kmat[:, sl], (((1,), (1,)), ((), ())),
                                    preferred_element_type=f32) * scale
            s = s - jnp.max(s, axis=-1, keepdims=True)
            pr = jnp.exp(s)
            pr = pr * pl.reciprocal(jnp.sum(pr, axis=-1, keepdims=True), approx=True)
            heads.append(jnp.dot(pr, v[:, sl], preferred_element_type=f32))
        attn = jnp.concatenate(heads, axis=1)                        # [N, D]
        attn = jnp.dot(attn, s_wo_ref[l], preferred_element_type=f32) + s_bo_ref[l]

        # residual + BN (eval) + FFN + residual + BN; dropout = identity (eval)
        src = x + attn
        src = src * s_g1_ref[l] + s_be1_ref[l]
        ff = jnp.dot(
            jnp.maximum(jnp.dot(src, s_w1_ref[l], preferred_element_type=f32) + s_b1_ref[l], 0.0),
            s_w2_ref[l], preferred_element_type=f32) + s_b2_ref[l]
        src = src + ff
        h = src * s_g2_ref[l] + s_be2_ref[l]

    # ---------------- LSPE readout (pe_init == 'rand_walk') ----------------
    p2 = jnp.dot(p, r_wpo_ref[...], preferred_element_type=f32) + r_bpo_ref[...]   # [N, PE]
    # norms taken BEFORE mean-centering, exactly as in the reference forward
    norms = jnp.sqrt(jnp.sum(p2 * p2, axis=0, keepdims=True))        # sum_nodes(p^2) per graph
    means = jnp.sum(p2, axis=0, keepdims=True) * (1.0 / N)           # mean_nodes(p)
    p3 = (p2 - means) / (norms + 1e-12)           # tiny eps only guards a degenerate all-zero p

    hp = (jnp.dot(h, r_whph_ref[...], preferred_element_type=f32)
          + jnp.dot(p3, r_whpp_ref[...], preferred_element_type=f32) + r_bhp_ref[...])
    hg = jnp.sum(hp, axis=0, keepdims=True) * (1.0 / N)              # mean_nodes(h) -> [1, D]

    y = jnp.maximum(jnp.dot(hg, r_w0_ref[...], preferred_element_type=f32) + r_b0_ref[...], 0.0)
    y = jnp.maximum(jnp.dot(y, r_w1_ref[...], preferred_element_type=f32) + r_b1_ref[...], 0.0)
    score_ref[...] = jnp.dot(y, r_w2_ref[...], preferred_element_type=f32) + r_b2_ref[...]
    hout_ref[...] = hp
    pout_ref[...] = p3


# ---------------- pallas_call wrapper: whole arrays in VMEM, grid=(1,) ----------------
def _full_spec(shape):
    return pl.BlockSpec(shape, lambda i, _n=len(shape): (0,) * _n)


def run_fused(h0, pos_enc, E0, adj, adj_norm, params):
    g, s, r = params['gcn'], params['sat'], params['readout']
    args = (
        h0, pos_enc, E0, adj, adj_norm,
        params['emb_p_w'], params['emb_p_b'],
        g['wh'], g['wp'], g['b'], g['wB3'], g['bB3'],
        g['gh'], g['bh'], g['ge'], g['be'],
        s['wgnn'], s['bgnn'], s['wsp'], s['bsp'],
        s['wqk'], s['wv'], s['wo'], s['bo'],
        s['w1'], s['b1'], s['w2'], s['b2'],
        s['g1'], s['be1'], s['g2'], s['be2'],
        r['wpo'], r['bpo'], r['whph'], r['whpp'], r['bhp'],
        r['w0'], r['b0'], r['w1'], r['b1'], r['w2'], r['b2'],
    )
    N, D = h0.shape
    out_shapes = (
        jax.ShapeDtypeStruct((1, 1), jnp.float32),
        jax.ShapeDtypeStruct((N, D), jnp.float32),
        jax.ShapeDtypeStruct((N, POS_ENC_DIM), jnp.float32),
    )
    return pl.pallas_call(
        fused_forward_kernel,
        grid=(1,),
        in_specs=[_full_spec(a.shape) for a in args],
        out_specs=tuple(_full_spec(o.shape) for o in out_shapes),
        out_shape=out_shapes,
        compiler_params=pltpu.CompilerParams(dimension_semantics=("arbitrary",)),
    )(*args)


def forward(params, node_type, pos_enc, edge_type, adj):
    # glue: embedding lookups (gathers) + one-time adjacency normalisation stay in plain JAX;
    # everything else runs inside the single fused Pallas kernel.
    h0 = params['emb_h'][node_type]                       # embedding_h  -> [N, D]
    E0 = params['emb_e'][edge_type] * adj[..., None]      # embedding_e  -> dense [N, N, D]
    a_tilde = adj + jnp.eye(adj.shape[0], dtype=adj.dtype)
    dinv = jax.lax.rsqrt(jnp.sum(a_tilde, axis=1))
    adj_norm = a_tilde * dinv[:, None] * dinv[None, :]    # structure-extractor GCN normalisation
    return run_fused(h0, pos_enc, E0, adj, adj_norm, params)


# ---------------- deterministic parameter initialisation (pre-concatenated layout) ----------------
def init_params(key):
    D, PE, L, LS, K = HIDDEN, POS_ENC_DIM, N_GCN_LAYERS, NUM_SAT_LAYERS, K_HOP
    keys = iter(jax.random.split(key, 512))

    def W(shape, scale=0.1):
        return (scale * jax.random.normal(next(keys), shape)).astype(jnp.float32)

    def Z(shape):
        return jnp.zeros(shape, jnp.float32)

    params = {
        'emb_h': W((NUM_ATOM_TYPE, D)),
        'emb_e': W((NUM_BOND_TYPE, D)),
        'emb_p_w': W((PE, D)), 'emb_p_b': W((1, D)),
    }

    # GatedGCN-LSPE layers: concatenate the node projections into lane-dense (D, 6D) matmuls.
    wh, wpp, bb, wB3, bB3 = [], [], [], [], []
    for _ in range(L):
        wA1, wA2 = W((2 * D, D)), W((2 * D, D))           # applied to [h || p]
        wB1, wB2, wB3_l = W((D, D)), W((D, D)), W((D, D))
        wC1, wC2 = W((D, D)), W((D, D))
        bA1, bA2, bB1, bB2, bB3_l, bC1, bC2 = (W((1, D)) for _ in range(7))
        # columns: [A1 | A2 | B1 | B2 | C1 | C2]; h feeds A*,B*; p feeds A*,C*
        wh.append(jnp.concatenate([wA1[:D], wA2[:D], wB1, wB2, Z((D, D)), Z((D, D))], axis=1))
        wpp.append(jnp.concatenate([wA1[D:], wA2[D:], Z((D, D)), Z((D, D)), wC1, wC2], axis=1))
        bb.append(jnp.concatenate([bA1, bA2, bB1, bB2, bC1, bC2], axis=1))
        wB3.append(wB3_l)
        bB3.append(bB3_l)
    params['gcn'] = dict(
        wh=jnp.stack(wh), wp=jnp.stack(wpp), b=jnp.stack(bb),
        wB3=jnp.stack(wB3), bB3=jnp.stack(bB3),
        # eval BatchNorm (running mean=0, var=1): fold 1/sqrt(1+eps) into gamma, beta=0
        gh=jnp.full((L, 1, D), _BN_INV, jnp.float32), bh=Z((L, 1, D)),
        ge=jnp.full((L, 1, D), _BN_INV, jnp.float32), be=Z((L, 1, D)),
    )

    params['sat'] = dict(
        wgnn=W((LS, K, D, D)), bgnn=W((LS, K, 1, D)),
        wsp=W((LS, D, D)), bsp=W((LS, 1, D)),
        wqk=W((LS, D, 2 * D)),                            # to_qk: Linear(D, 2D, bias=False)
        wv=W((LS, D, D)),                                 # to_v: Linear(D, D, bias=False)
        wo=W((LS, D, D)), bo=W((LS, 1, D)),
        w1=W((LS, D, 2 * D)), b1=W((LS, 1, 2 * D)),
        w2=W((LS, 2 * D, D)), b2=W((LS, 1, D)),
        g1=jnp.full((LS, 1, D), _BN_INV, jnp.float32), be1=Z((LS, 1, D)),
        g2=jnp.full((LS, 1, D), _BN_INV, jnp.float32), be2=Z((LS, 1, D)),
    )

    params['readout'] = dict(
        wpo=W((OUT_DIM, PE)), bpo=W((1, PE)),
        whph=W((OUT_DIM, OUT_DIM)), whpp=W((PE, OUT_DIM)), bhp=W((1, OUT_DIM)),  # Whp split rows
        w0=W((OUT_DIM, OUT_DIM // 2)), b0=W((1, OUT_DIM // 2)),
        w1=W((OUT_DIM // 2, OUT_DIM // 4)), b1=W((1, OUT_DIM // 4)),
        w2=W((OUT_DIM // 4, 1)), b2=W((1, 1)),
    )
    return params


if __name__ == "__main__":
    key = jax.random.PRNGKey(0)
    k_in, k_par = jax.random.split(key)
    kn, kp, ke = jax.random.split(k_in, 3)

    node_type = jax.random.randint(kn, (N_NODES,), 0, NUM_ATOM_TYPE)
    pos_enc = jax.random.normal(kp, (N_NODES, POS_ENC_DIM), jnp.float32)
    edge_type = jax.random.randint(ke, (N_NODES, N_NODES), 0, NUM_BOND_TYPE)

    # ring + chord adjacency, symmetric, no self loops
    idx = jnp.arange(N_NODES)
    adj = jnp.zeros((N_NODES, N_NODES), jnp.float32)
    adj = adj.at[idx, (idx + 1) % N_NODES].set(1.0)
    adj = adj.at[idx, (idx + 3) % N_NODES].set(1.0)
    adj = jnp.maximum(adj, adj.T)

    params = init_params(k_par)
    score, h_final, p_final = jax.jit(forward)(params, node_type, pos_enc, edge_type, adj)
    jax.block_until_ready((score, h_final, p_final))
    assert score.shape == (1, 1) and h_final.shape == (N_NODES, OUT_DIM) \
        and p_final.shape == (N_NODES, POS_ENC_DIM)
    print("KERNEL_OK")
</pallas_src>

<mosaic_0001>
module attributes {stable_mosaic.version = 11 : i64} {
  func.func @fused_forward_kernel(%arg0: i32, %arg1: memref<8x32xf32, #tpu.memory_space<vmem>>, %arg2: memref<8x8xf32, #tpu.memory_space<vmem>>, %arg3: memref<8x8x32xf32, #tpu.memory_space<vmem>>, %arg4: memref<8x8xf32, #tpu.memory_space<vmem>>, %arg5: memref<8x8xf32, #tpu.memory_space<vmem>>, %arg6: memref<8x32xf32, #tpu.memory_space<vmem>>, %arg7: memref<1x32xf32, #tpu.memory_space<vmem>>, %arg8: memref<2x32x192xf32, #tpu.memory_space<vmem>>, %arg9: memref<2x32x192xf32, #tpu.memory_space<vmem>>, %arg10: memref<2x1x192xf32, #tpu.memory_space<vmem>>, %arg11: memref<2x32x32xf32, #tpu.memory_space<vmem>>, %arg12: memref<2x1x32xf32, #tpu.memory_space<vmem>>, %arg13: memref<2x1x32xf32, #tpu.memory_space<vmem>>, %arg14: memref<2x1x32xf32, #tpu.memory_space<vmem>>, %arg15: memref<2x1x32xf32, #tpu.memory_space<vmem>>, %arg16: memref<2x1x32xf32, #tpu.memory_space<vmem>>, %arg17: memref<2x2x32x32xf32, #tpu.memory_space<vmem>>, %arg18: memref<2x2x1x32xf32, #tpu.memory_space<vmem>>, %arg19: memref<2x32x32xf32, #tpu.memory_space<vmem>>, %arg20: memref<2x1x32xf32, #tpu.memory_space<vmem>>, %arg21: memref<2x32x64xf32, #tpu.memory_space<vmem>>, %arg22: memref<2x32x32xf32, #tpu.memory_space<vmem>>, %arg23: memref<2x32x32xf32, #tpu.memory_space<vmem>>, %arg24: memref<2x1x32xf32, #tpu.memory_space<vmem>>, %arg25: memref<2x32x64xf32, #tpu.memory_space<vmem>>, %arg26: memref<2x1x64xf32, #tpu.memory_space<vmem>>, %arg27: memref<2x64x32xf32, #tpu.memory_space<vmem>>, %arg28: memref<2x1x32xf32, #tpu.memory_space<vmem>>, %arg29: memref<2x1x32xf32, #tpu.memory_space<vmem>>, %arg30: memref<2x1x32xf32, #tpu.memory_space<vmem>>, %arg31: memref<2x1x32xf32, #tpu.memory_space<vmem>>, %arg32: memref<2x1x32xf32, #tpu.memory_space<vmem>>, %arg33: memref<32x8xf32, #tpu.memory_space<vmem>>, %arg34: memref<1x8xf32, #tpu.memory_space<vmem>>, %arg35: memref<32x32xf32, #tpu.memory_space<vmem>>, %arg36: memref<8x32xf32, #tpu.memory_space<vmem>>, %arg37: memref<1x32xf32, #tpu.memory_space<vmem>>, %arg38: memref<32x16xf32, #tpu.memory_space<vmem>>, %arg39: memref<1x16xf32, #tpu.memory_space<vmem>>, %arg40: memref<16x8xf32, #tpu.memory_space<vmem>>, %arg41: memref<1x8xf32, #tpu.memory_space<vmem>>, %arg42: memref<8x1xf32, #tpu.memory_space<vmem>>, %arg43: memref<1x1xf32, #tpu.memory_space<vmem>>, %arg44: memref<1x1xf32, #tpu.memory_space<vmem>>, %arg45: memref<8x32xf32, #tpu.memory_space<vmem>>, %arg46: memref<8x8xf32, #tpu.memory_space<vmem>>) attributes {dimension_semantics = [#tpu.dimension_semantics<arbitrary>], iteration_bounds = array<i64: 1>, scalar_prefetch = 0 : i64, scratch_operands = 0 : i64, tpu.core_type = #tpu.core_type<tc>, window_params = [{pipeline_mode = #tpu.pipeline_mode<synchronous>, transform_indices = @transform_0, window_bounds = array<i64: 8, 32>}, {pipeline_mode = #tpu.pipeline_mode<synchronous>, transform_indices = @transform_1, window_bounds = array<i64: 8, 8>}, {pipeline_mode = #tpu.pipeline_mode<synchronous>, transform_indices = @transform_2, window_bounds = array<i64: 8, 8, 32>}, {pipeline_mode = #tpu.pipeline_mode<synchronous>, transform_indices = @transform_3, window_bounds = array<i64: 8, 8>}, {pipeline_mode = #tpu.pipeline_mode<synchronous>, transform_indices = @transform_4, window_bounds = array<i64: 8, 8>}, {pipeline_mode = #tpu.pipeline_mode<synchronous>, transform_indices = @transform_5, window_bounds = array<i64: 8, 32>}, {pipeline_mode = #tpu.pipeline_mode<synchronous>, transform_indices = @transform_6, window_bounds = array<i64: 1, 32>}, {pipeline_mode = #tpu.pipeline_mode<synchronous>, transform_indices = @transform_7, window_bounds = array<i64: 2, 32, 192>}, {pipeline_mode = #tpu.pipeline_mode<synchronous>, transform_indices = @transform_8, window_bounds = array<i64: 2, 32, 192>}, {pipeline_mode = #tpu.pipeline_mode<synchronous>, transform_indices = @transform_9, window_bounds = array<i64: 2, 1, 192>}, {pipeline_mode = #tpu.pipeline_mode<synchronous>, transform_indices = @transform_10, window_bounds = array<i64: 2, 32, 32>}, {pipeline_mode = #tpu.pipeline_mode<synchronous>, transform_indices = @transform_11, window_bounds = array<i64: 2, 1, 32>}, {pipeline_mode = #tpu.pipeline_mode<synchronous>, transform_indices = @transform_12, window_bounds = array<i64: 2, 1, 32>}, {pipeline_mode = #tpu.pipeline_mode<synchronous>, transform_indices = @transform_13, window_bounds = array<i64: 2, 1, 32>}, {pipeline_mode = #tpu.pipeline_mode<synchronous>, transform_indices = @transform_14, window_bounds = array<i64: 2, 1, 32>}, {pipeline_mode = #tpu.pipeline_mode<synchronous>, transform_indices = @transform_15, window_bounds = array<i64: 2, 1, 32>}, {pipeline_mode = #tpu.pipeline_mode<synchronous>, transform_indices = @transform_16, window_bounds = array<i64: 2, 2, 32, 32>}, {pipeline_mode = #tpu.pipeline_mode<synchronous>, transform_indices = @transform_17, window_bounds = array<i64: 2, 2, 1, 32>}, {pipeline_mode = #tpu.pipeline_mode<synchronous>, transform_indices = @transform_18, window_bounds = array<i64: 2, 32, 32>}, {pipeline_mode = #tpu.pipeline_mode<synchronous>, transform_indices = @transform_19, window_bounds = array<i64: 2, 1, 32>}, {pipeline_mode = #tpu.pipeline_mode<synchronous>, transform_indices = @transform_20, window_bounds = array<i64: 2, 32, 64>}, {pipeline_mode = #tpu.pipeline_mode<synchronous>, transform_indices = @transform_21, window_bounds = array<i64: 2, 32, 32>}, {pipeline_mode = #tpu.pipeline_mode<synchronous>, transform_indices = @transform_22, window_bounds = array<i64: 2, 32, 32>}, {pipeline_mode = #tpu.pipeline_mode<synchronous>, transform_indices = @transform_23, window_bounds = array<i64: 2, 1, 32>}, {pipeline_mode = #tpu.pipeline_mode<synchronous>, transform_indices = @transform_24, window_bounds = array<i64: 2, 32, 64>}, {pipeline_mode = #tpu.pipeline_mode<synchronous>, transform_indices = @transform_25, window_bounds = array<i64: 2, 1, 64>}, {pipeline_mode = #tpu.pipeline_mode<synchronous>, transform_indices = @transform_26, window_bounds = array<i64: 2, 64, 32>}, {pipeline_mode = #tpu.pipeline_mode<synchronous>, transform_indices = @transform_27, window_bounds = array<i64: 2, 1, 32>}, {pipeline_mode = #tpu.pipeline_mode<synchronous>, transform_indices = @transform_28, window_bounds = array<i64: 2, 1, 32>}, {pipeline_mode = #tpu.pipeline_mode<synchronous>, transform_indices = @transform_29, window_bounds = array<i64: 2, 1, 32>}, {pipeline_mode = #tpu.pipeline_mode<synchronous>, transform_indices = @transform_30, window_bounds = array<i64: 2, 1, 32>}, {pipeline_mode = #tpu.pipeline_mode<synchronous>, transform_indices = @transform_31, window_bounds = array<i64: 2, 1, 32>}, {pipeline_mode = #tpu.pipeline_mode<synchronous>, transform_indices = @transform_32, window_bounds = array<i64: 32, 8>}, {pipeline_mode = #tpu.pipeline_mode<synchronous>, transform_indices = @transform_33, window_bounds = array<i64: 1, 8>}, {pipeline_mode = #tpu.pipeline_mode<synchronous>, transform_indices = @transform_34, window_bounds = array<i64: 32, 32>}, {pipeline_mode = #tpu.pipeline_mode<synchronous>, transform_indices = @transform_35, window_bounds = array<i64: 8, 32>}, {pipeline_mode = #tpu.pipeline_mode<synchronous>, transform_indices = @transform_36, window_bounds = array<i64: 1, 32>}, {pipeline_mode = #tpu.pipeline_mode<synchronous>, transform_indices = @transform_37, window_bounds = array<i64: 32, 16>}, {pipeline_mode = #tpu.pipeline_mode<synchronous>, transform_indices = @transform_38, window_bounds = array<i64: 1, 16>}, {pipeline_mode = #tpu.pipeline_mode<synchronous>, transform_indices = @transform_39, window_bounds = array<i64: 16, 8>}, {pipeline_mode = #tpu.pipeline_mode<synchronous>, transform_indices = @transform_40, window_bounds = array<i64: 1, 8>}, {pipeline_mode = #tpu.pipeline_mode<synchronous>, transform_indices = @transform_41, window_bounds = array<i64: 8, 1>}, {pipeline_mode = #tpu.pipeline_mode<synchronous>, transform_indices = @transform_42, window_bounds = array<i64: 1, 1>}, {pipeline_mode = #tpu.pipeline_mode<synchronous>, transform_indices = @transform_43, window_bounds = array<i64: 1, 1>}, {pipeline_mode = #tpu.pipeline_mode<synchronous>, transform_indices = @transform_44, window_bounds = array<i64: 8, 32>}, {pipeline_mode = #tpu.pipeline_mode<synchronous>, transform_indices = @transform_45, window_bounds = array<i64: 8, 8>}]} {
    %c0 = arith.constant 0 : index
    %c0_0 = arith.constant 0 : index
    %0 = vector.load %arg1[%c0, %c0_0] : memref<8x32xf32, #tpu.memory_space<vmem>>, vector<8x32xf32>
    %c0_1 = arith.constant 0 : index
    %c0_2 = arith.constant 0 : index
    %1 = vector.load %arg4[%c0_1, %c0_2] : memref<8x8xf32, #tpu.memory_space<vmem>>, vector<8x8xf32>
    %c0_3 = arith.constant 0 : index
    %c0_4 = arith.constant 0 : index
    %c0_5 = arith.constant 0 : index
    %2 = vector.load %arg3[%c0_3, %c0_4, %c0_5] : memref<8x8x32xf32, #tpu.memory_space<vmem>>, vector<8x8x32xf32>
    %3 = vector.shape_cast %1 : vector<8x8xf32> to vector<8x8x1xf32>
    %c0_6 = arith.constant 0 : index
    %c0_7 = arith.constant 0 : index
    %4 = vector.load %arg2[%c0_6, %c0_7] : memref<8x8xf32, #tpu.memory_space<vmem>>, vector<8x8xf32>
    %c0_8 = arith.constant 0 : index
    %c0_9 = arith.constant 0 : index
    %5 = vector.load %arg6[%c0_8, %c0_9] : memref<8x32xf32, #tpu.memory_space<vmem>>, vector<8x32xf32>
    %cst = arith.constant dense<0.000000e+00> : vector<8x32xf32>
    %6 = tpu.matmul %4, %5, %cst {dimension_numbers = #tpu.dot_dimension_numbers<[1], [0], [0], [1], [0, 0, 1, 1], [], []>} : vector<8x8xf32>, vector<8x32xf32>, vector<8x32xf32> -> vector<8x32xf32>
    %c0_10 = arith.constant 0 : index
    %c0_11 = arith.constant 0 : index
    %7 = vector.load %arg7[%c0_10, %c0_11] : memref<1x32xf32, #tpu.memory_space<vmem>>, vector<1x32xf32>
    %8 = vector.broadcast %7 : vector<1x32xf32> to vector<8x32xf32>
    %9 = arith.addf %6, %8 : vector<8x32xf32>
    %c0_12 = arith.constant 0 : index
    %c0_13 = arith.constant 0 : index
    %c0_14 = arith.constant 0 : index
    %10 = vector.load %arg8[%c0_12, %c0_13, %c0_14] : memref<2x32x192xf32, #tpu.memory_space<vmem>>, vector<1x32x192xf32>
    %11 = vector.shape_cast %10 : vector<1x32x192xf32> to vector<32x192xf32>
    %cst_15 = arith.constant dense<0.000000e+00> : vector<8x192xf32>
    %12 = tpu.matmul %0, %11, %cst_15 {dimension_numbers = #tpu.dot_dimension_numbers<[1], [0], [0], [1], [0, 0, 1, 1], [], []>} : vector<8x32xf32>, vector<32x192xf32>, vector<8x192xf32> -> vector<8x192xf32>
    %c0_16 = arith.constant 0 : index
    %c0_17 = arith.constant 0 : index
    %c0_18 = arith.constant 0 : index
    %13 = vector.load %arg9[%c0_16, %c0_17, %c0_18] : memref<2x32x192xf32, #tpu.memory_space<vmem>>, vector<1x32x192xf32>
    %14 = vector.shape_cast %13 : vector<1x32x192xf32> to vector<32x192xf32>
    %cst_19 = arith.constant dense<0.000000e+00> : vector<8x192xf32>
    %15 = tpu.matmul %9, %14, %cst_19 {dimension_numbers = #tpu.dot_dimension_numbers<[1], [0], [0], [1], [0, 0, 1, 1], [], []>} : vector<8x32xf32>, vector<32x192xf32>, vector<8x192xf32> -> vector<8x192xf32>
    %16 = arith.addf %12, %15 : vector<8x192xf32>
    %c0_20 = arith.constant 0 : index
    %c0_21 = arith.constant 0 : index
    %c0_22 = arith.constant 0 : index
    %17 = vector.load %arg10[%c0_20, %c0_21, %c0_22] : memref<2x1x192xf32, #tpu.memory_space<vmem>>, vector<1x1x192xf32>
    %18 = vector.shape_cast %17 : vector<1x1x192xf32> to vector<1x192xf32>
    %19 = vector.broadcast %18 : vector<1x192xf32> to vector<8x192xf32>
    %20 = arith.addf %16, %19 : vector<8x192xf32>
    %21 = vector.extract_strided_slice %20 {offsets = [0, 0], sizes = [8, 32], strides = [1, 1]} : vector<8x192xf32> to vector<8x32xf32>
    %22 = vector.extract_strided_slice %20 {offsets = [0, 32], sizes = [8, 32], strides = [1, 1]} : vector<8x192xf32> to vector<8x32xf32>
    %23 = vector.extract_strided_slice %20 {offsets = [0, 64], sizes = [8, 32], strides = [1, 1]} : vector<8x192xf32> to vector<8x32xf32>
    %24 = vector.extract_strided_slice %20 {offsets = [0, 96], sizes = [8, 32], strides = [1, 1]} : vector<8x192xf32> to vector<8x32xf32>
    %25 = vector.extract_strided_slice %20 {offsets = [0, 128], sizes = [8, 32], strides = [1, 1]} : vector<8x192xf32> to vector<8x32xf32>
    %26 = vector.extract_strided_slice %20 {offsets = [0, 160], sizes = [8, 32], strides = [1, 1]} : vector<8x192xf32> to vector<8x32xf32>
    %27 = vector.shape_cast %2 : vector<8x8x32xf32> to vector<64x32xf32>
    %c0_23 = arith.constant 0 : index
    %c0_24 = arith.constant 0 : index
    %c0_25 = arith.constant 0 : index
    %28 = vector.load %arg11[%c0_23, %c0_24, %c0_25] : memref<2x32x32xf32, #tpu.memory_space<vmem>>, vector<1x32x32xf32>
    %29 = vector.shape_cast %28 : vector<1x32x32xf32> to vector<32x32xf32>
    %cst_26 = arith.constant dense<0.000000e+00> : vector<64x32xf32>
    %30 = tpu.matmul %27, %29, %cst_26 {dimension_numbers = #tpu.dot_dimension_numbers<[1], [0], [0], [1], [0, 0, 1, 1], [], []>} : vector<64x32xf32>, vector<32x32xf32>, vector<64x32xf32> -> vector<64x32xf32>
    %c0_27 = arith.constant 0 : index
    %c0_28 = arith.constant 0 : index
    %c0_29 = arith.constant 0 : index
    %31 = vector.load %arg12[%c0_27, %c0_28, %c0_29] : memref<2x1x32xf32, #tpu.memory_space<vmem>>, vector<1x1x32xf32>
    %32 = vector.shape_cast %31 : vector<1x1x32xf32> to vector<1x32xf32>
    %33 = vector.broadcast %32 : vector<1x32xf32> to vector<64x32xf32>
    %34 = arith.addf %30, %33 : vector<64x32xf32>
    %35 = vector.shape_cast %34 : vector<64x32xf32> to vector<8x8x32xf32>
    %36 = vector.shape_cast %23 : vector<8x32xf32> to vector<1x8x32xf32>
    %37 = vector.shape_cast %24 : vector<8x32xf32> to vector<8x1x32xf32>
    %38 = vector.broadcast %36 : vector<1x8x32xf32> to vector<8x8x32xf32>
    %39 = vector.broadcast %37 : vector<8x1x32xf32> to vector<8x8x32xf32>
    %40 = arith.addf %38, %39 : vector<8x8x32xf32>
    %41 = arith.addf %40, %35 : vector<8x8x32xf32>
    %42 = arith.negf %41 : vector<8x8x32xf32>
    %43 = math.exp %42 : vector<8x8x32xf32>
    %cst_30 = arith.constant 1.000000e+00 : f32
    %44 = vector.broadcast %cst_30 : f32 to vector<8x8x32xf32>
    %45 = arith.addf %44, %43 : vector<8x8x32xf32>
    %46 = arith.divf %44, %45 : vector<8x8x32xf32>
    %47 = vector.broadcast %3 : vector<8x8x1xf32> to vector<8x8x32xf32>
    %48 = arith.mulf %46, %47 : vector<8x8x32xf32>
    %cst_31 = arith.constant dense<0.000000e+00> : vector<8x32xf32>
    %49 = vector.multi_reduction <add>, %48, %cst_31 [1] : vector<8x8x32xf32> to vector<8x32xf32>
    %cst_32 = arith.constant 9.99999997E-7 : f32
    %50 = vector.broadcast %cst_32 : f32 to vector<8x32xf32>
    %51 = arith.addf %49, %50 : vector<8x32xf32>
    %52 = tpu.reciprocal %51 {approx = true} : vector<8x32xf32> -> vector<8x32xf32>
    %53 = vector.shape_cast %22 : vector<8x32xf32> to vector<1x8x32xf32>
    %54 = vector.broadcast %53 : vector<1x8x32xf32> to vector<8x8x32xf32>
    %55 = arith.mulf %48, %54 : vector<8x8x32xf32>
    %cst_33 = arith.constant dense<0.000000e+00> : vector<8x32xf32>
    %56 = vector.multi_reduction <add>, %55, %cst_33 [1] : vector<8x8x32xf32> to vector<8x32xf32>
    %57 = arith.mulf %56, %52 : vector<8x32xf32>
    %58 = arith.addf %21, %57 : vector<8x32xf32>
    %59 = vector.shape_cast %26 : vector<8x32xf32> to vector<1x8x32xf32>
    %60 = vector.broadcast %59 : vector<1x8x32xf32> to vector<8x8x32xf32>
    %61 = arith.mulf %48, %60 : vector<8x8x32xf32>
    %cst_34 = arith.constant dense<0.000000e+00> : vector<8x32xf32>
    %62 = vector.multi_reduction <add>, %61, %cst_34 [1] : vector<8x8x32xf32> to vector<8x32xf32>
    %63 = arith.mulf %62, %52 : vector<8x32xf32>
    %64 = arith.addf %25, %63 : vector<8x32xf32>
    %c0_35 = arith.constant 0 : index
    %c0_36 = arith.constant 0 : index
    %c0_37 = arith.constant 0 : index
    %65 = vector.load %arg13[%c0_35, %c0_36, %c0_37] : memref<2x1x32xf32, #tpu.memory_space<vmem>>, vector<1x1x32xf32>
    %66 = vector.shape_cast %65 : vector<1x1x32xf32> to vector<1x32xf32>
    %67 = vector.broadcast %66 : vector<1x32xf32> to vector<8x32xf32>
    %68 = arith.mulf %58, %67 : vector<8x32xf32>
    %c0_38 = arith.constant 0 : index
    %c0_39 = arith.constant 0 : index
    %c0_40 = arith.constant 0 : index
    %69 = vector.load %arg14[%c0_38, %c0_39, %c0_40] : memref<2x1x32xf32, #tpu.memory_space<vmem>>, vector<1x1x32xf32>
    %70 = vector.shape_cast %69 : vector<1x1x32xf32> to vector<1x32xf32>
    %71 = vector.broadcast %70 : vector<1x32xf32> to vector<8x32xf32>
    %72 = arith.addf %68, %71 : vector<8x32xf32>
    %cst_41 = arith.constant 0.000000e+00 : f32
    %73 = vector.broadcast %cst_41 : f32 to vector<8x32xf32>
    %74 = arith.maximumf %72, %73 : vector<8x32xf32>
    %75 = arith.addf %0, %74 : vector<8x32xf32>
    %76 = math.tanh %64 : vector<8x32xf32>
    %77 = arith.addf %9, %76 : vector<8x32xf32>
    %c0_42 = arith.constant 0 : index
    %c0_43 = arith.constant 0 : index
    %c0_44 = arith.constant 0 : index
    %78 = vector.load %arg15[%c0_42, %c0_43, %c0_44] : memref<2x1x32xf32, #tpu.memory_space<vmem>>, vector<1x1x32xf32>
    %79 = vector.shape_cast %78 : vector<1x1x32xf32> to vector<1x32xf32>
    %80 = vector.shape_cast %79 : vector<1x32xf32> to vector<1x1x32xf32>
    %81 = vector.broadcast %80 : vector<1x1x32xf32> to vector<8x8x32xf32>
    %82 = arith.mulf %41, %81 : vector<8x8x32xf32>
    %c0_45 = arith.constant 0 : index
    %c0_46 = arith.constant 0 : index
    %c0_47 = arith.constant 0 : index
    %83 = vector.load %arg16[%c0_45, %c0_46, %c0_47] : memref<2x1x32xf32, #tpu.memory_space<vmem>>, vector<1x1x32xf32>
    %84 = vector.shape_cast %83 : vector<1x1x32xf32> to vector<1x32xf32>
    %85 = vector.shape_cast %84 : vector<1x32xf32> to vector<1x1x32xf32>
    %86 = vector.broadcast %85 : vector<1x1x32xf32> to vector<8x8x32xf32>
    %87 = arith.addf %82, %86 : vector<8x8x32xf32>
    %cst_48 = arith.constant 0.000000e+00 : f32
    %88 = vector.broadcast %cst_48 : f32 to vector<8x8x32xf32>
    %89 = arith.maximumf %87, %88 : vector<8x8x32xf32>
    %90 = arith.addf %2, %89 : vector<8x8x32xf32>
    %91 = vector.broadcast %3 : vector<8x8x1xf32> to vector<8x8x32xf32>
    %92 = arith.mulf %90, %91 : vector<8x8x32xf32>
    %c1 = arith.constant 1 : index
    %c0_49 = arith.constant 0 : index
    %c0_50 = arith.constant 0 : index
    %93 = vector.load %arg8[%c1, %c0_49, %c0_50] : memref<2x32x192xf32, #tpu.memory_space<vmem>>, vector<1x32x192xf32>
    %94 = vector.shape_cast %93 : vector<1x32x192xf32> to vector<32x192xf32>
    %cst_51 = arith.constant dense<0.000000e+00> : vector<8x192xf32>
    %95 = tpu.matmul %75, %94, %cst_51 {dimension_numbers = #tpu.dot_dimension_numbers<[1], [0], [0], [1], [0, 0, 1, 1], [], []>} : vector<8x32xf32>, vector<32x192xf32>, vector<8x192xf32> -> vector<8x192xf32>
    %c1_52 = arith.constant 1 : index
    %c0_53 = arith.constant 0 : index
    %c0_54 = arith.constant 0 : index
    %96 = vector.load %arg9[%c1_52, %c0_53, %c0_54] : memref<2x32x192xf32, #tpu.memory_space<vmem>>, vector<1x32x192xf32>
    %97 = vector.shape_cast %96 : vector<1x32x192xf32> to vector<32x192xf32>
    %cst_55 = arith.constant dense<0.000000e+00> : vector<8x192xf32>
    %98 = tpu.matmul %77, %97, %cst_55 {dimension_numbers = #tpu.dot_dimension_numbers<[1], [0], [0], [1], [0, 0, 1, 1], [], []>} : vector<8x32xf32>, vector<32x192xf32>, vector<8x192xf32> -> vector<8x192xf32>
    %99 = arith.addf %95, %98 : vector<8x192xf32>
    %c1_56 = arith.constant 1 : index
    %c0_57 = arith.constant 0 : index
    %c0_58 = arith.constant 0 : index
    %100 = vector.load %arg10[%c1_56, %c0_57, %c0_58] : memref<2x1x192xf32, #tpu.memory_space<vmem>>, vector<1x1x192xf32>
    %101 = vector.shape_cast %100 : vector<1x1x192xf32> to vector<1x192xf32>
    %102 = vector.broadcast %101 : vector<1x192xf32> to vector<8x192xf32>
    %103 = arith.addf %99, %102 : vector<8x192xf32>
    %104 = vector.extract_strided_slice %103 {offsets = [0, 0], sizes = [8, 32], strides = [1, 1]} : vector<8x192xf32> to vector<8x32xf32>
    %105 = vector.extract_strided_slice %103 {offsets = [0, 32], sizes = [8, 32], strides = [1, 1]} : vector<8x192xf32> to vector<8x32xf32>
    %106 = vector.extract_strided_slice %103 {offsets = [0, 64], sizes = [8, 32], strides = [1, 1]} : vector<8x192xf32> to vector<8x32xf32>
    %107 = vector.extract_strided_slice %103 {offsets = [0, 96], sizes = [8, 32], strides = [1, 1]} : vector<8x192xf32> to vector<8x32xf32>
    %108 = vector.extract_strided_slice %103 {offsets = [0, 128], sizes = [8, 32], strides = [1, 1]} : vector<8x192xf32> to vector<8x32xf32>
    %109 = vector.extract_strided_slice %103 {offsets = [0, 160], sizes = [8, 32], strides = [1, 1]} : vector<8x192xf32> to vector<8x32xf32>
    %110 = vector.shape_cast %92 : vector<8x8x32xf32> to vector<64x32xf32>
    %c1_59 = arith.constant 1 : index
    %c0_60 = arith.constant 0 : index
    %c0_61 = arith.constant 0 : index
    %111 = vector.load %arg11[%c1_59, %c0_60, %c0_61] : memref<2x32x32xf32, #tpu.memory_space<vmem>>, vector<1x32x32xf32>
    %112 = vector.shape_cast %111 : vector<1x32x32xf32> to vector<32x32xf32>
    %cst_62 = arith.constant dense<0.000000e+00> : vector<64x32xf32>
    %113 = tpu.matmul %110, %112, %cst_62 {dimension_numbers = #tpu.dot_dimension_numbers<[1], [0], [0], [1], [0, 0, 1, 1], [], []>} : vector<64x32xf32>, vector<32x32xf32>, vector<64x32xf32> -> vector<64x32xf32>
    %c1_63 = arith.constant 1 : index
    %c0_64 = arith.constant 0 : index
    %c0_65 = arith.constant 0 : index
    %114 = vector.load %arg12[%c1_63, %c0_64, %c0_65] : memref<2x1x32xf32, #tpu.memory_space<vmem>>, vector<1x1x32xf32>
    %115 = vector.shape_cast %114 : vector<1x1x32xf32> to vector<1x32xf32>
    %116 = vector.broadcast %115 : vector<1x32xf32> to vector<64x32xf32>
    %117 = arith.addf %113, %116 : vector<64x32xf32>
    %118 = vector.shape_cast %117 : vector<64x32xf32> to vector<8x8x32xf32>
    %119 = vector.shape_cast %106 : vector<8x32xf32> to vector<1x8x32xf32>
    %120 = vector.shape_cast %107 : vector<8x32xf32> to vector<8x1x32xf32>
    %121 = vector.broadcast %119 : vector<1x8x32xf32> to vector<8x8x32xf32>
    %122 = vector.broadcast %120 : vector<8x1x32xf32> to vector<8x8x32xf32>
    %123 = arith.addf %121, %122 : vector<8x8x32xf32>
    %124 = arith.addf %123, %118 : vector<8x8x32xf32>
    %125 = arith.negf %124 : vector<8x8x32xf32>
    %126 = math.exp %125 : vector<8x8x32xf32>
    %cst_66 = arith.constant 1.000000e+00 : f32
    %127 = vector.broadcast %cst_66 : f32 to vector<8x8x32xf32>
    %128 = arith.addf %127, %126 : vector<8x8x32xf32>
    %129 = arith.divf %127, %128 : vector<8x8x32xf32>
    %130 = vector.broadcast %3 : vector<8x8x1xf32> to vector<8x8x32xf32>
    %131 = arith.mulf %129, %130 : vector<8x8x32xf32>
    %cst_67 = arith.constant dense<0.000000e+00> : vector<8x32xf32>
    %132 = vector.multi_reduction <add>, %131, %cst_67 [1] : vector<8x8x32xf32> to vector<8x32xf32>
    %cst_68 = arith.constant 9.99999997E-7 : f32
    %133 = vector.broadcast %cst_68 : f32 to vector<8x32xf32>
    %134 = arith.addf %132, %133 : vector<8x32xf32>
    %135 = tpu.reciprocal %134 {approx = true} : vector<8x32xf32> -> vector<8x32xf32>
    %136 = vector.shape_cast %105 : vector<8x32xf32> to vector<1x8x32xf32>
    %137 = vector.broadcast %136 : vector<1x8x32xf32> to vector<8x8x32xf32>
    %138 = arith.mulf %131, %137 : vector<8x8x32xf32>
    %cst_69 = arith.constant dense<0.000000e+00> : vector<8x32xf32>
    %139 = vector.multi_reduction <add>, %138, %cst_69 [1] : vector<8x8x32xf32> to vector<8x32xf32>
    %140 = arith.mulf %139, %135 : vector<8x32xf32>
    %141 = arith.addf %104, %140 : vector<8x32xf32>
    %142 = vector.shape_cast %109 : vector<8x32xf32> to vector<1x8x32xf32>
    %143 = vector.broadcast %142 : vector<1x8x32xf32> to vector<8x8x32xf32>
    %144 = arith.mulf %131, %143 : vector<8x8x32xf32>
    %cst_70 = arith.constant dense<0.000000e+00> : vector<8x32xf32>
    %145 = vector.multi_reduction <add>, %144, %cst_70 [1] : vector<8x8x32xf32> to vector<8x32xf32>
    %146 = arith.mulf %145, %135 : vector<8x32xf32>
    %147 = arith.addf %108, %146 : vector<8x32xf32>
    %c1_71 = arith.constant 1 : index
    %c0_72 = arith.constant 0 : index
    %c0_73 = arith.constant 0 : index
    %148 = vector.load %arg13[%c1_71, %c0_72, %c0_73] : memref<2x1x32xf32, #tpu.memory_space<vmem>>, vector<1x1x32xf32>
    %149 = vector.shape_cast %148 : vector<1x1x32xf32> to vector<1x32xf32>
    %150 = vector.broadcast %149 : vector<1x32xf32> to vector<8x32xf32>
    %151 = arith.mulf %141, %150 : vector<8x32xf32>
    %c1_74 = arith.constant 1 : index
    %c0_75 = arith.constant 0 : index
    %c0_76 = arith.constant 0 : index
    %152 = vector.load %arg14[%c1_74, %c0_75, %c0_76] : memref<2x1x32xf32, #tpu.memory_space<vmem>>, vector<1x1x32xf32>
    %153 = vector.shape_cast %152 : vector<1x1x32xf32> to vector<1x32xf32>
    %154 = vector.broadcast %153 : vector<1x32xf32> to vector<8x32xf32>
    %155 = arith.addf %151, %154 : vector<8x32xf32>
    %cst_77 = arith.constant 0.000000e+00 : f32
    %156 = vector.broadcast %cst_77 : f32 to vector<8x32xf32>
    %157 = arith.maximumf %155, %156 : vector<8x32xf32>
    %158 = arith.addf %75, %157 : vector<8x32xf32>
    %159 = math.tanh %147 : vector<8x32xf32>
    %160 = arith.addf %77, %159 : vector<8x32xf32>
    %c0_78 = arith.constant 0 : index
    %c0_79 = arith.constant 0 : index
    %161 = vector.load %arg5[%c0_78, %c0_79] : memref<8x8xf32, #tpu.memory_space<vmem>>, vector<8x8xf32>
    %cst_80 = arith.constant dense<0.000000e+00> : vector<8x32xf32>
    %162 = tpu.matmul %161, %158, %cst_80 {dimension_numbers = #tpu.dot_dimension_numbers<[1], [0], [0], [1], [0, 0, 1, 1], [], []>} : vector<8x8xf32>, vector<8x32xf32>, vector<8x32xf32> -> vector<8x32xf32>
    %c0_81 = arith.constant 0 : index
    %c0_82 = arith.constant 0 : index
    %c0_83 = arith.constant 0 : index
    %c0_84 = arith.constant 0 : index
    %163 = vector.load %arg17[%c0_81, %c0_82, %c0_83, %c0_84] : memref<2x2x32x32xf32, #tpu.memory_space<vmem>>, vector<1x1x32x32xf32>
    %164 = vector.shape_cast %163 : vector<1x1x32x32xf32> to vector<32x32xf32>
    %cst_85 = arith.constant dense<0.000000e+00> : vector<8x32xf32>
    %165 = tpu.matmul %162, %164, %cst_85 {dimension_numbers = #tpu.dot_dimension_numbers<[1], [0], [0], [1], [0, 0, 1, 1], [], []>} : vector<8x32xf32>, vector<32x32xf32>, vector<8x32xf32> -> vector<8x32xf32>
    %c0_86 = arith.constant 0 : index
    %c0_87 = arith.constant 0 : index
    %c0_88 = arith.constant 0 : index
    %c0_89 = arith.constant 0 : index
    %166 = vector.load %arg18[%c0_86, %c0_87, %c0_88, %c0_89] : memref<2x2x1x32xf32, #tpu.memory_space<vmem>>, vector<1x1x1x32xf32>
    %167 = vector.shape_cast %166 : vector<1x1x1x32xf32> to vector<1x32xf32>
    %168 = vector.broadcast %167 : vector<1x32xf32> to vector<8x32xf32>
    %169 = arith.addf %165, %168 : vector<8x32xf32>
    %cst_90 = arith.constant 0.000000e+00 : f32
    %170 = vector.broadcast %cst_90 : f32 to vector<8x32xf32>
    %171 = arith.maximumf %169, %170 : vector<8x32xf32>
    %cst_91 = arith.constant dense<0.000000e+00> : vector<8x32xf32>
    %172 = tpu.matmul %161, %171, %cst_91 {dimension_numbers = #tpu.dot_dimension_numbers<[1], [0], [0], [1], [0, 0, 1, 1], [], []>} : vector<8x8xf32>, vector<8x32xf32>, vector<8x32xf32> -> vector<8x32xf32>
    %c0_92 = arith.constant 0 : index
    %c1_93 = arith.constant 1 : index
    %c0_94 = arith.constant 0 : index
    %c0_95 = arith.constant 0 : index
    %173 = vector.load %arg17[%c0_92, %c1_93, %c0_94, %c0_95] : memref<2x2x32x32xf32, #tpu.memory_space<vmem>>, vector<1x1x32x32xf32>
    %174 = vector.shape_cast %173 : vector<1x1x32x32xf32> to vector<32x32xf32>
    %cst_96 = arith.constant dense<0.000000e+00> : vector<8x32xf32>
    %175 = tpu.matmul %172, %174, %cst_96 {dimension_numbers = #tpu.dot_dimension_numbers<[1], [0], [0], [1], [0, 0, 1, 1], [], []>} : vector<8x32xf32>, vector<32x32xf32>, vector<8x32xf32> -> vector<8x32xf32>
    %c0_97 = arith.constant 0 : index
    %c1_98 = arith.constant 1 : index
    %c0_99 = arith.constant 0 : index
    %c0_100 = arith.constant 0 : index
    %176 = vector.load %arg18[%c0_97, %c1_98, %c0_99, %c0_100] : memref<2x2x1x32xf32, #tpu.memory_space<vmem>>, vector<1x1x1x32xf32>
    %177 = vector.shape_cast %176 : vector<1x1x1x32xf32> to vector<1x32xf32>
    %178 = vector.broadcast %177 : vector<1x32xf32> to vector<8x32xf32>
    %179 = arith.addf %175, %178 : vector<8x32xf32>
    %cst_101 = arith.constant 0.000000e+00 : f32
    %180 = vector.broadcast %cst_101 : f32 to vector<8x32xf32>
    %181 = arith.maximumf %179, %180 : vector<8x32xf32>
    %c0_102 = arith.constant 0 : index
    %c0_103 = arith.constant 0 : index
    %c0_104 = arith.constant 0 : index
    %182 = vector.load %arg19[%c0_102, %c0_103, %c0_104] : memref<2x32x32xf32, #tpu.memory_space<vmem>>, vector<1x32x32xf32>
    %183 = vector.shape_cast %182 : vector<1x32x32xf32> to vector<32x32xf32>
    %cst_105 = arith.constant dense<0.000000e+00> : vector<8x32xf32>
    %184 = tpu.matmul %181, %183, %cst_105 {dimension_numbers = #tpu.dot_dimension_numbers<[1], [0], [0], [1], [0, 0, 1, 1], [], []>} : vector<8x32xf32>, vector<32x32xf32>, vector<8x32xf32> -> vector<8x32xf32>
    %c0_106 = arith.constant 0 : index
    %c0_107 = arith.constant 0 : index
    %c0_108 = arith.constant 0 : index
    %185 = vector.load %arg20[%c0_106, %c0_107, %c0_108] : memref<2x1x32xf32, #tpu.memory_space<vmem>>, vector<1x1x32xf32>
    %186 = vector.shape_cast %185 : vector<1x1x32xf32> to vector<1x32xf32>
    %187 = vector.broadcast %186 : vector<1x32xf32> to vector<8x32xf32>
    %188 = arith.addf %184, %187 : vector<8x32xf32>
    %c0_109 = arith.constant 0 : index
    %c0_110 = arith.constant 0 : index
    %c0_111 = arith.constant 0 : index
    %189 = vector.load %arg21[%c0_109, %c0_110, %c0_111] : memref<2x32x64xf32, #tpu.memory_space<vmem>>, vector<1x32x64xf32>
    %190 = vector.shape_cast %189 : vector<1x32x64xf32> to vector<32x64xf32>
    %cst_112 = arith.constant dense<0.000000e+00> : vector<8x64xf32>
    %191 = tpu.matmul %188, %190, %cst_112 {dimension_numbers = #tpu.dot_dimension_numbers<[1], [0], [0], [1], [0, 0, 1, 1], [], []>} : vector<8x32xf32>, vector<32x64xf32>, vector<8x64xf32> -> vector<8x64xf32>
    %192 = vector.extract_strided_slice %191 {offsets = [0, 0], sizes = [8, 32], strides = [1, 1]} : vector<8x64xf32> to vector<8x32xf32>
    %193 = vector.extract_strided_slice %191 {offsets = [0, 32], sizes = [8, 32], strides = [1, 1]} : vector<8x64xf32> to vector<8x32xf32>
    %c0_113 = arith.constant 0 : index
    %c0_114 = arith.constant 0 : index
    %c0_115 = arith.constant 0 : index
    %194 = vector.load %arg22[%c0_113, %c0_114, %c0_115] : memref<2x32x32xf32, #tpu.memory_space<vmem>>, vector<1x32x32xf32>
    %195 = vector.shape_cast %194 : vector<1x32x32xf32> to vector<32x32xf32>
    %cst_116 = arith.constant dense<0.000000e+00> : vector<8x32xf32>
    %196 = tpu.matmul %158, %195, %cst_116 {dimension_numbers = #tpu.dot_dimension_numbers<[1], [0], [0], [1], [0, 0, 1, 1], [], []>} : vector<8x32xf32>, vector<32x32xf32>, vector<8x32xf32> -> vector<8x32xf32>
    %197 = vector.extract_strided_slice %192 {offsets = [0, 0], sizes = [8, 8], strides = [1, 1]} : vector<8x32xf32> to vector<8x8xf32>
    %198 = vector.extract_strided_slice %193 {offsets = [0, 0], sizes = [8, 8], strides = [1, 1]} : vector<8x32xf32> to vector<8x8xf32>
    %cst_117 = arith.constant dense<0.000000e+00> : vector<8x8xf32>
    %199 = tpu.matmul %197, %198, %cst_117 {dimension_numbers = #tpu.dot_dimension_numbers<[1], [1], [0], [0], [0, 0, 1, 0], [], []>} : vector<8x8xf32>, vector<8x8xf32>, vector<8x8xf32> -> vector<8x8xf32>
    %cst_118 = arith.constant 0.353553385 : f32
    %200 = vector.broadcast %cst_118 : f32 to vector<8x8xf32>
    %201 = arith.mulf %199, %200 : vector<8x8xf32>
    %cst_119 = arith.constant dense<0xFF800000> : vector<8xf32>
    %202 = vector.multi_reduction <maximumf>, %201, %cst_119 [1] : vector<8x8xf32> to vector<8xf32>
    %203 = vector.shape_cast %202 : vector<8xf32> to vector<8x1xf32>
    %204 = vector.broadcast %203 : vector<8x1xf32> to vector<8x8xf32>
    %205 = arith.subf %201, %204 : vector<8x8xf32>
    %206 = math.exp %205 : vector<8x8xf32>
    %cst_120 = arith.constant dense<0.000000e+00> : vector<8xf32>
    %207 = vector.multi_reduction <add>, %206, %cst_120 [1] : vector<8x8xf32> to vector<8xf32>
    %208 = vector.shape_cast %207 : vector<8xf32> to vector<8x1xf32>
    %209 = tpu.reciprocal %208 {approx = true} : vector<8x1xf32> -> vector<8x1xf32>
    %210 = vector.broadcast %209 : vector<8x1xf32> to vector<8x8xf32>
    %211 = arith.mulf %206, %210 : vector<8x8xf32>
    %212 = vector.extract_strided_slice %196 {offsets = [0, 0], sizes = [8, 8], strides = [1, 1]} : vector<8x32xf32> to vector<8x8xf32>
    %cst_121 = arith.constant dense<0.000000e+00> : vector<8x8xf32>
    %213 = tpu.matmul %211, %212, %cst_121 {dimension_numbers = #tpu.dot_dimension_numbers<[1], [0], [0], [1], [0, 0, 1, 1], [], []>} : vector<8x8xf32>, vector<8x8xf32>, vector<8x8xf32> -> vector<8x8xf32>
    %214 = vector.extract_strided_slice %192 {offsets = [0, 8], sizes = [8, 8], strides = [1, 1]} : vector<8x32xf32> to vector<8x8xf32>
    %215 = vector.extract_strided_slice %193 {offsets = [0, 8], sizes = [8, 8], strides = [1, 1]} : vector<8x32xf32> to vector<8x8xf32>
    %cst_122 = arith.constant dense<0.000000e+00> : vector<8x8xf32>
    %216 = tpu.matmul %214, %215, %cst_122 {dimension_numbers = #tpu.dot_dimension_numbers<[1], [1], [0], [0], [0, 0, 1, 0], [], []>} : vector<8x8xf32>, vector<8x8xf32>, vector<8x8xf32> -> vector<8x8xf32>
    %cst_123 = arith.constant 0.353553385 : f32
    %217 = vector.broadcast %cst_123 : f32 to vector<8x8xf32>
    %218 = arith.mulf %216, %217 : vector<8x8xf32>
    %cst_124 = arith.constant dense<0xFF800000> : vector<8xf32>
    %219 = vector.multi_reduction <maximumf>, %218, %cst_124 [1] : vector<8x8xf32> to vector<8xf32>
    %220 = vector.shape_cast %219 : vector<8xf32> to vector<8x1xf32>
    %221 = vector.broadcast %220 : vector<8x1xf32> to vector<8x8xf32>
    %222 = arith.subf %218, %221 : vector<8x8xf32>
    %223 = math.exp %222 : vector<8x8xf32>
    %cst_125 = arith.constant dense<0.000000e+00> : vector<8xf32>
    %224 = vector.multi_reduction <add>, %223, %cst_125 [1] : vector<8x8xf32> to vector<8xf32>
    %225 = vector.shape_cast %224 : vector<8xf32> to vector<8x1xf32>
    %226 = tpu.reciprocal %225 {approx = true} : vector<8x1xf32> -> vector<8x1xf32>
    %227 = vector.broadcast %226 : vector<8x1xf32> to vector<8x8xf32>
    %228 = arith.mulf %223, %227 : vector<8x8xf32>
    %229 = vector.extract_strided_slice %196 {offsets = [0, 8], sizes = [8, 8], strides = [1, 1]} : vector<8x32xf32> to vector<8x8xf32>
    %cst_126 = arith.constant dense<0.000000e+00> : vector<8x8xf32>
    %230 = tpu.matmul %228, %229, %cst_126 {dimension_numbers = #tpu.dot_dimension_numbers<[1], [0], [0], [1], [0, 0, 1, 1], [], []>} : vector<8x8xf32>, vector<8x8xf32>, vector<8x8xf32> -> vector<8x8xf32>
    %231 = vector.extract_strided_slice %192 {offsets = [0, 16], sizes = [8, 8], strides = [1, 1]} : vector<8x32xf32> to vector<8x8xf32>
    %232 = vector.extract_strided_slice %193 {offsets = [0, 16], sizes = [8, 8], strides = [1, 1]} : vector<8x32xf32> to vector<8x8xf32>
    %cst_127 = arith.constant dense<0.000000e+00> : vector<8x8xf32>
    %233 = tpu.matmul %231, %232, %cst_127 {dimension_numbers = #tpu.dot_dimension_numbers<[1], [1], [0], [0], [0, 0, 1, 0], [], []>} : vector<8x8xf32>, vector<8x8xf32>, vector<8x8xf32> -> vector<8x8xf32>
    %cst_128 = arith.constant 0.353553385 : f32
    %234 = vector.broadcast %cst_128 : f32 to vector<8x8xf32>
    %235 = arith.mulf %233, %234 : vector<8x8xf32>
    %cst_129 = arith.constant dense<0xFF800000> : vector<8xf32>
    %236 = vector.multi_reduction <maximumf>, %235, %cst_129 [1] : vector<8x8xf32> to vector<8xf32>
    %237 = vector.shape_cast %236 : vector<8xf32> to vector<8x1xf32>
    %238 = vector.broadcast %237 : vector<8x1xf32> to vector<8x8xf32>
    %239 = arith.subf %235, %238 : vector<8x8xf32>
    %240 = math.exp %239 : vector<8x8xf32>
    %cst_130 = arith.constant dense<0.000000e+00> : vector<8xf32>
    %241 = vector.multi_reduction <add>, %240, %cst_130 [1] : vector<8x8xf32> to vector<8xf32>
    %242 = vector.shape_cast %241 : vector<8xf32> to vector<8x1xf32>
    %243 = tpu.reciprocal %242 {approx = true} : vector<8x1xf32> -> vector<8x1xf32>
    %244 = vector.broadcast %243 : vector<8x1xf32> to vector<8x8xf32>
    %245 = arith.mulf %240, %244 : vector<8x8xf32>
    %246 = vector.extract_strided_slice %196 {offsets = [0, 16], sizes = [8, 8], strides = [1, 1]} : vector<8x32xf32> to vector<8x8xf32>
    %cst_131 = arith.constant dense<0.000000e+00> : vector<8x8xf32>
    %247 = tpu.matmul %245, %246, %cst_131 {dimension_numbers = #tpu.dot_dimension_numbers<[1], [0], [0], [1], [0, 0, 1, 1], [], []>} : vector<8x8xf32>, vector<8x8xf32>, vector<8x8xf32> -> vector<8x8xf32>
    %248 = vector.extract_strided_slice %192 {offsets = [0, 24], sizes = [8, 8], strides = [1, 1]} : vector<8x32xf32> to vector<8x8xf32>
    %249 = vector.extract_strided_slice %193 {offsets = [0, 24], sizes = [8, 8], strides = [1, 1]} : vector<8x32xf32> to vector<8x8xf32>
    %cst_132 = arith.constant dense<0.000000e+00> : vector<8x8xf32>
    %250 = tpu.matmul %248, %249, %cst_132 {dimension_numbers = #tpu.dot_dimension_numbers<[1], [1], [0], [0], [0, 0, 1, 0], [], []>} : vector<8x8xf32>, vector<8x8xf32>, vector<8x8xf32> -> vector<8x8xf32>
    %cst_133 = arith.constant 0.353553385 : f32
    %251 = vector.broadcast %cst_133 : f32 to vector<8x8xf32>
    %252 = arith.mulf %250, %251 : vector<8x8xf32>
    %cst_134 = arith.constant dense<0xFF800000> : vector<8xf32>
    %253 = vector.multi_reduction <maximumf>, %252, %cst_134 [1] : vector<8x8xf32> to vector<8xf32>
    %254 = vector.shape_cast %253 : vector<8xf32> to vector<8x1xf32>
    %255 = vector.broadcast %254 : vector<8x1xf32> to vector<8x8xf32>
    %256 = arith.subf %252, %255 : vector<8x8xf32>
    %257 = math.exp %256 : vector<8x8xf32>
    %cst_135 = arith.constant dense<0.000000e+00> : vector<8xf32>
    %258 = vector.multi_reduction <add>, %257, %cst_135 [1] : vector<8x8xf32> to vector<8xf32>
    %259 = vector.shape_cast %258 : vector<8xf32> to vector<8x1xf32>
    %260 = tpu.reciprocal %259 {approx = true} : vector<8x1xf32> -> vector<8x1xf32>
    %261 = vector.broadcast %260 : vector<8x1xf32> to vector<8x8xf32>
    %262 = arith.mulf %257, %261 : vector<8x8xf32>
    %263 = vector.extract_strided_slice %196 {offsets = [0, 24], sizes = [8, 8], strides = [1, 1]} : vector<8x32xf32> to vector<8x8xf32>
    %cst_136 = arith.constant dense<0.000000e+00> : vector<8x8xf32>
    %264 = tpu.matmul %262, %263, %cst_136 {dimension_numbers = #tpu.dot_dimension_numbers<[1], [0], [0], [1], [0, 0, 1, 1], [], []>} : vector<8x8xf32>, vector<8x8xf32>, vector<8x8xf32> -> vector<8x8xf32>
    %265 = tpu.concatenate %213, %230, %247, %264 in 1 : vector<8x8xf32>, vector<8x8xf32>, vector<8x8xf32>, vector<8x8xf32> -> vector<8x32xf32>
    %c0_137 = arith.constant 0 : index
    %c0_138 = arith.constant 0 : index
    %c0_139 = arith.constant 0 : index
    %266 = vector.load %arg23[%c0_137, %c0_138, %c0_139] : memref<2x32x32xf32, #tpu.memory_space<vmem>>, vector<1x32x32xf32>
    %267 = vector.shape_cast %266 : vector<1x32x32xf32> to vector<32x32xf32>
    %cst_140 = arith.constant dense<0.000000e+00> : vector<8x32xf32>
    %268 = tpu.matmul %265, %267, %cst_140 {dimension_numbers = #tpu.dot_dimension_numbers<[1], [0], [0], [1], [0, 0, 1, 1], [], []>} : vector<8x32xf32>, vector<32x32xf32>, vector<8x32xf32> -> vector<8x32xf32>
    %c0_141 = arith.constant 0 : index
    %c0_142 = arith.constant 0 : index
    %c0_143 = arith.constant 0 : index
    %269 = vector.load %arg24[%c0_141, %c0_142, %c0_143] : memref<2x1x32xf32, #tpu.memory_space<vmem>>, vector<1x1x32xf32>
    %270 = vector.shape_cast %269 : vector<1x1x32xf32> to vector<1x32xf32>
    %271 = vector.broadcast %270 : vector<1x32xf32> to vector<8x32xf32>
    %272 = arith.addf %268, %271 : vector<8x32xf32>
    %273 = arith.addf %158, %272 : vector<8x32xf32>
    %c0_144 = arith.constant 0 : index
    %c0_145 = arith.constant 0 : index
    %c0_146 = arith.constant 0 : index
    %274 = vector.load %arg29[%c0_144, %c0_145, %c0_146] : memref<2x1x32xf32, #tpu.memory_space<vmem>>, vector<1x1x32xf32>
    %275 = vector.shape_cast %274 : vector<1x1x32xf32> to vector<1x32xf32>
    %276 = vector.broadcast %275 : vector<1x32xf32> to vector<8x32xf32>
    %277 = arith.mulf %273, %276 : vector<8x32xf32>
    %c0_147 = arith.constant 0 : index
    %c0_148 = arith.constant 0 : index
    %c0_149 = arith.constant 0 : index
    %278 = vector.load %arg30[%c0_147, %c0_148, %c0_149] : memref<2x1x32xf32, #tpu.memory_space<vmem>>, vector<1x1x32xf32>
    %279 = vector.shape_cast %278 : vector<1x1x32xf32> to vector<1x32xf32>
    %280 = vector.broadcast %279 : vector<1x32xf32> to vector<8x32xf32>
    %281 = arith.addf %277, %280 : vector<8x32xf32>
    %c0_150 = arith.constant 0 : index
    %c0_151 = arith.constant 0 : index
    %c0_152 = arith.constant 0 : index
    %282 = vector.load %arg25[%c0_150, %c0_151, %c0_152] : memref<2x32x64xf32, #tpu.memory_space<vmem>>, vector<1x32x64xf32>
    %283 = vector.shape_cast %282 : vector<1x32x64xf32> to vector<32x64xf32>
    %cst_153 = arith.constant dense<0.000000e+00> : vector<8x64xf32>
    %284 = tpu.matmul %281, %283, %cst_153 {dimension_numbers = #tpu.dot_dimension_numbers<[1], [0], [0], [1], [0, 0, 1, 1], [], []>} : vector<8x32xf32>, vector<32x64xf32>, vector<8x64xf32> -> vector<8x64xf32>
    %c0_154 = arith.constant 0 : index
    %c0_155 = arith.constant 0 : index
    %c0_156 = arith.constant 0 : index
    %285 = vector.load %arg26[%c0_154, %c0_155, %c0_156] : memref<2x1x64xf32, #tpu.memory_space<vmem>>, vector<1x1x64xf32>
    %286 = vector.shape_cast %285 : vector<1x1x64xf32> to vector<1x64xf32>
    %287 = vector.broadcast %286 : vector<1x64xf32> to vector<8x64xf32>
    %288 = arith.addf %284, %287 : vector<8x64xf32>
    %cst_157 = arith.constant 0.000000e+00 : f32
    %289 = vector.broadcast %cst_157 : f32 to vector<8x64xf32>
    %290 = arith.maximumf %288, %289 : vector<8x64xf32>
    %c0_158 = arith.constant 0 : index
    %c0_159 = arith.constant 0 : index
    %c0_160 = arith.constant 0 : index
    %291 = vector.load %arg27[%c0_158, %c0_159, %c0_160] : memref<2x64x32xf32, #tpu.memory_space<vmem>>, vector<1x64x32xf32>
    %292 = vector.shape_cast %291 : vector<1x64x32xf32> to vector<64x32xf32>
    %cst_161 = arith.constant dense<0.000000e+00> : vector<8x32xf32>
    %293 = tpu.matmul %290, %292, %cst_161 {dimension_numbers = #tpu.dot_dimension_numbers<[1], [0], [0], [1], [0, 0, 1, 1], [], []>} : vector<8x64xf32>, vector<64x32xf32>, vector<8x32xf32> -> vector<8x32xf32>
    %c0_162 = arith.constant 0 : index
    %c0_163 = arith.constant 0 : index
    %c0_164 = arith.constant 0 : index
    %294 = vector.load %arg28[%c0_162, %c0_163, %c0_164] : memref<2x1x32xf32, #tpu.memory_space<vmem>>, vector<1x1x32xf32>
    %295 = vector.shape_cast %294 : vector<1x1x32xf32> to vector<1x32xf32>
    %296 = vector.broadcast %295 : vector<1x32xf32> to vector<8x32xf32>
    %297 = arith.addf %293, %296 : vector<8x32xf32>
    %298 = arith.addf %281, %297 : vector<8x32xf32>
    %c0_165 = arith.constant 0 : index
    %c0_166 = arith.constant 0 : index
    %c0_167 = arith.constant 0 : index
    %299 = vector.load %arg31[%c0_165, %c0_166, %c0_167] : memref<2x1x32xf32, #tpu.memory_space<vmem>>, vector<1x1x32xf32>
    %300 = vector.shape_cast %299 : vector<1x1x32xf32> to vector<1x32xf32>
    %301 = vector.broadcast %300 : vector<1x32xf32> to vector<8x32xf32>
    %302 = arith.mulf %298, %301 : vector<8x32xf32>
    %c0_168 = arith.constant 0 : index
    %c0_169 = arith.constant 0 : index
    %c0_170 = arith.constant 0 : index
    %303 = vector.load %arg32[%c0_168, %c0_169, %c0_170] : memref<2x1x32xf32, #tpu.memory_space<vmem>>, vector<1x1x32xf32>
    %304 = vector.shape_cast %303 : vector<1x1x32xf32> to vector<1x32xf32>
    %305 = vector.broadcast %304 : vector<1x32xf32> to vector<8x32xf32>
    %306 = arith.addf %302, %305 : vector<8x32xf32>
    %cst_171 = arith.constant dense<0.000000e+00> : vector<8x32xf32>
    %307 = tpu.matmul %161, %306, %cst_171 {dimension_numbers = #tpu.dot_dimension_numbers<[1], [0], [0], [1], [0, 0, 1, 1], [], []>} : vector<8x8xf32>, vector<8x32xf32>, vector<8x32xf32> -> vector<8x32xf32>
    %c1_172 = arith.constant 1 : index
    %c0_173 = arith.constant 0 : index
    %c0_174 = arith.constant 0 : index
    %c0_175 = arith.constant 0 : index
    %308 = vector.load %arg17[%c1_172, %c0_173, %c0_174, %c0_175] : memref<2x2x32x32xf32, #tpu.memory_space<vmem>>, vector<1x1x32x32xf32>
    %309 = vector.shape_cast %308 : vector<1x1x32x32xf32> to vector<32x32xf32>
    %cst_176 = arith.constant dense<0.000000e+00> : vector<8x32xf32>
    %310 = tpu.matmul %307, %309, %cst_176 {dimension_numbers = #tpu.dot_dimension_numbers<[1], [0], [0], [1], [0, 0, 1, 1], [], []>} : vector<8x32xf32>, vector<32x32xf32>, vector<8x32xf32> -> vector<8x32xf32>
    %c1_177 = arith.constant 1 : index
    %c0_178 = arith.constant 0 : index
    %c0_179 = arith.constant 0 : index
    %c0_180 = arith.constant 0 : index
    %311 = vector.load %arg18[%c1_177, %c0_178, %c0_179, %c0_180] : memref<2x2x1x32xf32, #tpu.memory_space<vmem>>, vector<1x1x1x32xf32>
    %312 = vector.shape_cast %311 : vector<1x1x1x32xf32> to vector<1x32xf32>
    %313 = vector.broadcast %312 : vector<1x32xf32> to vector<8x32xf32>
    %314 = arith.addf %310, %313 : vector<8x32xf32>
    %cst_181 = arith.constant 0.000000e+00 : f32
    %315 = vector.broadcast %cst_181 : f32 to vector<8x32xf32>
    %316 = arith.maximumf %314, %315 : vector<8x32xf32>
    %cst_182 = arith.constant dense<0.000000e+00> : vector<8x32xf32>
    %317 = tpu.matmul %161, %316, %cst_182 {dimension_numbers = #tpu.dot_dimension_numbers<[1], [0], [0], [1], [0, 0, 1, 1], [], []>} : vector<8x8xf32>, vector<8x32xf32>, vector<8x32xf32> -> vector<8x32xf32>
    %c1_183 = arith.constant 1 : index
    %c1_184 = arith.constant 1 : index
    %c0_185 = arith.constant 0 : index
    %c0_186 = arith.constant 0 : index
    %318 = vector.load %arg17[%c1_183, %c1_184, %c0_185, %c0_186] : memref<2x2x32x32xf32, #tpu.memory_space<vmem>>, vector<1x1x32x32xf32>
    %319 = vector.shape_cast %318 : vector<1x1x32x32xf32> to vector<32x32xf32>
    %cst_187 = arith.constant dense<0.000000e+00> : vector<8x32xf32>
    %320 = tpu.matmul %317, %319, %cst_187 {dimension_numbers = #tpu.dot_dimension_numbers<[1], [0], [0], [1], [0, 0, 1, 1], [], []>} : vector<8x32xf32>, vector<32x32xf32>, vector<8x32xf32> -> vector<8x32xf32>
    %c1_188 = arith.constant 1 : index
    %c1_189 = arith.constant 1 : index
    %c0_190 = arith.constant 0 : index
    %c0_191 = arith.constant 0 : index
    %321 = vector.load %arg18[%c1_188, %c1_189, %c0_190, %c0_191] : memref<2x2x1x32xf32, #tpu.memory_space<vmem>>, vector<1x1x1x32xf32>
    %322 = vector.shape_cast %321 : vector<1x1x1x32xf32> to vector<1x32xf32>
    %323 = vector.broadcast %322 : vector<1x32xf32> to vector<8x32xf32>
    %324 = arith.addf %320, %323 : vector<8x32xf32>
    %cst_192 = arith.constant 0.000000e+00 : f32
    %325 = vector.broadcast %cst_192 : f32 to vector<8x32xf32>
    %326 = arith.maximumf %324, %325 : vector<8x32xf32>
    %c1_193 = arith.constant 1 : index
    %c0_194 = arith.constant 0 : index
    %c0_195 = arith.constant 0 : index
    %327 = vector.load %arg19[%c1_193, %c0_194, %c0_195] : memref<2x32x32xf32, #tpu.memory_space<vmem>>, vector<1x32x32xf32>
    %328 = vector.shape_cast %327 : vector<1x32x32xf32> to vector<32x32xf32>
    %cst_196 = arith.constant dense<0.000000e+00> : vector<8x32xf32>
    %329 = tpu.matmul %326, %328, %cst_196 {dimension_numbers = #tpu.dot_dimension_numbers<[1], [0], [0], [1], [0, 0, 1, 1], [], []>} : vector<8x32xf32>, vector<32x32xf32>, vector<8x32xf32> -> vector<8x32xf32>
    %c1_197 = arith.constant 1 : index
    %c0_198 = arith.constant 0 : index
    %c0_199 = arith.constant 0 : index
    %330 = vector.load %arg20[%c1_197, %c0_198, %c0_199] : memref<2x1x32xf32, #tpu.memory_space<vmem>>, vector<1x1x32xf32>
    %331 = vector.shape_cast %330 : vector<1x1x32xf32> to vector<1x32xf32>
    %332 = vector.broadcast %331 : vector<1x32xf32> to vector<8x32xf32>
    %333 = arith.addf %329, %332 : vector<8x32xf32>
    %c1_200 = arith.constant 1 : index
    %c0_201 = arith.constant 0 : index
    %c0_202 = arith.constant 0 : index
    %334 = vector.load %arg21[%c1_200, %c0_201, %c0_202] : memref<2x32x64xf32, #tpu.memory_space<vmem>>, vector<1x32x64xf32>
    %335 = vector.shape_cast %334 : vector<1x32x64xf32> to vector<32x64xf32>
    %cst_203 = arith.constant dense<0.000000e+00> : vector<8x64xf32>
    %336 = tpu.matmul %333, %335, %cst_203 {dimension_numbers = #tpu.dot_dimension_numbers<[1], [0], [0], [1], [0, 0, 1, 1], [], []>} : vector<8x32xf32>, vector<32x64xf32>, vector<8x64xf32> -> vector<8x64xf32>
    %337 = vector.extract_strided_slice %336 {offsets = [0, 0], sizes = [8, 32], strides = [1, 1]} : vector<8x64xf32> to vector<8x32xf32>
    %338 = vector.extract_strided_slice %336 {offsets = [0, 32], sizes = [8, 32], strides = [1, 1]} : vector<8x64xf32> to vector<8x32xf32>
    %c1_204 = arith.constant 1 : index
    %c0_205 = arith.constant 0 : index
    %c0_206 = arith.constant 0 : index
    %339 = vector.load %arg22[%c1_204, %c0_205, %c0_206] : memref<2x32x32xf32, #tpu.memory_space<vmem>>, vector<1x32x32xf32>
    %340 = vector.shape_cast %339 : vector<1x32x32xf32> to vector<32x32xf32>
    %cst_207 = arith.constant dense<0.000000e+00> : vector<8x32xf32>
    %341 = tpu.matmul %306, %340, %cst_207 {dimension_numbers = #tpu.dot_dimension_numbers<[1], [0], [0], [1], [0, 0, 1, 1], [], []>} : vector<8x32xf32>, vector<32x32xf32>, vector<8x32xf32> -> vector<8x32xf32>
    %342 = vector.extract_strided_slice %337 {offsets = [0, 0], sizes = [8, 8], strides = [1, 1]} : vector<8x32xf32> to vector<8x8xf32>
    %343 = vector.extract_strided_slice %338 {offsets = [0, 0], sizes = [8, 8], strides = [1, 1]} : vector<8x32xf32> to vector<8x8xf32>
    %cst_208 = arith.constant dense<0.000000e+00> : vector<8x8xf32>
    %344 = tpu.matmul %342, %343, %cst_208 {dimension_numbers = #tpu.dot_dimension_numbers<[1], [1], [0], [0], [0, 0, 1, 0], [], []>} : vector<8x8xf32>, vector<8x8xf32>, vector<8x8xf32> -> vector<8x8xf32>
    %cst_209 = arith.constant 0.353553385 : f32
    %345 = vector.broadcast %cst_209 : f32 to vector<8x8xf32>
    %346 = arith.mulf %344, %345 : vector<8x8xf32>
    %cst_210 = arith.constant dense<0xFF800000> : vector<8xf32>
    %347 = vector.multi_reduction <maximumf>, %346, %cst_210 [1] : vector<8x8xf32> to vector<8xf32>
    %348 = vector.shape_cast %347 : vector<8xf32> to vector<8x1xf32>
    %349 = vector.broadcast %348 : vector<8x1xf32> to vector<8x8xf32>
    %350 = arith.subf %346, %349 : vector<8x8xf32>
    %351 = math.exp %350 : vector<8x8xf32>
    %cst_211 = arith.constant dense<0.000000e+00> : vector<8xf32>
    %352 = vector.multi_reduction <add>, %351, %cst_211 [1] : vector<8x8xf32> to vector<8xf32>
    %353 = vector.shape_cast %352 : vector<8xf32> to vector<8x1xf32>
    %354 = tpu.reciprocal %353 {approx = true} : vector<8x1xf32> -> vector<8x1xf32>
    %355 = vector.broadcast %354 : vector<8x1xf32> to vector<8x8xf32>
    %356 = arith.mulf %351, %355 : vector<8x8xf32>
    %357 = vector.extract_strided_slice %341 {offsets = [0, 0], sizes = [8, 8], strides = [1, 1]} : vector<8x32xf32> to vector<8x8xf32>
    %cst_212 = arith.constant dense<0.000000e+00> : vector<8x8xf32>
    %358 = tpu.matmul %356, %357, %cst_212 {dimension_numbers = #tpu.dot_dimension_numbers<[1], [0], [0], [1], [0, 0, 1, 1], [], []>} : vector<8x8xf32>, vector<8x8xf32>, vector<8x8xf32> -> vector<8x8xf32>
    %359 = vector.extract_strided_slice %337 {offsets = [0, 8], sizes = [8, 8], strides = [1, 1]} : vector<8x32xf32> to vector<8x8xf32>
    %360 = vector.extract_strided_slice %338 {offsets = [0, 8], sizes = [8, 8], strides = [1, 1]} : vector<8x32xf32> to vector<8x8xf32>
    %cst_213 = arith.constant dense<0.000000e+00> : vector<8x8xf32>
    %361 = tpu.matmul %359, %360, %cst_213 {dimension_numbers = #tpu.dot_dimension_numbers<[1], [1], [0], [0], [0, 0, 1, 0], [], []>} : vector<8x8xf32>, vector<8x8xf32>, vector<8x8xf32> -> vector<8x8xf32>
    %cst_214 = arith.constant 0.353553385 : f32
    %362 = vector.broadcast %cst_214 : f32 to vector<8x8xf32>
    %363 = arith.mulf %361, %362 : vector<8x8xf32>
    %cst_215 = arith.constant dense<0xFF800000> : vector<8xf32>
    %364 = vector.multi_reduction <maximumf>, %363, %cst_215 [1] : vector<8x8xf32> to vector<8xf32>
    %365 = vector.shape_cast %364 : vector<8xf32> to vector<8x1xf32>
    %366 = vector.broadcast %365 : vector<8x1xf32> to vector<8x8xf32>
    %367 = arith.subf %363, %366 : vector<8x8xf32>
    %368 = math.exp %367 : vector<8x8xf32>
    %cst_216 = arith.constant dense<0.000000e+00> : vector<8xf32>
    %369 = vector.multi_reduction <add>, %368, %cst_216 [1] : vector<8x8xf32> to vector<8xf32>
    %370 = vector.shape_cast %369 : vector<8xf32> to vector<8x1xf32>
    %371 = tpu.reciprocal %370 {approx = true} : vector<8x1xf32> -> vector<8x1xf32>
    %372 = vector.broadcast %371 : vector<8x1xf32> to vector<8x8xf32>
    %373 = arith.mulf %368, %372 : vector<8x8xf32>
    %374 = vector.extract_strided_slice %341 {offsets = [0, 8], sizes = [8, 8], strides = [1, 1]} : vector<8x32xf32> to vector<8x8xf32>
    %cst_217 = arith.constant dense<0.000000e+00> : vector<8x8xf32>
    %375 = tpu.matmul %373, %374, %cst_217 {dimension_numbers = #tpu.dot_dimension_numbers<[1], [0], [0], [1], [0, 0, 1, 1], [], []>} : vector<8x8xf32>, vector<8x8xf32>, vector<8x8xf32> -> vector<8x8xf32>
    %376 = vector.extract_strided_slice %337 {offsets = [0, 16], sizes = [8, 8], strides = [1, 1]} : vector<8x32xf32> to vector<8x8xf32>
    %377 = vector.extract_strided_slice %338 {offsets = [0, 16], sizes = [8, 8], strides = [1, 1]} : vector<8x32xf32> to vector<8x8xf32>
    %cst_218 = arith.constant dense<0.000000e+00> : vector<8x8xf32>
    %378 = tpu.matmul %376, %377, %cst_218 {dimension_numbers = #tpu.dot_dimension_numbers<[1], [1], [0], [0], [0, 0, 1, 0], [], []>} : vector<8x8xf32>, vector<8x8xf32>, vector<8x8xf32> -> vector<8x8xf32>
    %cst_219 = arith.constant 0.353553385 : f32
    %379 = vector.broadcast %cst_219 : f32 to vector<8x8xf32>
    %380 = arith.mulf %378, %379 : vector<8x8xf32>
    %cst_220 = arith.constant dense<0xFF800000> : vector<8xf32>
    %381 = vector.multi_reduction <maximumf>, %380, %cst_220 [1] : vector<8x8xf32> to vector<8xf32>
    %382 = vector.shape_cast %381 : vector<8xf32> to vector<8x1xf32>
    %383 = vector.broadcast %382 : vector<8x1xf32> to vector<8x8xf32>
    %384 = arith.subf %380, %383 : vector<8x8xf32>
    %385 = math.exp %384 : vector<8x8xf32>
    %cst_221 = arith.constant dense<0.000000e+00> : vector<8xf32>
    %386 = vector.multi_reduction <add>, %385, %cst_221 [1] : vector<8x8xf32> to vector<8xf32>
    %387 = vector.shape_cast %386 : vector<8xf32> to vector<8x1xf32>
    %388 = tpu.reciprocal %387 {approx = true} : vector<8x1xf32> -> vector<8x1xf32>
    %389 = vector.broadcast %388 : vector<8x1xf32> to vector<8x8xf32>
    %390 = arith.mulf %385, %389 : vector<8x8xf32>
    %391 = vector.extract_strided_slice %341 {offsets = [0, 16], sizes = [8, 8], strides = [1, 1]} : vector<8x32xf32> to vector<8x8xf32>
    %cst_222 = arith.constant dense<0.000000e+00> : vector<8x8xf32>
    %392 = tpu.matmul %390, %391, %cst_222 {dimension_numbers = #tpu.dot_dimension_numbers<[1], [0], [0], [1], [0, 0, 1, 1], [], []>} : vector<8x8xf32>, vector<8x8xf32>, vector<8x8xf32> -> vector<8x8xf32>
    %393 = vector.extract_strided_slice %337 {offsets = [0, 24], sizes = [8, 8], strides = [1, 1]} : vector<8x32xf32> to vector<8x8xf32>
    %394 = vector.extract_strided_slice %338 {offsets = [0, 24], sizes = [8, 8], strides = [1, 1]} : vector<8x32xf32> to vector<8x8xf32>
    %cst_223 = arith.constant dense<0.000000e+00> : vector<8x8xf32>
    %395 = tpu.matmul %393, %394, %cst_223 {dimension_numbers = #tpu.dot_dimension_numbers<[1], [1], [0], [0], [0, 0, 1, 0], [], []>} : vector<8x8xf32>, vector<8x8xf32>, vector<8x8xf32> -> vector<8x8xf32>
    %cst_224 = arith.constant 0.353553385 : f32
    %396 = vector.broadcast %cst_224 : f32 to vector<8x8xf32>
    %397 = arith.mulf %395, %396 : vector<8x8xf32>
    %cst_225 = arith.constant dense<0xFF800000> : vector<8xf32>
    %398 = vector.multi_reduction <maximumf>, %397, %cst_225 [1] : vector<8x8xf32> to vector<8xf32>
    %399 = vector.shape_cast %398 : vector<8xf32> to vector<8x1xf32>
    %400 = vector.broadcast %399 : vector<8x1xf32> to vector<8x8xf32>
    %401 = arith.subf %397, %400 : vector<8x8xf32>
    %402 = math.exp %401 : vector<8x8xf32>
    %cst_226 = arith.constant dense<0.000000e+00> : vector<8xf32>
    %403 = vector.multi_reduction <add>, %402, %cst_226 [1] : vector<8x8xf32> to vector<8xf32>
    %404 = vector.shape_cast %403 : vector<8xf32> to vector<8x1xf32>
    %405 = tpu.reciprocal %404 {approx = true} : vector<8x1xf32> -> vector<8x1xf32>
    %406 = vector.broadcast %405 : vector<8x1xf32> to vector<8x8xf32>
    %407 = arith.mulf %402, %406 : vector<8x8xf32>
    %408 = vector.extract_strided_slice %341 {offsets = [0, 24], sizes = [8, 8], strides = [1, 1]} : vector<8x32xf32> to vector<8x8xf32>
    %cst_227 = arith.constant dense<0.000000e+00> : vector<8x8xf32>
    %409 = tpu.matmul %407, %408, %cst_227 {dimension_numbers = #tpu.dot_dimension_numbers<[1], [0], [0], [1], [0, 0, 1, 1], [], []>} : vector<8x8xf32>, vector<8x8xf32>, vector<8x8xf32> -> vector<8x8xf32>
    %410 = tpu.concatenate %358, %375, %392, %409 in 1 : vector<8x8xf32>, vector<8x8xf32>, vector<8x8xf32>, vector<8x8xf32> -> vector<8x32xf32>
    %c1_228 = arith.constant 1 : index
    %c0_229 = arith.constant 0 : index
    %c0_230 = arith.constant 0 : index
    %411 = vector.load %arg23[%c1_228, %c0_229, %c0_230] : memref<2x32x32xf32, #tpu.memory_space<vmem>>, vector<1x32x32xf32>
    %412 = vector.shape_cast %411 : vector<1x32x32xf32> to vector<32x32xf32>
    %cst_231 = arith.constant dense<0.000000e+00> : vector<8x32xf32>
    %413 = tpu.matmul %410, %412, %cst_231 {dimension_numbers = #tpu.dot_dimension_numbers<[1], [0], [0], [1], [0, 0, 1, 1], [], []>} : vector<8x32xf32>, vector<32x32xf32>, vector<8x32xf32> -> vector<8x32xf32>
    %c1_232 = arith.constant 1 : index
    %c0_233 = arith.constant 0 : index
    %c0_234 = arith.constant 0 : index
    %414 = vector.load %arg24[%c1_232, %c0_233, %c0_234] : memref<2x1x32xf32, #tpu.memory_space<vmem>>, vector<1x1x32xf32>
    %415 = vector.shape_cast %414 : vector<1x1x32xf32> to vector<1x32xf32>
    %416 = vector.broadcast %415 : vector<1x32xf32> to vector<8x32xf32>
    %417 = arith.addf %413, %416 : vector<8x32xf32>
    %418 = arith.addf %306, %417 : vector<8x32xf32>
    %c1_235 = arith.constant 1 : index
    %c0_236 = arith.constant 0 : index
    %c0_237 = arith.constant 0 : index
    %419 = vector.load %arg29[%c1_235, %c0_236, %c0_237] : memref<2x1x32xf32, #tpu.memory_space<vmem>>, vector<1x1x32xf32>
    %420 = vector.shape_cast %419 : vector<1x1x32xf32> to vector<1x32xf32>
    %421 = vector.broadcast %420 : vector<1x32xf32> to vector<8x32xf32>
    %422 = arith.mulf %418, %421 : vector<8x32xf32>
    %c1_238 = arith.constant 1 : index
    %c0_239 = arith.constant 0 : index
    %c0_240 = arith.constant 0 : index
    %423 = vector.load %arg30[%c1_238, %c0_239, %c0_240] : memref<2x1x32xf32, #tpu.memory_space<vmem>>, vector<1x1x32xf32>
    %424 = vector.shape_cast %423 : vector<1x1x32xf32> to vector<1x32xf32>
    %425 = vector.broadcast %424 : vector<1x32xf32> to vector<8x32xf32>
    %426 = arith.addf %422, %425 : vector<8x32xf32>
    %c1_241 = arith.constant 1 : index
    %c0_242 = arith.constant 0 : index
    %c0_243 = arith.constant 0 : index
    %427 = vector.load %arg25[%c1_241, %c0_242, %c0_243] : memref<2x32x64xf32, #tpu.memory_space<vmem>>, vector<1x32x64xf32>
    %428 = vector.shape_cast %427 : vector<1x32x64xf32> to vector<32x64xf32>
    %cst_244 = arith.constant dense<0.000000e+00> : vector<8x64xf32>
    %429 = tpu.matmul %426, %428, %cst_244 {dimension_numbers = #tpu.dot_dimension_numbers<[1], [0], [0], [1], [0, 0, 1, 1], [], []>} : vector<8x32xf32>, vector<32x64xf32>, vector<8x64xf32> -> vector<8x64xf32>
    %c1_245 = arith.constant 1 : index
    %c0_246 = arith.constant 0 : index
    %c0_247 = arith.constant 0 : index
    %430 = vector.load %arg26[%c1_245, %c0_246, %c0_247] : memref<2x1x64xf32, #tpu.memory_space<vmem>>, vector<1x1x64xf32>
    %431 = vector.shape_cast %430 : vector<1x1x64xf32> to vector<1x64xf32>
    %432 = vector.broadcast %431 : vector<1x64xf32> to vector<8x64xf32>
    %433 = arith.addf %429, %432 : vector<8x64xf32>
    %cst_248 = arith.constant 0.000000e+00 : f32
    %434 = vector.broadcast %cst_248 : f32 to vector<8x64xf32>
    %435 = arith.maximumf %433, %434 : vector<8x64xf32>
    %c1_249 = arith.constant 1 : index
    %c0_250 = arith.constant 0 : index
    %c0_251 = arith.constant 0 : index
    %436 = vector.load %arg27[%c1_249, %c0_250, %c0_251] : memref<2x64x32xf32, #tpu.memory_space<vmem>>, vector<1x64x32xf32>
    %437 = vector.shape_cast %436 : vector<1x64x32xf32> to vector<64x32xf32>
    %cst_252 = arith.constant dense<0.000000e+00> : vector<8x32xf32>
    %438 = tpu.matmul %435, %437, %cst_252 {dimension_numbers = #tpu.dot_dimension_numbers<[1], [0], [0], [1], [0, 0, 1, 1], [], []>} : vector<8x64xf32>, vector<64x32xf32>, vector<8x32xf32> -> vector<8x32xf32>
    %c1_253 = arith.constant 1 : index
    %c0_254 = arith.constant 0 : index
    %c0_255 = arith.constant 0 : index
    %439 = vector.load %arg28[%c1_253, %c0_254, %c0_255] : memref<2x1x32xf32, #tpu.memory_space<vmem>>, vector<1x1x32xf32>
    %440 = vector.shape_cast %439 : vector<1x1x32xf32> to vector<1x32xf32>
    %441 = vector.broadcast %440 : vector<1x32xf32> to vector<8x32xf32>
    %442 = arith.addf %438, %441 : vector<8x32xf32>
    %443 = arith.addf %426, %442 : vector<8x32xf32>
    %c1_256 = arith.constant 1 : index
    %c0_257 = arith.constant 0 : index
    %c0_258 = arith.constant 0 : index
    %444 = vector.load %arg31[%c1_256, %c0_257, %c0_258] : memref<2x1x32xf32, #tpu.memory_space<vmem>>, vector<1x1x32xf32>
    %445 = vector.shape_cast %444 : vector<1x1x32xf32> to vector<1x32xf32>
    %446 = vector.broadcast %445 : vector<1x32xf32> to vector<8x32xf32>
    %447 = arith.mulf %443, %446 : vector<8x32xf32>
    %c1_259 = arith.constant 1 : index
    %c0_260 = arith.constant 0 : index
    %c0_261 = arith.constant 0 : index
    %448 = vector.load %arg32[%c1_259, %c0_260, %c0_261] : memref<2x1x32xf32, #tpu.memory_space<vmem>>, vector<1x1x32xf32>
    %449 = vector.shape_cast %448 : vector<1x1x32xf32> to vector<1x32xf32>
    %450 = vector.broadcast %449 : vector<1x32xf32> to vector<8x32xf32>
    %451 = arith.addf %447, %450 : vector<8x32xf32>
    %c0_262 = arith.constant 0 : index
    %c0_263 = arith.constant 0 : index
    %452 = vector.load %arg33[%c0_262, %c0_263] : memref<32x8xf32, #tpu.memory_space<vmem>>, vector<32x8xf32>
    %cst_264 = arith.constant dense<0.000000e+00> : vector<8x8xf32>
    %453 = tpu.matmul %160, %452, %cst_264 {dimension_numbers = #tpu.dot_dimension_numbers<[1], [0], [0], [1], [0, 0, 1, 1], [], []>} : vector<8x32xf32>, vector<32x8xf32>, vector<8x8xf32> -> vector<8x8xf32>
    %c0_265 = arith.constant 0 : index
    %c0_266 = arith.constant 0 : index
    %454 = vector.load %arg34[%c0_265, %c0_266] : memref<1x8xf32, #tpu.memory_space<vmem>>, vector<1x8xf32>
    %455 = vector.broadcast %454 : vector<1x8xf32> to vector<8x8xf32>
    %456 = arith.addf %453, %455 : vector<8x8xf32>
    %457 = arith.mulf %456, %456 : vector<8x8xf32>
    %cst_267 = arith.constant dense<0.000000e+00> : vector<8xf32>
    %458 = vector.multi_reduction <add>, %457, %cst_267 [0] : vector<8x8xf32> to vector<8xf32>
    %459 = vector.shape_cast %458 : vector<8xf32> to vector<1x8xf32>
    %460 = math.sqrt %459 : vector<1x8xf32>
    %cst_268 = arith.constant dense<0.000000e+00> : vector<8xf32>
    %461 = vector.multi_reduction <add>, %456, %cst_268 [0] : vector<8x8xf32> to vector<8xf32>
    %462 = vector.shape_cast %461 : vector<8xf32> to vector<1x8xf32>
    %cst_269 = arith.constant 1.250000e-01 : f32
    %463 = vector.broadcast %cst_269 : f32 to vector<1x8xf32>
    %464 = arith.mulf %462, %463 : vector<1x8xf32>
    %465 = vector.broadcast %464 : vector<1x8xf32> to vector<8x8xf32>
    %466 = arith.subf %456, %465 : vector<8x8xf32>
    %cst_270 = arith.constant 9.99999996E-13 : f32
    %467 = vector.broadcast %cst_270 : f32 to vector<1x8xf32>
    %468 = arith.addf %460, %467 : vector<1x8xf32>
    %469 = vector.broadcast %468 : vector<1x8xf32> to vector<8x8xf32>
    %470 = arith.divf %466, %469 : vector<8x8xf32>
    %c0_271 = arith.constant 0 : index
    %c0_272 = arith.constant 0 : index
    %471 = vector.load %arg35[%c0_271, %c0_272] : memref<32x32xf32, #tpu.memory_space<vmem>>, vector<32x32xf32>
    %cst_273 = arith.constant dense<0.000000e+00> : vector<8x32xf32>
    %472 = tpu.matmul %451, %471, %cst_273 {dimension_numbers = #tpu.dot_dimension_numbers<[1], [0], [0], [1], [0, 0, 1, 1], [], []>} : vector<8x32xf32>, vector<32x32xf32>, vector<8x32xf32> -> vector<8x32xf32>
    %c0_274 = arith.constant 0 : index
    %c0_275 = arith.constant 0 : index
    %473 = vector.load %arg36[%c0_274, %c0_275] : memref<8x32xf32, #tpu.memory_space<vmem>>, vector<8x32xf32>
    %cst_276 = arith.constant dense<0.000000e+00> : vector<8x32xf32>
    %474 = tpu.matmul %470, %473, %cst_276 {dimension_numbers = #tpu.dot_dimension_numbers<[1], [0], [0], [1], [0, 0, 1, 1], [], []>} : vector<8x8xf32>, vector<8x32xf32>, vector<8x32xf32> -> vector<8x32xf32>
    %475 = arith.addf %472, %474 : vector<8x32xf32>
    %c0_277 = arith.constant 0 : index
    %c0_278 = arith.constant 0 : index
    %476 = vector.load %arg37[%c0_277, %c0_278] : memref<1x32xf32, #tpu.memory_space<vmem>>, vector<1x32xf32>
    %477 = vector.broadcast %476 : vector<1x32xf32> to vector<8x32xf32>
    %478 = arith.addf %475, %477 : vector<8x32xf32>
    %cst_279 = arith.constant dense<0.000000e+00> : vector<32xf32>
    %479 = vector.multi_reduction <add>, %478, %cst_279 [0] : vector<8x32xf32> to vector<32xf32>
    %480 = vector.shape_cast %479 : vector<32xf32> to vector<1x32xf32>
    %cst_280 = arith.constant 1.250000e-01 : f32
    %481 = vector.broadcast %cst_280 : f32 to vector<1x32xf32>
    %482 = arith.mulf %480, %481 : vector<1x32xf32>
    %c0_281 = arith.constant 0 : index
    %c0_282 = arith.constant 0 : index
    %483 = vector.load %arg38[%c0_281, %c0_282] : memref<32x16xf32, #tpu.memory_space<vmem>>, vector<32x16xf32>
    %cst_283 = arith.constant dense<0.000000e+00> : vector<1x16xf32>
    %484 = tpu.matmul %482, %483, %cst_283 {dimension_numbers = #tpu.dot_dimension_numbers<[1], [0], [0], [1], [0, 0, 1, 1], [], []>} : vector<1x32xf32>, vector<32x16xf32>, vector<1x16xf32> -> vector<1x16xf32>
    %c0_284 = arith.constant 0 : index
    %c0_285 = arith.constant 0 : index
    %485 = vector.load %arg39[%c0_284, %c0_285] : memref<1x16xf32, #tpu.memory_space<vmem>>, vector<1x16xf32>
    %486 = arith.addf %484, %485 : vector<1x16xf32>
    %cst_286 = arith.constant 0.000000e+00 : f32
    %487 = vector.broadcast %cst_286 : f32 to vector<1x16xf32>
    %488 = arith.maximumf %486, %487 : vector<1x16xf32>
    %c0_287 = arith.constant 0 : index
    %c0_288 = arith.constant 0 : index
    %489 = vector.load %arg40[%c0_287, %c0_288] : memref<16x8xf32, #tpu.memory_space<vmem>>, vector<16x8xf32>
    %cst_289 = arith.constant dense<0.000000e+00> : vector<1x8xf32>
    %490 = tpu.matmul %488, %489, %cst_289 {dimension_numbers = #tpu.dot_dimension_numbers<[1], [0], [0], [1], [0, 0, 1, 1], [], []>} : vector<1x16xf32>, vector<16x8xf32>, vector<1x8xf32> -> vector<1x8xf32>
    %c0_290 = arith.constant 0 : index
    %c0_291 = arith.constant 0 : index
    %491 = vector.load %arg41[%c0_290, %c0_291] : memref<1x8xf32, #tpu.memory_space<vmem>>, vector<1x8xf32>
    %492 = arith.addf %490, %491 : vector<1x8xf32>
    %cst_292 = arith.constant 0.000000e+00 : f32
    %493 = vector.broadcast %cst_292 : f32 to vector<1x8xf32>
    %494 = arith.maximumf %492, %493 : vector<1x8xf32>
    %c0_293 = arith.constant 0 : index
    %c0_294 = arith.constant 0 : index
    %495 = vector.load %arg42[%c0_293, %c0_294] : memref<8x1xf32, #tpu.memory_space<vmem>>, vector<8x1xf32>
    %cst_295 = arith.constant dense<0.000000e+00> : vector<1x1xf32>
    %496 = tpu.matmul %494, %495, %cst_295 {dimension_numbers = #tpu.dot_dimension_numbers<[1], [0], [0], [1], [0, 0, 1, 1], [], []>} : vector<1x8xf32>, vector<8x1xf32>, vector<1x1xf32> -> vector<1x1xf32>
    %c0_296 = arith.constant 0 : index
    %c0_297 = arith.constant 0 : index
    %497 = vector.load %arg43[%c0_296, %c0_297] : memref<1x1xf32, #tpu.memory_space<vmem>>, vector<1x1xf32>
    %498 = arith.addf %496, %497 : vector<1x1xf32>
    %c0_298 = arith.constant 0 : index
    %c0_299 = arith.constant 0 : index
    %499 = vector.load %arg44[%c0_298, %c0_299] : memref<1x1xf32, #tpu.memory_space<vmem>>, vector<1x1xf32>
    tpu.vector_store %arg44[%c0_298, %c0_299], %498 {strides = array<i32>} : memref<1x1xf32, #tpu.memory_space<vmem>>, vector<1x1xf32>,
    %c0_300 = arith.constant 0 : index
    %c0_301 = arith.constant 0 : index
    %500 = vector.load %arg45[%c0_300, %c0_301] : memref<8x32xf32, #tpu.memory_space<vmem>>, vector<8x32xf32>
    tpu.vector_store %arg45[%c0_300, %c0_301], %478 {strides = array<i32>} : memref<8x32xf32, #tpu.memory_space<vmem>>, vector<8x32xf32>,
    %c0_302 = arith.constant 0 : index
    %c0_303 = arith.constant 0 : index
    %501 = vector.load %arg46[%c0_302, %c0_303] : memref<8x8xf32, #tpu.memory_space<vmem>>, vector<8x8xf32>
    tpu.vector_store %arg46[%c0_302, %c0_303], %470 {strides = array<i32>} : memref<8x8xf32, #tpu.memory_space<vmem>>, vector<8x8xf32>,
    return
  }
  func.func @transform_0(%arg0: i32) -> (i32, i32) {
    %c0_i32 = arith.constant 0 : i32
    %c0_i32_0 = arith.constant 0 : i32
    %c0_i32_1 = arith.constant 0 : i32
    return %c0_i32, %c0_i32_0 : i32, i32
  }
  func.func @transform_1(%arg0: i32) -> (i32, i32) {
    %c0_i32 = arith.constant 0 : i32
    %c0_i32_0 = arith.constant 0 : i32
    %c0_i32_1 = arith.constant 0 : i32
    return %c0_i32, %c0_i32_0 : i32, i32
  }
  func.func @transform_2(%arg0: i32) -> (i32, i32, i32) {
    %c0_i32 = arith.constant 0 : i32
    %c0_i32_0 = arith.constant 0 : i32
    %c0_i32_1 = arith.constant 0 : i32
    %c0_i32_2 = arith.constant 0 : i32
    return %c0_i32, %c0_i32_0, %c0_i32_1 : i32, i32, i32
  }
  func.func @transform_3(%arg0: i32) -> (i32, i32) {
    %c0_i32 = arith.constant 0 : i32
    %c0_i32_0 = arith.constant 0 : i32
    %c0_i32_1 = arith.constant 0 : i32
    return %c0_i32, %c0_i32_0 : i32, i32
  }
  func.func @transform_4(%arg0: i32) -> (i32, i32) {
    %c0_i32 = arith.constant 0 : i32
    %c0_i32_0 = arith.constant 0 : i32
    %c0_i32_1 = arith.constant 0 : i32
    return %c0_i32, %c0_i32_0 : i32, i32
  }
  func.func @transform_5(%arg0: i32) -> (i32, i32) {
    %c0_i32 = arith.constant 0 : i32
    %c0_i32_0 = arith.constant 0 : i32
    %c0_i32_1 = arith.constant 0 : i32
    return %c0_i32, %c0_i32_0 : i32, i32
  }
  func.func @transform_6(%arg0: i32) -> (i32, i32) {
    %c0_i32 = arith.constant 0 : i32
    %c0_i32_0 = arith.constant 0 : i32
    %c0_i32_1 = arith.constant 0 : i32
    return %c0_i32, %c0_i32_0 : i32, i32
  }
  func.func @transform_7(%arg0: i32) -> (i32, i32, i32) {
    %c0_i32 = arith.constant 0 : i32
    %c0_i32_0 = arith.constant 0 : i32
    %c0_i32_1 = arith.constant 0 : i32
    %c0_i32_2 = arith.constant 0 : i32
    return %c0_i32, %c0_i32_0, %c0_i32_1 : i32, i32, i32
  }
  func.func @transform_8(%arg0: i32) -> (i32, i32, i32) {
    %c0_i32 = arith.constant 0 : i32
    %c0_i32_0 = arith.constant 0 : i32
    %c0_i32_1 = arith.constant 0 : i32
    %c0_i32_2 = arith.constant 0 : i32
    return %c0_i32, %c0_i32_0, %c0_i32_1 : i32, i32, i32
  }
  func.func @transform_9(%arg0: i32) -> (i32, i32, i32) {
    %c0_i32 = arith.constant 0 : i32
    %c0_i32_0 = arith.constant 0 : i32
    %c0_i32_1 = arith.constant 0 : i32
    %c0_i32_2 = arith.constant 0 : i32
    return %c0_i32, %c0_i32_0, %c0_i32_1 : i32, i32, i32
  }
  func.func @transform_10(%arg0: i32) -> (i32, i32, i32) {
    %c0_i32 = arith.constant 0 : i32
    %c0_i32_0 = arith.constant 0 : i32
    %c0_i32_1 = arith.constant 0 : i32
    %c0_i32_2 = arith.constant 0 : i32
    return %c0_i32, %c0_i32_0, %c0_i32_1 : i32, i32, i32
  }
  func.func @transform_11(%arg0: i32) -> (i32, i32, i32) {
    %c0_i32 = arith.constant 0 : i32
    %c0_i32_0 = arith.constant 0 : i32
    %c0_i32_1 = arith.constant 0 : i32
    %c0_i32_2 = arith.constant 0 : i32
    return %c0_i32, %c0_i32_0, %c0_i32_1 : i32, i32, i32
  }
  func.func @transform_12(%arg0: i32) -> (i32, i32, i32) {
    %c0_i32 = arith.constant 0 : i32
    %c0_i32_0 = arith.constant 0 : i32
    %c0_i32_1 = arith.constant 0 : i32
    %c0_i32_2 = arith.constant 0 : i32
    return %c0_i32, %c0_i32_0, %c0_i32_1 : i32, i32, i32
  }
  func.func @transform_13(%arg0: i32) -> (i32, i32, i32) {
    %c0_i32 = arith.constant 0 : i32
    %c0_i32_0 = arith.constant 0 : i32
    %c0_i32_1 = arith.constant 0 : i32
    %c0_i32_2 = arith.constant 0 : i32
    return %c0_i32, %c0_i32_0, %c0_i32_1 : i32, i32, i32
  }
  func.func @transform_14(%arg0: i32) -> (i32, i32, i32) {
    %c0_i32 = arith.constant 0 : i32
    %c0_i32_0 = arith.constant 0 : i32
    %c0_i32_1 = arith.constant 0 : i32
    %c0_i32_2 = arith.constant 0 : i32
    return %c0_i32, %c0_i32_0, %c0_i32_1 : i32, i32, i32
  }
  func.func @transform_15(%arg0: i32) -> (i32, i32, i32) {
    %c0_i32 = arith.constant 0 : i32
    %c0_i32_0 = arith.constant 0 : i32
    %c0_i32_1 = arith.constant 0 : i32
    %c0_i32_2 = arith.constant 0 : i32
    return %c0_i32, %c0_i32_0, %c0_i32_1 : i32, i32, i32
  }
  func.func @transform_16(%arg0: i32) -> (i32, i32, i32, i32) {
    %c0_i32 = arith.constant 0 : i32
    %c0_i32_0 = arith.constant 0 : i32
    %c0_i32_1 = arith.constant 0 : i32
    %c0_i32_2 = arith.constant 0 : i32
    %c0_i32_3 = arith.constant 0 : i32
    return %c0_i32, %c0_i32_0, %c0_i32_1, %c0_i32_2 : i32, i32, i32, i32
  }
  func.func @transform_17(%arg0: i32) -> (i32, i32, i32, i32) {
    %c0_i32 = arith.constant 0 : i32
    %c0_i32_0 = arith.constant 0 : i32
    %c0_i32_1 = arith.constant 0 : i32
    %c0_i32_2 = arith.constant 0 : i32
    %c0_i32_3 = arith.constant 0 : i32
    return %c0_i32, %c0_i32_0, %c0_i32_1, %c0_i32_2 : i32, i32, i32, i32
  }
  func.func @transform_18(%arg0: i32) -> (i32, i32, i32) {
    %c0_i32 = arith.constant 0 : i32
    %c0_i32_0 = arith.constant 0 : i32
    %c0_i32_1 = arith.constant 0 : i32
    %c0_i32_2 = arith.constant 0 : i32
    return %c0_i32, %c0_i32_0, %c0_i32_1 : i32, i32, i32
  }
  func.func @transform_19(%arg0: i32) -> (i32, i32, i32) {
    %c0_i32 = arith.constant 0 : i32
    %c0_i32_0 = arith.constant 0 : i32
    %c0_i32_1 = arith.constant 0 : i32
    %c0_i32_2 = arith.constant 0 : i32
    return %c0_i32, %c0_i32_0, %c0_i32_1 : i32, i32, i32
  }
  func.func @transform_20(%arg0: i32) -> (i32, i32, i32) {
    %c0_i32 = arith.constant 0 : i32
    %c0_i32_0 = arith.constant 0 : i32
    %c0_i32_1 = arith.constant 0 : i32
    %c0_i32_2 = arith.constant 0 : i32
    return %c0_i32, %c0_i32_0, %c0_i32_1 : i32, i32, i32
  }
  func.func @transform_21(%arg0: i32) -> (i32, i32, i32) {
    %c0_i32 = arith.constant 0 : i32
    %c0_i32_0 = arith.constant 0 : i32
    %c0_i32_1 = arith.constant 0 : i32
    %c0_i32_2 = arith.constant 0 : i32
    return %c0_i32, %c0_i32_0, %c0_i32_1 : i32, i32, i32
  }
  func.func @transform_22(%arg0: i32) -> (i32, i32, i32) {
    %c0_i32 = arith.constant 0 : i32
    %c0_i32_0 = arith.constant 0 : i32
    %c0_i32_1 = arith.constant 0 : i32
    %c0_i32_2 = arith.constant 0 : i32
    return %c0_i32, %c0_i32_0, %c0_i32_1 : i32, i32, i32
  }
  func.func @transform_23(%arg0: i32) -> (i32, i32, i32) {
    %c0_i32 = arith.constant 0 : i32
    %c0_i32_0 = arith.constant 0 : i32
    %c0_i32_1 = arith.constant 0 : i32
    %c0_i32_2 = arith.constant 0 : i32
    return %c0_i32, %c0_i32_0, %c0_i32_1 : i32, i32, i32
  }
  func.func @transform_24(%arg0: i32) -> (i32, i32, i32) {
    %c0_i32 = arith.constant 0 : i32
    %c0_i32_0 = arith.constant 0 : i32
    %c0_i32_1 = arith.constant 0 : i32
    %c0_i32_2 = arith.constant 0 : i32
    return %c0_i32, %c0_i32_0, %c0_i32_1 : i32, i32, i32
  }
  func.func @transform_25(%arg0: i32) -> (i32, i32, i32) {
    %c0_i32 = arith.constant 0 : i32
    %c0_i32_0 = arith.constant 0 : i32
    %c0_i32_1 = arith.constant 0 : i32
    %c0_i32_2 = arith.constant 0 : i32
    return %c0_i32, %c0_i32_0, %c0_i32_1 : i32, i32, i32
  }
  func.func @transform_26(%arg0: i32) -> (i32, i32, i32) {
    %c0_i32 = arith.constant 0 : i32
    %c0_i32_0 = arith.constant 0 : i32
    %c0_i32_1 = arith.constant 0 : i32
    %c0_i32_2 = arith.constant 0 : i32
    return %c0_i32, %c0_i32_0, %c0_i32_1 : i32, i32, i32
  }
  func.func @transform_27(%arg0: i32) -> (i32, i32, i32) {
    %c0_i32 = arith.constant 0 : i32
    %c0_i32_0 = arith.constant 0 : i32
    %c0_i32_1 = arith.constant 0 : i32
    %c0_i32_2 = arith.constant 0 : i32
    return %c0_i32, %c0_i32_0, %c0_i32_1 : i32, i32, i32
  }
  func.func @transform_28(%arg0: i32) -> (i32, i32, i32) {
    %c0_i32 = arith.constant 0 : i32
    %c0_i32_0 = arith.constant 0 : i32
    %c0_i32_1 = arith.constant 0 : i32
    %c0_i32_2 = arith.constant 0 : i32
    return %c0_i32, %c0_i32_0, %c0_i32_1 : i32, i32, i32
  }
  func.func @transform_29(%arg0: i32) -> (i32, i32, i32) {
    %c0_i32 = arith.constant 0 : i32
    %c0_i32_0 = arith.constant 0 : i32
    %c0_i32_1 = arith.constant 0 : i32
    %c0_i32_2 = arith.constant 0 : i32
    return %c0_i32, %c0_i32_0, %c0_i32_1 : i32, i32, i32
  }
  func.func @transform_30(%arg0: i32) -> (i32, i32, i32) {
    %c0_i32 = arith.constant 0 : i32
    %c0_i32_0 = arith.constant 0 : i32
    %c0_i32_1 = arith.constant 0 : i32
    %c0_i32_2 = arith.constant 0 : i32
    return %c0_i32, %c0_i32_0, %c0_i32_1 : i32, i32, i32
  }
  func.func @transform_31(%arg0: i32) -> (i32, i32, i32) {
    %c0_i32 = arith.constant 0 : i32
    %c0_i32_0 = arith.constant 0 : i32
    %c0_i32_1 = arith.constant 0 : i32
    %c0_i32_2 = arith.constant 0 : i32
    return %c0_i32, %c0_i32_0, %c0_i32_1 : i32, i32, i32
  }
  func.func @transform_32(%arg0: i32) -> (i32, i32) {
    %c0_i32 = arith.constant 0 : i32
    %c0_i32_0 = arith.constant 0 : i32
    %c0_i32_1 = arith.constant 0 : i32
    return %c0_i32, %c0_i32_0 : i32, i32
  }
  func.func @transform_33(%arg0: i32) -> (i32, i32) {
    %c0_i32 = arith.constant 0 : i32
    %c0_i32_0 = arith.constant 0 : i32
    %c0_i32_1 = arith.constant 0 : i32
    return %c0_i32, %c0_i32_0 : i32, i32
  }
  func.func @transform_34(%arg0: i32) -> (i32, i32) {
    %c0_i32 = arith.constant 0 : i32
    %c0_i32_0 = arith.constant 0 : i32
    %c0_i32_1 = arith.constant 0 : i32
    return %c0_i32, %c0_i32_0 : i32, i32
  }
  func.func @transform_35(%arg0: i32) -> (i32, i32) {
    %c0_i32 = arith.constant 0 : i32
    %c0_i32_0 = arith.constant 0 : i32
    %c0_i32_1 = arith.constant 0 : i32
    return %c0_i32, %c0_i32_0 : i32, i32
  }
  func.func @transform_36(%arg0: i32) -> (i32, i32) {
    %c0_i32 = arith.constant 0 : i32
    %c0_i32_0 = arith.constant 0 : i32
    %c0_i32_1 = arith.constant 0 : i32
    return %c0_i32, %c0_i32_0 : i32, i32
  }
  func.func @transform_37(%arg0: i32) -> (i32, i32) {
    %c0_i32 = arith.constant 0 : i32
    %c0_i32_0 = arith.constant 0 : i32
    %c0_i32_1 = arith.constant 0 : i32
    return %c0_i32, %c0_i32_0 : i32, i32
  }
  func.func @transform_38(%arg0: i32) -> (i32, i32) {
    %c0_i32 = arith.constant 0 : i32
    %c0_i32_0 = arith.constant 0 : i32
    %c0_i32_1 = arith.constant 0 : i32
    return %c0_i32, %c0_i32_0 : i32, i32
  }
  func.func @transform_39(%arg0: i32) -> (i32, i32) {
    %c0_i32 = arith.constant 0 : i32
    %c0_i32_0 = arith.constant 0 : i32
    %c0_i32_1 = arith.constant 0 : i32
    return %c0_i32, %c0_i32_0 : i32, i32
  }
  func.func @transform_40(%arg0: i32) -> (i32, i32) {
    %c0_i32 = arith.constant 0 : i32
    %c0_i32_0 = arith.constant 0 : i32
    %c0_i32_1 = arith.constant 0 : i32
    return %c0_i32, %c0_i32_0 : i32, i32
  }
  func.func @transform_41(%arg0: i32) -> (i32, i32) {
    %c0_i32 = arith.constant 0 : i32
    %c0_i32_0 = arith.constant 0 : i32
    %c0_i32_1 = arith.constant 0 : i32
    return %c0_i32, %c0_i32_0 : i32, i32
  }
  func.func @transform_42(%arg0: i32) -> (i32, i32) {
    %c0_i32 = arith.constant 0 : i32
    %c0_i32_0 = arith.constant 0 : i32
    %c0_i32_1 = arith.constant 0 : i32
    return %c0_i32, %c0_i32_0 : i32, i32
  }
  func.func @transform_43(%arg0: i32) -> (i32, i32) {
    %c0_i32 = arith.constant 0 : i32
    %c0_i32_0 = arith.constant 0 : i32
    %c0_i32_1 = arith.constant 0 : i32
    return %c0_i32, %c0_i32_0 : i32, i32
  }
  func.func @transform_44(%arg0: i32) -> (i32, i32) {
    %c0_i32 = arith.constant 0 : i32
    %c0_i32_0 = arith.constant 0 : i32
    %c0_i32_1 = arith.constant 0 : i32
    return %c0_i32, %c0_i32_0 : i32, i32
  }
  func.func @transform_45(%arg0: i32) -> (i32, i32) {
    %c0_i32 = arith.constant 0 : i32
    %c0_i32_0 = arith.constant 0 : i32
    %c0_i32_1 = arith.constant 0 : i32
    return %c0_i32, %c0_i32_0 : i32, i32
  }
}

</mosaic_0001>

<llo_original>
// kernel: forward.1
$region0: #{forward.1}
  #allocation0 [shape = 'u32[]', space=smem, size = 0x4, offset = 0x4, fixed_abs, tag = 'smem constant byte address 0x4 - core index']
  #allocation1 [shape = 'u32[144,128]{1,0:T(1,128)}', space=vmem, size = 0x12000, scoped, tag = 'internal scratch']
  #allocation2 [shape = 'f32[1,1]{1,0:T(1,128)S(1)}', space=vmem, size = 0x200, scoped, tag = 'scoped memory for forward.1']
  %s0 = inlined_call_operand.smem [shape: u32[46], index: -1, kind: input, shape index: {}]
  %s1 = sld [smem:[%s0]]
  %s2 = scalar_lea.smem %s0, 1
  %s3 = sld [smem:[%s2]]
  %s4 = scalar_lea.smem %s0, 2
  %s5 = sld [smem:[%s4]]
  %s6 = scalar_lea.smem %s0, 3
  %s7 = sld [smem:[%s6]]
  %s8 = scalar_lea.smem %s0, 4
  %s9 = sld [smem:[%s8]]
  %s10 = scalar_lea.smem %s0, 5
  %s11 = sld [smem:[%s10]]
  %s12 = scalar_lea.smem %s0, 6
  %s13 = sld [smem:[%s12]]
  %s14 = scalar_lea.smem %s0, 7
  %s15 = sld [smem:[%s14]]
  %s16 = scalar_lea.smem %s0, 8
  %s17 = sld [smem:[%s16]]
  %s18 = scalar_lea.smem %s0, 9
  %s19 = sld [smem:[%s18]]
  %s20 = scalar_lea.smem %s0, 10
  %s21 = sld [smem:[%s20]]
  %s22 = scalar_lea.smem %s0, 11
  %s23 = sld [smem:[%s22]]
  %s24 = scalar_lea.smem %s0, 12
  %s25 = sld [smem:[%s24]]
  %s26 = scalar_lea.smem %s0, 13
  %s27 = sld [smem:[%s26]]
  %s28 = scalar_lea.smem %s0, 14
  %s29 = sld [smem:[%s28]]
  %s30 = scalar_lea.smem %s0, 15
  %s31 = sld [smem:[%s30]]
  %s32 = scalar_lea.smem %s0, 16
  %s33 = sld [smem:[%s32]]
  %s34 = scalar_lea.smem %s0, 17
  %s35 = sld [smem:[%s34]]
  %s36 = scalar_lea.smem %s0, 18
  %s37 = sld [smem:[%s36]]
  %s38 = scalar_lea.smem %s0, 19
  %s39 = sld [smem:[%s38]]
  %s40 = scalar_lea.smem %s0, 20
  %s41 = sld [smem:[%s40]]
  %s42 = scalar_lea.smem %s0, 21
  %s43 = sld [smem:[%s42]]
  %s44 = scalar_lea.smem %s0, 22
  %s45 = sld [smem:[%s44]]
  %s46 = scalar_lea.smem %s0, 23
  %s47 = sld [smem:[%s46]]
  %s48 = scalar_lea.smem %s0, 24
  %s49 = sld [smem:[%s48]]
  %s50 = scalar_lea.smem %s0, 25
  %s51 = sld [smem:[%s50]]
  %s52 = scalar_lea.smem %s0, 26
  %s53 = sld [smem:[%s52]]
  %s54 = scalar_lea.smem %s0, 27
  %s55 = sld [smem:[%s54]]
  %s56 = scalar_lea.smem %s0, 28
  %s57 = sld [smem:[%s56]]
  %s58 = scalar_lea.smem %s0, 29
  %s59 = sld [smem:[%s58]]
  %s60 = scalar_lea.smem %s0, 30
  %s61 = sld [smem:[%s60]]
  %s62 = scalar_lea.smem %s0, 31
  %s63 = sld [smem:[%s62]]
  %s64 = scalar_lea.smem %s0, 32
  %s65 = sld [smem:[%s64]]
  %s66 = scalar_lea.smem %s0, 33
  %s67 = sld [smem:[%s66]]
  %s68 = scalar_lea.smem %s0, 34
  %s69 = sld [smem:[%s68]]
  %s70 = scalar_lea.smem %s0, 35
  %s71 = sld [smem:[%s70]]
  %s72 = scalar_lea.smem %s0, 36
  %s73 = sld [smem:[%s72]]
  %s74 = scalar_lea.smem %s0, 37
  %s75 = sld [smem:[%s74]]
  %s76 = scalar_lea.smem %s0, 38
  %s77 = sld [smem:[%s76]]
  %s78 = scalar_lea.smem %s0, 39
  %s79 = sld [smem:[%s78]]
  %s80 = scalar_lea.smem %s0, 40
  %s81 = sld [smem:[%s80]]
  %s82 = scalar_lea.smem %s0, 41
  %s83 = sld [smem:[%s82]]
  %s84 = scalar_lea.smem %s0, 42
  %s85 = sld [smem:[%s84]]
  %s86 = scalar_lea.smem %s0, 43
  %s87 = sld [smem:[%s86]]
  %s88 = scalar_lea.smem %s0, 44
  %s89 = sld [smem:[%s88]]
  %s90 = scalar_lea.smem %s0, 45
  %s91 = sld [smem:[%s90]]
  %92 = xla_tuple %s87, %s89, %s91
  %s93 = sld [smem:[#allocation0]]
  $region198: #{forward.1} parent=0
    _
  %s95 = ssub.s32 1, %s93
  %s96 = scalar_select 0, %s95, %s93
  %v97 = vstv %s85
  %98 = vst [vmem:[#allocation2] sm:$0x1] %v97
  $region1: #{forward.1} parent=0
    #allocation3 [shape = 'u8[512]{0}', space=vmem, size = 0x400, scoped, tag = 'output window, operand 0, single buffered']
    #allocation4 [shape = 's32[1]{0}', space=sflag, size = 0x4, scoped, tag = 'scoped memory for forward.1']
    #allocation5 [shape = 'u8[4096]{0}', space=vmem, size = 0x1000, scoped, tag = 'output window, operand 1, single buffered']
    #allocation6 [shape = 's32[1]{0}', space=sflag, size = 0x4, scoped, tag = 'scoped memory for forward.1']
    #allocation7 [shape = 'u8[4096]{0}', space=vmem, size = 0x1000, scoped, tag = 'output window, operand 2, single buffered']
    %99 = vsyncpa [#allocation4], 0
    %100 = vsyncpa [#allocation6], 0
    // Predicated region
    $region2: #{forward.1} parent=1 // pred_check
      _
    $region3: #{forward.1} parent=1 // pred_check_branch
      %102 = sbr.rel (0) target = $region5
    $region4: #{forward.1} parent=1 // pred_region
      _
    $region5: #{forward.1} parent=1 // pred_fallthru
      _
    // Predicated region
    $region6: #{forward.1} parent=1 // pred_check
      _
    $region7: #{forward.1} parent=1 // pred_check_branch
      %104 = sbr.rel (0) target = $region9
    $region8: #{forward.1} parent=1 // pred_region
      _
    $region9: #{forward.1} parent=1 // pred_fallthru
      _
    // Predicated region
    $region10: #{forward.1} parent=1 // pred_check
      _
    $region11: #{forward.1} parent=1 // pred_check_branch
      %106 = sbr.rel (0) target = $region13
    $region12: #{forward.1} parent=1 // pred_region
      _
    $region13: #{forward.1} parent=1 // pred_fallthru
      _
    // Predicated region
    $region14: #{forward.1} parent=1 // pred_check
      _
    $region15: #{forward.1} parent=1 // pred_check_branch
      %108 = sbr.rel (0) target = $region17
    $region16: #{forward.1} parent=1 // pred_region
      _
    $region17: #{forward.1} parent=1 // pred_fallthru
      _
    // Predicated region
    $region18: #{forward.1} parent=1 // pred_check
      _
    $region19: #{forward.1} parent=1 // pred_check_branch
      %110 = sbr.rel (0) target = $region21
    $region20: #{forward.1} parent=1 // pred_region
      _
    $region21: #{forward.1} parent=1 // pred_fallthru
      _
    // Predicated region
    $region22: #{forward.1} parent=1 // pred_check
      _
    $region23: #{forward.1} parent=1 // pred_check_branch
      %112 = sbr.rel (0) target = $region25
    $region24: #{forward.1} parent=1 // pred_region
      _
    $region25: #{forward.1} parent=1 // pred_fallthru
      _
    // Predicated region
    $region26: #{forward.1} parent=1 // pred_check
      _
    $region27: #{forward.1} parent=1 // pred_check_branch
      %114 = sbr.rel (0) target = $region29
    $region28: #{forward.1} parent=1 // pred_region
      _
    $region29: #{forward.1} parent=1 // pred_fallthru
      _
    // Predicated region
    $region30: #{forward.1} parent=1 // pred_check
      _
    $region31: #{forward.1} parent=1 // pred_check_branch
      %116 = sbr.rel (0) target = $region33
    $region32: #{forward.1} parent=1 // pred_region
      _
    $region33: #{forward.1} parent=1 // pred_fallthru
      _
    // Predicated region
    $region34: #{forward.1} parent=1 // pred_check
      _
    $region35: #{forward.1} parent=1 // pred_check_branch
      %118 = sbr.rel (0) target = $region37
    $region36: #{forward.1} parent=1 // pred_region
      _
    $region37: #{forward.1} parent=1 // pred_fallthru
      _
    // Predicated region
    $region38: #{forward.1} parent=1 // pred_check
      _
    $region39: #{forward.1} parent=1 // pred_check_branch
      %120 = sbr.rel (0) target = $region41
    $region40: #{forward.1} parent=1 // pred_region
      _
    $region41: #{forward.1} parent=1 // pred_fallthru
      _
    // Predicated region
    $region42: #{forward.1} parent=1 // pred_check
      _
    $region43: #{forward.1} parent=1 // pred_check_branch
      %122 = sbr.rel (0) target = $region45
    $region44: #{forward.1} parent=1 // pred_region
      _
    $region45: #{forward.1} parent=1 // pred_fallthru
      _
    // Predicated region
    $region46: #{forward.1} parent=1 // pred_check
      _
    $region47: #{forward.1} parent=1 // pred_check_branch
      %124 = sbr.rel (0) target = $region49
    $region48: #{forward.1} parent=1 // pred_region
      _
    $region49: #{forward.1} parent=1 // pred_fallthru
      _
    // Predicated region
    $region50: #{forward.1} parent=1 // pred_check
      _
    $region51: #{forward.1} parent=1 // pred_check_branch
      %126 = sbr.rel (0) target = $region53
    $region52: #{forward.1} parent=1 // pred_region
      _
    $region53: #{forward.1} parent=1 // pred_fallthru
      _
    // Predicated region
    $region54: #{forward.1} parent=1 // pred_check
      _
    $region55: #{forward.1} parent=1 // pred_check_branch
      %128 = sbr.rel (0) target = $region57
    $region56: #{forward.1} parent=1 // pred_region
      _
    $region57: #{forward.1} parent=1 // pred_fallthru
      _
    // Predicated region
    $region58: #{forward.1} parent=1 // pred_check
      _
    $region59: #{forward.1} parent=1 // pred_check_branch
      %130 = sbr.rel (0) target = $region61
    $region60: #{forward.1} parent=1 // pred_region
      _
    $region61: #{forward.1} parent=1 // pred_fallthru
      _
    // Predicated region
    $region62: #{forward.1} parent=1 // pred_check
      _
    $region63: #{forward.1} parent=1 // pred_check_branch
      %132 = sbr.rel (0) target = $region65
    $region64: #{forward.1} parent=1 // pred_region
      _
    $region65: #{forward.1} parent=1 // pred_fallthru
      _
    // Predicated region
    $region66: #{forward.1} parent=1 // pred_check
      _
    $region67: #{forward.1} parent=1 // pred_check_branch
      %134 = sbr.rel (0) target = $region69
    $region68: #{forward.1} parent=1 // pred_region
      _
    $region69: #{forward.1} parent=1 // pred_fallthru
      _
    // Predicated region
    $region70: #{forward.1} parent=1 // pred_check
      _
    $region71: #{forward.1} parent=1 // pred_check_branch
      %136 = sbr.rel (0) target = $region73
    $region72: #{forward.1} parent=1 // pred_region
      _
    $region73: #{forward.1} parent=1 // pred_fallthru
      _
    // Predicated region
    $region74: #{forward.1} parent=1 // pred_check
      _
    $region75: #{forward.1} parent=1 // pred_check_branch
      %138 = sbr.rel (0) target = $region77
    $region76: #{forward.1} parent=1 // pred_region
      _
    $region77: #{forward.1} parent=1 // pred_fallthru
      _
    // Predicated region
    $region78: #{forward.1} parent=1 // pred_check
      _
    $region79: #{forward.1} parent=1 // pred_check_branch
      %140 = sbr.rel (0) target = $region81
    $region80: #{forward.1} parent=1 // pred_region
      _
    $region81: #{forward.1} parent=1 // pred_fallthru
      _
    // Predicated region
    $region82: #{forward.1} parent=1 // pred_check
      _
    $region83: #{forward.1} parent=1 // pred_check_branch
      %142 = sbr.rel (0) target = $region85
    $region84: #{forward.1} parent=1 // pred_region
      _
    $region85: #{forward.1} parent=1 // pred_fallthru
      _
    // Predicated region
    $region86: #{forward.1} parent=1 // pred_check
      _
    $region87: #{forward.1} parent=1 // pred_check_branch
      %144 = sbr.rel (0) target = $region89
    $region88: #{forward.1} parent=1 // pred_region
      _
    $region89: #{forward.1} parent=1 // pred_fallthru
      _
    // Predicated region
    $region90: #{forward.1} parent=1 // pred_check
      _
    $region91: #{forward.1} parent=1 // pred_check_branch
      %146 = sbr.rel (0) target = $region93
    $region92: #{forward.1} parent=1 // pred_region
      _
    $region93: #{forward.1} parent=1 // pred_fallthru
      _
    // Predicated region
    $region94: #{forward.1} parent=1 // pred_check
      _
    $region95: #{forward.1} parent=1 // pred_check_branch
      %148 = sbr.rel (0) target = $region97
    $region96: #{forward.1} parent=1 // pred_region
      _
    $region97: #{forward.1} parent=1 // pred_fallthru
      _
    // Predicated region
    $region98: #{forward.1} parent=1 // pred_check
      _
    $region99: #{forward.1} parent=1 // pred_check_branch
      %150 = sbr.rel (0) target = $region101
    $region100: #{forward.1} parent=1 // pred_region
      _
    $region101: #{forward.1} parent=1 // pred_fallthru
      _
    // Predicated region
    $region102: #{forward.1} parent=1 // pred_check
      _
    $region103: #{forward.1} parent=1 // pred_check_branch
      %152 = sbr.rel (0) target = $region105
    $region104: #{forward.1} parent=1 // pred_region
      _
    $region105: #{forward.1} parent=1 // pred_fallthru
      _
    // Predicated region
    $region106: #{forward.1} parent=1 // pred_check
      _
    $region107: #{forward.1} parent=1 // pred_check_branch
      %154 = sbr.rel (0) target = $region109
    $region108: #{forward.1} parent=1 // pred_region
      _
    $region109: #{forward.1} parent=1 // pred_fallthru
      _
    // Predicated region
    $region110: #{forward.1} parent=1 // pred_check
      _
    $region111: #{forward.1} parent=1 // pred_check_branch
      %156 = sbr.rel (0) target = $region113
    $region112: #{forward.1} parent=1 // pred_region
      _
    $region113: #{forward.1} parent=1 // pred_fallthru
      _
    // Predicated region
    $region114: #{forward.1} parent=1 // pred_check
      _
    $region115: #{forward.1} parent=1 // pred_check_branch
      %158 = sbr.rel (0) target = $region117
    $region116: #{forward.1} parent=1 // pred_region
      _
    $region117: #{forward.1} parent=1 // pred_fallthru
      _
    // Predicated region
    $region118: #{forward.1} parent=1 // pred_check
      _
    $region119: #{forward.1} parent=1 // pred_check_branch
      %160 = sbr.rel (0) target = $region121
    $region120: #{forward.1} parent=1 // pred_region
      _
    $region121: #{forward.1} parent=1 // pred_fallthru
      _
    // Predicated region
    $region122: #{forward.1} parent=1 // pred_check
      _
    $region123: #{forward.1} parent=1 // pred_check_branch
      %162 = sbr.rel (0) target = $region125
    $region124: #{forward.1} parent=1 // pred_region
      _
    $region125: #{forward.1} parent=1 // pred_fallthru
      _
    // Predicated region
    $region126: #{forward.1} parent=1 // pred_check
      _
    $region127: #{forward.1} parent=1 // pred_check_branch
      %164 = sbr.rel (0) target = $region129
    $region128: #{forward.1} parent=1 // pred_region
      _
    $region129: #{forward.1} parent=1 // pred_fallthru
      _
    // Predicated region
    $region130: #{forward.1} parent=1 // pred_check
      _
    $region131: #{forward.1} parent=1 // pred_check_branch
      %166 = sbr.rel (0) target = $region133
    $region132: #{forward.1} parent=1 // pred_region
      _
    $region133: #{forward.1} parent=1 // pred_fallthru
      _
    // Predicated region
    $region134: #{forward.1} parent=1 // pred_check
      _
    $region135: #{forward.1} parent=1 // pred_check_branch
      %168 = sbr.rel (0) target = $region137
    $region136: #{forward.1} parent=1 // pred_region
      _
    $region137: #{forward.1} parent=1 // pred_fallthru
      _
    // Predicated region
    $region138: #{forward.1} parent=1 // pred_check
      _
    $region139: #{forward.1} parent=1 // pred_check_branch
      %170 = sbr.rel (0) target = $region141
    $region140: #{forward.1} parent=1 // pred_region
      _
    $region141: #{forward.1} parent=1 // pred_fallthru
      _
    // Predicated region
    $region142: #{forward.1} parent=1 // pred_check
      _
    $region143: #{forward.1} parent=1 // pred_check_branch
      %172 = sbr.rel (0) target = $region145
    $region144: #{forward.1} parent=1 // pred_region
      _
    $region145: #{forward.1} parent=1 // pred_fallthru
      _
    // Predicated region
    $region146: #{forward.1} parent=1 // pred_check
      _
    $region147: #{forward.1} parent=1 // pred_check_branch
      %174 = sbr.rel (0) target = $region149
    $region148: #{forward.1} parent=1 // pred_region
      _
    $region149: #{forward.1} parent=1 // pred_fallthru
      _
    // Predicated region
    $region150: #{forward.1} parent=1 // pred_check
      _
    $region151: #{forward.1} parent=1 // pred_check_branch
      %176 = sbr.rel (0) target = $region153
    $region152: #{forward.1} parent=1 // pred_region
      _
    $region153: #{forward.1} parent=1 // pred_fallthru
      _
    // Predicated region
    $region154: #{forward.1} parent=1 // pred_check
      _
    $region155: #{forward.1} parent=1 // pred_check_branch
      %178 = sbr.rel (0) target = $region157
    $region156: #{forward.1} parent=1 // pred_region
      _
    $region157: #{forward.1} parent=1 // pred_fallthru
      _
    // Predicated region
    $region158: #{forward.1} parent=1 // pred_check
      _
    $region159: #{forward.1} parent=1 // pred_check_branch
      %180 = sbr.rel (0) target = $region161
    $region160: #{forward.1} parent=1 // pred_region
      _
    $region161: #{forward.1} parent=1 // pred_fallthru
      _
    // Predicated region
    $region162: #{forward.1} parent=1 // pred_check
      _
    $region163: #{forward.1} parent=1 // pred_check_branch
      %182 = sbr.rel (0) target = $region165
    $region164: #{forward.1} parent=1 // pred_region
      _
    $region165: #{forward.1} parent=1 // pred_fallthru
      _
    // Predicated region
    $region166: #{forward.1} parent=1 // pred_check
      _
    $region167: #{forward.1} parent=1 // pred_check_branch
      %184 = sbr.rel (0) target = $region169
    $region168: #{forward.1} parent=1 // pred_region
      _
    $region169: #{forward.1} parent=1 // pred_fallthru
      _
    // Predicated region
    $region170: #{forward.1} parent=1 // pred_check
      _
    $region171: #{forward.1} parent=1 // pred_check_branch
      %186 = sbr.rel (0) target = $region173
    $region172: #{forward.1} parent=1 // pred_region
      _
    $region173: #{forward.1} parent=1 // pred_fallthru
      _
    %v187 = vld [vmem:[%s1] sm:$0xff]
    %v188 = vld [vmem:[%s7] sm:$0xff]
    %v189 = vld [vmem:[%s5] sm:$0xff]
    %v190 = vld [vmem:[%s5 + $0x8] sm:$0xff]
    %v191 = vld [vmem:[%s5 + $0x10] sm:$0xff]
    %v192 = vld [vmem:[%s5 + $0x18] sm:$0xff]
    %v193 = vld [vmem:[%s5 + $0x20] sm:$0xff]
    %v194 = vld [vmem:[%s5 + $0x28] sm:$0xff]
    %v195 = vld [vmem:[%s5 + $0x30] sm:$0xff]
    %v196 = vld [vmem:[%s5 + $0x38] sm:$0xff]
    %v197 = vlaneseq
    %v198 = vshrl.u32 %v197, 7
    %v199 = vsub.s32 0, %v198
    %v200 = vrot.slane %v188, %v199
    %202 = vbcast.lane.b32.xlu0 %v200, 256
    %v203 = vpop.permute.xlu0 %202
    %v204 = vlaneseq
    %v205 = vshrl.u32 %v204, 7
    %v206 = vsub.s32 1, %v205
    %v207 = vrot.slane %v188, %v206
    %209 = vbcast.lane.b32.xlu0 %v207, 256
    %v210 = vpop.permute.xlu0 %209
    %v211 = vlaneseq
    %v212 = vshrl.u32 %v211, 7
    %v213 = vsub.s32 2, %v212
    %v214 = vrot.slane %v188, %v213
    %216 = vbcast.lane.b32.xlu0 %v214, 256
    %v217 = vpop.permute.xlu0 %216
    %v218 = vlaneseq
    %v219 = vshrl.u32 %v218, 7
    %v220 = vsub.s32 3, %v219
    %v221 = vrot.slane %v188, %v220
    %223 = vbcast.lane.b32.xlu0 %v221, 256
    %v224 = vpop.permute.xlu0 %223
    %v225 = vlaneseq
    %v226 = vshrl.u32 %v225, 7
    %v227 = vsub.s32 4, %v226
    %v228 = vrot.slane %v188, %v227
    %230 = vbcast.lane.b32.xlu0 %v228, 256
    %v231 = vpop.permute.xlu0 %230
    %v232 = vlaneseq
    %v233 = vshrl.u32 %v232, 7
    %v234 = vsub.s32 5, %v233
    %v235 = vrot.slane %v188, %v234
    %237 = vbcast.lane.b32.xlu0 %v235, 256
    %v238 = vpop.permute.xlu0 %237
    %v239 = vlaneseq
    %v240 = vshrl.u32 %v239, 7
    %v241 = vsub.s32 6, %v240
    %v242 = vrot.slane %v188, %v241
    %244 = vbcast.lane.b32.xlu0 %v242, 256
    %v245 = vpop.permute.xlu0 %244
    %v246 = vlaneseq
    %v247 = vshrl.u32 %v246, 7
    %v248 = vsub.s32 7, %v247
    %v249 = vrot.slane %v188, %v248
    %251 = vbcast.lane.b32.xlu0 %v249, 256
    %v252 = vpop.permute.xlu0 %251
    %v253 = vld [vmem:[%s3] sm:$0xff]
    %v254 = vld [vmem:[%s11] sm:$0xff]
    %v255 = vld [vmem:[%s13] sm:$0x1]
    %v257 = vlaneseq
    %v258 = vshrl.u32 %v257, 7
    %v259 = vsub.s32 0, %v258
    %v260 = vrot.slane %v255, %v259
    %vm262 = vcmask 64512
    %v264 = vsel %vm262, %v253, 0
    %266 = vmatprep.subr.mxu0 0.0
    %267 = vmatpush1.msra.mxu0 %v254
    %268 = vmatprep.subr.mxu0 0.0
    %269 = vmatpush1.msra.mxu0 0.0
    %270 = vmatprep.subr.mxu0 0.0
    %271 = vmatpush1.msra.mxu0 0.0
    %272 = vmatprep.subr.mxu0 0.0
    %273 = vmatpush1.msra.mxu0 0.0
    %274 = vmatprep.subr.mxu0 0.0
    %275 = vmatpush1.msra.mxu0 0.0
    %276 = vmatprep.subr.mxu0 0.0
    %277 = vmatpush1.msra.mxu0 0.0
    %278 = vmatprep.subr.mxu0 0.0
    %279 = vmatpush1.msra.mxu0 0.0
    %280 = vmatprep.subr.mxu0 0.0
    %281 = vmatpush1.msra.mxu0 0.0
    %282 = vmatprep.subr.mxu0 0.0
    %283 = vmatpush1.msra.mxu0 0.0
    %284 = vmatprep.subr.mxu0 0.0
    %285 = vmatpush1.msra.mxu0 0.0
    %286 = vmatprep.subr.mxu0 0.0
    %287 = vmatpush1.msra.mxu0 0.0
    %288 = vmatprep.subr.mxu0 0.0
    %289 = vmatpush1.msra.mxu0 0.0
    %290 = vmatprep.subr.mxu0 0.0
    %291 = vmatpush1.msra.mxu0 0.0
    %292 = vmatprep.subr.mxu0 0.0
    %293 = vmatpush1.msra.mxu0 0.0
    %294 = vmatprep.subr.mxu0 0.0
    %295 = vmatpush1.msra.mxu0 0.0
    %296 = vmatprep.subr.mxu0 0.0
    %297 = vmatpush1.msra.mxu0 0.0
    %298 = vmatprep.subr.mxu0 0.0
    %299 = vmatpush1.msra.mxu0 0.0
    %300 = vmatprep.subr.mxu0 0.0
    %301 = vmatpush1.msra.mxu0 0.0
    %302 = vmatprep.subr.mxu0 0.0
    %303 = vmatpush1.msra.mxu0 0.0
    %304 = vmatprep.subr.mxu0 0.0
    %305 = vmatpush1.msra.mxu0 0.0
    %306 = vmatprep.subr.mxu0 0.0
    %307 = vmatpush1.msra.mxu0 0.0
    %308 = vmatprep.subr.mxu0 0.0
    %309 = vmatpush1.msra.mxu0 0.0
    %310 = vmatprep.subr.mxu0 0.0
    %311 = vmatpush1.msra.mxu0 0.0
    %312 = vmatprep.subr.mxu0 0.0
    %313 = vmatpush1.msra.mxu0 0.0
    %314 = vmatprep.subr.mxu0 0.0
    %315 = vmatpush1.msra.mxu0 0.0
    %316 = vmatprep.subr.mxu0 0.0
    %317 = vmatpush1.msra.mxu0 0.0
    %318 = vmatprep.subr.mxu0 0.0
    %319 = vmatpush1.msra.mxu0 0.0
    %320 = vmatprep.subr.mxu0 0.0
    %321 = vmatpush1.msra.mxu0 0.0
    %322 = vmatprep.subr.mxu0 0.0
    %323 = vmatpush1.msra.mxu0 0.0
    %324 = vmatprep.subr.mxu0 0.0
    %325 = vmatpush1.msra.mxu0 0.0
    %326 = vmatprep.subr.mxu0 0.0
    %327 = vmatpush1.msra.mxu0 0.0
    %328 = vmatprep.subr.mxu0 0.0
    %329 = vmatpush1.msra.mxu0 0.0
    %330 = vmatprep.mubr.f32.mxu0 0.0
    %331 = vmatmul.mubr.f32.gmra.mrb[0].mxu0 %v264
    %v332 = vpop.f32.mrb[0].mxu0
    %v333 = vadd.f32 %v260, %v332
    %v334 = vpop.f32.mrb[0].mxu0
    %335 = vdwg.mxu0
    %v336 = vld [vmem:[%s15] sm:$0xff]
    %v337 = vld [vmem:[%s15 + $0x8] sm:$0xff]
    %v338 = vld [vmem:[%s15 + $0x10] sm:$0xff]
    %v339 = vld [vmem:[%s15 + $0x18] sm:$0xff]
    %v340 = vld [vmem:[%s15 + $0x20] sm:$0xff]
    %v341 = vld [vmem:[%s15 + $0x28] sm:$0xff]
    %v342 = vld [vmem:[%s15 + $0x30] sm:$0xff]
    %v343 = vld [vmem:[%s15 + $0x38] sm:$0xff]
    %v344 = vld [vmem:[%s17] sm:$0xff]
    %v345 = vld [vmem:[%s17 + $0x8] sm:$0xff]
    %v346 = vld [vmem:[%s17 + $0x10] sm:$0xff]
    %v347 = vld [vmem:[%s17 + $0x18] sm:$0xff]
    %v348 = vld [vmem:[%s17 + $0x20] sm:$0xff]
    %v349 = vld [vmem:[%s17 + $0x28] sm:$0xff]
    %v350 = vld [vmem:[%s17 + $0x30] sm:$0xff]
    %v351 = vld [vmem:[%s17 + $0x38] sm:$0xff]
    %vm352 = vcmask 261120
    %v354 = vsel %vm352, %v333, 0
    %356 = vmatprep.subr.mxu0 %v345
    %357 = vmatpush1.msra.mxu0 %v344
    %358 = vmatprep.subr.mxu0 %v347
    %359 = vmatpush1.msra.mxu0 %v346
    %360 = vmatprep.subr.mxu0 %v349
    %361 = vmatpush1.msra.mxu0 %v348
    %362 = vmatprep.subr.mxu0 %v351
    %363 = vmatpush1.msra.mxu0 %v350
    %364 = vmatprep.subr.mxu0 0.0
    %365 = vmatpush1.msra.mxu0 0.0
    %366 = vmatprep.subr.mxu0 0.0
    %367 = vmatpush1.msra.mxu0 0.0
    %368 = vmatprep.subr.mxu0 0.0
    %369 = vmatpush1.msra.mxu0 0.0
    %370 = vmatprep.subr.mxu0 0.0
    %371 = vmatpush1.msra.mxu0 0.0
    %372 = vmatprep.subr.mxu0 0.0
    %373 = vmatpush1.msra.mxu0 0.0
    %374 = vmatprep.subr.mxu0 0.0
    %375 = vmatpush1.msra.mxu0 0.0
    %376 = vmatprep.subr.mxu0 0.0
    %377 = vmatpush1.msra.mxu0 0.0
    %378 = vmatprep.subr.mxu0 0.0
    %379 = vmatpush1.msra.mxu0 0.0
    %380 = vmatprep.subr.mxu0 0.0
    %381 = vmatpush1.msra.mxu0 0.0
    %382 = vmatprep.subr.mxu0 0.0
    %383 = vmatpush1.msra.mxu0 0.0
    %384 = vmatprep.subr.mxu0 0.0
    %385 = vmatpush1.msra.mxu0 0.0
    %386 = vmatprep.subr.mxu0 0.0
    %387 = vmatpush1.msra.mxu0 0.0
    %388 = vmatprep.subr.mxu0 0.0
    %389 = vmatpush1.msra.mxu0 0.0
    %390 = vmatprep.subr.mxu0 0.0
    %391 = vmatpush1.msra.mxu0 0.0
    %392 = vmatprep.subr.mxu0 0.0
    %393 = vmatpush1.msra.mxu0 0.0
    %394 = vmatprep.subr.mxu0 0.0
    %395 = vmatpush1.msra.mxu0 0.0
    %396 = vmatprep.subr.mxu0 0.0
    %397 = vmatpush1.msra.mxu0 0.0
    %398 = vmatprep.subr.mxu0 0.0
    %399 = vmatpush1.msra.mxu0 0.0
    %400 = vmatprep.subr.mxu0 0.0
    %401 = vmatpush1.msra.mxu0 0.0
    %402 = vmatprep.subr.mxu0 0.0
    %403 = vmatpush1.msra.mxu0 0.0
    %404 = vmatprep.subr.mxu0 0.0
    %405 = vmatpush1.msra.mxu0 0.0
    %406 = vmatprep.subr.mxu0 0.0
    %407 = vmatpush1.msra.mxu0 0.0
    %408 = vmatprep.subr.mxu0 0.0
    %409 = vmatpush1.msra.mxu0 0.0
    %410 = vmatprep.subr.mxu0 0.0
    %411 = vmatpush1.msra.mxu0 0.0
    %412 = vmatprep.subr.mxu0 0.0
    %413 = vmatpush1.msra.mxu0 0.0
    %414 = vmatprep.subr.mxu0 0.0
    %415 = vmatpush1.msra.mxu0 0.0
    %416 = vmatprep.subr.mxu0 0.0
    %417 = vmatpush1.msra.mxu0 0.0
    %418 = vmatprep.subr.mxu0 0.0
    %419 = vmatpush1.msra.mxu0 0.0
    %420 = vmatprep.mubr.f32.mxu0 0.0
    %421 = vmatmul.mubr.f32.gmra.mrb[0].mxu0 %v354
    %v422 = vpop.f32.mrb[0].mxu0
    %v423 = vadd.f32 0.0, %v422
    %v424 = vpop.f32.mrb[0].mxu0
    %v425 = vadd.f32 0.0, %v424
    %426 = vdwg.mxu0
    %v428 = vsel %vm352, %v187, 0
    %430 = vmatprep.subr.mxu0 %v337
    %431 = vmatpush1.msra.mxu0 %v336
    %432 = vmatprep.subr.mxu0 %v339
    %433 = vmatpush1.msra.mxu0 %v338
    %434 = vmatprep.subr.mxu0 %v341
    %435 = vmatpush1.msra.mxu0 %v340
    %436 = vmatprep.subr.mxu0 %v343
    %437 = vmatpush1.msra.mxu0 %v342
    %438 = vmatprep.subr.mxu0 0.0
    %439 = vmatpush1.msra.mxu0 0.0
    %440 = vmatprep.subr.mxu0 0.0
    %441 = vmatpush1.msra.mxu0 0.0
    %442 = vmatprep.subr.mxu0 0.0
    %443 = vmatpush1.msra.mxu0 0.0
    %444 = vmatprep.subr.mxu0 0.0
    %445 = vmatpush1.msra.mxu0 0.0
    %446 = vmatprep.subr.mxu0 0.0
    %447 = vmatpush1.msra.mxu0 0.0
    %448 = vmatprep.subr.mxu0 0.0
    %449 = vmatpush1.msra.mxu0 0.0
    %450 = vmatprep.subr.mxu0 0.0
    %451 = vmatpush1.msra.mxu0 0.0
    %452 = vmatprep.subr.mxu0 0.0
    %453 = vmatpush1.msra.mxu0 0.0
    %454 = vmatprep.subr.mxu0 0.0
    %455 = vmatpush1.msra.mxu0 0.0
    %456 = vmatprep.subr.mxu0 0.0
    %457 = vmatpush1.msra.mxu0 0.0
    %458 = vmatprep.subr.mxu0 0.0
    %459 = vmatpush1.msra.mxu0 0.0
    %460 = vmatprep.subr.mxu0 0.0
    %461 = vmatpush1.msra.mxu0 0.0
    %462 = vmatprep.subr.mxu0 0.0
    %463 = vmatpush1.msra.mxu0 0.0
    %464 = vmatprep.subr.mxu0 0.0
    %465 = vmatpush1.msra.mxu0 0.0
    %466 = vmatprep.subr.mxu0 0.0
    %467 = vmatpush1.msra.mxu0 0.0
    %468 = vmatprep.subr.mxu0 0.0
    %469 = vmatpush1.msra.mxu0 0.0
    %470 = vmatprep.subr.mxu0 0.0
    %471 = vmatpush1.msra.mxu0 0.0
    %472 = vmatprep.subr.mxu0 0.0
    %473 = vmatpush1.msra.mxu0 0.0
    %474 = vmatprep.subr.mxu0 0.0
    %475 = vmatpush1.msra.mxu0 0.0
    %476 = vmatprep.subr.mxu0 0.0
    %477 = vmatpush1.msra.mxu0 0.0
    %478 = vmatprep.subr.mxu0 0.0
    %479 = vmatpush1.msra.mxu0 0.0
    %480 = vmatprep.subr.mxu0 0.0
    %481 = vmatpush1.msra.mxu0 0.0
    %482 = vmatprep.subr.mxu0 0.0
    %483 = vmatpush1.msra.mxu0 0.0
    %484 = vmatprep.subr.mxu0 0.0
    %485 = vmatpush1.msra.mxu0 0.0
    %486 = vmatprep.subr.mxu0 0.0
    %487 = vmatpush1.msra.mxu0 0.0
    %488 = vmatprep.subr.mxu0 0.0
    %489 = vmatpush1.msra.mxu0 0.0
    %490 = vmatprep.subr.mxu0 0.0
    %491 = vmatpush1.msra.mxu0 0.0
    %492 = vmatprep.subr.mxu0 0.0
    %493 = vmatpush1.msra.mxu0 0.0
    %494 = vmatprep.mubr.f32.mxu0 0.0
    %495 = vmatmul.mubr.f32.gmra.mrb[0].mxu0 %v428
    %v496 = vpop.f32.mrb[0].mxu0
    %v497 = vadd.f32 %v423, %v496
    %v498 = vpop.f32.mrb[0].mxu0
    %v499 = vadd.f32 %v425, %v498
    %500 = vdwg.mxu0
    %v501 = vld [vmem:[%s19] sm:$0x3]
    %v503 = vlaneseq
    %v504 = vshrl.u32 %v503, 7
    %v505 = vsub.s32 0, %v504
    %v506 = vrot.slane %v501, %v505
    %v507 = vlaneseq
    %v508 = vshrl.u32 %v507, 7
    %v509 = vsub.s32 1, %v508
    %v510 = vrot.slane %v501, %v509
    %v513 = vadd.f32 %v497, %v506
    %v514 = vadd.f32 %v499, %v510
    %v515 = vld [vmem:[%s21] sm:$0xff]
    %v516 = vld [vmem:[%s21 + $0x8] sm:$0xff]
    %v517 = vld [vmem:[%s21 + $0x10] sm:$0xff]
    %v518 = vld [vmem:[%s21 + $0x18] sm:$0xff]
    %v519 = vld [vmem:[%s23] sm:$0x1]
    %v521 = vlaneseq
    %v522 = vshrl.u32 %v521, 7
    %v523 = vsub.s32 0, %v522
    %v524 = vrot.slane %v519, %v523
    %v527 = vsel %vm352, %v189, 0
    %v530 = vsel %vm352, %v190, 0
    %v533 = vsel %vm352, %v191, 0
    %v536 = vsel %vm352, %v192, 0
    %v539 = vsel %vm352, %v193, 0
    %v542 = vsel %vm352, %v194, 0
    %v545 = vsel %vm352, %v195, 0
    %v548 = vsel %vm352, %v196, 0
    %550 = vmatprep.subr.mxu0 0.0
    %551 = vmatpush1.msra.mxu0 %v515
    %552 = vmatprep.subr.mxu0 0.0
    %553 = vmatpush1.msra.mxu0 %v516
    %554 = vmatprep.subr.mxu0 0.0
    %555 = vmatpush1.msra.mxu0 %v517
    %556 = vmatprep.subr.mxu0 0.0
    %557 = vmatpush1.msra.mxu0 %v518
    %558 = vmatprep.subr.mxu0 0.0
    %559 = vmatpush1.msra.mxu0 0.0
    %560 = vmatprep.subr.mxu0 0.0
    %561 = vmatpush1.msra.mxu0 0.0
    %562 = vmatprep.subr.mxu0 0.0
    %563 = vmatpush1.msra.mxu0 0.0
    %564 = vmatprep.subr.mxu0 0.0
    %565 = vmatpush1.msra.mxu0 0.0
    %566 = vmatprep.subr.mxu0 0.0
    %567 = vmatpush1.msra.mxu0 0.0
    %568 = vmatprep.subr.mxu0 0.0
    %569 = vmatpush1.msra.mxu0 0.0
    %570 = vmatprep.subr.mxu0 0.0
    %571 = vmatpush1.msra.mxu0 0.0
    %572 = vmatprep.subr.mxu0 0.0
    %573 = vmatpush1.msra.mxu0 0.0
    %574 = vmatprep.subr.mxu0 0.0
    %575 = vmatpush1.msra.mxu0 0.0
    %576 = vmatprep.subr.mxu0 0.0
    %577 = vmatpush1.msra.mxu0 0.0
    %578 = vmatprep.subr.mxu0 0.0
    %579 = vmatpush1.msra.mxu0 0.0
    %580 = vmatprep.subr.mxu0 0.0
    %581 = vmatpush1.msra.mxu0 0.0
    %582 = vmatprep.subr.mxu0 0.0
    %583 = vmatpush1.msra.mxu0 0.0
    %584 = vmatprep.subr.mxu0 0.0
    %585 = vmatpush1.msra.mxu0 0.0
    %586 = vmatprep.subr.mxu0 0.0
    %587 = vmatpush1.msra.mxu0 0.0
    %588 = vmatprep.subr.mxu0 0.0
    %589 = vmatpush1.msra.mxu0 0.0
    %590 = vmatprep.subr.mxu0 0.0
    %591 = vmatpush1.msra.mxu0 0.0
    %592 = vmatprep.subr.mxu0 0.0
    %593 = vmatpush1.msra.mxu0 0.0
    %594 = vmatprep.subr.mxu0 0.0
    %595 = vmatpush1.msra.mxu0 0.0
    %596 = vmatprep.subr.mxu0 0.0
    %597 = vmatpush1.msra.mxu0 0.0
    %598 = vmatprep.subr.mxu0 0.0
    %599 = vmatpush1.msra.mxu0 0.0
    %600 = vmatprep.subr.mxu0 0.0
    %601 = vmatpush1.msra.mxu0 0.0
    %602 = vmatprep.subr.mxu0 0.0
    %603 = vmatpush1.msra.mxu0 0.0
    %604 = vmatprep.subr.mxu0 0.0
    %605 = vmatpush1.msra.mxu0 0.0
    %606 = vmatprep.subr.mxu0 0.0
    %607 = vmatpush1.msra.mxu0 0.0
    %608 = vmatprep.subr.mxu0 0.0
    %609 = vmatpush1.msra.mxu0 0.0
    %610 = vmatprep.subr.mxu0 0.0
    %611 = vmatpush1.msra.mxu0 0.0
    %612 = vmatprep.subr.mxu0 0.0
    %613 = vmatpush1.msra.mxu0 0.0
    %614 = vmatprep.mubr.f32.mxu0 0.0
    %615 = vmatmul.mubr.f32.gmra.mrb[0].mxu0 %v527
    %v616 = vpop.f32.mrb[0].mxu0
    %v617 = vadd.f32 %v524, %v616
    %v618 = vpop.f32.mrb[0].mxu0
    %619 = vmatprep.mubr.f32.mxu0 0.0
    %620 = vmatmul.mubr.f32.gmra.mrb[0].mxu0 %v530
    %v621 = vpop.f32.mrb[0].mxu0
    %v622 = vadd.f32 %v524, %v621
    %v623 = vpop.f32.mrb[0].mxu0
    %624 = vmatprep.mubr.f32.mxu0 0.0
    %625 = vmatmul.mubr.f32.gmra.mrb[0].mxu0 %v533
    %v626 = vpop.f32.mrb[0].mxu0
    %v627 = vadd.f32 %v524, %v626
    %v628 = vpop.f32.mrb[0].mxu0
    %629 = vmatprep.mubr.f32.mxu0 0.0
    %630 = vmatmul.mubr.f32.gmra.mrb[0].mxu0 %v536
    %v631 = vpop.f32.mrb[0].mxu0
    %v632 = vadd.f32 %v524, %v631
    %v633 = vpop.f32.mrb[0].mxu0
    %634 = vmatprep.mubr.f32.mxu0 0.0
    %635 = vmatmul.mubr.f32.gmra.mrb[0].mxu0 %v539
    %v636 = vpop.f32.mrb[0].mxu0
    %v637 = vadd.f32 %v524, %v636
    %v638 = vpop.f32.mrb[0].mxu0
    %639 = vmatprep.mubr.f32.mxu0 0.0
    %640 = vmatmul.mubr.f32.gmra.mrb[0].mxu0 %v542
    %v641 = vpop.f32.mrb[0].mxu0
    %v642 = vadd.f32 %v524, %v641
    %v643 = vpop.f32.mrb[0].mxu0
    %644 = vmatprep.mubr.f32.mxu0 0.0
    %645 = vmatmul.mubr.f32.gmra.mrb[0].mxu0 %v545
    %v646 = vpop.f32.mrb[0].mxu0
    %v647 = vadd.f32 %v524, %v646
    %v648 = vpop.f32.mrb[0].mxu0
    %649 = vmatprep.mubr.f32.mxu0 0.0
    %650 = vmatmul.mubr.f32.gmra.mrb[0].mxu0 %v548
    %v651 = vpop.f32.mrb[0].mxu0
    %v652 = vadd.f32 %v524, %v651
    %v653 = vpop.f32.mrb[0].mxu0
    %654 = vdwg.mxu0
    %v656 = vcombine.high %v513, %v513
    %v658 = vunpack.c.l.s4 1966171168
    %v659 = vunpack.c.0.s8 %v658
    %v660 = vlaneseq
    %v661 = vshrl.u32 %v660, 7
    %v662 = vsub.s32 %v659, %v661
    %v663 = vrot.slane %v513, %v662
    %v665 = vunpack.c.l.s4 1966171168
    %v666 = vunpack.c.0.s8 %v665
    %v667 = vlaneseq
    %v668 = vshrl.u32 %v667, 7
    %v669 = vsub.s32 %v666, %v668
    %v670 = vrot.slane %v656, %v669
    %v671 = vcombine.high %v663, %v663
    %v672 = vcombine.high %v670, %v670
    %v674 = vunpack.c.l.s4 1966171168
    %v675 = vunpack.c.0.s8 %v674
    %v676 = vlaneseq
    %v677 = vshrl.u32 %v676, 7
    %v678 = vsub.s32 %v675, %v677
    %v679 = vrot.slane %v663, %v678
    %v681 = vunpack.c.l.s4 1966171168
    %v682 = vunpack.c.0.s8 %v681
    %v683 = vlaneseq
    %v684 = vshrl.u32 %v683, 7
    %v685 = vsub.s32 %v682, %v684
    %v686 = vrot.slane %v670, %v685
    %v688 = vunpack.c.l.s4 1966171168
    %v689 = vunpack.c.0.s8 %v688
    %v690 = vlaneseq
    %v691 = vshrl.u32 %v690, 7
    %v692 = vsub.s32 %v689, %v691
    %v693 = vrot.slane %v671, %v692
    %v695 = vunpack.c.l.s4 1966171168
    %v696 = vunpack.c.0.s8 %v695
    %v697 = vlaneseq
    %v698 = vshrl.u32 %v697, 7
    %v699 = vsub.s32 %v696, %v698
    %v700 = vrot.slane %v672, %v699
    %v701 = vcombine.high %v679, %v679
    %v702 = vcombine.high %v686, %v686
    %v703 = vcombine.high %v693, %v693
    %v704 = vcombine.high %v700, %v700
    %v705 = vlaneseq
    %v706 = vshrl.u32 %v705, 7
    %v707 = vsub.s32 0, %v706
    %v708 = vrot.slane %v679, %v707
    %v709 = vlaneseq
    %v710 = vshrl.u32 %v709, 7
    %v711 = vsub.s32 0, %v710
    %v712 = vrot.slane %v693, %v711
    %v713 = vlaneseq
    %v714 = vshrl.u32 %v713, 7
    %v715 = vsub.s32 0, %v714
    %v716 = vrot.slane %v701, %v715
    %v717 = vlaneseq
    %v718 = vshrl.u32 %v717, 7
    %v719 = vsub.s32 0, %v718
    %v720 = vrot.slane %v703, %v719
    %v721 = vlaneseq
    %v722 = vshrl.u32 %v721, 7
    %v723 = vsub.s32 0, %v722
    %v724 = vrot.slane %v686, %v723
    %v725 = vlaneseq
    %v726 = vshrl.u32 %v725, 7
    %v727 = vsub.s32 0, %v726
    %v728 = vrot.slane %v700, %v727
    %v729 = vlaneseq
    %v730 = vshrl.u32 %v729, 7
    %v731 = vsub.s32 0, %v730
    %v732 = vrot.slane %v702, %v731
    %v733 = vlaneseq
    %v734 = vshrl.u32 %v733, 7
    %v735 = vsub.s32 0, %v734
    %v736 = vrot.slane %v704, %v735
    %737 = vrot.lane.b32.xlu0 %v708, 96
    %v738 = vpop.permute.xlu0 %737
    %739 = vrot.lane.b32.xlu0 %v712, 96
    %v740 = vpop.permute.xlu0 %739
    %741 = vrot.lane.b32.xlu0 %v716, 96
    %v742 = vpop.permute.xlu0 %741
    %743 = vrot.lane.b32.xlu0 %v720, 96
    %v744 = vpop.permute.xlu0 %743
    %745 = vrot.lane.b32.xlu0 %v724, 96
    %v746 = vpop.permute.xlu0 %745
    %747 = vrot.lane.b32.xlu0 %v728, 96
    %v748 = vpop.permute.xlu0 %747
    %749 = vrot.lane.b32.xlu0 %v732, 96
    %v750 = vpop.permute.xlu0 %749
    %751 = vrot.lane.b32.xlu0 %v736, 96
    %v752 = vpop.permute.xlu0 %751
    %v761 = vadd.f32 %v513, %v738
    %v762 = vadd.f32 %v513, %v740
    %v763 = vadd.f32 %v513, %v742
    %v764 = vadd.f32 %v513, %v744
    %v765 = vadd.f32 %v513, %v746
    %v766 = vadd.f32 %v513, %v748
    %v767 = vadd.f32 %v513, %v750
    %v768 = vadd.f32 %v513, %v752
    %777 = vrot.lane.b32.xlu0 %v617, 64
    %v778 = vpop.permute.xlu0 %777
    %779 = vrot.lane.b32.xlu0 %v622, 64
    %v780 = vpop.permute.xlu0 %779
    %781 = vrot.lane.b32.xlu0 %v627, 64
    %v782 = vpop.permute.xlu0 %781
    %783 = vrot.lane.b32.xlu0 %v632, 64
    %v784 = vpop.permute.xlu0 %783
    %785 = vrot.lane.b32.xlu0 %v637, 64
    %v786 = vpop.permute.xlu0 %785
    %787 = vrot.lane.b32.xlu0 %v642, 64
    %v788 = vpop.permute.xlu0 %787
    %789 = vrot.lane.b32.xlu0 %v647, 64
    %v790 = vpop.permute.xlu0 %789
    %791 = vrot.lane.b32.xlu0 %v652, 64
    %v792 = vpop.permute.xlu0 %791
    %v801 = vadd.f32 %v761, %v778
    %v802 = vadd.f32 %v762, %v780
    %v803 = vadd.f32 %v763, %v782
    %v804 = vadd.f32 %v764, %v784
    %v805 = vadd.f32 %v765, %v786
    %v806 = vadd.f32 %v766, %v788
    %v807 = vadd.f32 %v767, %v790
    %v808 = vadd.f32 %v768, %v792
    %v809 = vxor.u32 %v801, 2147483648
    %v810 = vxor.u32 %v802, 2147483648
    %v811 = vxor.u32 %v803, 2147483648
    %v812 = vxor.u32 %v804, 2147483648
    %v813 = vxor.u32 %v805, 2147483648
    %v814 = vxor.u32 %v806, 2147483648
    %v815 = vxor.u32 %v807, 2147483648
    %v816 = vxor.u32 %v808, 2147483648
    %v817 = vmul.f32 %v809, 1.442695
    %v818 = vpow.pop %v817
    %v819 = vmul.f32 %v810, 1.442695
    %v820 = vpow.pop %v819
    %v821 = vmul.f32 %v811, 1.442695
    %v822 = vpow.pop %v821
    %v823 = vmul.f32 %v812, 1.442695
    %v824 = vpow.pop %v823
    %v825 = vmul.f32 %v813, 1.442695
    %v826 = vpow.pop %v825
    %v827 = vmul.f32 %v814, 1.442695
    %v828 = vpow.pop %v827
    %v829 = vmul.f32 %v815, 1.442695
    %v830 = vpow.pop %v829
    %v831 = vmul.f32 %v816, 1.442695
    %v832 = vpow.pop %v831
    %v833 = vadd.f32 %v818, 1.0
    %v834 = vadd.f32 %v820, 1.0
    %v835 = vadd.f32 %v822, 1.0
    %v836 = vadd.f32 %v824, 1.0
    %v837 = vadd.f32 %v826, 1.0
    %v838 = vadd.f32 %v828, 1.0
    %v839 = vadd.f32 %v830, 1.0
    %v840 = vadd.f32 %v832, 1.0
    %v841 = vrcp.pop %v833
    %v842 = vmul.f32 1.0, %v841
    %v843 = vrcp.pop %v834
    %v844 = vmul.f32 1.0, %v843
    %v845 = vrcp.pop %v835
    %v846 = vmul.f32 1.0, %v845
    %v847 = vrcp.pop %v836
    %v848 = vmul.f32 1.0, %v847
    %v849 = vrcp.pop %v837
    %v850 = vmul.f32 1.0, %v849
    %v851 = vrcp.pop %v838
    %v852 = vmul.f32 1.0, %v851
    %v853 = vrcp.pop %v839
    %v854 = vmul.f32 1.0, %v853
    %v855 = vrcp.pop %v840
    %v856 = vmul.f32 1.0, %v855
    %v857 = vmul.f32 %v842, %v203
    %v858 = vmul.f32 %v844, %v210
    %v859 = vmul.f32 %v846, %v217
    %v860 = vmul.f32 %v848, %v224
    %v861 = vmul.f32 %v850, %v231
    %v862 = vmul.f32 %v852, %v238
    %v863 = vmul.f32 %v854, %v245
    %v864 = vmul.f32 %v856, %v252
    %vm865 = vcmask 785920
    %v866 = vsel %vm865, %v857, 0.0
    %v867 = vrot.slane %v866, 4
    %v868 = vadd.f32 %v866, %v867
    %v869 = vrot.slane %v868, 2
    %v870 = vadd.f32 %v868, %v869
    %v871 = vrot.slane %v870, 1
    %v872 = vadd.f32 %v870, %v871
    %v873 = vsel %vm865, %v858, 0.0
    %v874 = vrot.slane %v873, 4
    %v875 = vadd.f32 %v873, %v874
    %v876 = vrot.slane %v875, 2
    %v877 = vadd.f32 %v875, %v876
    %v878 = vrot.slane %v877, 1
    %v879 = vadd.f32 %v877, %v878
    %v880 = vsel %vm865, %v859, 0.0
    %v881 = vrot.slane %v880, 4
    %v882 = vadd.f32 %v880, %v881
    %v883 = vrot.slane %v882, 2
    %v884 = vadd.f32 %v882, %v883
    %v885 = vrot.slane %v884, 1
    %v886 = vadd.f32 %v884, %v885
    %v887 = vsel %vm865, %v860, 0.0
    %v888 = vrot.slane %v887, 4
    %v889 = vadd.f32 %v887, %v888
    %v890 = vrot.slane %v889, 2
    %v891 = vadd.f32 %v889, %v890
    %v892 = vrot.slane %v891, 1
    %v893 = vadd.f32 %v891, %v892
    %v894 = vsel %vm865, %v861, 0.0
    %v895 = vrot.slane %v894, 4
    %v896 = vadd.f32 %v894, %v895
    %v897 = vrot.slane %v896, 2
    %v898 = vadd.f32 %v896, %v897
    %v899 = vrot.slane %v898, 1
    %v900 = vadd.f32 %v898, %v899
    %v901 = vsel %vm865, %v862, 0.0
    %v902 = vrot.slane %v901, 4
    %v903 = vadd.f32 %v901, %v902
    %v904 = vrot.slane %v903, 2
    %v905 = vadd.f32 %v903, %v904
    %v906 = vrot.slane %v905, 1
    %v907 = vadd.f32 %v905, %v906
    %v908 = vsel %vm865, %v863, 0.0
    %v909 = vrot.slane %v908, 4
    %v910 = vadd.f32 %v908, %v909
    %v911 = vrot.slane %v910, 2
    %v912 = vadd.f32 %v910, %v911
    %v913 = vrot.slane %v912, 1
    %v914 = vadd.f32 %v912, %v913
    %v915 = vsel %vm865, %v864, 0.0
    %v916 = vrot.slane %v915, 4
    %v917 = vadd.f32 %v915, %v916
    %v918 = vrot.slane %v917, 2
    %v919 = vadd.f32 %v917, %v918
    %v920 = vrot.slane %v919, 1
    %v921 = vadd.f32 %v919, %v920
    %v922 = vadd.f32 %v872, 1e-06
    %v923 = vadd.f32 %v879, 1e-06
    %v924 = vadd.f32 %v886, 1e-06
    %v925 = vadd.f32 %v893, 1e-06
    %v926 = vadd.f32 %v900, 1e-06
    %v927 = vadd.f32 %v907, 1e-06
    %v928 = vadd.f32 %v914, 1e-06
    %v929 = vadd.f32 %v921, 1e-06
    %v930 = vrcp.pop %v922
    %v931 = vrcp.pop %v923
    %v932 = vrcp.pop %v924
    %v933 = vrcp.pop %v925
    %v934 = vrcp.pop %v926
    %v935 = vrcp.pop %v927
    %v936 = vrcp.pop %v928
    %v937 = vrcp.pop %v929
    %938 = vrot.lane.b32.xlu0 %v513, 32
    %v939 = vpop.permute.xlu0 %938
    %v941 = vmul.f32 %v857, %v939
    %v942 = vmul.f32 %v858, %v939
    %v943 = vmul.f32 %v859, %v939
    %v944 = vmul.f32 %v860, %v939
    %v945 = vmul.f32 %v861, %v939
    %v946 = vmul.f32 %v862, %v939
    %v947 = vmul.f32 %v863, %v939
    %v948 = vmul.f32 %v864, %v939
    %v949 = vsel %vm865, %v941, 0.0
    %v950 = vrot.slane %v949, 4
    %v951 = vadd.f32 %v949, %v950
    %v952 = vrot.slane %v951, 2
    %v953 = vadd.f32 %v951, %v952
    %v954 = vrot.slane %v953, 1
    %v955 = vadd.f32 %v953, %v954
    %v956 = vsel %vm865, %v942, 0.0
    %v957 = vrot.slane %v956, 4
    %v958 = vadd.f32 %v956, %v957
    %v959 = vrot.slane %v958, 2
    %v960 = vadd.f32 %v958, %v959
    %v961 = vrot.slane %v960, 1
    %v962 = vadd.f32 %v960, %v961
    %v963 = vsel %vm865, %v943, 0.0
    %v964 = vrot.slane %v963, 4
    %v965 = vadd.f32 %v963, %v964
    %v966 = vrot.slane %v965, 2
    %v967 = vadd.f32 %v965, %v966
    %v968 = vrot.slane %v967, 1
    %v969 = vadd.f32 %v967, %v968
    %v970 = vsel %vm865, %v944, 0.0
    %v971 = vrot.slane %v970, 4
    %v972 = vadd.f32 %v970, %v971
    %v973 = vrot.slane %v972, 2
    %v974 = vadd.f32 %v972, %v973
    %v975 = vrot.slane %v974, 1
    %v976 = vadd.f32 %v974, %v975
    %v977 = vsel %vm865, %v945, 0.0
    %v978 = vrot.slane %v977, 4
    %v979 = vadd.f32 %v977, %v978
    %v980 = vrot.slane %v979, 2
    %v981 = vadd.f32 %v979, %v980
    %v982 = vrot.slane %v981, 1
    %v983 = vadd.f32 %v981, %v982
    %v984 = vsel %vm865, %v946, 0.0
    %v985 = vrot.slane %v984, 4
    %v986 = vadd.f32 %v984, %v985
    %v987 = vrot.slane %v986, 2
    %v988 = vadd.f32 %v986, %v987
    %v989 = vrot.slane %v988, 1
    %v990 = vadd.f32 %v988, %v989
    %v991 = vsel %vm865, %v947, 0.0
    %v992 = vrot.slane %v991, 4
    %v993 = vadd.f32 %v991, %v992
    %v994 = vrot.slane %v993, 2
    %v995 = vadd.f32 %v993, %v994
    %v996 = vrot.slane %v995, 1
    %v997 = vadd.f32 %v995, %v996
    %v998 = vsel %vm865, %v948, 0.0
    %v999 = vrot.slane %v998, 4
    %v1000 = vadd.f32 %v998, %v999
    %v1001 = vrot.slane %v1000, 2
    %v1002 = vadd.f32 %v1000, %v1001
    %v1003 = vrot.slane %v1002, 1
    %v1004 = vadd.f32 %v1002, %v1003
    %v1005 = vmul.f32 %v955, %v930
    %v1006 = vmul.f32 %v962, %v931
    %v1007 = vmul.f32 %v969, %v932
    %v1008 = vmul.f32 %v976, %v933
    %v1009 = vmul.f32 %v983, %v934
    %v1010 = vmul.f32 %v990, %v935
    %v1011 = vmul.f32 %v997, %v936
    %v1012 = vmul.f32 %v1004, %v937
    %vm1021 = vcmask 1041409
    %v1022 = vsel %vm1021, %v1006, %v1005
    %vm1023 = vcmask 1042434
    %v1024 = vsel %vm1023, %v1007, %v1022
    %vm1025 = vcmask 1043459
    %v1026 = vsel %vm1025, %v1008, %v1024
    %vm1027 = vcmask 1044484
    %v1028 = vsel %vm1027, %v1009, %v1026
    %vm1029 = vcmask 1045509
    %v1030 = vsel %vm1029, %v1010, %v1028
    %vm1031 = vcmask 1046534
    %v1032 = vsel %vm1031, %v1011, %v1030
    %vm1033 = vcmask 1047559
    %v1034 = vsel %vm1033, %v1012, %v1032
    %1035 = vrot.lane.b32.xlu0 %v1034, 64
    %v1036 = vpop.permute.xlu0 %1035
    %v1038 = vadd.f32 %v513, %v1036
    %1040 = vrot.lane.b32.xlu0 %v514, 32
    %v1041 = vpop.permute.xlu0 %1040
    %v1043 = vmul.f32 %v857, %v1041
    %v1044 = vmul.f32 %v858, %v1041
    %v1045 = vmul.f32 %v859, %v1041
    %v1046 = vmul.f32 %v860, %v1041
    %v1047 = vmul.f32 %v861, %v1041
    %v1048 = vmul.f32 %v862, %v1041
    %v1049 = vmul.f32 %v863, %v1041
    %v1050 = vmul.f32 %v864, %v1041
    %v1051 = vsel %vm865, %v1043, 0.0
    %v1052 = vrot.slane %v1051, 4
    %v1053 = vadd.f32 %v1051, %v1052
    %v1054 = vrot.slane %v1053, 2
    %v1055 = vadd.f32 %v1053, %v1054
    %v1056 = vrot.slane %v1055, 1
    %v1057 = vadd.f32 %v1055, %v1056
    %v1058 = vsel %vm865, %v1044, 0.0
    %v1059 = vrot.slane %v1058, 4
    %v1060 = vadd.f32 %v1058, %v1059
    %v1061 = vrot.slane %v1060, 2
    %v1062 = vadd.f32 %v1060, %v1061
    %v1063 = vrot.slane %v1062, 1
    %v1064 = vadd.f32 %v1062, %v1063
    %v1065 = vsel %vm865, %v1045, 0.0
    %v1066 = vrot.slane %v1065, 4
    %v1067 = vadd.f32 %v1065, %v1066
    %v1068 = vrot.slane %v1067, 2
    %v1069 = vadd.f32 %v1067, %v1068
    %v1070 = vrot.slane %v1069, 1
    %v1071 = vadd.f32 %v1069, %v1070
    %v1072 = vsel %vm865, %v1046, 0.0
    %v1073 = vrot.slane %v1072, 4
    %v1074 = vadd.f32 %v1072, %v1073
    %v1075 = vrot.slane %v1074, 2
    %v1076 = vadd.f32 %v1074, %v1075
    %v1077 = vrot.slane %v1076, 1
    %v1078 = vadd.f32 %v1076, %v1077
    %v1079 = vsel %vm865, %v1047, 0.0
    %v1080 = vrot.slane %v1079, 4
    %v1081 = vadd.f32 %v1079, %v1080
    %v1082 = vrot.slane %v1081, 2
    %v1083 = vadd.f32 %v1081, %v1082
    %v1084 = vrot.slane %v1083, 1
    %v1085 = vadd.f32 %v1083, %v1084
    %v1086 = vsel %vm865, %v1048, 0.0
    %v1087 = vrot.slane %v1086, 4
    %v1088 = vadd.f32 %v1086, %v1087
    %v1089 = vrot.slane %v1088, 2
    %v1090 = vadd.f32 %v1088, %v1089
    %v1091 = vrot.slane %v1090, 1
    %v1092 = vadd.f32 %v1090, %v1091
    %v1093 = vsel %vm865, %v1049, 0.0
    %v1094 = vrot.slane %v1093, 4
    %v1095 = vadd.f32 %v1093, %v1094
    %v1096 = vrot.slane %v1095, 2
    %v1097 = vadd.f32 %v1095, %v1096
    %v1098 = vrot.slane %v1097, 1
    %v1099 = vadd.f32 %v1097, %v1098
    %v1100 = vsel %vm865, %v1050, 0.0
    %v1101 = vrot.slane %v1100, 4
    %v1102 = vadd.f32 %v1100, %v1101
    %v1103 = vrot.slane %v1102, 2
    %v1104 = vadd.f32 %v1102, %v1103
    %v1105 = vrot.slane %v1104, 1
    %v1106 = vadd.f32 %v1104, %v1105
    %v1107 = vmul.f32 %v1057, %v930
    %v1108 = vmul.f32 %v1064, %v931
    %v1109 = vmul.f32 %v1071, %v932
    %v1110 = vmul.f32 %v1078, %v933
    %v1111 = vmul.f32 %v1085, %v934
    %v1112 = vmul.f32 %v1092, %v935
    %v1113 = vmul.f32 %v1099, %v936
    %v1114 = vmul.f32 %v1106, %v937
    %v1123 = vsel %vm1021, %v1108, %v1107
    %v1124 = vsel %vm1023, %v1109, %v1123
    %v1125 = vsel %vm1025, %v1110, %v1124
    %v1126 = vsel %vm1027, %v1111, %v1125
    %v1127 = vsel %vm1029, %v1112, %v1126
    %v1128 = vsel %vm1031, %v1113, %v1127
    %v1129 = vsel %vm1033, %v1114, %v1128
    %1130 = vrot.lane.b32.xlu0 %v1129, 64
    %v1131 = vpop.permute.xlu0 %1130
    %v1133 = vadd.f32 %v514, %v1131
    %v1134 = vld [vmem:[%s25] sm:$0x1]
    %v1136 = vlaneseq
    %v1137 = vshrl.u32 %v1136, 7
    %v1138 = vsub.s32 0, %v1137
    %v1139 = vrot.slane %v1134, %v1138
    %v1141 = vmul.f32 %v1038, %v1139
    %v1142 = vld [vmem:[%s27] sm:$0x1]
    %v1144 = vlaneseq
    %v1145 = vshrl.u32 %v1144, 7
    %v1146 = vsub.s32 0, %v1145
    %v1147 = vrot.slane %v1142, %v1146
    %v1149 = vadd.f32 %v1141, %v1147
    %v1150 = vmax.f32 %v1149, 0.0
    %v1151 = vadd.f32 %v187, %v1150
    %v1152 = vtanh.pop %v1133
    %v1153 = vadd.f32 %v333, %v1152
    %v1154 = vld [vmem:[%s29] sm:$0x1]
    %v1156 = vlaneseq
    %v1157 = vshrl.u32 %v1156, 7
    %v1158 = vsub.s32 0, %v1157
    %v1159 = vrot.slane %v1154, %v1158
    %1160 = vrot.lane.b32.xlu0 %v1159, 64
    %v1161 = vpop.permute.xlu0 %1160
    %v1163 = vmul.f32 %v801, %v1161
    %v1164 = vmul.f32 %v802, %v1161
    %v1165 = vmul.f32 %v803, %v1161
    %v1166 = vmul.f32 %v804, %v1161
    %v1167 = vmul.f32 %v805, %v1161
    %v1168 = vmul.f32 %v806, %v1161
    %v1169 = vmul.f32 %v807, %v1161
    %v1170 = vmul.f32 %v808, %v1161
    %v1171 = vld [vmem:[%s31] sm:$0x1]
    %v1173 = vlaneseq
    %v1174 = vshrl.u32 %v1173, 7
    %v1175 = vsub.s32 0, %v1174
    %v1176 = vrot.slane %v1171, %v1175
    %1177 = vrot.lane.b32.xlu0 %v1176, 64
    %v1178 = vpop.permute.xlu0 %1177
    %v1180 = vadd.f32 %v1163, %v1178
    %v1181 = vadd.f32 %v1164, %v1178
    %v1182 = vadd.f32 %v1165, %v1178
    %v1183 = vadd.f32 %v1166, %v1178
    %v1184 = vadd.f32 %v1167, %v1178
    %v1185 = vadd.f32 %v1168, %v1178
    %v1186 = vadd.f32 %v1169, %v1178
    %v1187 = vadd.f32 %v1170, %v1178
    %v1188 = vmax.f32 %v1180, 0.0
    %v1189 = vmax.f32 %v1181, 0.0
    %v1190 = vmax.f32 %v1182, 0.0
    %v1191 = vmax.f32 %v1183, 0.0
    %v1192 = vmax.f32 %v1184, 0.0
    %v1193 = vmax.f32 %v1185, 0.0
    %v1194 = vmax.f32 %v1186, 0.0
    %v1195 = vmax.f32 %v1187, 0.0
    %1204 = vrot.lane.b32.xlu0 %v1188, 64
    %v1205 = vpop.permute.xlu0 %1204
    %1206 = vrot.lane.b32.xlu0 %v1189, 64
    %v1207 = vpop.permute.xlu0 %1206
    %1208 = vrot.lane.b32.xlu0 %v1190, 64
    %v1209 = vpop.permute.xlu0 %1208
    %1210 = vrot.lane.b32.xlu0 %v1191, 64
    %v1211 = vpop.permute.xlu0 %1210
    %1212 = vrot.lane.b32.xlu0 %v1192, 64
    %v1213 = vpop.permute.xlu0 %1212
    %1214 = vrot.lane.b32.xlu0 %v1193, 64
    %v1215 = vpop.permute.xlu0 %1214
    %1216 = vrot.lane.b32.xlu0 %v1194, 64
    %v1217 = vpop.permute.xlu0 %1216
    %1218 = vrot.lane.b32.xlu0 %v1195, 64
    %v1219 = vpop.permute.xlu0 %1218
    %v1228 = vadd.f32 %v189, %v1205
    %v1229 = vadd.f32 %v190, %v1207
    %v1230 = vadd.f32 %v191, %v1209
    %v1231 = vadd.f32 %v192, %v1211
    %v1232 = vadd.f32 %v193, %v1213
    %v1233 = vadd.f32 %v194, %v1215
    %v1234 = vadd.f32 %v195, %v1217
    %v1235 = vadd.f32 %v196, %v1219
    %v1236 = vmul.f32 %v1228, %v203
    %v1237 = vmul.f32 %v1229, %v210
    %v1238 = vmul.f32 %v1230, %v217
    %v1239 = vmul.f32 %v1231, %v224
    %v1240 = vmul.f32 %v1232, %v231
    %v1241 = vmul.f32 %v1233, %v238
    %v1242 = vmul.f32 %v1234, %v245
    %v1243 = vmul.f32 %v1235, %v252
    %s1244 = scalar_lea.vmem %s15, 64
    %v1245 = vld [vmem:[%s1244] sm:$0xff]
    %v1246 = vld [vmem:[%s1244 + $0x8] sm:$0xff]
    %v1247 = vld [vmem:[%s1244 + $0x10] sm:$0xff]
    %v1248 = vld [vmem:[%s1244 + $0x18] sm:$0xff]
    %v1249 = vld [vmem:[%s1244 + $0x20] sm:$0xff]
    %v1250 = vld [vmem:[%s1244 + $0x28] sm:$0xff]
    %v1251 = vld [vmem:[%s1244 + $0x30] sm:$0xff]
    %v1252 = vld [vmem:[%s1244 + $0x38] sm:$0xff]
    %s1253 = scalar_lea.vmem %s17, 64
    %v1254 = vld [vmem:[%s1253] sm:$0xff]
    %v1255 = vld [vmem:[%s1253 + $0x8] sm:$0xff]
    %v1256 = vld [vmem:[%s1253 + $0x10] sm:$0xff]
    %v1257 = vld [vmem:[%s1253 + $0x18] sm:$0xff]
    %v1258 = vld [vmem:[%s1253 + $0x20] sm:$0xff]
    %v1259 = vld [vmem:[%s1253 + $0x28] sm:$0xff]
    %v1260 = vld [vmem:[%s1253 + $0x30] sm:$0xff]
    %v1261 = vld [vmem:[%s1253 + $0x38] sm:$0xff]
    %v1263 = vsel %vm352, %v1153, 0
    %1265 = vmatprep.subr.mxu0 %v1255
    %1266 = vmatpush1.msra.mxu0 %v1254
    %1267 = vmatprep.subr.mxu0 %v1257
    %1268 = vmatpush1.msra.mxu0 %v1256
    %1269 = vmatprep.subr.mxu0 %v1259
    %1270 = vmatpush1.msra.mxu0 %v1258
    %1271 = vmatprep.subr.mxu0 %v1261
    %1272 = vmatpush1.msra.mxu0 %v1260
    %1273 = vmatprep.subr.mxu0 0.0
    %1274 = vmatpush1.msra.mxu0 0.0
    %1275 = vmatprep.subr.mxu0 0.0
    %1276 = vmatpush1.msra.mxu0 0.0
    %1277 = vmatprep.subr.mxu0 0.0
    %1278 = vmatpush1.msra.mxu0 0.0
    %1279 = vmatprep.subr.mxu0 0.0
    %1280 = vmatpush1.msra.mxu0 0.0
    %1281 = vmatprep.subr.mxu0 0.0
    %1282 = vmatpush1.msra.mxu0 0.0
    %1283 = vmatprep.subr.mxu0 0.0
    %1284 = vmatpush1.msra.mxu0 0.0
    %1285 = vmatprep.subr.mxu0 0.0
    %1286 = vmatpush1.msra.mxu0 0.0
    %1287 = vmatprep.subr.mxu0 0.0
    %1288 = vmatpush1.msra.mxu0 0.0
    %1289 = vmatprep.subr.mxu0 0.0
    %1290 = vmatpush1.msra.mxu0 0.0
    %1291 = vmatprep.subr.mxu0 0.0
    %1292 = vmatpush1.msra.mxu0 0.0
    %1293 = vmatprep.subr.mxu0 0.0
    %1294 = vmatpush1.msra.mxu0 0.0
    %1295 = vmatprep.subr.mxu0 0.0
    %1296 = vmatpush1.msra.mxu0 0.0
    %1297 = vmatprep.subr.mxu0 0.0
    %1298 = vmatpush1.msra.mxu0 0.0
    %1299 = vmatprep.subr.mxu0 0.0
    %1300 = vmatpush1.msra.mxu0 0.0
    %1301 = vmatprep.subr.mxu0 0.0
    %1302 = vmatpush1.msra.mxu0 0.0
    %1303 = vmatprep.subr.mxu0 0.0
    %1304 = vmatpush1.msra.mxu0 0.0
    %1305 = vmatprep.subr.mxu0 0.0
    %1306 = vmatpush1.msra.mxu0 0.0
    %1307 = vmatprep.subr.mxu0 0.0
    %1308 = vmatpush1.msra.mxu0 0.0
    %1309 = vmatprep.subr.mxu0 0.0
    %1310 = vmatpush1.msra.mxu0 0.0
    %1311 = vmatprep.subr.mxu0 0.0
    %1312 = vmatpush1.msra.mxu0 0.0
    %1313 = vmatprep.subr.mxu0 0.0
    %1314 = vmatpush1.msra.mxu0 0.0
    %1315 = vmatprep.subr.mxu0 0.0
    %1316 = vmatpush1.msra.mxu0 0.0
    %1317 = vmatprep.subr.mxu0 0.0
    %1318 = vmatpush1.msra.mxu0 0.0
    %1319 = vmatprep.subr.mxu0 0.0
    %1320 = vmatpush1.msra.mxu0 0.0
    %1321 = vmatprep.subr.mxu0 0.0
    %1322 = vmatpush1.msra.mxu0 0.0
    %1323 = vmatprep.subr.mxu0 0.0
    %1324 = vmatpush1.msra.mxu0 0.0
    %1325 = vmatprep.subr.mxu0 0.0
    %1326 = vmatpush1.msra.mxu0 0.0
    %1327 = vmatprep.subr.mxu0 0.0
    %1328 = vmatpush1.msra.mxu0 0.0
    %1329 = vmatprep.mubr.f32.mxu0 0.0
    %1330 = vmatmul.mubr.f32.gmra.mrb[0].mxu0 %v1263
    %v1331 = vpop.f32.mrb[0].mxu0
    %v1332 = vadd.f32 0.0, %v1331
    %v1333 = vpop.f32.mrb[0].mxu0
    %v1334 = vadd.f32 0.0, %v1333
    %1335 = vdwg.mxu0
    %v1337 = vsel %vm352, %v1151, 0
    %1339 = vmatprep.subr.mxu0 %v1246
    %1340 = vmatpush1.msra.mxu0 %v1245
    %1341 = vmatprep.subr.mxu0 %v1248
    %1342 = vmatpush1.msra.mxu0 %v1247
    %1343 = vmatprep.subr.mxu0 %v1250
    %1344 = vmatpush1.msra.mxu0 %v1249
    %1345 = vmatprep.subr.mxu0 %v1252
    %1346 = vmatpush1.msra.mxu0 %v1251
    %1347 = vmatprep.subr.mxu0 0.0
    %1348 = vmatpush1.msra.mxu0 0.0
    %1349 = vmatprep.subr.mxu0 0.0
    %1350 = vmatpush1.msra.mxu0 0.0
    %1351 = vmatprep.subr.mxu0 0.0
    %1352 = vmatpush1.msra.mxu0 0.0
    %1353 = vmatprep.subr.mxu0 0.0
    %1354 = vmatpush1.msra.mxu0 0.0
    %1355 = vmatprep.subr.mxu0 0.0
    %1356 = vmatpush1.msra.mxu0 0.0
    %1357 = vmatprep.subr.mxu0 0.0
    %1358 = vmatpush1.msra.mxu0 0.0
    %1359 = vmatprep.subr.mxu0 0.0
    %1360 = vmatpush1.msra.mxu0 0.0
    %1361 = vmatprep.subr.mxu0 0.0
    %1362 = vmatpush1.msra.mxu0 0.0
    %1363 = vmatprep.subr.mxu0 0.0
    %1364 = vmatpush1.msra.mxu0 0.0
    %1365 = vmatprep.subr.mxu0 0.0
    %1366 = vmatpush1.msra.mxu0 0.0
    %1367 = vmatprep.subr.mxu0 0.0
    %1368 = vmatpush1.msra.mxu0 0.0
    %1369 = vmatprep.subr.mxu0 0.0
    %1370 = vmatpush1.msra.mxu0 0.0
    %1371 = vmatprep.subr.mxu0 0.0
    %1372 = vmatpush1.msra.mxu0 0.0
    %1373 = vmatprep.subr.mxu0 0.0
    %1374 = vmatpush1.msra.mxu0 0.0
    %1375 = vmatprep.subr.mxu0 0.0
    %1376 = vmatpush1.msra.mxu0 0.0
    %1377 = vmatprep.subr.mxu0 0.0
    %1378 = vmatpush1.msra.mxu0 0.0
    %1379 = vmatprep.subr.mxu0 0.0
    %1380 = vmatpush1.msra.mxu0 0.0
    %1381 = vmatprep.subr.mxu0 0.0
    %1382 = vmatpush1.msra.mxu0 0.0
    %1383 = vmatprep.subr.mxu0 0.0
    %1384 = vmatpush1.msra.mxu0 0.0
    %1385 = vmatprep.subr.mxu0 0.0
    %1386 = vmatpush1.msra.mxu0 0.0
    %1387 = vmatprep.subr.mxu0 0.0
    %1388 = vmatpush1.msra.mxu0 0.0
    %1389 = vmatprep.subr.mxu0 0.0
    %1390 = vmatpush1.msra.mxu0 0.0
    %1391 = vmatprep.subr.mxu0 0.0
    %1392 = vmatpush1.msra.mxu0 0.0
    %1393 = vmatprep.subr.mxu0 0.0
    %1394 = vmatpush1.msra.mxu0 0.0
    %1395 = vmatprep.subr.mxu0 0.0
    %1396 = vmatpush1.msra.mxu0 0.0
    %1397 = vmatprep.subr.mxu0 0.0
    %1398 = vmatpush1.msra.mxu0 0.0
    %1399 = vmatprep.subr.mxu0 0.0
    %1400 = vmatpush1.msra.mxu0 0.0
    %1401 = vmatprep.subr.mxu0 0.0
    %1402 = vmatpush1.msra.mxu0 0.0
    %1403 = vmatprep.mubr.f32.mxu0 0.0
    %1404 = vmatmul.mubr.f32.gmra.mrb[0].mxu0 %v1337
    %v1405 = vpop.f32.mrb[0].mxu0
    %v1406 = vadd.f32 %v1332, %v1405
    %v1407 = vpop.f32.mrb[0].mxu0
    %v1408 = vadd.f32 %v1334, %v1407
    %1409 = vdwg.mxu0
    %s1410 = scalar_lea.vmem %s19, 2
    %v1411 = vld [vmem:[%s1410] sm:$0x3]
    %v1413 = vlaneseq
    %v1414 = vshrl.u32 %v1413, 7
    %v1415 = vsub.s32 0, %v1414
    %v1416 = vrot.slane %v1411, %v1415
    %v1417 = vlaneseq
    %v1418 = vshrl.u32 %v1417, 7
    %v1419 = vsub.s32 1, %v1418
    %v1420 = vrot.slane %v1411, %v1419
    %v1423 = vadd.f32 %v1406, %v1416
    %v1424 = vadd.f32 %v1408, %v1420
    %s1425 = scalar_lea.vmem %s21, 32
    %v1426 = vld [vmem:[%s1425] sm:$0xff]
    %v1427 = vld [vmem:[%s1425 + $0x8] sm:$0xff]
    %v1428 = vld [vmem:[%s1425 + $0x10] sm:$0xff]
    %v1429 = vld [vmem:[%s1425 + $0x18] sm:$0xff]
    %s1430 = scalar_lea.vmem %s23, 1
    %v1431 = vld [vmem:[%s1430] sm:$0x1]
    %v1433 = vlaneseq
    %v1434 = vshrl.u32 %v1433, 7
    %v1435 = vsub.s32 0, %v1434
    %v1436 = vrot.slane %v1431, %v1435
    %v1439 = vsel %vm352, %v1236, 0
    %v1442 = vsel %vm352, %v1237, 0
    %v1445 = vsel %vm352, %v1238, 0
    %v1448 = vsel %vm352, %v1239, 0
    %v1451 = vsel %vm352, %v1240, 0
    %v1454 = vsel %vm352, %v1241, 0
    %v1457 = vsel %vm352, %v1242, 0
    %v1460 = vsel %vm352, %v1243, 0
    %1462 = vmatprep.subr.mxu0 0.0
    %1463 = vmatpush1.msra.mxu0 %v1426
    %1464 = vmatprep.subr.mxu0 0.0
    %1465 = vmatpush1.msra.mxu0 %v1427
    %1466 = vmatprep.subr.mxu0 0.0
    %1467 = vmatpush1.msra.mxu0 %v1428
    %1468 = vmatprep.subr.mxu0 0.0
    %1469 = vmatpush1.msra.mxu0 %v1429
    %1470 = vmatprep.subr.mxu0 0.0
    %1471 = vmatpush1.msra.mxu0 0.0
    %1472 = vmatprep.subr.mxu0 0.0
    %1473 = vmatpush1.msra.mxu0 0.0
    %1474 = vmatprep.subr.mxu0 0.0
    %1475 = vmatpush1.msra.mxu0 0.0
    %1476 = vmatprep.subr.mxu0 0.0
    %1477 = vmatpush1.msra.mxu0 0.0
    %1478 = vmatprep.subr.mxu0 0.0
    %1479 = vmatpush1.msra.mxu0 0.0
    %1480 = vmatprep.subr.mxu0 0.0
    %1481 = vmatpush1.msra.mxu0 0.0
    %1482 = vmatprep.subr.mxu0 0.0
    %1483 = vmatpush1.msra.mxu0 0.0
    %1484 = vmatprep.subr.mxu0 0.0
    %1485 = vmatpush1.msra.mxu0 0.0
    %1486 = vmatprep.subr.mxu0 0.0
    %1487 = vmatpush1.msra.mxu0 0.0
    %1488 = vmatprep.subr.mxu0 0.0
    %1489 = vmatpush1.msra.mxu0 0.0
    %1490 = vmatprep.subr.mxu0 0.0
    %1491 = vmatpush1.msra.mxu0 0.0
    %1492 = vmatprep.subr.mxu0 0.0
    %1493 = vmatpush1.msra.mxu0 0.0
    %1494 = vmatprep.subr.mxu0 0.0
    %1495 = vmatpush1.msra.mxu0 0.0
    %1496 = vmatprep.subr.mxu0 0.0
    %1497 = vmatpush1.msra.mxu0 0.0
    %1498 = vmatprep.subr.mxu0 0.0
    %1499 = vmatpush1.msra.mxu0 0.0
    %1500 = vmatprep.subr.mxu0 0.0
    %1501 = vmatpush1.msra.mxu0 0.0
    %1502 = vmatprep.subr.mxu0 0.0
    %1503 = vmatpush1.msra.mxu0 0.0
    %1504 = vmatprep.subr.mxu0 0.0
    %1505 = vmatpush1.msra.mxu0 0.0
    %1506 = vmatprep.subr.mxu0 0.0
    %1507 = vmatpush1.msra.mxu0 0.0
    %1508 = vmatprep.subr.mxu0 0.0
    %1509 = vmatpush1.msra.mxu0 0.0
    %1510 = vmatprep.subr.mxu0 0.0
    %1511 = vmatpush1.msra.mxu0 0.0
    %1512 = vmatprep.subr.mxu0 0.0
    %1513 = vmatpush1.msra.mxu0 0.0
    %1514 = vmatprep.subr.mxu0 0.0
    %1515 = vmatpush1.msra.mxu0 0.0
    %1516 = vmatprep.subr.mxu0 0.0
    %1517 = vmatpush1.msra.mxu0 0.0
    %1518 = vmatprep.subr.mxu0 0.0
    %1519 = vmatpush1.msra.mxu0 0.0
    %1520 = vmatprep.subr.mxu0 0.0
    %1521 = vmatpush1.msra.mxu0 0.0
    %1522 = vmatprep.subr.mxu0 0.0
    %1523 = vmatpush1.msra.mxu0 0.0
    %1524 = vmatprep.subr.mxu0 0.0
    %1525 = vmatpush1.msra.mxu0 0.0
    %1526 = vmatprep.mubr.f32.mxu0 0.0
    %1527 = vmatmul.mubr.f32.gmra.mrb[0].mxu0 %v1439
    %v1528 = vpop.f32.mrb[0].mxu0
    %v1529 = vadd.f32 %v1436, %v1528
    %v1530 = vpop.f32.mrb[0].mxu0
    %1531 = vmatprep.mubr.f32.mxu0 0.0
    %1532 = vmatmul.mubr.f32.gmra.mrb[0].mxu0 %v1442
    %v1533 = vpop.f32.mrb[0].mxu0
    %v1534 = vadd.f32 %v1436, %v1533
    %v1535 = vpop.f32.mrb[0].mxu0
    %1536 = vmatprep.mubr.f32.mxu0 0.0
    %1537 = vmatmul.mubr.f32.gmra.mrb[0].mxu0 %v1445
    %v1538 = vpop.f32.mrb[0].mxu0
    %v1539 = vadd.f32 %v1436, %v1538
    %v1540 = vpop.f32.mrb[0].mxu0
    %1541 = vmatprep.mubr.f32.mxu0 0.0
    %1542 = vmatmul.mubr.f32.gmra.mrb[0].mxu0 %v1448
    %v1543 = vpop.f32.mrb[0].mxu0
    %v1544 = vadd.f32 %v1436, %v1543
    %v1545 = vpop.f32.mrb[0].mxu0
    %1546 = vmatprep.mubr.f32.mxu0 0.0
    %1547 = vmatmul.mubr.f32.gmra.mrb[0].mxu0 %v1451
    %v1548 = vpop.f32.mrb[0].mxu0
    %v1549 = vadd.f32 %v1436, %v1548
    %v1550 = vpop.f32.mrb[0].mxu0
    %1551 = vmatprep.mubr.f32.mxu0 0.0
    %1552 = vmatmul.mubr.f32.gmra.mrb[0].mxu0 %v1454
    %v1553 = vpop.f32.mrb[0].mxu0
    %v1554 = vadd.f32 %v1436, %v1553
    %v1555 = vpop.f32.mrb[0].mxu0
    %1556 = vmatprep.mubr.f32.mxu0 0.0
    %1557 = vmatmul.mubr.f32.gmra.mrb[0].mxu0 %v1457
    %v1558 = vpop.f32.mrb[0].mxu0
    %v1559 = vadd.f32 %v1436, %v1558
    %v1560 = vpop.f32.mrb[0].mxu0
    %1561 = vmatprep.mubr.f32.mxu0 0.0
    %1562 = vmatmul.mubr.f32.gmra.mrb[0].mxu0 %v1460
    %v1563 = vpop.f32.mrb[0].mxu0
    %v1564 = vadd.f32 %v1436, %v1563
    %v1565 = vpop.f32.mrb[0].mxu0
    %1566 = vdwg.mxu0
    %v1568 = vcombine.high %v1423, %v1423
    %v1570 = vunpack.c.l.s4 1966171168
    %v1571 = vunpack.c.0.s8 %v1570
    %v1572 = vlaneseq
    %v1573 = vshrl.u32 %v1572, 7
    %v1574 = vsub.s32 %v1571, %v1573
    %v1575 = vrot.slane %v1423, %v1574
    %v1577 = vunpack.c.l.s4 1966171168
    %v1578 = vunpack.c.0.s8 %v1577
    %v1579 = vlaneseq
    %v1580 = vshrl.u32 %v1579, 7
    %v1581 = vsub.s32 %v1578, %v1580
    %v1582 = vrot.slane %v1568, %v1581
    %v1583 = vcombine.high %v1575, %v1575
    %v1584 = vcombine.high %v1582, %v1582
    %v1586 = vunpack.c.l.s4 1966171168
    %v1587 = vunpack.c.0.s8 %v1586
    %v1588 = vlaneseq
    %v1589 = vshrl.u32 %v1588, 7
    %v1590 = vsub.s32 %v1587, %v1589
    %v1591 = vrot.slane %v1575, %v1590
    %v1593 = vunpack.c.l.s4 1966171168
    %v1594 = vunpack.c.0.s8 %v1593
    %v1595 = vlaneseq
    %v1596 = vshrl.u32 %v1595, 7
    %v1597 = vsub.s32 %v1594, %v1596
    %v1598 = vrot.slane %v1582, %v1597
    %v1600 = vunpack.c.l.s4 1966171168
    %v1601 = vunpack.c.0.s8 %v1600
    %v1602 = vlaneseq
    %v1603 = vshrl.u32 %v1602, 7
    %v1604 = vsub.s32 %v1601, %v1603
    %v1605 = vrot.slane %v1583, %v1604
    %v1607 = vunpack.c.l.s4 1966171168
    %v1608 = vunpack.c.0.s8 %v1607
    %v1609 = vlaneseq
    %v1610 = vshrl.u32 %v1609, 7
    %v1611 = vsub.s32 %v1608, %v1610
    %v1612 = vrot.slane %v1584, %v1611
    %v1613 = vcombine.high %v1591, %v1591
    %v1614 = vcombine.high %v1598, %v1598
    %v1615 = vcombine.high %v1605, %v1605
    %v1616 = vcombine.high %v1612, %v1612
    %v1617 = vlaneseq
    %v1618 = vshrl.u32 %v1617, 7
    %v1619 = vsub.s32 0, %v1618
    %v1620 = vrot.slane %v1591, %v1619
    %v1621 = vlaneseq
    %v1622 = vshrl.u32 %v1621, 7
    %v1623 = vsub.s32 0, %v1622
    %v1624 = vrot.slane %v1605, %v1623
    %v1625 = vlaneseq
    %v1626 = vshrl.u32 %v1625, 7
    %v1627 = vsub.s32 0, %v1626
    %v1628 = vrot.slane %v1613, %v1627
    %v1629 = vlaneseq
    %v1630 = vshrl.u32 %v1629, 7
    %v1631 = vsub.s32 0, %v1630
    %v1632 = vrot.slane %v1615, %v1631
    %v1633 = vlaneseq
    %v1634 = vshrl.u32 %v1633, 7
    %v1635 = vsub.s32 0, %v1634
    %v1636 = vrot.slane %v1598, %v1635
    %v1637 = vlaneseq
    %v1638 = vshrl.u32 %v1637, 7
    %v1639 = vsub.s32 0, %v1638
    %v1640 = vrot.slane %v1612, %v1639
    %v1641 = vlaneseq
    %v1642 = vshrl.u32 %v1641, 7
    %v1643 = vsub.s32 0, %v1642
    %v1644 = vrot.slane %v1614, %v1643
    %v1645 = vlaneseq
    %v1646 = vshrl.u32 %v1645, 7
    %v1647 = vsub.s32 0, %v1646
    %v1648 = vrot.slane %v1616, %v1647
    %1649 = vrot.lane.b32.xlu0 %v1620, 96
    %v1650 = vpop.permute.xlu0 %1649
    %1651 = vrot.lane.b32.xlu0 %v1624, 96
    %v1652 = vpop.permute.xlu0 %1651
    %1653 = vrot.lane.b32.xlu0 %v1628, 96
    %v1654 = vpop.permute.xlu0 %1653
    %1655 = vrot.lane.b32.xlu0 %v1632, 96
    %v1656 = vpop.permute.xlu0 %1655
    %1657 = vrot.lane.b32.xlu0 %v1636, 96
    %v1658 = vpop.permute.xlu0 %1657
    %1659 = vrot.lane.b32.xlu0 %v1640, 96
    %v1660 = vpop.permute.xlu0 %1659
    %1661 = vrot.lane.b32.xlu0 %v1644, 96
    %v1662 = vpop.permute.xlu0 %1661
    %1663 = vrot.lane.b32.xlu0 %v1648, 96
    %v1664 = vpop.permute.xlu0 %1663
    %v1673 = vadd.f32 %v1423, %v1650
    %v1674 = vadd.f32 %v1423, %v1652
    %v1675 = vadd.f32 %v1423, %v1654
    %v1676 = vadd.f32 %v1423, %v1656
    %v1677 = vadd.f32 %v1423, %v1658
    %v1678 = vadd.f32 %v1423, %v1660
    %v1679 = vadd.f32 %v1423, %v1662
    %v1680 = vadd.f32 %v1423, %v1664
    %1689 = vrot.lane.b32.xlu0 %v1529, 64
    %v1690 = vpop.permute.xlu0 %1689
    %1691 = vrot.lane.b32.xlu0 %v1534, 64
    %v1692 = vpop.permute.xlu0 %1691
    %1693 = vrot.lane.b32.xlu0 %v1539, 64
    %v1694 = vpop.permute.xlu0 %1693
    %1695 = vrot.lane.b32.xlu0 %v1544, 64
    %v1696 = vpop.permute.xlu0 %1695
    %1697 = vrot.lane.b32.xlu0 %v1549, 64
    %v1698 = vpop.permute.xlu0 %1697
    %1699 = vrot.lane.b32.xlu0 %v1554, 64
    %v1700 = vpop.permute.xlu0 %1699
    %1701 = vrot.lane.b32.xlu0 %v1559, 64
    %v1702 = vpop.permute.xlu0 %1701
    %1703 = vrot.lane.b32.xlu0 %v1564, 64
    %v1704 = vpop.permute.xlu0 %1703
    %v1713 = vadd.f32 %v1673, %v1690
    %v1714 = vadd.f32 %v1674, %v1692
    %v1715 = vadd.f32 %v1675, %v1694
    %v1716 = vadd.f32 %v1676, %v1696
    %v1717 = vadd.f32 %v1677, %v1698
    %v1718 = vadd.f32 %v1678, %v1700
    %v1719 = vadd.f32 %v1679, %v1702
    %v1720 = vadd.f32 %v1680, %v1704
    %v1721 = vxor.u32 %v1713, 2147483648
    %v1722 = vxor.u32 %v1714, 2147483648
    %v1723 = vxor.u32 %v1715, 2147483648
    %v1724 = vxor.u32 %v1716, 2147483648
    %v1725 = vxor.u32 %v1717, 2147483648
    %v1726 = vxor.u32 %v1718, 2147483648
    %v1727 = vxor.u32 %v1719, 2147483648
    %v1728 = vxor.u32 %v1720, 2147483648
    %v1729 = vmul.f32 %v1721, 1.442695
    %v1730 = vpow.pop %v1729
    %v1731 = vmul.f32 %v1722, 1.442695
    %v1732 = vpow.pop %v1731
    %v1733 = vmul.f32 %v1723, 1.442695
    %v1734 = vpow.pop %v1733
    %v1735 = vmul.f32 %v1724, 1.442695
    %v1736 = vpow.pop %v1735
    %v1737 = vmul.f32 %v1725, 1.442695
    %v1738 = vpow.pop %v1737
    %v1739 = vmul.f32 %v1726, 1.442695
    %v1740 = vpow.pop %v1739
    %v1741 = vmul.f32 %v1727, 1.442695
    %v1742 = vpow.pop %v1741
    %v1743 = vmul.f32 %v1728, 1.442695
    %v1744 = vpow.pop %v1743
    %v1745 = vadd.f32 %v1730, 1.0
    %v1746 = vadd.f32 %v1732, 1.0
    %v1747 = vadd.f32 %v1734, 1.0
    %v1748 = vadd.f32 %v1736, 1.0
    %v1749 = vadd.f32 %v1738, 1.0
    %v1750 = vadd.f32 %v1740, 1.0
    %v1751 = vadd.f32 %v1742, 1.0
    %v1752 = vadd.f32 %v1744, 1.0
    %v1753 = vrcp.pop %v1745
    %v1754 = vmul.f32 1.0, %v1753
    %v1755 = vrcp.pop %v1746
    %v1756 = vmul.f32 1.0, %v1755
    %v1757 = vrcp.pop %v1747
    %v1758 = vmul.f32 1.0, %v1757
    %v1759 = vrcp.pop %v1748
    %v1760 = vmul.f32 1.0, %v1759
    %v1761 = vrcp.pop %v1749
    %v1762 = vmul.f32 1.0, %v1761
    %v1763 = vrcp.pop %v1750
    %v1764 = vmul.f32 1.0, %v1763
    %v1765 = vrcp.pop %v1751
    %v1766 = vmul.f32 1.0, %v1765
    %v1767 = vrcp.pop %v1752
    %v1768 = vmul.f32 1.0, %v1767
    %v1769 = vmul.f32 %v1754, %v203
    %v1770 = vmul.f32 %v1756, %v210
    %v1771 = vmul.f32 %v1758, %v217
    %v1772 = vmul.f32 %v1760, %v224
    %v1773 = vmul.f32 %v1762, %v231
    %v1774 = vmul.f32 %v1764, %v238
    %v1775 = vmul.f32 %v1766, %v245
    %v1776 = vmul.f32 %v1768, %v252
    %v1777 = vsel %vm865, %v1769, 0.0
    %v1778 = vrot.slane %v1777, 4
    %v1779 = vadd.f32 %v1777, %v1778
    %v1780 = vrot.slane %v1779, 2
    %v1781 = vadd.f32 %v1779, %v1780
    %v1782 = vrot.slane %v1781, 1
    %v1783 = vadd.f32 %v1781, %v1782
    %v1784 = vsel %vm865, %v1770, 0.0
    %v1785 = vrot.slane %v1784, 4
    %v1786 = vadd.f32 %v1784, %v1785
    %v1787 = vrot.slane %v1786, 2
    %v1788 = vadd.f32 %v1786, %v1787
    %v1789 = vrot.slane %v1788, 1
    %v1790 = vadd.f32 %v1788, %v1789
    %v1791 = vsel %vm865, %v1771, 0.0
    %v1792 = vrot.slane %v1791, 4
    %v1793 = vadd.f32 %v1791, %v1792
    %v1794 = vrot.slane %v1793, 2
    %v1795 = vadd.f32 %v1793, %v1794
    %v1796 = vrot.slane %v1795, 1
    %v1797 = vadd.f32 %v1795, %v1796
    %v1798 = vsel %vm865, %v1772, 0.0
    %v1799 = vrot.slane %v1798, 4
    %v1800 = vadd.f32 %v1798, %v1799
    %v1801 = vrot.slane %v1800, 2
    %v1802 = vadd.f32 %v1800, %v1801
    %v1803 = vrot.slane %v1802, 1
    %v1804 = vadd.f32 %v1802, %v1803
    %v1805 = vsel %vm865, %v1773, 0.0
    %v1806 = vrot.slane %v1805, 4
    %v1807 = vadd.f32 %v1805, %v1806
    %v1808 = vrot.slane %v1807, 2
    %v1809 = vadd.f32 %v1807, %v1808
    %v1810 = vrot.slane %v1809, 1
    %v1811 = vadd.f32 %v1809, %v1810
    %v1812 = vsel %vm865, %v1774, 0.0
    %v1813 = vrot.slane %v1812, 4
    %v1814 = vadd.f32 %v1812, %v1813
    %v1815 = vrot.slane %v1814, 2
    %v1816 = vadd.f32 %v1814, %v1815
    %v1817 = vrot.slane %v1816, 1
    %v1818 = vadd.f32 %v1816, %v1817
    %v1819 = vsel %vm865, %v1775, 0.0
    %v1820 = vrot.slane %v1819, 4
    %v1821 = vadd.f32 %v1819, %v1820
    %v1822 = vrot.slane %v1821, 2
    %v1823 = vadd.f32 %v1821, %v1822
    %v1824 = vrot.slane %v1823, 1
    %v1825 = vadd.f32 %v1823, %v1824
    %v1826 = vsel %vm865, %v1776, 0.0
    %v1827 = vrot.slane %v1826, 4
    %v1828 = vadd.f32 %v1826, %v1827
    %v1829 = vrot.slane %v1828, 2
    %v1830 = vadd.f32 %v1828, %v1829
    %v1831 = vrot.slane %v1830, 1
    %v1832 = vadd.f32 %v1830, %v1831
    %v1833 = vadd.f32 %v1783, 1e-06
    %v1834 = vadd.f32 %v1790, 1e-06
    %v1835 = vadd.f32 %v1797, 1e-06
    %v1836 = vadd.f32 %v1804, 1e-06
    %v1837 = vadd.f32 %v1811, 1e-06
    %v1838 = vadd.f32 %v1818, 1e-06
    %v1839 = vadd.f32 %v1825, 1e-06
    %v1840 = vadd.f32 %v1832, 1e-06
    %v1841 = vrcp.pop %v1833
    %v1842 = vrcp.pop %v1834
    %v1843 = vrcp.pop %v1835
    %v1844 = vrcp.pop %v1836
    %v1845 = vrcp.pop %v1837
    %v1846 = vrcp.pop %v1838
    %v1847 = vrcp.pop %v1839
    %v1848 = vrcp.pop %v1840
    %1849 = vrot.lane.b32.xlu0 %v1423, 32
    %v1850 = vpop.permute.xlu0 %1849
    %v1852 = vmul.f32 %v1769, %v1850
    %v1853 = vmul.f32 %v1770, %v1850
    %v1854 = vmul.f32 %v1771, %v1850
    %v1855 = vmul.f32 %v1772, %v1850
    %v1856 = vmul.f32 %v1773, %v1850
    %v1857 = vmul.f32 %v1774, %v1850
    %v1858 = vmul.f32 %v1775, %v1850
    %v1859 = vmul.f32 %v1776, %v1850
    %v1860 = vsel %vm865, %v1852, 0.0
    %v1861 = vrot.slane %v1860, 4
    %v1862 = vadd.f32 %v1860, %v1861
    %v1863 = vrot.slane %v1862, 2
    %v1864 = vadd.f32 %v1862, %v1863
    %v1865 = vrot.slane %v1864, 1
    %v1866 = vadd.f32 %v1864, %v1865
    %v1867 = vsel %vm865, %v1853, 0.0
    %v1868 = vrot.slane %v1867, 4
    %v1869 = vadd.f32 %v1867, %v1868
    %v1870 = vrot.slane %v1869, 2
    %v1871 = vadd.f32 %v1869, %v1870
    %v1872 = vrot.slane %v1871, 1
    %v1873 = vadd.f32 %v1871, %v1872
    %v1874 = vsel %vm865, %v1854, 0.0
    %v1875 = vrot.slane %v1874, 4
    %v1876 = vadd.f32 %v1874, %v1875
    %v1877 = vrot.slane %v1876, 2
    %v1878 = vadd.f32 %v1876, %v1877
    %v1879 = vrot.slane %v1878, 1
    %v1880 = vadd.f32 %v1878, %v1879
    %v1881 = vsel %vm865, %v1855, 0.0
    %v1882 = vrot.slane %v1881, 4
    %v1883 = vadd.f32 %v1881, %v1882
    %v1884 = vrot.slane %v1883, 2
    %v1885 = vadd.f32 %v1883, %v1884
    %v1886 = vrot.slane %v1885, 1
    %v1887 = vadd.f32 %v1885, %v1886
    %v1888 = vsel %vm865, %v1856, 0.0
    %v1889 = vrot.slane %v1888, 4
    %v1890 = vadd.f32 %v1888, %v1889
    %v1891 = vrot.slane %v1890, 2
    %v1892 = vadd.f32 %v1890, %v1891
    %v1893 = vrot.slane %v1892, 1
    %v1894 = vadd.f32 %v1892, %v1893
    %v1895 = vsel %vm865, %v1857, 0.0
    %v1896 = vrot.slane %v1895, 4
    %v1897 = vadd.f32 %v1895, %v1896
    %v1898 = vrot.slane %v1897, 2
    %v1899 = vadd.f32 %v1897, %v1898
    %v1900 = vrot.slane %v1899, 1
    %v1901 = vadd.f32 %v1899, %v1900
    %v1902 = vsel %vm865, %v1858, 0.0
    %v1903 = vrot.slane %v1902, 4
    %v1904 = vadd.f32 %v1902, %v1903
    %v1905 = vrot.slane %v1904, 2
    %v1906 = vadd.f32 %v1904, %v1905
    %v1907 = vrot.slane %v1906, 1
    %v1908 = vadd.f32 %v1906, %v1907
    %v1909 = vsel %vm865, %v1859, 0.0
    %v1910 = vrot.slane %v1909, 4
    %v1911 = vadd.f32 %v1909, %v1910
    %v1912 = vrot.slane %v1911, 2
    %v1913 = vadd.f32 %v1911, %v1912
    %v1914 = vrot.slane %v1913, 1
    %v1915 = vadd.f32 %v1913, %v1914
    %v1916 = vmul.f32 %v1866, %v1841
    %v1917 = vmul.f32 %v1873, %v1842
    %v1918 = vmul.f32 %v1880, %v1843
    %v1919 = vmul.f32 %v1887, %v1844
    %v1920 = vmul.f32 %v1894, %v1845
    %v1921 = vmul.f32 %v1901, %v1846
    %v1922 = vmul.f32 %v1908, %v1847
    %v1923 = vmul.f32 %v1915, %v1848
    %v1932 = vsel %vm1021, %v1917, %v1916
    %v1933 = vsel %vm1023, %v1918, %v1932
    %v1934 = vsel %vm1025, %v1919, %v1933
    %v1935 = vsel %vm1027, %v1920, %v1934
    %v1936 = vsel %vm1029, %v1921, %v1935
    %v1937 = vsel %vm1031, %v1922, %v1936
    %v1938 = vsel %vm1033, %v1923, %v1937
    %1939 = vrot.lane.b32.xlu0 %v1938, 64
    %v1940 = vpop.permute.xlu0 %1939
    %v1942 = vadd.f32 %v1423, %v1940
    %1944 = vrot.lane.b32.xlu0 %v1424, 32
    %v1945 = vpop.permute.xlu0 %1944
    %v1947 = vmul.f32 %v1769, %v1945
    %v1948 = vmul.f32 %v1770, %v1945
    %v1949 = vmul.f32 %v1771, %v1945
    %v1950 = vmul.f32 %v1772, %v1945
    %v1951 = vmul.f32 %v1773, %v1945
    %v1952 = vmul.f32 %v1774, %v1945
    %v1953 = vmul.f32 %v1775, %v1945
    %v1954 = vmul.f32 %v1776, %v1945
    %v1955 = vsel %vm865, %v1947, 0.0
    %v1956 = vrot.slane %v1955, 4
    %v1957 = vadd.f32 %v1955, %v1956
    %v1958 = vrot.slane %v1957, 2
    %v1959 = vadd.f32 %v1957, %v1958
    %v1960 = vrot.slane %v1959, 1
    %v1961 = vadd.f32 %v1959, %v1960
    %v1962 = vsel %vm865, %v1948, 0.0
    %v1963 = vrot.slane %v1962, 4
    %v1964 = vadd.f32 %v1962, %v1963
    %v1965 = vrot.slane %v1964, 2
    %v1966 = vadd.f32 %v1964, %v1965
    %v1967 = vrot.slane %v1966, 1
    %v1968 = vadd.f32 %v1966, %v1967
    %v1969 = vsel %vm865, %v1949, 0.0
    %v1970 = vrot.slane %v1969, 4
    %v1971 = vadd.f32 %v1969, %v1970
    %v1972 = vrot.slane %v1971, 2
    %v1973 = vadd.f32 %v1971, %v1972
    %v1974 = vrot.slane %v1973, 1
    %v1975 = vadd.f32 %v1973, %v1974
    %v1976 = vsel %vm865, %v1950, 0.0
    %v1977 = vrot.slane %v1976, 4
    %v1978 = vadd.f32 %v1976, %v1977
    %v1979 = vrot.slane %v1978, 2
    %v1980 = vadd.f32 %v1978, %v1979
    %v1981 = vrot.slane %v1980, 1
    %v1982 = vadd.f32 %v1980, %v1981
    %v1983 = vsel %vm865, %v1951, 0.0
    %v1984 = vrot.slane %v1983, 4
    %v1985 = vadd.f32 %v1983, %v1984
    %v1986 = vrot.slane %v1985, 2
    %v1987 = vadd.f32 %v1985, %v1986
    %v1988 = vrot.slane %v1987, 1
    %v1989 = vadd.f32 %v1987, %v1988
    %v1990 = vsel %vm865, %v1952, 0.0
    %v1991 = vrot.slane %v1990, 4
    %v1992 = vadd.f32 %v1990, %v1991
    %v1993 = vrot.slane %v1992, 2
    %v1994 = vadd.f32 %v1992, %v1993
    %v1995 = vrot.slane %v1994, 1
    %v1996 = vadd.f32 %v1994, %v1995
    %v1997 = vsel %vm865, %v1953, 0.0
    %v1998 = vrot.slane %v1997, 4
    %v1999 = vadd.f32 %v1997, %v1998
    %v2000 = vrot.slane %v1999, 2
    %v2001 = vadd.f32 %v1999, %v2000
    %v2002 = vrot.slane %v2001, 1
    %v2003 = vadd.f32 %v2001, %v2002
    %v2004 = vsel %vm865, %v1954, 0.0
    %v2005 = vrot.slane %v2004, 4
    %v2006 = vadd.f32 %v2004, %v2005
    %v2007 = vrot.slane %v2006, 2
    %v2008 = vadd.f32 %v2006, %v2007
    %v2009 = vrot.slane %v2008, 1
    %v2010 = vadd.f32 %v2008, %v2009
    %v2011 = vmul.f32 %v1961, %v1841
    %v2012 = vmul.f32 %v1968, %v1842
    %v2013 = vmul.f32 %v1975, %v1843
    %v2014 = vmul.f32 %v1982, %v1844
    %v2015 = vmul.f32 %v1989, %v1845
    %v2016 = vmul.f32 %v1996, %v1846
    %v2017 = vmul.f32 %v2003, %v1847
    %v2018 = vmul.f32 %v2010, %v1848
    %v2027 = vsel %vm1021, %v2012, %v2011
    %v2028 = vsel %vm1023, %v2013, %v2027
    %v2029 = vsel %vm1025, %v2014, %v2028
    %v2030 = vsel %vm1027, %v2015, %v2029
    %v2031 = vsel %vm1029, %v2016, %v2030
    %v2032 = vsel %vm1031, %v2017, %v2031
    %v2033 = vsel %vm1033, %v2018, %v2032
    %2034 = vrot.lane.b32.xlu0 %v2033, 64
    %v2035 = vpop.permute.xlu0 %2034
    %v2037 = vadd.f32 %v1424, %v2035
    %s2038 = scalar_lea.vmem %s25, 1
    %v2039 = vld [vmem:[%s2038] sm:$0x1]
    %v2041 = vlaneseq
    %v2042 = vshrl.u32 %v2041, 7
    %v2043 = vsub.s32 0, %v2042
    %v2044 = vrot.slane %v2039, %v2043
    %v2046 = vmul.f32 %v1942, %v2044
    %s2047 = scalar_lea.vmem %s27, 1
    %v2048 = vld [vmem:[%s2047] sm:$0x1]
    %v2050 = vlaneseq
    %v2051 = vshrl.u32 %v2050, 7
    %v2052 = vsub.s32 0, %v2051
    %v2053 = vrot.slane %v2048, %v2052
    %v2055 = vadd.f32 %v2046, %v2053
    %v2056 = vmax.f32 %v2055, 0.0
    %v2057 = vadd.f32 %v1151, %v2056
    %v2058 = vtanh.pop %v2037
    %v2059 = vadd.f32 %v1153, %v2058
    %v2060 = vld [vmem:[%s9] sm:$0xff]
    %v2062 = vsel %vm262, %v2060, 0
    %2064 = vmatprep.subr.mxu0 0.0
    %2065 = vmatpush1.msra.mxu0 %v2057
    %2066 = vmatprep.subr.mxu0 0.0
    %2067 = vmatpush1.msra.mxu0 0.0
    %2068 = vmatprep.subr.mxu0 0.0
    %2069 = vmatpush1.msra.mxu0 0.0
    %2070 = vmatprep.subr.mxu0 0.0
    %2071 = vmatpush1.msra.mxu0 0.0
    %2072 = vmatprep.subr.mxu0 0.0
    %2073 = vmatpush1.msra.mxu0 0.0
    %2074 = vmatprep.subr.mxu0 0.0
    %2075 = vmatpush1.msra.mxu0 0.0
    %2076 = vmatprep.subr.mxu0 0.0
    %2077 = vmatpush1.msra.mxu0 0.0
    %2078 = vmatprep.subr.mxu0 0.0
    %2079 = vmatpush1.msra.mxu0 0.0
    %2080 = vmatprep.subr.mxu0 0.0
    %2081 = vmatpush1.msra.mxu0 0.0
    %2082 = vmatprep.subr.mxu0 0.0
    %2083 = vmatpush1.msra.mxu0 0.0
    %2084 = vmatprep.subr.mxu0 0.0
    %2085 = vmatpush1.msra.mxu0 0.0
    %2086 = vmatprep.subr.mxu0 0.0
    %2087 = vmatpush1.msra.mxu0 0.0
    %2088 = vmatprep.subr.mxu0 0.0
    %2089 = vmatpush1.msra.mxu0 0.0
    %2090 = vmatprep.subr.mxu0 0.0
    %2091 = vmatpush1.msra.mxu0 0.0
    %2092 = vmatprep.subr.mxu0 0.0
    %2093 = vmatpush1.msra.mxu0 0.0
    %2094 = vmatprep.subr.mxu0 0.0
    %2095 = vmatpush1.msra.mxu0 0.0
    %2096 = vmatprep.subr.mxu0 0.0
    %2097 = vmatpush1.msra.mxu0 0.0
    %2098 = vmatprep.subr.mxu0 0.0
    %2099 = vmatpush1.msra.mxu0 0.0
    %2100 = vmatprep.subr.mxu0 0.0
    %2101 = vmatpush1.msra.mxu0 0.0
    %2102 = vmatprep.subr.mxu0 0.0
    %2103 = vmatpush1.msra.mxu0 0.0
    %2104 = vmatprep.subr.mxu0 0.0
    %2105 = vmatpush1.msra.mxu0 0.0
    %2106 = vmatprep.subr.mxu0 0.0
    %2107 = vmatpush1.msra.mxu0 0.0
    %2108 = vmatprep.subr.mxu0 0.0
    %2109 = vmatpush1.msra.mxu0 0.0
    %2110 = vmatprep.subr.mxu0 0.0
    %2111 = vmatpush1.msra.mxu0 0.0
    %2112 = vmatprep.subr.mxu0 0.0
    %2113 = vmatpush1.msra.mxu0 0.0
    %2114 = vmatprep.subr.mxu0 0.0
    %2115 = vmatpush1.msra.mxu0 0.0
    %2116 = vmatprep.subr.mxu0 0.0
    %2117 = vmatpush1.msra.mxu0 0.0
    %2118 = vmatprep.subr.mxu0 0.0
    %2119 = vmatpush1.msra.mxu0 0.0
    %2120 = vmatprep.subr.mxu0 0.0
    %2121 = vmatpush1.msra.mxu0 0.0
    %2122 = vmatprep.subr.mxu0 0.0
    %2123 = vmatpush1.msra.mxu0 0.0
    %2124 = vmatprep.subr.mxu0 0.0
    %2125 = vmatpush1.msra.mxu0 0.0
    %2126 = vmatprep.subr.mxu0 0.0
    %2127 = vmatpush1.msra.mxu0 0.0
    %2128 = vmatprep.mubr.f32.mxu0 0.0
    %2129 = vmatmul.mubr.f32.gmra.mrb[0].mxu0 %v2062
    %v2130 = vpop.f32.mrb[0].mxu0
    %v2131 = vadd.f32 0.0, %v2130
    %v2132 = vpop.f32.mrb[0].mxu0
    %2133 = vdwg.mxu0
    %v2134 = vld [vmem:[%s33] sm:$0xff]
    %v2135 = vld [vmem:[%s33 + $0x8] sm:$0xff]
    %v2136 = vld [vmem:[%s33 + $0x10] sm:$0xff]
    %v2137 = vld [vmem:[%s33 + $0x18] sm:$0xff]
    %v2138 = vld [vmem:[%s35] sm:$0x1]
    %v2140 = vlaneseq
    %v2141 = vshrl.u32 %v2140, 7
    %v2142 = vsub.s32 0, %v2141
    %v2143 = vrot.slane %v2138, %v2142
    %v2146 = vsel %vm352, %v2131, 0
    %2148 = vmatprep.subr.mxu0 0.0
    %2149 = vmatpush1.msra.mxu0 %v2134
    %2150 = vmatprep.subr.mxu0 0.0
    %2151 = vmatpush1.msra.mxu0 %v2135
    %2152 = vmatprep.subr.mxu0 0.0
    %2153 = vmatpush1.msra.mxu0 %v2136
    %2154 = vmatprep.subr.mxu0 0.0
    %2155 = vmatpush1.msra.mxu0 %v2137
    %2156 = vmatprep.subr.mxu0 0.0
    %2157 = vmatpush1.msra.mxu0 0.0
    %2158 = vmatprep.subr.mxu0 0.0
    %2159 = vmatpush1.msra.mxu0 0.0
    %2160 = vmatprep.subr.mxu0 0.0
    %2161 = vmatpush1.msra.mxu0 0.0
    %2162 = vmatprep.subr.mxu0 0.0
    %2163 = vmatpush1.msra.mxu0 0.0
    %2164 = vmatprep.subr.mxu0 0.0
    %2165 = vmatpush1.msra.mxu0 0.0
    %2166 = vmatprep.subr.mxu0 0.0
    %2167 = vmatpush1.msra.mxu0 0.0
    %2168 = vmatprep.subr.mxu0 0.0
    %2169 = vmatpush1.msra.mxu0 0.0
    %2170 = vmatprep.subr.mxu0 0.0
    %2171 = vmatpush1.msra.mxu0 0.0
    %2172 = vmatprep.subr.mxu0 0.0
    %2173 = vmatpush1.msra.mxu0 0.0
    %2174 = vmatprep.subr.mxu0 0.0
    %2175 = vmatpush1.msra.mxu0 0.0
    %2176 = vmatprep.subr.mxu0 0.0
    %2177 = vmatpush1.msra.mxu0 0.0
    %2178 = vmatprep.subr.mxu0 0.0
    %2179 = vmatpush1.msra.mxu0 0.0
    %2180 = vmatprep.subr.mxu0 0.0
    %2181 = vmatpush1.msra.mxu0 0.0
    %2182 = vmatprep.subr.mxu0 0.0
    %2183 = vmatpush1.msra.mxu0 0.0
    %2184 = vmatprep.subr.mxu0 0.0
    %2185 = vmatpush1.msra.mxu0 0.0
    %2186 = vmatprep.subr.mxu0 0.0
    %2187 = vmatpush1.msra.mxu0 0.0
    %2188 = vmatprep.subr.mxu0 0.0
    %2189 = vmatpush1.msra.mxu0 0.0
    %2190 = vmatprep.subr.mxu0 0.0
    %2191 = vmatpush1.msra.mxu0 0.0
    %2192 = vmatprep.subr.mxu0 0.0
    %2193 = vmatpush1.msra.mxu0 0.0
    %2194 = vmatprep.subr.mxu0 0.0
    %2195 = vmatpush1.msra.mxu0 0.0
    %2196 = vmatprep.subr.mxu0 0.0
    %2197 = vmatpush1.msra.mxu0 0.0
    %2198 = vmatprep.subr.mxu0 0.0
    %2199 = vmatpush1.msra.mxu0 0.0
    %2200 = vmatprep.subr.mxu0 0.0
    %2201 = vmatpush1.msra.mxu0 0.0
    %2202 = vmatprep.subr.mxu0 0.0
    %2203 = vmatpush1.msra.mxu0 0.0
    %2204 = vmatprep.subr.mxu0 0.0
    %2205 = vmatpush1.msra.mxu0 0.0
    %2206 = vmatprep.subr.mxu0 0.0
    %2207 = vmatpush1.msra.mxu0 0.0
    %2208 = vmatprep.subr.mxu0 0.0
    %2209 = vmatpush1.msra.mxu0 0.0
    %2210 = vmatprep.subr.mxu0 0.0
    %2211 = vmatpush1.msra.mxu0 0.0
    %2212 = vmatprep.mubr.f32.mxu0 0.0
    %2213 = vmatmul.mubr.f32.gmra.mrb[0].mxu0 %v2146
    %v2214 = vpop.f32.mrb[0].mxu0
    %v2215 = vadd.f32 %v2143, %v2214
    %v2216 = vpop.f32.mrb[0].mxu0
    %2217 = vdwg.mxu0
    %v2218 = vmax.f32 %v2215, 0.0
    %2219 = vmatprep.subr.mxu0 0.0
    %2220 = vmatpush1.msra.mxu0 %v2218
    %2221 = vmatprep.subr.mxu0 0.0
    %2222 = vmatpush1.msra.mxu0 0.0
    %2223 = vmatprep.subr.mxu0 0.0
    %2224 = vmatpush1.msra.mxu0 0.0
    %2225 = vmatprep.subr.mxu0 0.0
    %2226 = vmatpush1.msra.mxu0 0.0
    %2227 = vmatprep.subr.mxu0 0.0
    %2228 = vmatpush1.msra.mxu0 0.0
    %2229 = vmatprep.subr.mxu0 0.0
    %2230 = vmatpush1.msra.mxu0 0.0
    %2231 = vmatprep.subr.mxu0 0.0
    %2232 = vmatpush1.msra.mxu0 0.0
    %2233 = vmatprep.subr.mxu0 0.0
    %2234 = vmatpush1.msra.mxu0 0.0
    %2235 = vmatprep.subr.mxu0 0.0
    %2236 = vmatpush1.msra.mxu0 0.0
    %2237 = vmatprep.subr.mxu0 0.0
    %2238 = vmatpush1.msra.mxu0 0.0
    %2239 = vmatprep.subr.mxu0 0.0
    %2240 = vmatpush1.msra.mxu0 0.0
    %2241 = vmatprep.subr.mxu0 0.0
    %2242 = vmatpush1.msra.mxu0 0.0
    %2243 = vmatprep.subr.mxu0 0.0
    %2244 = vmatpush1.msra.mxu0 0.0
    %2245 = vmatprep.subr.mxu0 0.0
    %2246 = vmatpush1.msra.mxu0 0.0
    %2247 = vmatprep.subr.mxu0 0.0
    %2248 = vmatpush1.msra.mxu0 0.0
    %2249 = vmatprep.subr.mxu0 0.0
    %2250 = vmatpush1.msra.mxu0 0.0
    %2251 = vmatprep.subr.mxu0 0.0
    %2252 = vmatpush1.msra.mxu0 0.0
    %2253 = vmatprep.subr.mxu0 0.0
    %2254 = vmatpush1.msra.mxu0 0.0
    %2255 = vmatprep.subr.mxu0 0.0
    %2256 = vmatpush1.msra.mxu0 0.0
    %2257 = vmatprep.subr.mxu0 0.0
    %2258 = vmatpush1.msra.mxu0 0.0
    %2259 = vmatprep.subr.mxu0 0.0
    %2260 = vmatpush1.msra.mxu0 0.0
    %2261 = vmatprep.subr.mxu0 0.0
    %2262 = vmatpush1.msra.mxu0 0.0
    %2263 = vmatprep.subr.mxu0 0.0
    %2264 = vmatpush1.msra.mxu0 0.0
    %2265 = vmatprep.subr.mxu0 0.0
    %2266 = vmatpush1.msra.mxu0 0.0
    %2267 = vmatprep.subr.mxu0 0.0
    %2268 = vmatpush1.msra.mxu0 0.0
    %2269 = vmatprep.subr.mxu0 0.0
    %2270 = vmatpush1.msra.mxu0 0.0
    %2271 = vmatprep.subr.mxu0 0.0
    %2272 = vmatpush1.msra.mxu0 0.0
    %2273 = vmatprep.subr.mxu0 0.0
    %2274 = vmatpush1.msra.mxu0 0.0
    %2275 = vmatprep.subr.mxu0 0.0
    %2276 = vmatpush1.msra.mxu0 0.0
    %2277 = vmatprep.subr.mxu0 0.0
    %2278 = vmatpush1.msra.mxu0 0.0
    %2279 = vmatprep.subr.mxu0 0.0
    %2280 = vmatpush1.msra.mxu0 0.0
    %2281 = vmatprep.subr.mxu0 0.0
    %2282 = vmatpush1.msra.mxu0 0.0
    %2283 = vmatprep.mubr.f32.mxu0 0.0
    %2284 = vmatmul.mubr.f32.gmra.mrb[0].mxu0 %v2062
    %v2285 = vpop.f32.mrb[0].mxu0
    %v2286 = vadd.f32 0.0, %v2285
    %v2287 = vpop.f32.mrb[0].mxu0
    %2288 = vdwg.mxu0
    %s2289 = scalar_lea.vmem %s33, 32
    %v2290 = vld [vmem:[%s2289] sm:$0xff]
    %v2291 = vld [vmem:[%s2289 + $0x8] sm:$0xff]
    %v2292 = vld [vmem:[%s2289 + $0x10] sm:$0xff]
    %v2293 = vld [vmem:[%s2289 + $0x18] sm:$0xff]
    %s2294 = scalar_lea.vmem %s35, 1
    %v2295 = vld [vmem:[%s2294] sm:$0x1]
    %v2297 = vlaneseq
    %v2298 = vshrl.u32 %v2297, 7
    %v2299 = vsub.s32 0, %v2298
    %v2300 = vrot.slane %v2295, %v2299
    %v2303 = vsel %vm352, %v2286, 0
    %2305 = vmatprep.subr.mxu0 0.0
    %2306 = vmatpush1.msra.mxu0 %v2290
    %2307 = vmatprep.subr.mxu0 0.0
    %2308 = vmatpush1.msra.mxu0 %v2291
    %2309 = vmatprep.subr.mxu0 0.0
    %2310 = vmatpush1.msra.mxu0 %v2292
    %2311 = vmatprep.subr.mxu0 0.0
    %2312 = vmatpush1.msra.mxu0 %v2293
    %2313 = vmatprep.subr.mxu0 0.0
    %2314 = vmatpush1.msra.mxu0 0.0
    %2315 = vmatprep.subr.mxu0 0.0
    %2316 = vmatpush1.msra.mxu0 0.0
    %2317 = vmatprep.subr.mxu0 0.0
    %2318 = vmatpush1.msra.mxu0 0.0
    %2319 = vmatprep.subr.mxu0 0.0
    %2320 = vmatpush1.msra.mxu0 0.0
    %2321 = vmatprep.subr.mxu0 0.0
    %2322 = vmatpush1.msra.mxu0 0.0
    %2323 = vmatprep.subr.mxu0 0.0
    %2324 = vmatpush1.msra.mxu0 0.0
    %2325 = vmatprep.subr.mxu0 0.0
    %2326 = vmatpush1.msra.mxu0 0.0
    %2327 = vmatprep.subr.mxu0 0.0
    %2328 = vmatpush1.msra.mxu0 0.0
    %2329 = vmatprep.subr.mxu0 0.0
    %2330 = vmatpush1.msra.mxu0 0.0
    %2331 = vmatprep.subr.mxu0 0.0
    %2332 = vmatpush1.msra.mxu0 0.0
    %2333 = vmatprep.subr.mxu0 0.0
    %2334 = vmatpush1.msra.mxu0 0.0
    %2335 = vmatprep.subr.mxu0 0.0
    %2336 = vmatpush1.msra.mxu0 0.0
    %2337 = vmatprep.subr.mxu0 0.0
    %2338 = vmatpush1.msra.mxu0 0.0
    %2339 = vmatprep.subr.mxu0 0.0
    %2340 = vmatpush1.msra.mxu0 0.0
    %2341 = vmatprep.subr.mxu0 0.0
    %2342 = vmatpush1.msra.mxu0 0.0
    %2343 = vmatprep.subr.mxu0 0.0
    %2344 = vmatpush1.msra.mxu0 0.0
    %2345 = vmatprep.subr.mxu0 0.0
    %2346 = vmatpush1.msra.mxu0 0.0
    %2347 = vmatprep.subr.mxu0 0.0
    %2348 = vmatpush1.msra.mxu0 0.0
    %2349 = vmatprep.subr.mxu0 0.0
    %2350 = vmatpush1.msra.mxu0 0.0
    %2351 = vmatprep.subr.mxu0 0.0
    %2352 = vmatpush1.msra.mxu0 0.0
    %2353 = vmatprep.subr.mxu0 0.0
    %2354 = vmatpush1.msra.mxu0 0.0
    %2355 = vmatprep.subr.mxu0 0.0
    %2356 = vmatpush1.msra.mxu0 0.0
    %2357 = vmatprep.subr.mxu0 0.0
    %2358 = vmatpush1.msra.mxu0 0.0
    %2359 = vmatprep.subr.mxu0 0.0
    %2360 = vmatpush1.msra.mxu0 0.0
    %2361 = vmatprep.subr.mxu0 0.0
    %2362 = vmatpush1.msra.mxu0 0.0
    %2363 = vmatprep.subr.mxu0 0.0
    %2364 = vmatpush1.msra.mxu0 0.0
    %2365 = vmatprep.subr.mxu0 0.0
    %2366 = vmatpush1.msra.mxu0 0.0
    %2367 = vmatprep.subr.mxu0 0.0
    %2368 = vmatpush1.msra.mxu0 0.0
    %2369 = vmatprep.mubr.f32.mxu0 0.0
    %2370 = vmatmul.mubr.f32.gmra.mrb[0].mxu0 %v2303
    %v2371 = vpop.f32.mrb[0].mxu0
    %v2372 = vadd.f32 %v2300, %v2371
    %v2373 = vpop.f32.mrb[0].mxu0
    %2374 = vdwg.mxu0
    %v2375 = vmax.f32 %v2372, 0.0
    %v2376 = vld [vmem:[%s37] sm:$0xff]
    %v2377 = vld [vmem:[%s37 + $0x8] sm:$0xff]
    %v2378 = vld [vmem:[%s37 + $0x10] sm:$0xff]
    %v2379 = vld [vmem:[%s37 + $0x18] sm:$0xff]
    %v2380 = vld [vmem:[%s39] sm:$0x1]
    %v2382 = vlaneseq
    %v2383 = vshrl.u32 %v2382, 7
    %v2384 = vsub.s32 0, %v2383
    %v2385 = vrot.slane %v2380, %v2384
    %v2388 = vsel %vm352, %v2375, 0
    %2390 = vmatprep.subr.mxu0 0.0
    %2391 = vmatpush1.msra.mxu0 %v2376
    %2392 = vmatprep.subr.mxu0 0.0
    %2393 = vmatpush1.msra.mxu0 %v2377
    %2394 = vmatprep.subr.mxu0 0.0
    %2395 = vmatpush1.msra.mxu0 %v2378
    %2396 = vmatprep.subr.mxu0 0.0
    %2397 = vmatpush1.msra.mxu0 %v2379
    %2398 = vmatprep.subr.mxu0 0.0
    %2399 = vmatpush1.msra.mxu0 0.0
    %2400 = vmatprep.subr.mxu0 0.0
    %2401 = vmatpush1.msra.mxu0 0.0
    %2402 = vmatprep.subr.mxu0 0.0
    %2403 = vmatpush1.msra.mxu0 0.0
    %2404 = vmatprep.subr.mxu0 0.0
    %2405 = vmatpush1.msra.mxu0 0.0
    %2406 = vmatprep.subr.mxu0 0.0
    %2407 = vmatpush1.msra.mxu0 0.0
    %2408 = vmatprep.subr.mxu0 0.0
    %2409 = vmatpush1.msra.mxu0 0.0
    %2410 = vmatprep.subr.mxu0 0.0
    %2411 = vmatpush1.msra.mxu0 0.0
    %2412 = vmatprep.subr.mxu0 0.0
    %2413 = vmatpush1.msra.mxu0 0.0
    %2414 = vmatprep.subr.mxu0 0.0
    %2415 = vmatpush1.msra.mxu0 0.0
    %2416 = vmatprep.subr.mxu0 0.0
    %2417 = vmatpush1.msra.mxu0 0.0
    %2418 = vmatprep.subr.mxu0 0.0
    %2419 = vmatpush1.msra.mxu0 0.0
    %2420 = vmatprep.subr.mxu0 0.0
    %2421 = vmatpush1.msra.mxu0 0.0
    %2422 = vmatprep.subr.mxu0 0.0
    %2423 = vmatpush1.msra.mxu0 0.0
    %2424 = vmatprep.subr.mxu0 0.0
    %2425 = vmatpush1.msra.mxu0 0.0
    %2426 = vmatprep.subr.mxu0 0.0
    %2427 = vmatpush1.msra.mxu0 0.0
    %2428 = vmatprep.subr.mxu0 0.0
    %2429 = vmatpush1.msra.mxu0 0.0
    %2430 = vmatprep.subr.mxu0 0.0
    %2431 = vmatpush1.msra.mxu0 0.0
    %2432 = vmatprep.subr.mxu0 0.0
    %2433 = vmatpush1.msra.mxu0 0.0
    %2434 = vmatprep.subr.mxu0 0.0
    %2435 = vmatpush1.msra.mxu0 0.0
    %2436 = vmatprep.subr.mxu0 0.0
    %2437 = vmatpush1.msra.mxu0 0.0
    %2438 = vmatprep.subr.mxu0 0.0
    %2439 = vmatpush1.msra.mxu0 0.0
    %2440 = vmatprep.subr.mxu0 0.0
    %2441 = vmatpush1.msra.mxu0 0.0
    %2442 = vmatprep.subr.mxu0 0.0
    %2443 = vmatpush1.msra.mxu0 0.0
    %2444 = vmatprep.subr.mxu0 0.0
    %2445 = vmatpush1.msra.mxu0 0.0
    %2446 = vmatprep.subr.mxu0 0.0
    %2447 = vmatpush1.msra.mxu0 0.0
    %2448 = vmatprep.subr.mxu0 0.0
    %2449 = vmatpush1.msra.mxu0 0.0
    %2450 = vmatprep.subr.mxu0 0.0
    %2451 = vmatpush1.msra.mxu0 0.0
    %2452 = vmatprep.subr.mxu0 0.0
    %2453 = vmatpush1.msra.mxu0 0.0
    %2454 = vmatprep.mubr.f32.mxu0 0.0
    %2455 = vmatmul.mubr.f32.gmra.mrb[0].mxu0 %v2388
    %v2456 = vpop.f32.mrb[0].mxu0
    %v2457 = vadd.f32 %v2385, %v2456
    %v2458 = vpop.f32.mrb[0].mxu0
    %2459 = vdwg.mxu0
    %v2460 = vld [vmem:[%s41] sm:$0xff]
    %v2461 = vld [vmem:[%s41 + $0x8] sm:$0xff]
    %v2462 = vld [vmem:[%s41 + $0x10] sm:$0xff]
    %v2463 = vld [vmem:[%s41 + $0x18] sm:$0xff]
    %v2465 = vsel %vm352, %v2457, 0
    %2467 = vmatprep.subr.mxu0 0.0
    %2468 = vmatpush1.msra.mxu0 %v2460
    %2469 = vmatprep.subr.mxu0 0.0
    %2470 = vmatpush1.msra.mxu0 %v2461
    %2471 = vmatprep.subr.mxu0 0.0
    %2472 = vmatpush1.msra.mxu0 %v2462
    %2473 = vmatprep.subr.mxu0 0.0
    %2474 = vmatpush1.msra.mxu0 %v2463
    %2475 = vmatprep.subr.mxu0 0.0
    %2476 = vmatpush1.msra.mxu0 0.0
    %2477 = vmatprep.subr.mxu0 0.0
    %2478 = vmatpush1.msra.mxu0 0.0
    %2479 = vmatprep.subr.mxu0 0.0
    %2480 = vmatpush1.msra.mxu0 0.0
    %2481 = vmatprep.subr.mxu0 0.0
    %2482 = vmatpush1.msra.mxu0 0.0
    %2483 = vmatprep.subr.mxu0 0.0
    %2484 = vmatpush1.msra.mxu0 0.0
    %2485 = vmatprep.subr.mxu0 0.0
    %2486 = vmatpush1.msra.mxu0 0.0
    %2487 = vmatprep.subr.mxu0 0.0
    %2488 = vmatpush1.msra.mxu0 0.0
    %2489 = vmatprep.subr.mxu0 0.0
    %2490 = vmatpush1.msra.mxu0 0.0
    %2491 = vmatprep.subr.mxu0 0.0
    %2492 = vmatpush1.msra.mxu0 0.0
    %2493 = vmatprep.subr.mxu0 0.0
    %2494 = vmatpush1.msra.mxu0 0.0
    %2495 = vmatprep.subr.mxu0 0.0
    %2496 = vmatpush1.msra.mxu0 0.0
    %2497 = vmatprep.subr.mxu0 0.0
    %2498 = vmatpush1.msra.mxu0 0.0
    %2499 = vmatprep.subr.mxu0 0.0
    %2500 = vmatpush1.msra.mxu0 0.0
    %2501 = vmatprep.subr.mxu0 0.0
    %2502 = vmatpush1.msra.mxu0 0.0
    %2503 = vmatprep.subr.mxu0 0.0
    %2504 = vmatpush1.msra.mxu0 0.0
    %2505 = vmatprep.subr.mxu0 0.0
    %2506 = vmatpush1.msra.mxu0 0.0
    %2507 = vmatprep.subr.mxu0 0.0
    %2508 = vmatpush1.msra.mxu0 0.0
    %2509 = vmatprep.subr.mxu0 0.0
    %2510 = vmatpush1.msra.mxu0 0.0
    %2511 = vmatprep.subr.mxu0 0.0
    %2512 = vmatpush1.msra.mxu0 0.0
    %2513 = vmatprep.subr.mxu0 0.0
    %2514 = vmatpush1.msra.mxu0 0.0
    %2515 = vmatprep.subr.mxu0 0.0
    %2516 = vmatpush1.msra.mxu0 0.0
    %2517 = vmatprep.subr.mxu0 0.0
    %2518 = vmatpush1.msra.mxu0 0.0
    %2519 = vmatprep.subr.mxu0 0.0
    %2520 = vmatpush1.msra.mxu0 0.0
    %2521 = vmatprep.subr.mxu0 0.0
    %2522 = vmatpush1.msra.mxu0 0.0
    %2523 = vmatprep.subr.mxu0 0.0
    %2524 = vmatpush1.msra.mxu0 0.0
    %2525 = vmatprep.subr.mxu0 0.0
    %2526 = vmatpush1.msra.mxu0 0.0
    %2527 = vmatprep.subr.mxu0 0.0
    %2528 = vmatpush1.msra.mxu0 0.0
    %2529 = vmatprep.subr.mxu0 0.0
    %2530 = vmatpush1.msra.mxu0 0.0
    %2531 = vmatprep.mubr.f32.mxu0 0.0
    %2532 = vmatmul.mubr.f32.gmra.mrb[0].mxu0 %v2465
    %v2533 = vpop.f32.mrb[0].mxu0
    %v2534 = vadd.f32 0.0, %v2533
    %v2535 = vpop.f32.mrb[0].mxu0
    %2536 = vdwg.mxu0
    %v2537 = vld [vmem:[%s43] sm:$0xff]
    %v2538 = vld [vmem:[%s43 + $0x8] sm:$0xff]
    %v2539 = vld [vmem:[%s43 + $0x10] sm:$0xff]
    %v2540 = vld [vmem:[%s43 + $0x18] sm:$0xff]
    %v2542 = vsel %vm352, %v2057, 0
    %2544 = vmatprep.subr.mxu0 0.0
    %2545 = vmatpush1.msra.mxu0 %v2537
    %2546 = vmatprep.subr.mxu0 0.0
    %2547 = vmatpush1.msra.mxu0 %v2538
    %2548 = vmatprep.subr.mxu0 0.0
    %2549 = vmatpush1.msra.mxu0 %v2539
    %2550 = vmatprep.subr.mxu0 0.0
    %2551 = vmatpush1.msra.mxu0 %v2540
    %2552 = vmatprep.subr.mxu0 0.0
    %2553 = vmatpush1.msra.mxu0 0.0
    %2554 = vmatprep.subr.mxu0 0.0
    %2555 = vmatpush1.msra.mxu0 0.0
    %2556 = vmatprep.subr.mxu0 0.0
    %2557 = vmatpush1.msra.mxu0 0.0
    %2558 = vmatprep.subr.mxu0 0.0
    %2559 = vmatpush1.msra.mxu0 0.0
    %2560 = vmatprep.subr.mxu0 0.0
    %2561 = vmatpush1.msra.mxu0 0.0
    %2562 = vmatprep.subr.mxu0 0.0
    %2563 = vmatpush1.msra.mxu0 0.0
    %2564 = vmatprep.subr.mxu0 0.0
    %2565 = vmatpush1.msra.mxu0 0.0
    %2566 = vmatprep.subr.mxu0 0.0
    %2567 = vmatpush1.msra.mxu0 0.0
    %2568 = vmatprep.subr.mxu0 0.0
    %2569 = vmatpush1.msra.mxu0 0.0
    %2570 = vmatprep.subr.mxu0 0.0
    %2571 = vmatpush1.msra.mxu0 0.0
    %2572 = vmatprep.subr.mxu0 0.0
    %2573 = vmatpush1.msra.mxu0 0.0
    %2574 = vmatprep.subr.mxu0 0.0
    %2575 = vmatpush1.msra.mxu0 0.0
    %2576 = vmatprep.subr.mxu0 0.0
    %2577 = vmatpush1.msra.mxu0 0.0
    %2578 = vmatprep.subr.mxu0 0.0
    %2579 = vmatpush1.msra.mxu0 0.0
    %2580 = vmatprep.subr.mxu0 0.0
    %2581 = vmatpush1.msra.mxu0 0.0
    %2582 = vmatprep.subr.mxu0 0.0
    %2583 = vmatpush1.msra.mxu0 0.0
    %2584 = vmatprep.subr.mxu0 0.0
    %2585 = vmatpush1.msra.mxu0 0.0
    %2586 = vmatprep.subr.mxu0 0.0
    %2587 = vmatpush1.msra.mxu0 0.0
    %2588 = vmatprep.subr.mxu0 0.0
    %2589 = vmatpush1.msra.mxu0 0.0
    %2590 = vmatprep.subr.mxu0 0.0
    %2591 = vmatpush1.msra.mxu0 0.0
    %2592 = vmatprep.subr.mxu0 0.0
    %2593 = vmatpush1.msra.mxu0 0.0
    %2594 = vmatprep.subr.mxu0 0.0
    %2595 = vmatpush1.msra.mxu0 0.0
    %2596 = vmatprep.subr.mxu0 0.0
    %2597 = vmatpush1.msra.mxu0 0.0
    %2598 = vmatprep.subr.mxu0 0.0
    %2599 = vmatpush1.msra.mxu0 0.0
    %2600 = vmatprep.subr.mxu0 0.0
    %2601 = vmatpush1.msra.mxu0 0.0
    %2602 = vmatprep.subr.mxu0 0.0
    %2603 = vmatpush1.msra.mxu0 0.0
    %2604 = vmatprep.subr.mxu0 0.0
    %2605 = vmatpush1.msra.mxu0 0.0
    %2606 = vmatprep.subr.mxu0 0.0
    %2607 = vmatpush1.msra.mxu0 0.0
    %2608 = vmatprep.mubr.f32.mxu0 0.0
    %2609 = vmatmul.mubr.f32.gmra.mrb[0].mxu0 %v2542
    %v2610 = vpop.f32.mrb[0].mxu0
    %v2611 = vadd.f32 0.0, %v2610
    %v2612 = vpop.f32.mrb[0].mxu0
    %2613 = vdwg.mxu0
    %2615 = vrot.lane.b32.xlu0 %v2534, 96
    %v2616 = vpop.permute.xlu0 %2615
    %v2617 = vsel %vm262, %v2534, 0
    %v2619 = vsel %vm262, %v2616, 0
    %2621 = vmatprep.subr.mxu0 0.0
    %2622 = vmatpush1.xpose.msra.mxu0 %v2619
    %2623 = vmatprep.subr.mxu0 0.0
    %2624 = vmatpush1.xpose.msra.mxu0 0.0
    %2625 = vmatprep.subr.mxu0 0.0
    %2626 = vmatpush1.xpose.msra.mxu0 0.0
    %2627 = vmatprep.subr.mxu0 0.0
    %2628 = vmatpush1.xpose.msra.mxu0 0.0
    %2629 = vmatprep.subr.mxu0 0.0
    %2630 = vmatpush1.xpose.msra.mxu0 0.0
    %2631 = vmatprep.subr.mxu0 0.0
    %2632 = vmatpush1.xpose.msra.mxu0 0.0
    %2633 = vmatprep.subr.mxu0 0.0
    %2634 = vmatpush1.xpose.msra.mxu0 0.0
    %2635 = vmatprep.subr.mxu0 0.0
    %2636 = vmatpush1.xpose.msra.mxu0 0.0
    %2637 = vmatprep.subr.mxu0 0.0
    %2638 = vmatpush1.xpose.msra.mxu0 0.0
    %2639 = vmatprep.subr.mxu0 0.0
    %2640 = vmatpush1.xpose.msra.mxu0 0.0
    %2641 = vmatprep.subr.mxu0 0.0
    %2642 = vmatpush1.xpose.msra.mxu0 0.0
    %2643 = vmatprep.subr.mxu0 0.0
    %2644 = vmatpush1.xpose.msra.mxu0 0.0
    %2645 = vmatprep.subr.mxu0 0.0
    %2646 = vmatpush1.xpose.msra.mxu0 0.0
    %2647 = vmatprep.subr.mxu0 0.0
    %2648 = vmatpush1.xpose.msra.mxu0 0.0
    %2649 = vmatprep.subr.mxu0 0.0
    %2650 = vmatpush1.xpose.msra.mxu0 0.0
    %2651 = vmatprep.subr.mxu0 0.0
    %2652 = vmatpush1.xpose.msra.mxu0 0.0
    %2653 = vmatprep.subr.mxu0 0.0
    %2654 = vmatpush1.xpose.msra.mxu0 0.0
    %2655 = vmatprep.subr.mxu0 0.0
    %2656 = vmatpush1.xpose.msra.mxu0 0.0
    %2657 = vmatprep.subr.mxu0 0.0
    %2658 = vmatpush1.xpose.msra.mxu0 0.0
    %2659 = vmatprep.subr.mxu0 0.0
    %2660 = vmatpush1.xpose.msra.mxu0 0.0
    %2661 = vmatprep.subr.mxu0 0.0
    %2662 = vmatpush1.xpose.msra.mxu0 0.0
    %2663 = vmatprep.subr.mxu0 0.0
    %2664 = vmatpush1.xpose.msra.mxu0 0.0
    %2665 = vmatprep.subr.mxu0 0.0
    %2666 = vmatpush1.xpose.msra.mxu0 0.0
    %2667 = vmatprep.subr.mxu0 0.0
    %2668 = vmatpush1.xpose.msra.mxu0 0.0
    %2669 = vmatprep.subr.mxu0 0.0
    %2670 = vmatpush1.xpose.msra.mxu0 0.0
    %2671 = vmatprep.subr.mxu0 0.0
    %2672 = vmatpush1.xpose.msra.mxu0 0.0
    %2673 = vmatprep.subr.mxu0 0.0
    %2674 = vmatpush1.xpose.msra.mxu0 0.0
    %2675 = vmatprep.subr.mxu0 0.0
    %2676 = vmatpush1.xpose.msra.mxu0 0.0
    %2677 = vmatprep.subr.mxu0 0.0
    %2678 = vmatpush1.xpose.msra.mxu0 0.0
    %2679 = vmatprep.subr.mxu0 0.0
    %2680 = vmatpush1.xpose.msra.mxu0 0.0
    %2681 = vmatprep.subr.mxu0 0.0
    %2682 = vmatpush1.xpose.msra.mxu0 0.0
    %2683 = vmatprep.subr.mxu0 0.0
    %2684 = vmatpush1.xpose.msra.mxu0 0.0
    %2685 = vmatprep.mubr.f32.mxu0 0.0
    %2686 = vmatmul.mubr.f32.gmra.mrb[0].mxu0 %v2617
    %v2687 = vpop.f32.mrb[0].mxu0
    %v2688 = vadd.f32 0.0, %v2687
    %v2689 = vpop.f32.mrb[0].mxu0
    %2690 = vdwg.mxu0
    %v2691 = vmul.f32 %v2688, 0.35355338
    %v2692 = vsel %vm262, %v2691, -inf
    %2693 = vmax.xlane.f32.xlu0 %v2692
    %v2694 = vpop.xlane.xlu0 %2693
    %v2695 = vsub.f32 %v2691, %v2694
    %v2696 = vmul.f32 %v2695, 1.442695
    %v2697 = vpow.pop %v2696
    %v2698 = vsel %vm262, %v2697, 0.0
    %2699 = vadd.xlane.f32.xlu0 %v2698
    %v2700 = vpop.xlane.xlu0 %2699
    %v2701 = vrcp.pop %v2700
    %v2702 = vmul.f32 %v2697, %v2701
    %v2704 = vsel %vm262, %v2702, 0
    %2706 = vmatprep.subr.mxu0 0.0
    %2707 = vmatpush1.msra.mxu0 %v2611
    %2708 = vmatprep.subr.mxu0 0.0
    %2709 = vmatpush1.msra.mxu0 0.0
    %2710 = vmatprep.subr.mxu0 0.0
    %2711 = vmatpush1.msra.mxu0 0.0
    %2712 = vmatprep.subr.mxu0 0.0
    %2713 = vmatpush1.msra.mxu0 0.0
    %2714 = vmatprep.subr.mxu0 0.0
    %2715 = vmatpush1.msra.mxu0 0.0
    %2716 = vmatprep.subr.mxu0 0.0
    %2717 = vmatpush1.msra.mxu0 0.0
    %2718 = vmatprep.subr.mxu0 0.0
    %2719 = vmatpush1.msra.mxu0 0.0
    %2720 = vmatprep.subr.mxu0 0.0
    %2721 = vmatpush1.msra.mxu0 0.0
    %2722 = vmatprep.subr.mxu0 0.0
    %2723 = vmatpush1.msra.mxu0 0.0
    %2724 = vmatprep.subr.mxu0 0.0
    %2725 = vmatpush1.msra.mxu0 0.0
    %2726 = vmatprep.subr.mxu0 0.0
    %2727 = vmatpush1.msra.mxu0 0.0
    %2728 = vmatprep.subr.mxu0 0.0
    %2729 = vmatpush1.msra.mxu0 0.0
    %2730 = vmatprep.subr.mxu0 0.0
    %2731 = vmatpush1.msra.mxu0 0.0
    %2732 = vmatprep.subr.mxu0 0.0
    %2733 = vmatpush1.msra.mxu0 0.0
    %2734 = vmatprep.subr.mxu0 0.0
    %2735 = vmatpush1.msra.mxu0 0.0
    %2736 = vmatprep.subr.mxu0 0.0
    %2737 = vmatpush1.msra.mxu0 0.0
    %2738 = vmatprep.subr.mxu0 0.0
    %2739 = vmatpush1.msra.mxu0 0.0
    %2740 = vmatprep.subr.mxu0 0.0
    %2741 = vmatpush1.msra.mxu0 0.0
    %2742 = vmatprep.subr.mxu0 0.0
    %2743 = vmatpush1.msra.mxu0 0.0
    %2744 = vmatprep.subr.mxu0 0.0
    %2745 = vmatpush1.msra.mxu0 0.0
    %2746 = vmatprep.subr.mxu0 0.0
    %2747 = vmatpush1.msra.mxu0 0.0
    %2748 = vmatprep.subr.mxu0 0.0
    %2749 = vmatpush1.msra.mxu0 0.0
    %2750 = vmatprep.subr.mxu0 0.0
    %2751 = vmatpush1.msra.mxu0 0.0
    %2752 = vmatprep.subr.mxu0 0.0
    %2753 = vmatpush1.msra.mxu0 0.0
    %2754 = vmatprep.subr.mxu0 0.0
    %2755 = vmatpush1.msra.mxu0 0.0
    %2756 = vmatprep.subr.mxu0 0.0
    %2757 = vmatpush1.msra.mxu0 0.0
    %2758 = vmatprep.subr.mxu0 0.0
    %2759 = vmatpush1.msra.mxu0 0.0
    %2760 = vmatprep.subr.mxu0 0.0
    %2761 = vmatpush1.msra.mxu0 0.0
    %2762 = vmatprep.subr.mxu0 0.0
    %2763 = vmatpush1.msra.mxu0 0.0
    %2764 = vmatprep.subr.mxu0 0.0
    %2765 = vmatpush1.msra.mxu0 0.0
    %2766 = vmatprep.subr.mxu0 0.0
    %2767 = vmatpush1.msra.mxu0 0.0
    %2768 = vmatprep.subr.mxu0 0.0
    %2769 = vmatpush1.msra.mxu0 0.0
    %2770 = vmatprep.mubr.f32.mxu0 0.0
    %2771 = vmatmul.mubr.f32.gmra.mrb[0].mxu0 %v2704
    %v2772 = vpop.f32.mrb[0].mxu0
    %v2773 = vadd.f32 0.0, %v2772
    %v2774 = vpop.f32.mrb[0].mxu0
    %2775 = vdwg.mxu0
    %2776 = vrot.lane.b32.xlu0 %v2534, 120
    %v2777 = vpop.permute.xlu0 %2776
    %2778 = vrot.lane.b32.xlu0 %v2534, 88
    %v2779 = vpop.permute.xlu0 %2778
    %v2780 = vsel %vm262, %v2777, 0
    %v2782 = vsel %vm262, %v2779, 0
    %2784 = vmatprep.subr.mxu0 0.0
    %2785 = vmatpush1.xpose.msra.mxu0 %v2782
    %2786 = vmatprep.subr.mxu0 0.0
    %2787 = vmatpush1.xpose.msra.mxu0 0.0
    %2788 = vmatprep.subr.mxu0 0.0
    %2789 = vmatpush1.xpose.msra.mxu0 0.0
    %2790 = vmatprep.subr.mxu0 0.0
    %2791 = vmatpush1.xpose.msra.mxu0 0.0
    %2792 = vmatprep.subr.mxu0 0.0
    %2793 = vmatpush1.xpose.msra.mxu0 0.0
    %2794 = vmatprep.subr.mxu0 0.0
    %2795 = vmatpush1.xpose.msra.mxu0 0.0
    %2796 = vmatprep.subr.mxu0 0.0
    %2797 = vmatpush1.xpose.msra.mxu0 0.0
    %2798 = vmatprep.subr.mxu0 0.0
    %2799 = vmatpush1.xpose.msra.mxu0 0.0
    %2800 = vmatprep.subr.mxu0 0.0
    %2801 = vmatpush1.xpose.msra.mxu0 0.0
    %2802 = vmatprep.subr.mxu0 0.0
    %2803 = vmatpush1.xpose.msra.mxu0 0.0
    %2804 = vmatprep.subr.mxu0 0.0
    %2805 = vmatpush1.xpose.msra.mxu0 0.0
    %2806 = vmatprep.subr.mxu0 0.0
    %2807 = vmatpush1.xpose.msra.mxu0 0.0
    %2808 = vmatprep.subr.mxu0 0.0
    %2809 = vmatpush1.xpose.msra.mxu0 0.0
    %2810 = vmatprep.subr.mxu0 0.0
    %2811 = vmatpush1.xpose.msra.mxu0 0.0
    %2812 = vmatprep.subr.mxu0 0.0
    %2813 = vmatpush1.xpose.msra.mxu0 0.0
    %2814 = vmatprep.subr.mxu0 0.0
    %2815 = vmatpush1.xpose.msra.mxu0 0.0
    %2816 = vmatprep.subr.mxu0 0.0
    %2817 = vmatpush1.xpose.msra.mxu0 0.0
    %2818 = vmatprep.subr.mxu0 0.0
    %2819 = vmatpush1.xpose.msra.mxu0 0.0
    %2820 = vmatprep.subr.mxu0 0.0
    %2821 = vmatpush1.xpose.msra.mxu0 0.0
    %2822 = vmatprep.subr.mxu0 0.0
    %2823 = vmatpush1.xpose.msra.mxu0 0.0
    %2824 = vmatprep.subr.mxu0 0.0
    %2825 = vmatpush1.xpose.msra.mxu0 0.0
    %2826 = vmatprep.subr.mxu0 0.0
    %2827 = vmatpush1.xpose.msra.mxu0 0.0
    %2828 = vmatprep.subr.mxu0 0.0
    %2829 = vmatpush1.xpose.msra.mxu0 0.0
    %2830 = vmatprep.subr.mxu0 0.0
    %2831 = vmatpush1.xpose.msra.mxu0 0.0
    %2832 = vmatprep.subr.mxu0 0.0
    %2833 = vmatpush1.xpose.msra.mxu0 0.0
    %2834 = vmatprep.subr.mxu0 0.0
    %2835 = vmatpush1.xpose.msra.mxu0 0.0
    %2836 = vmatprep.subr.mxu0 0.0
    %2837 = vmatpush1.xpose.msra.mxu0 0.0
    %2838 = vmatprep.subr.mxu0 0.0
    %2839 = vmatpush1.xpose.msra.mxu0 0.0
    %2840 = vmatprep.subr.mxu0 0.0
    %2841 = vmatpush1.xpose.msra.mxu0 0.0
    %2842 = vmatprep.subr.mxu0 0.0
    %2843 = vmatpush1.xpose.msra.mxu0 0.0
    %2844 = vmatprep.subr.mxu0 0.0
    %2845 = vmatpush1.xpose.msra.mxu0 0.0
    %2846 = vmatprep.subr.mxu0 0.0
    %2847 = vmatpush1.xpose.msra.mxu0 0.0
    %2848 = vmatprep.mubr.f32.mxu0 0.0
    %2849 = vmatmul.mubr.f32.gmra.mrb[0].mxu0 %v2780
    %v2850 = vpop.f32.mrb[0].mxu0
    %v2851 = vadd.f32 0.0, %v2850
    %v2852 = vpop.f32.mrb[0].mxu0
    %2853 = vdwg.mxu0
    %v2854 = vmul.f32 %v2851, 0.35355338
    %v2855 = vsel %vm262, %v2854, -inf
    %2856 = vmax.xlane.f32.xlu0 %v2855
    %v2857 = vpop.xlane.xlu0 %2856
    %v2858 = vsub.f32 %v2854, %v2857
    %v2859 = vmul.f32 %v2858, 1.442695
    %v2860 = vpow.pop %v2859
    %v2861 = vsel %vm262, %v2860, 0.0
    %2862 = vadd.xlane.f32.xlu0 %v2861
    %v2863 = vpop.xlane.xlu0 %2862
    %v2864 = vrcp.pop %v2863
    %v2865 = vmul.f32 %v2860, %v2864
    %2867 = vrot.lane.b32.xlu0 %v2611, 120
    %v2868 = vpop.permute.xlu0 %2867
    %v2871 = vsel %vm262, %v2865, 0
    %2873 = vmatprep.subr.mxu0 0.0
    %2874 = vmatpush1.msra.mxu0 %v2868
    %2875 = vmatprep.subr.mxu0 0.0
    %2876 = vmatpush1.msra.mxu0 0.0
    %2877 = vmatprep.subr.mxu0 0.0
    %2878 = vmatpush1.msra.mxu0 0.0
    %2879 = vmatprep.subr.mxu0 0.0
    %2880 = vmatpush1.msra.mxu0 0.0
    %2881 = vmatprep.subr.mxu0 0.0
    %2882 = vmatpush1.msra.mxu0 0.0
    %2883 = vmatprep.subr.mxu0 0.0
    %2884 = vmatpush1.msra.mxu0 0.0
    %2885 = vmatprep.subr.mxu0 0.0
    %2886 = vmatpush1.msra.mxu0 0.0
    %2887 = vmatprep.subr.mxu0 0.0
    %2888 = vmatpush1.msra.mxu0 0.0
    %2889 = vmatprep.subr.mxu0 0.0
    %2890 = vmatpush1.msra.mxu0 0.0
    %2891 = vmatprep.subr.mxu0 0.0
    %2892 = vmatpush1.msra.mxu0 0.0
    %2893 = vmatprep.subr.mxu0 0.0
    %2894 = vmatpush1.msra.mxu0 0.0
    %2895 = vmatprep.subr.mxu0 0.0
    %2896 = vmatpush1.msra.mxu0 0.0
    %2897 = vmatprep.subr.mxu0 0.0
    %2898 = vmatpush1.msra.mxu0 0.0
    %2899 = vmatprep.subr.mxu0 0.0
    %2900 = vmatpush1.msra.mxu0 0.0
    %2901 = vmatprep.subr.mxu0 0.0
    %2902 = vmatpush1.msra.mxu0 0.0
    %2903 = vmatprep.subr.mxu0 0.0
    %2904 = vmatpush1.msra.mxu0 0.0
    %2905 = vmatprep.subr.mxu0 0.0
    %2906 = vmatpush1.msra.mxu0 0.0
    %2907 = vmatprep.subr.mxu0 0.0
    %2908 = vmatpush1.msra.mxu0 0.0
    %2909 = vmatprep.subr.mxu0 0.0
    %2910 = vmatpush1.msra.mxu0 0.0
    %2911 = vmatprep.subr.mxu0 0.0
    %2912 = vmatpush1.msra.mxu0 0.0
    %2913 = vmatprep.subr.mxu0 0.0
    %2914 = vmatpush1.msra.mxu0 0.0
    %2915 = vmatprep.subr.mxu0 0.0
    %2916 = vmatpush1.msra.mxu0 0.0
    %2917 = vmatprep.subr.mxu0 0.0
    %2918 = vmatpush1.msra.mxu0 0.0
    %2919 = vmatprep.subr.mxu0 0.0
    %2920 = vmatpush1.msra.mxu0 0.0
    %2921 = vmatprep.subr.mxu0 0.0
    %2922 = vmatpush1.msra.mxu0 0.0
    %2923 = vmatprep.subr.mxu0 0.0
    %2924 = vmatpush1.msra.mxu0 0.0
    %2925 = vmatprep.subr.mxu0 0.0
    %2926 = vmatpush1.msra.mxu0 0.0
    %2927 = vmatprep.subr.mxu0 0.0
    %2928 = vmatpush1.msra.mxu0 0.0
    %2929 = vmatprep.subr.mxu0 0.0
    %2930 = vmatpush1.msra.mxu0 0.0
    %2931 = vmatprep.subr.mxu0 0.0
    %2932 = vmatpush1.msra.mxu0 0.0
    %2933 = vmatprep.subr.mxu0 0.0
    %2934 = vmatpush1.msra.mxu0 0.0
    %2935 = vmatprep.subr.mxu0 0.0
    %2936 = vmatpush1.msra.mxu0 0.0
    %2937 = vmatprep.mubr.f32.mxu0 0.0
    %2938 = vmatmul.mubr.f32.gmra.mrb[0].mxu0 %v2871
    %v2939 = vpop.f32.mrb[0].mxu0
    %v2940 = vadd.f32 0.0, %v2939
    %v2941 = vpop.f32.mrb[0].mxu0
    %2942 = vdwg.mxu0
    %2943 = vrot.lane.b32.xlu0 %v2534, 112
    %v2944 = vpop.permute.xlu0 %2943
    %2945 = vrot.lane.b32.xlu0 %v2534, 80
    %v2946 = vpop.permute.xlu0 %2945
    %v2947 = vsel %vm262, %v2944, 0
    %v2949 = vsel %vm262, %v2946, 0
    %2951 = vmatprep.subr.mxu0 0.0
    %2952 = vmatpush1.xpose.msra.mxu0 %v2949
    %2953 = vmatprep.subr.mxu0 0.0
    %2954 = vmatpush1.xpose.msra.mxu0 0.0
    %2955 = vmatprep.subr.mxu0 0.0
    %2956 = vmatpush1.xpose.msra.mxu0 0.0
    %2957 = vmatprep.subr.mxu0 0.0
    %2958 = vmatpush1.xpose.msra.mxu0 0.0
    %2959 = vmatprep.subr.mxu0 0.0
    %2960 = vmatpush1.xpose.msra.mxu0 0.0
    %2961 = vmatprep.subr.mxu0 0.0
    %2962 = vmatpush1.xpose.msra.mxu0 0.0
    %2963 = vmatprep.subr.mxu0 0.0
    %2964 = vmatpush1.xpose.msra.mxu0 0.0
    %2965 = vmatprep.subr.mxu0 0.0
    %2966 = vmatpush1.xpose.msra.mxu0 0.0
    %2967 = vmatprep.subr.mxu0 0.0
    %2968 = vmatpush1.xpose.msra.mxu0 0.0
    %2969 = vmatprep.subr.mxu0 0.0
    %2970 = vmatpush1.xpose.msra.mxu0 0.0
    %2971 = vmatprep.subr.mxu0 0.0
    %2972 = vmatpush1.xpose.msra.mxu0 0.0
    %2973 = vmatprep.subr.mxu0 0.0
    %2974 = vmatpush1.xpose.msra.mxu0 0.0
    %2975 = vmatprep.subr.mxu0 0.0
    %2976 = vmatpush1.xpose.msra.mxu0 0.0
    %2977 = vmatprep.subr.mxu0 0.0
    %2978 = vmatpush1.xpose.msra.mxu0 0.0
    %2979 = vmatprep.subr.mxu0 0.0
    %2980 = vmatpush1.xpose.msra.mxu0 0.0
    %2981 = vmatprep.subr.mxu0 0.0
    %2982 = vmatpush1.xpose.msra.mxu0 0.0
    %2983 = vmatprep.subr.mxu0 0.0
    %2984 = vmatpush1.xpose.msra.mxu0 0.0
    %2985 = vmatprep.subr.mxu0 0.0
    %2986 = vmatpush1.xpose.msra.mxu0 0.0
    %2987 = vmatprep.subr.mxu0 0.0
    %2988 = vmatpush1.xpose.msra.mxu0 0.0
    %2989 = vmatprep.subr.mxu0 0.0
    %2990 = vmatpush1.xpose.msra.mxu0 0.0
    %2991 = vmatprep.subr.mxu0 0.0
    %2992 = vmatpush1.xpose.msra.mxu0 0.0
    %2993 = vmatprep.subr.mxu0 0.0
    %2994 = vmatpush1.xpose.msra.mxu0 0.0
    %2995 = vmatprep.subr.mxu0 0.0
    %2996 = vmatpush1.xpose.msra.mxu0 0.0
    %2997 = vmatprep.subr.mxu0 0.0
    %2998 = vmatpush1.xpose.msra.mxu0 0.0
    %2999 = vmatprep.subr.mxu0 0.0
    %3000 = vmatpush1.xpose.msra.mxu0 0.0
    %3001 = vmatprep.subr.mxu0 0.0
    %3002 = vmatpush1.xpose.msra.mxu0 0.0
    %3003 = vmatprep.subr.mxu0 0.0
    %3004 = vmatpush1.xpose.msra.mxu0 0.0
    %3005 = vmatprep.subr.mxu0 0.0
    %3006 = vmatpush1.xpose.msra.mxu0 0.0
    %3007 = vmatprep.subr.mxu0 0.0
    %3008 = vmatpush1.xpose.msra.mxu0 0.0
    %3009 = vmatprep.subr.mxu0 0.0
    %3010 = vmatpush1.xpose.msra.mxu0 0.0
    %3011 = vmatprep.subr.mxu0 0.0
    %3012 = vmatpush1.xpose.msra.mxu0 0.0
    %3013 = vmatprep.subr.mxu0 0.0
    %3014 = vmatpush1.xpose.msra.mxu0 0.0
    %3015 = vmatprep.mubr.f32.mxu0 0.0
    %3016 = vmatmul.mubr.f32.gmra.mrb[0].mxu0 %v2947
    %v3017 = vpop.f32.mrb[0].mxu0
    %v3018 = vadd.f32 0.0, %v3017
    %v3019 = vpop.f32.mrb[0].mxu0
    %3020 = vdwg.mxu0
    %v3021 = vmul.f32 %v3018, 0.35355338
    %v3022 = vsel %vm262, %v3021, -inf
    %3023 = vmax.xlane.f32.xlu0 %v3022
    %v3024 = vpop.xlane.xlu0 %3023
    %v3025 = vsub.f32 %v3021, %v3024
    %v3026 = vmul.f32 %v3025, 1.442695
    %v3027 = vpow.pop %v3026
    %v3028 = vsel %vm262, %v3027, 0.0
    %3029 = vadd.xlane.f32.xlu0 %v3028
    %v3030 = vpop.xlane.xlu0 %3029
    %v3031 = vrcp.pop %v3030
    %v3032 = vmul.f32 %v3027, %v3031
    %3033 = vrot.lane.b32.xlu0 %v2611, 112
    %v3034 = vpop.permute.xlu0 %3033
    %v3037 = vsel %vm262, %v3032, 0
    %3039 = vmatprep.subr.mxu0 0.0
    %3040 = vmatpush1.msra.mxu0 %v3034
    %3041 = vmatprep.subr.mxu0 0.0
    %3042 = vmatpush1.msra.mxu0 0.0
    %3043 = vmatprep.subr.mxu0 0.0
    %3044 = vmatpush1.msra.mxu0 0.0
    %3045 = vmatprep.subr.mxu0 0.0
    %3046 = vmatpush1.msra.mxu0 0.0
    %3047 = vmatprep.subr.mxu0 0.0
    %3048 = vmatpush1.msra.mxu0 0.0
    %3049 = vmatprep.subr.mxu0 0.0
    %3050 = vmatpush1.msra.mxu0 0.0
    %3051 = vmatprep.subr.mxu0 0.0
    %3052 = vmatpush1.msra.mxu0 0.0
    %3053 = vmatprep.subr.mxu0 0.0
    %3054 = vmatpush1.msra.mxu0 0.0
    %3055 = vmatprep.subr.mxu0 0.0
    %3056 = vmatpush1.msra.mxu0 0.0
    %3057 = vmatprep.subr.mxu0 0.0
    %3058 = vmatpush1.msra.mxu0 0.0
    %3059 = vmatprep.subr.mxu0 0.0
    %3060 = vmatpush1.msra.mxu0 0.0
    %3061 = vmatprep.subr.mxu0 0.0
    %3062 = vmatpush1.msra.mxu0 0.0
    %3063 = vmatprep.subr.mxu0 0.0
    %3064 = vmatpush1.msra.mxu0 0.0
    %3065 = vmatprep.subr.mxu0 0.0
    %3066 = vmatpush1.msra.mxu0 0.0
    %3067 = vmatprep.subr.mxu0 0.0
    %3068 = vmatpush1.msra.mxu0 0.0
    %3069 = vmatprep.subr.mxu0 0.0
    %3070 = vmatpush1.msra.mxu0 0.0
    %3071 = vmatprep.subr.mxu0 0.0
    %3072 = vmatpush1.msra.mxu0 0.0
    %3073 = vmatprep.subr.mxu0 0.0
    %3074 = vmatpush1.msra.mxu0 0.0
    %3075 = vmatprep.subr.mxu0 0.0
    %3076 = vmatpush1.msra.mxu0 0.0
    %3077 = vmatprep.subr.mxu0 0.0
    %3078 = vmatpush1.msra.mxu0 0.0
    %3079 = vmatprep.subr.mxu0 0.0
    %3080 = vmatpush1.msra.mxu0 0.0
    %3081 = vmatprep.subr.mxu0 0.0
    %3082 = vmatpush1.msra.mxu0 0.0
    %3083 = vmatprep.subr.mxu0 0.0
    %3084 = vmatpush1.msra.mxu0 0.0
    %3085 = vmatprep.subr.mxu0 0.0
    %3086 = vmatpush1.msra.mxu0 0.0
    %3087 = vmatprep.subr.mxu0 0.0
    %3088 = vmatpush1.msra.mxu0 0.0
    %3089 = vmatprep.subr.mxu0 0.0
    %3090 = vmatpush1.msra.mxu0 0.0
    %3091 = vmatprep.subr.mxu0 0.0
    %3092 = vmatpush1.msra.mxu0 0.0
    %3093 = vmatprep.subr.mxu0 0.0
    %3094 = vmatpush1.msra.mxu0 0.0
    %3095 = vmatprep.subr.mxu0 0.0
    %3096 = vmatpush1.msra.mxu0 0.0
    %3097 = vmatprep.subr.mxu0 0.0
    %3098 = vmatpush1.msra.mxu0 0.0
    %3099 = vmatprep.subr.mxu0 0.0
    %3100 = vmatpush1.msra.mxu0 0.0
    %3101 = vmatprep.subr.mxu0 0.0
    %3102 = vmatpush1.msra.mxu0 0.0
    %3103 = vmatprep.mubr.f32.mxu0 0.0
    %3104 = vmatmul.mubr.f32.gmra.mrb[0].mxu0 %v3037
    %v3105 = vpop.f32.mrb[0].mxu0
    %v3106 = vadd.f32 0.0, %v3105
    %v3107 = vpop.f32.mrb[0].mxu0
    %3108 = vdwg.mxu0
    %3109 = vrot.lane.b32.xlu0 %v2534, 104
    %v3110 = vpop.permute.xlu0 %3109
    %3111 = vrot.lane.b32.xlu0 %v2534, 72
    %v3112 = vpop.permute.xlu0 %3111
    %v3113 = vsel %vm262, %v3110, 0
    %v3115 = vsel %vm262, %v3112, 0
    %3117 = vmatprep.subr.mxu0 0.0
    %3118 = vmatpush1.xpose.msra.mxu0 %v3115
    %3119 = vmatprep.subr.mxu0 0.0
    %3120 = vmatpush1.xpose.msra.mxu0 0.0
    %3121 = vmatprep.subr.mxu0 0.0
    %3122 = vmatpush1.xpose.msra.mxu0 0.0
    %3123 = vmatprep.subr.mxu0 0.0
    %3124 = vmatpush1.xpose.msra.mxu0 0.0
    %3125 = vmatprep.subr.mxu0 0.0
    %3126 = vmatpush1.xpose.msra.mxu0 0.0
    %3127 = vmatprep.subr.mxu0 0.0
    %3128 = vmatpush1.xpose.msra.mxu0 0.0
    %3129 = vmatprep.subr.mxu0 0.0
    %3130 = vmatpush1.xpose.msra.mxu0 0.0
    %3131 = vmatprep.subr.mxu0 0.0
    %3132 = vmatpush1.xpose.msra.mxu0 0.0
    %3133 = vmatprep.subr.mxu0 0.0
    %3134 = vmatpush1.xpose.msra.mxu0 0.0
    %3135 = vmatprep.subr.mxu0 0.0
    %3136 = vmatpush1.xpose.msra.mxu0 0.0
    %3137 = vmatprep.subr.mxu0 0.0
    %3138 = vmatpush1.xpose.msra.mxu0 0.0
    %3139 = vmatprep.subr.mxu0 0.0
    %3140 = vmatpush1.xpose.msra.mxu0 0.0
    %3141 = vmatprep.subr.mxu0 0.0
    %3142 = vmatpush1.xpose.msra.mxu0 0.0
    %3143 = vmatprep.subr.mxu0 0.0
    %3144 = vmatpush1.xpose.msra.mxu0 0.0
    %3145 = vmatprep.subr.mxu0 0.0
    %3146 = vmatpush1.xpose.msra.mxu0 0.0
    %3147 = vmatprep.subr.mxu0 0.0
    %3148 = vmatpush1.xpose.msra.mxu0 0.0
    %3149 = vmatprep.subr.mxu0 0.0
    %3150 = vmatpush1.xpose.msra.mxu0 0.0
    %3151 = vmatprep.subr.mxu0 0.0
    %3152 = vmatpush1.xpose.msra.mxu0 0.0
    %3153 = vmatprep.subr.mxu0 0.0
    %3154 = vmatpush1.xpose.msra.mxu0 0.0
    %3155 = vmatprep.subr.mxu0 0.0
    %3156 = vmatpush1.xpose.msra.mxu0 0.0
    %3157 = vmatprep.subr.mxu0 0.0
    %3158 = vmatpush1.xpose.msra.mxu0 0.0
    %3159 = vmatprep.subr.mxu0 0.0
    %3160 = vmatpush1.xpose.msra.mxu0 0.0
    %3161 = vmatprep.subr.mxu0 0.0
    %3162 = vmatpush1.xpose.msra.mxu0 0.0
    %3163 = vmatprep.subr.mxu0 0.0
    %3164 = vmatpush1.xpose.msra.mxu0 0.0
    %3165 = vmatprep.subr.mxu0 0.0
    %3166 = vmatpush1.xpose.msra.mxu0 0.0
    %3167 = vmatprep.subr.mxu0 0.0
    %3168 = vmatpush1.xpose.msra.mxu0 0.0
    %3169 = vmatprep.subr.mxu0 0.0
    %3170 = vmatpush1.xpose.msra.mxu0 0.0
    %3171 = vmatprep.subr.mxu0 0.0
    %3172 = vmatpush1.xpose.msra.mxu0 0.0
    %3173 = vmatprep.subr.mxu0 0.0
    %3174 = vmatpush1.xpose.msra.mxu0 0.0
    %3175 = vmatprep.subr.mxu0 0.0
    %3176 = vmatpush1.xpose.msra.mxu0 0.0
    %3177 = vmatprep.subr.mxu0 0.0
    %3178 = vmatpush1.xpose.msra.mxu0 0.0
    %3179 = vmatprep.subr.mxu0 0.0
    %3180 = vmatpush1.xpose.msra.mxu0 0.0
    %3181 = vmatprep.mubr.f32.mxu0 0.0
    %3182 = vmatmul.mubr.f32.gmra.mrb[0].mxu0 %v3113
    %v3183 = vpop.f32.mrb[0].mxu0
    %v3184 = vadd.f32 0.0, %v3183
    %v3185 = vpop.f32.mrb[0].mxu0
    %3186 = vdwg.mxu0
    %v3187 = vmul.f32 %v3184, 0.35355338
    %v3188 = vsel %vm262, %v3187, -inf
    %3189 = vmax.xlane.f32.xlu0 %v3188
    %v3190 = vpop.xlane.xlu0 %3189
    %v3191 = vsub.f32 %v3187, %v3190
    %v3192 = vmul.f32 %v3191, 1.442695
    %v3193 = vpow.pop %v3192
    %v3194 = vsel %vm262, %v3193, 0.0
    %3195 = vadd.xlane.f32.xlu0 %v3194
    %v3196 = vpop.xlane.xlu0 %3195
    %v3197 = vrcp.pop %v3196
    %v3198 = vmul.f32 %v3193, %v3197
    %3199 = vrot.lane.b32.xlu0 %v2611, 104
    %v3200 = vpop.permute.xlu0 %3199
    %v3203 = vsel %vm262, %v3198, 0
    %3205 = vmatprep.subr.mxu0 0.0
    %3206 = vmatpush1.msra.mxu0 %v3200
    %3207 = vmatprep.subr.mxu0 0.0
    %3208 = vmatpush1.msra.mxu0 0.0
    %3209 = vmatprep.subr.mxu0 0.0
    %3210 = vmatpush1.msra.mxu0 0.0
    %3211 = vmatprep.subr.mxu0 0.0
    %3212 = vmatpush1.msra.mxu0 0.0
    %3213 = vmatprep.subr.mxu0 0.0
    %3214 = vmatpush1.msra.mxu0 0.0
    %3215 = vmatprep.subr.mxu0 0.0
    %3216 = vmatpush1.msra.mxu0 0.0
    %3217 = vmatprep.subr.mxu0 0.0
    %3218 = vmatpush1.msra.mxu0 0.0
    %3219 = vmatprep.subr.mxu0 0.0
    %3220 = vmatpush1.msra.mxu0 0.0
    %3221 = vmatprep.subr.mxu0 0.0
    %3222 = vmatpush1.msra.mxu0 0.0
    %3223 = vmatprep.subr.mxu0 0.0
    %3224 = vmatpush1.msra.mxu0 0.0
    %3225 = vmatprep.subr.mxu0 0.0
    %3226 = vmatpush1.msra.mxu0 0.0
    %3227 = vmatprep.subr.mxu0 0.0
    %3228 = vmatpush1.msra.mxu0 0.0
    %3229 = vmatprep.subr.mxu0 0.0
    %3230 = vmatpush1.msra.mxu0 0.0
    %3231 = vmatprep.subr.mxu0 0.0
    %3232 = vmatpush1.msra.mxu0 0.0
    %3233 = vmatprep.subr.mxu0 0.0
    %3234 = vmatpush1.msra.mxu0 0.0
    %3235 = vmatprep.subr.mxu0 0.0
    %3236 = vmatpush1.msra.mxu0 0.0
    %3237 = vmatprep.subr.mxu0 0.0
    %3238 = vmatpush1.msra.mxu0 0.0
    %3239 = vmatprep.subr.mxu0 0.0
    %3240 = vmatpush1.msra.mxu0 0.0
    %3241 = vmatprep.subr.mxu0 0.0
    %3242 = vmatpush1.msra.mxu0 0.0
    %3243 = vmatprep.subr.mxu0 0.0
    %3244 = vmatpush1.msra.mxu0 0.0
    %3245 = vmatprep.subr.mxu0 0.0
    %3246 = vmatpush1.msra.mxu0 0.0
    %3247 = vmatprep.subr.mxu0 0.0
    %3248 = vmatpush1.msra.mxu0 0.0
    %3249 = vmatprep.subr.mxu0 0.0
    %3250 = vmatpush1.msra.mxu0 0.0
    %3251 = vmatprep.subr.mxu0 0.0
    %3252 = vmatpush1.msra.mxu0 0.0
    %3253 = vmatprep.subr.mxu0 0.0
    %3254 = vmatpush1.msra.mxu0 0.0
    %3255 = vmatprep.subr.mxu0 0.0
    %3256 = vmatpush1.msra.mxu0 0.0
    %3257 = vmatprep.subr.mxu0 0.0
    %3258 = vmatpush1.msra.mxu0 0.0
    %3259 = vmatprep.subr.mxu0 0.0
    %3260 = vmatpush1.msra.mxu0 0.0
    %3261 = vmatprep.subr.mxu0 0.0
    %3262 = vmatpush1.msra.mxu0 0.0
    %3263 = vmatprep.subr.mxu0 0.0
    %3264 = vmatpush1.msra.mxu0 0.0
    %3265 = vmatprep.subr.mxu0 0.0
    %3266 = vmatpush1.msra.mxu0 0.0
    %3267 = vmatprep.subr.mxu0 0.0
    %3268 = vmatpush1.msra.mxu0 0.0
    %3269 = vmatprep.mubr.f32.mxu0 0.0
    %3270 = vmatmul.mubr.f32.gmra.mrb[0].mxu0 %v3203
    %v3271 = vpop.f32.mrb[0].mxu0
    %v3272 = vadd.f32 0.0, %v3271
    %v3273 = vpop.f32.mrb[0].mxu0
    %3274 = vdwg.mxu0
    %3276 = vrot.lane.b32.xlu0 %v2940, 8
    %v3277 = vpop.permute.xlu0 %3276
    %3280 = vrot.lane.b32.xlu0 %v3106, 16
    %v3281 = vpop.permute.xlu0 %3280
    %3284 = vrot.lane.b32.xlu0 %v3272, 24
    %v3285 = vpop.permute.xlu0 %3284
    %v3287 = vsel %vm262, %v2773, %v3277
    %vm3288 = vcmask 130048
    %v3289 = vsel %vm3288, %v3287, %v3281
    %vm3290 = vcmask 195584
    %v3291 = vsel %vm3290, %v3289, %v3285
    %v3292 = vld [vmem:[%s45] sm:$0xff]
    %v3293 = vld [vmem:[%s45 + $0x8] sm:$0xff]
    %v3294 = vld [vmem:[%s45 + $0x10] sm:$0xff]
    %v3295 = vld [vmem:[%s45 + $0x18] sm:$0xff]
    %v3296 = vld [vmem:[%s47] sm:$0x1]
    %v3298 = vlaneseq
    %v3299 = vshrl.u32 %v3298, 7
    %v3300 = vsub.s32 0, %v3299
    %v3301 = vrot.slane %v3296, %v3300
    %v3304 = vsel %vm352, %v3291, 0
    %3306 = vmatprep.subr.mxu0 0.0
    %3307 = vmatpush1.msra.mxu0 %v3292
    %3308 = vmatprep.subr.mxu0 0.0
    %3309 = vmatpush1.msra.mxu0 %v3293
    %3310 = vmatprep.subr.mxu0 0.0
    %3311 = vmatpush1.msra.mxu0 %v3294
    %3312 = vmatprep.subr.mxu0 0.0
    %3313 = vmatpush1.msra.mxu0 %v3295
    %3314 = vmatprep.subr.mxu0 0.0
    %3315 = vmatpush1.msra.mxu0 0.0
    %3316 = vmatprep.subr.mxu0 0.0
    %3317 = vmatpush1.msra.mxu0 0.0
    %3318 = vmatprep.subr.mxu0 0.0
    %3319 = vmatpush1.msra.mxu0 0.0
    %3320 = vmatprep.subr.mxu0 0.0
    %3321 = vmatpush1.msra.mxu0 0.0
    %3322 = vmatprep.subr.mxu0 0.0
    %3323 = vmatpush1.msra.mxu0 0.0
    %3324 = vmatprep.subr.mxu0 0.0
    %3325 = vmatpush1.msra.mxu0 0.0
    %3326 = vmatprep.subr.mxu0 0.0
    %3327 = vmatpush1.msra.mxu0 0.0
    %3328 = vmatprep.subr.mxu0 0.0
    %3329 = vmatpush1.msra.mxu0 0.0
    %3330 = vmatprep.subr.mxu0 0.0
    %3331 = vmatpush1.msra.mxu0 0.0
    %3332 = vmatprep.subr.mxu0 0.0
    %3333 = vmatpush1.msra.mxu0 0.0
    %3334 = vmatprep.subr.mxu0 0.0
    %3335 = vmatpush1.msra.mxu0 0.0
    %3336 = vmatprep.subr.mxu0 0.0
    %3337 = vmatpush1.msra.mxu0 0.0
    %3338 = vmatprep.subr.mxu0 0.0
    %3339 = vmatpush1.msra.mxu0 0.0
    %3340 = vmatprep.subr.mxu0 0.0
    %3341 = vmatpush1.msra.mxu0 0.0
    %3342 = vmatprep.subr.mxu0 0.0
    %3343 = vmatpush1.msra.mxu0 0.0
    %3344 = vmatprep.subr.mxu0 0.0
    %3345 = vmatpush1.msra.mxu0 0.0
    %3346 = vmatprep.subr.mxu0 0.0
    %3347 = vmatpush1.msra.mxu0 0.0
    %3348 = vmatprep.subr.mxu0 0.0
    %3349 = vmatpush1.msra.mxu0 0.0
    %3350 = vmatprep.subr.mxu0 0.0
    %3351 = vmatpush1.msra.mxu0 0.0
    %3352 = vmatprep.subr.mxu0 0.0
    %3353 = vmatpush1.msra.mxu0 0.0
    %3354 = vmatprep.subr.mxu0 0.0
    %3355 = vmatpush1.msra.mxu0 0.0
    %3356 = vmatprep.subr.mxu0 0.0
    %3357 = vmatpush1.msra.mxu0 0.0
    %3358 = vmatprep.subr.mxu0 0.0
    %3359 = vmatpush1.msra.mxu0 0.0
    %3360 = vmatprep.subr.mxu0 0.0
    %3361 = vmatpush1.msra.mxu0 0.0
    %3362 = vmatprep.subr.mxu0 0.0
    %3363 = vmatpush1.msra.mxu0 0.0
    %3364 = vmatprep.subr.mxu0 0.0
    %3365 = vmatpush1.msra.mxu0 0.0
    %3366 = vmatprep.subr.mxu0 0.0
    %3367 = vmatpush1.msra.mxu0 0.0
    %3368 = vmatprep.subr.mxu0 0.0
    %3369 = vmatpush1.msra.mxu0 0.0
    %3370 = vmatprep.mubr.f32.mxu0 0.0
    %3371 = vmatmul.mubr.f32.gmra.mrb[0].mxu0 %v3304
    %v3372 = vpop.f32.mrb[0].mxu0
    %v3373 = vadd.f32 %v3301, %v3372
    %v3374 = vpop.f32.mrb[0].mxu0
    %3375 = vdwg.mxu0
    %v3376 = vadd.f32 %v2057, %v3373
    %v3377 = vld [vmem:[%s57] sm:$0x1]
    %v3379 = vlaneseq
    %v3380 = vshrl.u32 %v3379, 7
    %v3381 = vsub.s32 0, %v3380
    %v3382 = vrot.slane %v3377, %v3381
    %v3384 = vmul.f32 %v3376, %v3382
    %v3385 = vld [vmem:[%s59] sm:$0x1]
    %v3387 = vlaneseq
    %v3388 = vshrl.u32 %v3387, 7
    %v3389 = vsub.s32 0, %v3388
    %v3390 = vrot.slane %v3385, %v3389
    %v3392 = vadd.f32 %v3384, %v3390
    %v3393 = vld [vmem:[%s49] sm:$0xff]
    %v3394 = vld [vmem:[%s49 + $0x8] sm:$0xff]
    %v3395 = vld [vmem:[%s49 + $0x10] sm:$0xff]
    %v3396 = vld [vmem:[%s49 + $0x18] sm:$0xff]
    %v3397 = vld [vmem:[%s51] sm:$0x1]
    %v3399 = vlaneseq
    %v3400 = vshrl.u32 %v3399, 7
    %v3401 = vsub.s32 0, %v3400
    %v3402 = vrot.slane %v3397, %v3401
    %v3405 = vsel %vm352, %v3392, 0
    %3407 = vmatprep.subr.mxu0 0.0
    %3408 = vmatpush1.msra.mxu0 %v3393
    %3409 = vmatprep.subr.mxu0 0.0
    %3410 = vmatpush1.msra.mxu0 %v3394
    %3411 = vmatprep.subr.mxu0 0.0
    %3412 = vmatpush1.msra.mxu0 %v3395
    %3413 = vmatprep.subr.mxu0 0.0
    %3414 = vmatpush1.msra.mxu0 %v3396
    %3415 = vmatprep.subr.mxu0 0.0
    %3416 = vmatpush1.msra.mxu0 0.0
    %3417 = vmatprep.subr.mxu0 0.0
    %3418 = vmatpush1.msra.mxu0 0.0
    %3419 = vmatprep.subr.mxu0 0.0
    %3420 = vmatpush1.msra.mxu0 0.0
    %3421 = vmatprep.subr.mxu0 0.0
    %3422 = vmatpush1.msra.mxu0 0.0
    %3423 = vmatprep.subr.mxu0 0.0
    %3424 = vmatpush1.msra.mxu0 0.0
    %3425 = vmatprep.subr.mxu0 0.0
    %3426 = vmatpush1.msra.mxu0 0.0
    %3427 = vmatprep.subr.mxu0 0.0
    %3428 = vmatpush1.msra.mxu0 0.0
    %3429 = vmatprep.subr.mxu0 0.0
    %3430 = vmatpush1.msra.mxu0 0.0
    %3431 = vmatprep.subr.mxu0 0.0
    %3432 = vmatpush1.msra.mxu0 0.0
    %3433 = vmatprep.subr.mxu0 0.0
    %3434 = vmatpush1.msra.mxu0 0.0
    %3435 = vmatprep.subr.mxu0 0.0
    %3436 = vmatpush1.msra.mxu0 0.0
    %3437 = vmatprep.subr.mxu0 0.0
    %3438 = vmatpush1.msra.mxu0 0.0
    %3439 = vmatprep.subr.mxu0 0.0
    %3440 = vmatpush1.msra.mxu0 0.0
    %3441 = vmatprep.subr.mxu0 0.0
    %3442 = vmatpush1.msra.mxu0 0.0
    %3443 = vmatprep.subr.mxu0 0.0
    %3444 = vmatpush1.msra.mxu0 0.0
    %3445 = vmatprep.subr.mxu0 0.0
    %3446 = vmatpush1.msra.mxu0 0.0
    %3447 = vmatprep.subr.mxu0 0.0
    %3448 = vmatpush1.msra.mxu0 0.0
    %3449 = vmatprep.subr.mxu0 0.0
    %3450 = vmatpush1.msra.mxu0 0.0
    %3451 = vmatprep.subr.mxu0 0.0
    %3452 = vmatpush1.msra.mxu0 0.0
    %3453 = vmatprep.subr.mxu0 0.0
    %3454 = vmatpush1.msra.mxu0 0.0
    %3455 = vmatprep.subr.mxu0 0.0
    %3456 = vmatpush1.msra.mxu0 0.0
    %3457 = vmatprep.subr.mxu0 0.0
    %3458 = vmatpush1.msra.mxu0 0.0
    %3459 = vmatprep.subr.mxu0 0.0
    %3460 = vmatpush1.msra.mxu0 0.0
    %3461 = vmatprep.subr.mxu0 0.0
    %3462 = vmatpush1.msra.mxu0 0.0
    %3463 = vmatprep.subr.mxu0 0.0
    %3464 = vmatpush1.msra.mxu0 0.0
    %3465 = vmatprep.subr.mxu0 0.0
    %3466 = vmatpush1.msra.mxu0 0.0
    %3467 = vmatprep.subr.mxu0 0.0
    %3468 = vmatpush1.msra.mxu0 0.0
    %3469 = vmatprep.subr.mxu0 0.0
    %3470 = vmatpush1.msra.mxu0 0.0
    %3471 = vmatprep.mubr.f32.mxu0 0.0
    %3472 = vmatmul.mubr.f32.gmra.mrb[0].mxu0 %v3405
    %v3473 = vpop.f32.mrb[0].mxu0
    %v3474 = vadd.f32 %v3402, %v3473
    %v3475 = vpop.f32.mrb[0].mxu0
    %3476 = vdwg.mxu0
    %v3477 = vmax.f32 %v3474, 0.0
    %v3478 = vld [vmem:[%s53] sm:$0xff]
    %v3479 = vld [vmem:[%s53 + $0x8] sm:$0xff]
    %v3480 = vld [vmem:[%s53 + $0x10] sm:$0xff]
    %v3481 = vld [vmem:[%s53 + $0x18] sm:$0xff]
    %v3482 = vld [vmem:[%s53 + $0x20] sm:$0xff]
    %v3483 = vld [vmem:[%s53 + $0x28] sm:$0xff]
    %v3484 = vld [vmem:[%s53 + $0x30] sm:$0xff]
    %v3485 = vld [vmem:[%s53 + $0x38] sm:$0xff]
    %v3486 = vld [vmem:[%s55] sm:$0x1]
    %v3488 = vlaneseq
    %v3489 = vshrl.u32 %v3488, 7
    %v3490 = vsub.s32 0, %v3489
    %v3491 = vrot.slane %v3486, %v3490
    %vm3493 = vcmask 523264
    %v3495 = vsel %vm3493, %v3477, 0
    %3497 = vmatprep.subr.mxu0 0.0
    %3498 = vmatpush1.msra.mxu0 %v3478
    %3499 = vmatprep.subr.mxu0 0.0
    %3500 = vmatpush1.msra.mxu0 %v3479
    %3501 = vmatprep.subr.mxu0 0.0
    %3502 = vmatpush1.msra.mxu0 %v3480
    %3503 = vmatprep.subr.mxu0 0.0
    %3504 = vmatpush1.msra.mxu0 %v3481
    %3505 = vmatprep.subr.mxu0 0.0
    %3506 = vmatpush1.msra.mxu0 %v3482
    %3507 = vmatprep.subr.mxu0 0.0
    %3508 = vmatpush1.msra.mxu0 %v3483
    %3509 = vmatprep.subr.mxu0 0.0
    %3510 = vmatpush1.msra.mxu0 %v3484
    %3511 = vmatprep.subr.mxu0 0.0
    %3512 = vmatpush1.msra.mxu0 %v3485
    %3513 = vmatprep.subr.mxu0 0.0
    %3514 = vmatpush1.msra.mxu0 0.0
    %3515 = vmatprep.subr.mxu0 0.0
    %3516 = vmatpush1.msra.mxu0 0.0
    %3517 = vmatprep.subr.mxu0 0.0
    %3518 = vmatpush1.msra.mxu0 0.0
    %3519 = vmatprep.subr.mxu0 0.0
    %3520 = vmatpush1.msra.mxu0 0.0
    %3521 = vmatprep.subr.mxu0 0.0
    %3522 = vmatpush1.msra.mxu0 0.0
    %3523 = vmatprep.subr.mxu0 0.0
    %3524 = vmatpush1.msra.mxu0 0.0
    %3525 = vmatprep.subr.mxu0 0.0
    %3526 = vmatpush1.msra.mxu0 0.0
    %3527 = vmatprep.subr.mxu0 0.0
    %3528 = vmatpush1.msra.mxu0 0.0
    %3529 = vmatprep.subr.mxu0 0.0
    %3530 = vmatpush1.msra.mxu0 0.0
    %3531 = vmatprep.subr.mxu0 0.0
    %3532 = vmatpush1.msra.mxu0 0.0
    %3533 = vmatprep.subr.mxu0 0.0
    %3534 = vmatpush1.msra.mxu0 0.0
    %3535 = vmatprep.subr.mxu0 0.0
    %3536 = vmatpush1.msra.mxu0 0.0
    %3537 = vmatprep.subr.mxu0 0.0
    %3538 = vmatpush1.msra.mxu0 0.0
    %3539 = vmatprep.subr.mxu0 0.0
    %3540 = vmatpush1.msra.mxu0 0.0
    %3541 = vmatprep.subr.mxu0 0.0
    %3542 = vmatpush1.msra.mxu0 0.0
    %3543 = vmatprep.subr.mxu0 0.0
    %3544 = vmatpush1.msra.mxu0 0.0
    %3545 = vmatprep.subr.mxu0 0.0
    %3546 = vmatpush1.msra.mxu0 0.0
    %3547 = vmatprep.subr.mxu0 0.0
    %3548 = vmatpush1.msra.mxu0 0.0
    %3549 = vmatprep.subr.mxu0 0.0
    %3550 = vmatpush1.msra.mxu0 0.0
    %3551 = vmatprep.subr.mxu0 0.0
    %3552 = vmatpush1.msra.mxu0 0.0
    %3553 = vmatprep.subr.mxu0 0.0
    %3554 = vmatpush1.msra.mxu0 0.0
    %3555 = vmatprep.subr.mxu0 0.0
    %3556 = vmatpush1.msra.mxu0 0.0
    %3557 = vmatprep.subr.mxu0 0.0
    %3558 = vmatpush1.msra.mxu0 0.0
    %3559 = vmatprep.subr.mxu0 0.0
    %3560 = vmatpush1.msra.mxu0 0.0
    %3561 = vmatprep.mubr.f32.mxu0 0.0
    %3562 = vmatmul.mubr.f32.gmra.mrb[0].mxu0 %v3495
    %v3563 = vpop.f32.mrb[0].mxu0
    %v3564 = vadd.f32 %v3491, %v3563
    %v3565 = vpop.f32.mrb[0].mxu0
    %3566 = vdwg.mxu0
    %v3567 = vadd.f32 %v3392, %v3564
    %v3568 = vld [vmem:[%s61] sm:$0x1]
    %v3570 = vlaneseq
    %v3571 = vshrl.u32 %v3570, 7
    %v3572 = vsub.s32 0, %v3571
    %v3573 = vrot.slane %v3568, %v3572
    %v3575 = vmul.f32 %v3567, %v3573
    %v3576 = vld [vmem:[%s63] sm:$0x1]
    %v3578 = vlaneseq
    %v3579 = vshrl.u32 %v3578, 7
    %v3580 = vsub.s32 0, %v3579
    %v3581 = vrot.slane %v3576, %v3580
    %v3583 = vadd.f32 %v3575, %v3581
    %3584 = vmatprep.subr.mxu0 0.0
    %3585 = vmatpush1.msra.mxu0 %v3583
    %3586 = vmatprep.subr.mxu0 0.0
    %3587 = vmatpush1.msra.mxu0 0.0
    %3588 = vmatprep.subr.mxu0 0.0
    %3589 = vmatpush1.msra.mxu0 0.0
    %3590 = vmatprep.subr.mxu0 0.0
    %3591 = vmatpush1.msra.mxu0 0.0
    %3592 = vmatprep.subr.mxu0 0.0
    %3593 = vmatpush1.msra.mxu0 0.0
    %3594 = vmatprep.subr.mxu0 0.0
    %3595 = vmatpush1.msra.mxu0 0.0
    %3596 = vmatprep.subr.mxu0 0.0
    %3597 = vmatpush1.msra.mxu0 0.0
    %3598 = vmatprep.subr.mxu0 0.0
    %3599 = vmatpush1.msra.mxu0 0.0
    %3600 = vmatprep.subr.mxu0 0.0
    %3601 = vmatpush1.msra.mxu0 0.0
    %3602 = vmatprep.subr.mxu0 0.0
    %3603 = vmatpush1.msra.mxu0 0.0
    %3604 = vmatprep.subr.mxu0 0.0
    %3605 = vmatpush1.msra.mxu0 0.0
    %3606 = vmatprep.subr.mxu0 0.0
    %3607 = vmatpush1.msra.mxu0 0.0
    %3608 = vmatprep.subr.mxu0 0.0
    %3609 = vmatpush1.msra.mxu0 0.0
    %3610 = vmatprep.subr.mxu0 0.0
    %3611 = vmatpush1.msra.mxu0 0.0
    %3612 = vmatprep.subr.mxu0 0.0
    %3613 = vmatpush1.msra.mxu0 0.0
    %3614 = vmatprep.subr.mxu0 0.0
    %3615 = vmatpush1.msra.mxu0 0.0
    %3616 = vmatprep.subr.mxu0 0.0
    %3617 = vmatpush1.msra.mxu0 0.0
    %3618 = vmatprep.subr.mxu0 0.0
    %3619 = vmatpush1.msra.mxu0 0.0
    %3620 = vmatprep.subr.mxu0 0.0
    %3621 = vmatpush1.msra.mxu0 0.0
    %3622 = vmatprep.subr.mxu0 0.0
    %3623 = vmatpush1.msra.mxu0 0.0
    %3624 = vmatprep.subr.mxu0 0.0
    %3625 = vmatpush1.msra.mxu0 0.0
    %3626 = vmatprep.subr.mxu0 0.0
    %3627 = vmatpush1.msra.mxu0 0.0
    %3628 = vmatprep.subr.mxu0 0.0
    %3629 = vmatpush1.msra.mxu0 0.0
    %3630 = vmatprep.subr.mxu0 0.0
    %3631 = vmatpush1.msra.mxu0 0.0
    %3632 = vmatprep.subr.mxu0 0.0
    %3633 = vmatpush1.msra.mxu0 0.0
    %3634 = vmatprep.subr.mxu0 0.0
    %3635 = vmatpush1.msra.mxu0 0.0
    %3636 = vmatprep.subr.mxu0 0.0
    %3637 = vmatpush1.msra.mxu0 0.0
    %3638 = vmatprep.subr.mxu0 0.0
    %3639 = vmatpush1.msra.mxu0 0.0
    %3640 = vmatprep.subr.mxu0 0.0
    %3641 = vmatpush1.msra.mxu0 0.0
    %3642 = vmatprep.subr.mxu0 0.0
    %3643 = vmatpush1.msra.mxu0 0.0
    %3644 = vmatprep.subr.mxu0 0.0
    %3645 = vmatpush1.msra.mxu0 0.0
    %3646 = vmatprep.subr.mxu0 0.0
    %3647 = vmatpush1.msra.mxu0 0.0
    %3648 = vmatprep.mubr.f32.mxu0 0.0
    %3649 = vmatmul.mubr.f32.gmra.mrb[0].mxu0 %v2062
    %v3650 = vpop.f32.mrb[0].mxu0
    %v3651 = vadd.f32 0.0, %v3650
    %v3652 = vpop.f32.mrb[0].mxu0
    %3653 = vdwg.mxu0
    %s3654 = scalar_lea.vmem %s33, 64
    %v3655 = vld [vmem:[%s3654] sm:$0xff]
    %v3656 = vld [vmem:[%s3654 + $0x8] sm:$0xff]
    %v3657 = vld [vmem:[%s3654 + $0x10] sm:$0xff]
    %v3658 = vld [vmem:[%s3654 + $0x18] sm:$0xff]
    %s3659 = scalar_lea.vmem %s35, 2
    %v3660 = vld [vmem:[%s3659] sm:$0x1]
    %v3662 = vlaneseq
    %v3663 = vshrl.u32 %v3662, 7
    %v3664 = vsub.s32 0, %v3663
    %v3665 = vrot.slane %v3660, %v3664
    %v3668 = vsel %vm352, %v3651, 0
    %3670 = vmatprep.subr.mxu0 0.0
    %3671 = vmatpush1.msra.mxu0 %v3655
    %3672 = vmatprep.subr.mxu0 0.0
    %3673 = vmatpush1.msra.mxu0 %v3656
    %3674 = vmatprep.subr.mxu0 0.0
    %3675 = vmatpush1.msra.mxu0 %v3657
    %3676 = vmatprep.subr.mxu0 0.0
    %3677 = vmatpush1.msra.mxu0 %v3658
    %3678 = vmatprep.subr.mxu0 0.0
    %3679 = vmatpush1.msra.mxu0 0.0
    %3680 = vmatprep.subr.mxu0 0.0
    %3681 = vmatpush1.msra.mxu0 0.0
    %3682 = vmatprep.subr.mxu0 0.0
    %3683 = vmatpush1.msra.mxu0 0.0
    %3684 = vmatprep.subr.mxu0 0.0
    %3685 = vmatpush1.msra.mxu0 0.0
    %3686 = vmatprep.subr.mxu0 0.0
    %3687 = vmatpush1.msra.mxu0 0.0
    %3688 = vmatprep.subr.mxu0 0.0
    %3689 = vmatpush1.msra.mxu0 0.0
    %3690 = vmatprep.subr.mxu0 0.0
    %3691 = vmatpush1.msra.mxu0 0.0
    %3692 = vmatprep.subr.mxu0 0.0
    %3693 = vmatpush1.msra.mxu0 0.0
    %3694 = vmatprep.subr.mxu0 0.0
    %3695 = vmatpush1.msra.mxu0 0.0
    %3696 = vmatprep.subr.mxu0 0.0
    %3697 = vmatpush1.msra.mxu0 0.0
    %3698 = vmatprep.subr.mxu0 0.0
    %3699 = vmatpush1.msra.mxu0 0.0
    %3700 = vmatprep.subr.mxu0 0.0
    %3701 = vmatpush1.msra.mxu0 0.0
    %3702 = vmatprep.subr.mxu0 0.0
    %3703 = vmatpush1.msra.mxu0 0.0
    %3704 = vmatprep.subr.mxu0 0.0
    %3705 = vmatpush1.msra.mxu0 0.0
    %3706 = vmatprep.subr.mxu0 0.0
    %3707 = vmatpush1.msra.mxu0 0.0
    %3708 = vmatprep.subr.mxu0 0.0
    %3709 = vmatpush1.msra.mxu0 0.0
    %3710 = vmatprep.subr.mxu0 0.0
    %3711 = vmatpush1.msra.mxu0 0.0
    %3712 = vmatprep.subr.mxu0 0.0
    %3713 = vmatpush1.msra.mxu0 0.0
    %3714 = vmatprep.subr.mxu0 0.0
    %3715 = vmatpush1.msra.mxu0 0.0
    %3716 = vmatprep.subr.mxu0 0.0
    %3717 = vmatpush1.msra.mxu0 0.0
    %3718 = vmatprep.subr.mxu0 0.0
    %3719 = vmatpush1.msra.mxu0 0.0
    %3720 = vmatprep.subr.mxu0 0.0
    %3721 = vmatpush1.msra.mxu0 0.0
    %3722 = vmatprep.subr.mxu0 0.0
    %3723 = vmatpush1.msra.mxu0 0.0
    %3724 = vmatprep.subr.mxu0 0.0
    %3725 = vmatpush1.msra.mxu0 0.0
    %3726 = vmatprep.subr.mxu0 0.0
    %3727 = vmatpush1.msra.mxu0 0.0
    %3728 = vmatprep.subr.mxu0 0.0
    %3729 = vmatpush1.msra.mxu0 0.0
    %3730 = vmatprep.subr.mxu0 0.0
    %3731 = vmatpush1.msra.mxu0 0.0
    %3732 = vmatprep.subr.mxu0 0.0
    %3733 = vmatpush1.msra.mxu0 0.0
    %3734 = vmatprep.mubr.f32.mxu0 0.0
    %3735 = vmatmul.mubr.f32.gmra.mrb[0].mxu0 %v3668
    %v3736 = vpop.f32.mrb[0].mxu0
    %v3737 = vadd.f32 %v3665, %v3736
    %v3738 = vpop.f32.mrb[0].mxu0
    %3739 = vdwg.mxu0
    %v3740 = vmax.f32 %v3737, 0.0
    %3741 = vmatprep.subr.mxu0 0.0
    %3742 = vmatpush1.msra.mxu0 %v3740
    %3743 = vmatprep.subr.mxu0 0.0
    %3744 = vmatpush1.msra.mxu0 0.0
    %3745 = vmatprep.subr.mxu0 0.0
    %3746 = vmatpush1.msra.mxu0 0.0
    %3747 = vmatprep.subr.mxu0 0.0
    %3748 = vmatpush1.msra.mxu0 0.0
    %3749 = vmatprep.subr.mxu0 0.0
    %3750 = vmatpush1.msra.mxu0 0.0
    %3751 = vmatprep.subr.mxu0 0.0
    %3752 = vmatpush1.msra.mxu0 0.0
    %3753 = vmatprep.subr.mxu0 0.0
    %3754 = vmatpush1.msra.mxu0 0.0
    %3755 = vmatprep.subr.mxu0 0.0
    %3756 = vmatpush1.msra.mxu0 0.0
    %3757 = vmatprep.subr.mxu0 0.0
    %3758 = vmatpush1.msra.mxu0 0.0
    %3759 = vmatprep.subr.mxu0 0.0
    %3760 = vmatpush1.msra.mxu0 0.0
    %3761 = vmatprep.subr.mxu0 0.0
    %3762 = vmatpush1.msra.mxu0 0.0
    %3763 = vmatprep.subr.mxu0 0.0
    %3764 = vmatpush1.msra.mxu0 0.0
    %3765 = vmatprep.subr.mxu0 0.0
    %3766 = vmatpush1.msra.mxu0 0.0
    %3767 = vmatprep.subr.mxu0 0.0
    %3768 = vmatpush1.msra.mxu0 0.0
    %3769 = vmatprep.subr.mxu0 0.0
    %3770 = vmatpush1.msra.mxu0 0.0
    %3771 = vmatprep.subr.mxu0 0.0
    %3772 = vmatpush1.msra.mxu0 0.0
    %3773 = vmatprep.subr.mxu0 0.0
    %3774 = vmatpush1.msra.mxu0 0.0
    %3775 = vmatprep.subr.mxu0 0.0
    %3776 = vmatpush1.msra.mxu0 0.0
    %3777 = vmatprep.subr.mxu0 0.0
    %3778 = vmatpush1.msra.mxu0 0.0
    %3779 = vmatprep.subr.mxu0 0.0
    %3780 = vmatpush1.msra.mxu0 0.0
    %3781 = vmatprep.subr.mxu0 0.0
    %3782 = vmatpush1.msra.mxu0 0.0
    %3783 = vmatprep.subr.mxu0 0.0
    %3784 = vmatpush1.msra.mxu0 0.0
    %3785 = vmatprep.subr.mxu0 0.0
    %3786 = vmatpush1.msra.mxu0 0.0
    %3787 = vmatprep.subr.mxu0 0.0
    %3788 = vmatpush1.msra.mxu0 0.0
    %3789 = vmatprep.subr.mxu0 0.0
    %3790 = vmatpush1.msra.mxu0 0.0
    %3791 = vmatprep.subr.mxu0 0.0
    %3792 = vmatpush1.msra.mxu0 0.0
    %3793 = vmatprep.subr.mxu0 0.0
    %3794 = vmatpush1.msra.mxu0 0.0
    %3795 = vmatprep.subr.mxu0 0.0
    %3796 = vmatpush1.msra.mxu0 0.0
    %3797 = vmatprep.subr.mxu0 0.0
    %3798 = vmatpush1.msra.mxu0 0.0
    %3799 = vmatprep.subr.mxu0 0.0
    %3800 = vmatpush1.msra.mxu0 0.0
    %3801 = vmatprep.subr.mxu0 0.0
    %3802 = vmatpush1.msra.mxu0 0.0
    %3803 = vmatprep.subr.mxu0 0.0
    %3804 = vmatpush1.msra.mxu0 0.0
    %3805 = vmatprep.mubr.f32.mxu0 0.0
    %3806 = vmatmul.mubr.f32.gmra.mrb[0].mxu0 %v2062
    %v3807 = vpop.f32.mrb[0].mxu0
    %v3808 = vadd.f32 0.0, %v3807
    %v3809 = vpop.f32.mrb[0].mxu0
    %3810 = vdwg.mxu0
    %s3811 = scalar_lea.vmem %s33, 96
    %v3812 = vld [vmem:[%s3811] sm:$0xff]
    %v3813 = vld [vmem:[%s3811 + $0x8] sm:$0xff]
    %v3814 = vld [vmem:[%s3811 + $0x10] sm:$0xff]
    %v3815 = vld [vmem:[%s3811 + $0x18] sm:$0xff]
    %s3816 = scalar_lea.vmem %s35, 3
    %v3817 = vld [vmem:[%s3816] sm:$0x1]
    %v3819 = vlaneseq
    %v3820 = vshrl.u32 %v3819, 7
    %v3821 = vsub.s32 0, %v3820
    %v3822 = vrot.slane %v3817, %v3821
    %v3825 = vsel %vm352, %v3808, 0
    %3827 = vmatprep.subr.mxu0 0.0
    %3828 = vmatpush1.msra.mxu0 %v3812
    %3829 = vmatprep.subr.mxu0 0.0
    %3830 = vmatpush1.msra.mxu0 %v3813
    %3831 = vmatprep.subr.mxu0 0.0
    %3832 = vmatpush1.msra.mxu0 %v3814
    %3833 = vmatprep.subr.mxu0 0.0
    %3834 = vmatpush1.msra.mxu0 %v3815
    %3835 = vmatprep.subr.mxu0 0.0
    %3836 = vmatpush1.msra.mxu0 0.0
    %3837 = vmatprep.subr.mxu0 0.0
    %3838 = vmatpush1.msra.mxu0 0.0
    %3839 = vmatprep.subr.mxu0 0.0
    %3840 = vmatpush1.msra.mxu0 0.0
    %3841 = vmatprep.subr.mxu0 0.0
    %3842 = vmatpush1.msra.mxu0 0.0
    %3843 = vmatprep.subr.mxu0 0.0
    %3844 = vmatpush1.msra.mxu0 0.0
    %3845 = vmatprep.subr.mxu0 0.0
    %3846 = vmatpush1.msra.mxu0 0.0
    %3847 = vmatprep.subr.mxu0 0.0
    %3848 = vmatpush1.msra.mxu0 0.0
    %3849 = vmatprep.subr.mxu0 0.0
    %3850 = vmatpush1.msra.mxu0 0.0
    %3851 = vmatprep.subr.mxu0 0.0
    %3852 = vmatpush1.msra.mxu0 0.0
    %3853 = vmatprep.subr.mxu0 0.0
    %3854 = vmatpush1.msra.mxu0 0.0
    %3855 = vmatprep.subr.mxu0 0.0
    %3856 = vmatpush1.msra.mxu0 0.0
    %3857 = vmatprep.subr.mxu0 0.0
    %3858 = vmatpush1.msra.mxu0 0.0
    %3859 = vmatprep.subr.mxu0 0.0
    %3860 = vmatpush1.msra.mxu0 0.0
    %3861 = vmatprep.subr.mxu0 0.0
    %3862 = vmatpush1.msra.mxu0 0.0
    %3863 = vmatprep.subr.mxu0 0.0
    %3864 = vmatpush1.msra.mxu0 0.0
    %3865 = vmatprep.subr.mxu0 0.0
    %3866 = vmatpush1.msra.mxu0 0.0
    %3867 = vmatprep.subr.mxu0 0.0
    %3868 = vmatpush1.msra.mxu0 0.0
    %3869 = vmatprep.subr.mxu0 0.0
    %3870 = vmatpush1.msra.mxu0 0.0
    %3871 = vmatprep.subr.mxu0 0.0
    %3872 = vmatpush1.msra.mxu0 0.0
    %3873 = vmatprep.subr.mxu0 0.0
    %3874 = vmatpush1.msra.mxu0 0.0
    %3875 = vmatprep.subr.mxu0 0.0
    %3876 = vmatpush1.msra.mxu0 0.0
    %3877 = vmatprep.subr.mxu0 0.0
    %3878 = vmatpush1.msra.mxu0 0.0
    %3879 = vmatprep.subr.mxu0 0.0
    %3880 = vmatpush1.msra.mxu0 0.0
    %3881 = vmatprep.subr.mxu0 0.0
    %3882 = vmatpush1.msra.mxu0 0.0
    %3883 = vmatprep.subr.mxu0 0.0
    %3884 = vmatpush1.msra.mxu0 0.0
    %3885 = vmatprep.subr.mxu0 0.0
    %3886 = vmatpush1.msra.mxu0 0.0
    %3887 = vmatprep.subr.mxu0 0.0
    %3888 = vmatpush1.msra.mxu0 0.0
    %3889 = vmatprep.subr.mxu0 0.0
    %3890 = vmatpush1.msra.mxu0 0.0
    %3891 = vmatprep.mubr.f32.mxu0 0.0
    %3892 = vmatmul.mubr.f32.gmra.mrb[0].mxu0 %v3825
    %v3893 = vpop.f32.mrb[0].mxu0
    %v3894 = vadd.f32 %v3822, %v3893
    %v3895 = vpop.f32.mrb[0].mxu0
    %3896 = vdwg.mxu0
    %v3897 = vmax.f32 %v3894, 0.0
    %s3898 = scalar_lea.vmem %s37, 32
    %v3899 = vld [vmem:[%s3898] sm:$0xff]
    %v3900 = vld [vmem:[%s3898 + $0x8] sm:$0xff]
    %v3901 = vld [vmem:[%s3898 + $0x10] sm:$0xff]
    %v3902 = vld [vmem:[%s3898 + $0x18] sm:$0xff]
    %s3903 = scalar_lea.vmem %s39, 1
    %v3904 = vld [vmem:[%s3903] sm:$0x1]
    %v3906 = vlaneseq
    %v3907 = vshrl.u32 %v3906, 7
    %v3908 = vsub.s32 0, %v3907
    %v3909 = vrot.slane %v3904, %v3908
    %v3912 = vsel %vm352, %v3897, 0
    %3914 = vmatprep.subr.mxu0 0.0
    %3915 = vmatpush1.msra.mxu0 %v3899
    %3916 = vmatprep.subr.mxu0 0.0
    %3917 = vmatpush1.msra.mxu0 %v3900
    %3918 = vmatprep.subr.mxu0 0.0
    %3919 = vmatpush1.msra.mxu0 %v3901
    %3920 = vmatprep.subr.mxu0 0.0
    %3921 = vmatpush1.msra.mxu0 %v3902
    %3922 = vmatprep.subr.mxu0 0.0
    %3923 = vmatpush1.msra.mxu0 0.0
    %3924 = vmatprep.subr.mxu0 0.0
    %3925 = vmatpush1.msra.mxu0 0.0
    %3926 = vmatprep.subr.mxu0 0.0
    %3927 = vmatpush1.msra.mxu0 0.0
    %3928 = vmatprep.subr.mxu0 0.0
    %3929 = vmatpush1.msra.mxu0 0.0
    %3930 = vmatprep.subr.mxu0 0.0
    %3931 = vmatpush1.msra.mxu0 0.0
    %3932 = vmatprep.subr.mxu0 0.0
    %3933 = vmatpush1.msra.mxu0 0.0
    %3934 = vmatprep.subr.mxu0 0.0
    %3935 = vmatpush1.msra.mxu0 0.0
    %3936 = vmatprep.subr.mxu0 0.0
    %3937 = vmatpush1.msra.mxu0 0.0
    %3938 = vmatprep.subr.mxu0 0.0
    %3939 = vmatpush1.msra.mxu0 0.0
    %3940 = vmatprep.subr.mxu0 0.0
    %3941 = vmatpush1.msra.mxu0 0.0
    %3942 = vmatprep.subr.mxu0 0.0
    %3943 = vmatpush1.msra.mxu0 0.0
    %3944 = vmatprep.subr.mxu0 0.0
    %3945 = vmatpush1.msra.mxu0 0.0
    %3946 = vmatprep.subr.mxu0 0.0
    %3947 = vmatpush1.msra.mxu0 0.0
    %3948 = vmatprep.subr.mxu0 0.0
    %3949 = vmatpush1.msra.mxu0 0.0
    %3950 = vmatprep.subr.mxu0 0.0
    %3951 = vmatpush1.msra.mxu0 0.0
    %3952 = vmatprep.subr.mxu0 0.0
    %3953 = vmatpush1.msra.mxu0 0.0
    %3954 = vmatprep.subr.mxu0 0.0
    %3955 = vmatpush1.msra.mxu0 0.0
    %3956 = vmatprep.subr.mxu0 0.0
    %3957 = vmatpush1.msra.mxu0 0.0
    %3958 = vmatprep.subr.mxu0 0.0
    %3959 = vmatpush1.msra.mxu0 0.0
    %3960 = vmatprep.subr.mxu0 0.0
    %3961 = vmatpush1.msra.mxu0 0.0
    %3962 = vmatprep.subr.mxu0 0.0
    %3963 = vmatpush1.msra.mxu0 0.0
    %3964 = vmatprep.subr.mxu0 0.0
    %3965 = vmatpush1.msra.mxu0 0.0
    %3966 = vmatprep.subr.mxu0 0.0
    %3967 = vmatpush1.msra.mxu0 0.0
    %3968 = vmatprep.subr.mxu0 0.0
    %3969 = vmatpush1.msra.mxu0 0.0
    %3970 = vmatprep.subr.mxu0 0.0
    %3971 = vmatpush1.msra.mxu0 0.0
    %3972 = vmatprep.subr.mxu0 0.0
    %3973 = vmatpush1.msra.mxu0 0.0
    %3974 = vmatprep.subr.mxu0 0.0
    %3975 = vmatpush1.msra.mxu0 0.0
    %3976 = vmatprep.subr.mxu0 0.0
    %3977 = vmatpush1.msra.mxu0 0.0
    %3978 = vmatprep.mubr.f32.mxu0 0.0
    %3979 = vmatmul.mubr.f32.gmra.mrb[0].mxu0 %v3912
    %v3980 = vpop.f32.mrb[0].mxu0
    %v3981 = vadd.f32 %v3909, %v3980
    %v3982 = vpop.f32.mrb[0].mxu0
    %3983 = vdwg.mxu0
    %s3984 = scalar_lea.vmem %s41, 32
    %v3985 = vld [vmem:[%s3984] sm:$0xff]
    %v3986 = vld [vmem:[%s3984 + $0x8] sm:$0xff]
    %v3987 = vld [vmem:[%s3984 + $0x10] sm:$0xff]
    %v3988 = vld [vmem:[%s3984 + $0x18] sm:$0xff]
    %v3990 = vsel %vm352, %v3981, 0
    %3992 = vmatprep.subr.mxu0 0.0
    %3993 = vmatpush1.msra.mxu0 %v3985
    %3994 = vmatprep.subr.mxu0 0.0
    %3995 = vmatpush1.msra.mxu0 %v3986
    %3996 = vmatprep.subr.mxu0 0.0
    %3997 = vmatpush1.msra.mxu0 %v3987
    %3998 = vmatprep.subr.mxu0 0.0
    %3999 = vmatpush1.msra.mxu0 %v3988
    %4000 = vmatprep.subr.mxu0 0.0
    %4001 = vmatpush1.msra.mxu0 0.0
    %4002 = vmatprep.subr.mxu0 0.0
    %4003 = vmatpush1.msra.mxu0 0.0
    %4004 = vmatprep.subr.mxu0 0.0
    %4005 = vmatpush1.msra.mxu0 0.0
    %4006 = vmatprep.subr.mxu0 0.0
    %4007 = vmatpush1.msra.mxu0 0.0
    %4008 = vmatprep.subr.mxu0 0.0
    %4009 = vmatpush1.msra.mxu0 0.0
    %4010 = vmatprep.subr.mxu0 0.0
    %4011 = vmatpush1.msra.mxu0 0.0
    %4012 = vmatprep.subr.mxu0 0.0
    %4013 = vmatpush1.msra.mxu0 0.0
    %4014 = vmatprep.subr.mxu0 0.0
    %4015 = vmatpush1.msra.mxu0 0.0
    %4016 = vmatprep.subr.mxu0 0.0
    %4017 = vmatpush1.msra.mxu0 0.0
    %4018 = vmatprep.subr.mxu0 0.0
    %4019 = vmatpush1.msra.mxu0 0.0
    %4020 = vmatprep.subr.mxu0 0.0
    %4021 = vmatpush1.msra.mxu0 0.0
    %4022 = vmatprep.subr.mxu0 0.0
    %4023 = vmatpush1.msra.mxu0 0.0
    %4024 = vmatprep.subr.mxu0 0.0
    %4025 = vmatpush1.msra.mxu0 0.0
    %4026 = vmatprep.subr.mxu0 0.0
    %4027 = vmatpush1.msra.mxu0 0.0
    %4028 = vmatprep.subr.mxu0 0.0
    %4029 = vmatpush1.msra.mxu0 0.0
    %4030 = vmatprep.subr.mxu0 0.0
    %4031 = vmatpush1.msra.mxu0 0.0
    %4032 = vmatprep.subr.mxu0 0.0
    %4033 = vmatpush1.msra.mxu0 0.0
    %4034 = vmatprep.subr.mxu0 0.0
    %4035 = vmatpush1.msra.mxu0 0.0
    %4036 = vmatprep.subr.mxu0 0.0
    %4037 = vmatpush1.msra.mxu0 0.0
    %4038 = vmatprep.subr.mxu0 0.0
    %4039 = vmatpush1.msra.mxu0 0.0
    %4040 = vmatprep.subr.mxu0 0.0
    %4041 = vmatpush1.msra.mxu0 0.0
    %4042 = vmatprep.subr.mxu0 0.0
    %4043 = vmatpush1.msra.mxu0 0.0
    %4044 = vmatprep.subr.mxu0 0.0
    %4045 = vmatpush1.msra.mxu0 0.0
    %4046 = vmatprep.subr.mxu0 0.0
    %4047 = vmatpush1.msra.mxu0 0.0
    %4048 = vmatprep.subr.mxu0 0.0
    %4049 = vmatpush1.msra.mxu0 0.0
    %4050 = vmatprep.subr.mxu0 0.0
    %4051 = vmatpush1.msra.mxu0 0.0
    %4052 = vmatprep.subr.mxu0 0.0
    %4053 = vmatpush1.msra.mxu0 0.0
    %4054 = vmatprep.subr.mxu0 0.0
    %4055 = vmatpush1.msra.mxu0 0.0
    %4056 = vmatprep.mubr.f32.mxu0 0.0
    %4057 = vmatmul.mubr.f32.gmra.mrb[0].mxu0 %v3990
    %v4058 = vpop.f32.mrb[0].mxu0
    %v4059 = vadd.f32 0.0, %v4058
    %v4060 = vpop.f32.mrb[0].mxu0
    %4061 = vdwg.mxu0
    %s4062 = scalar_lea.vmem %s43, 32
    %v4063 = vld [vmem:[%s4062] sm:$0xff]
    %v4064 = vld [vmem:[%s4062 + $0x8] sm:$0xff]
    %v4065 = vld [vmem:[%s4062 + $0x10] sm:$0xff]
    %v4066 = vld [vmem:[%s4062 + $0x18] sm:$0xff]
    %v4068 = vsel %vm352, %v3583, 0
    %4070 = vmatprep.subr.mxu0 0.0
    %4071 = vmatpush1.msra.mxu0 %v4063
    %4072 = vmatprep.subr.mxu0 0.0
    %4073 = vmatpush1.msra.mxu0 %v4064
    %4074 = vmatprep.subr.mxu0 0.0
    %4075 = vmatpush1.msra.mxu0 %v4065
    %4076 = vmatprep.subr.mxu0 0.0
    %4077 = vmatpush1.msra.mxu0 %v4066
    %4078 = vmatprep.subr.mxu0 0.0
    %4079 = vmatpush1.msra.mxu0 0.0
    %4080 = vmatprep.subr.mxu0 0.0
    %4081 = vmatpush1.msra.mxu0 0.0
    %4082 = vmatprep.subr.mxu0 0.0
    %4083 = vmatpush1.msra.mxu0 0.0
    %4084 = vmatprep.subr.mxu0 0.0
    %4085 = vmatpush1.msra.mxu0 0.0
    %4086 = vmatprep.subr.mxu0 0.0
    %4087 = vmatpush1.msra.mxu0 0.0
    %4088 = vmatprep.subr.mxu0 0.0
    %4089 = vmatpush1.msra.mxu0 0.0
    %4090 = vmatprep.subr.mxu0 0.0
    %4091 = vmatpush1.msra.mxu0 0.0
    %4092 = vmatprep.subr.mxu0 0.0
    %4093 = vmatpush1.msra.mxu0 0.0
    %4094 = vmatprep.subr.mxu0 0.0
    %4095 = vmatpush1.msra.mxu0 0.0
    %4096 = vmatprep.subr.mxu0 0.0
    %4097 = vmatpush1.msra.mxu0 0.0
    %4098 = vmatprep.subr.mxu0 0.0
    %4099 = vmatpush1.msra.mxu0 0.0
    %4100 = vmatprep.subr.mxu0 0.0
    %4101 = vmatpush1.msra.mxu0 0.0
    %4102 = vmatprep.subr.mxu0 0.0
    %4103 = vmatpush1.msra.mxu0 0.0
    %4104 = vmatprep.subr.mxu0 0.0
    %4105 = vmatpush1.msra.mxu0 0.0
    %4106 = vmatprep.subr.mxu0 0.0
    %4107 = vmatpush1.msra.mxu0 0.0
    %4108 = vmatprep.subr.mxu0 0.0
    %4109 = vmatpush1.msra.mxu0 0.0
    %4110 = vmatprep.subr.mxu0 0.0
    %4111 = vmatpush1.msra.mxu0 0.0
    %4112 = vmatprep.subr.mxu0 0.0
    %4113 = vmatpush1.msra.mxu0 0.0
    %4114 = vmatprep.subr.mxu0 0.0
    %4115 = vmatpush1.msra.mxu0 0.0
    %4116 = vmatprep.subr.mxu0 0.0
    %4117 = vmatpush1.msra.mxu0 0.0
    %4118 = vmatprep.subr.mxu0 0.0
    %4119 = vmatpush1.msra.mxu0 0.0
    %4120 = vmatprep.subr.mxu0 0.0
    %4121 = vmatpush1.msra.mxu0 0.0
    %4122 = vmatprep.subr.mxu0 0.0
    %4123 = vmatpush1.msra.mxu0 0.0
    %4124 = vmatprep.subr.mxu0 0.0
    %4125 = vmatpush1.msra.mxu0 0.0
    %4126 = vmatprep.subr.mxu0 0.0
    %4127 = vmatpush1.msra.mxu0 0.0
    %4128 = vmatprep.subr.mxu0 0.0
    %4129 = vmatpush1.msra.mxu0 0.0
    %4130 = vmatprep.subr.mxu0 0.0
    %4131 = vmatpush1.msra.mxu0 0.0
    %4132 = vmatprep.subr.mxu0 0.0
    %4133 = vmatpush1.msra.mxu0 0.0
    %4134 = vmatprep.mubr.f32.mxu0 0.0
    %4135 = vmatmul.mubr.f32.gmra.mrb[0].mxu0 %v4068
    %v4136 = vpop.f32.mrb[0].mxu0
    %v4137 = vadd.f32 0.0, %v4136
    %v4138 = vpop.f32.mrb[0].mxu0
    %4139 = vdwg.mxu0
    %4141 = vrot.lane.b32.xlu0 %v4059, 96
    %v4142 = vpop.permute.xlu0 %4141
    %v4143 = vsel %vm262, %v4059, 0
    %v4145 = vsel %vm262, %v4142, 0
    %4147 = vmatprep.subr.mxu0 0.0
    %4148 = vmatpush1.xpose.msra.mxu0 %v4145
    %4149 = vmatprep.subr.mxu0 0.0
    %4150 = vmatpush1.xpose.msra.mxu0 0.0
    %4151 = vmatprep.subr.mxu0 0.0
    %4152 = vmatpush1.xpose.msra.mxu0 0.0
    %4153 = vmatprep.subr.mxu0 0.0
    %4154 = vmatpush1.xpose.msra.mxu0 0.0
    %4155 = vmatprep.subr.mxu0 0.0
    %4156 = vmatpush1.xpose.msra.mxu0 0.0
    %4157 = vmatprep.subr.mxu0 0.0
    %4158 = vmatpush1.xpose.msra.mxu0 0.0
    %4159 = vmatprep.subr.mxu0 0.0
    %4160 = vmatpush1.xpose.msra.mxu0 0.0
    %4161 = vmatprep.subr.mxu0 0.0
    %4162 = vmatpush1.xpose.msra.mxu0 0.0
    %4163 = vmatprep.subr.mxu0 0.0
    %4164 = vmatpush1.xpose.msra.mxu0 0.0
    %4165 = vmatprep.subr.mxu0 0.0
    %4166 = vmatpush1.xpose.msra.mxu0 0.0
    %4167 = vmatprep.subr.mxu0 0.0
    %4168 = vmatpush1.xpose.msra.mxu0 0.0
    %4169 = vmatprep.subr.mxu0 0.0
    %4170 = vmatpush1.xpose.msra.mxu0 0.0
    %4171 = vmatprep.subr.mxu0 0.0
    %4172 = vmatpush1.xpose.msra.mxu0 0.0
    %4173 = vmatprep.subr.mxu0 0.0
    %4174 = vmatpush1.xpose.msra.mxu0 0.0
    %4175 = vmatprep.subr.mxu0 0.0
    %4176 = vmatpush1.xpose.msra.mxu0 0.0
    %4177 = vmatprep.subr.mxu0 0.0
    %4178 = vmatpush1.xpose.msra.mxu0 0.0
    %4179 = vmatprep.subr.mxu0 0.0
    %4180 = vmatpush1.xpose.msra.mxu0 0.0
    %4181 = vmatprep.subr.mxu0 0.0
    %4182 = vmatpush1.xpose.msra.mxu0 0.0
    %4183 = vmatprep.subr.mxu0 0.0
    %4184 = vmatpush1.xpose.msra.mxu0 0.0
    %4185 = vmatprep.subr.mxu0 0.0
    %4186 = vmatpush1.xpose.msra.mxu0 0.0
    %4187 = vmatprep.subr.mxu0 0.0
    %4188 = vmatpush1.xpose.msra.mxu0 0.0
    %4189 = vmatprep.subr.mxu0 0.0
    %4190 = vmatpush1.xpose.msra.mxu0 0.0
    %4191 = vmatprep.subr.mxu0 0.0
    %4192 = vmatpush1.xpose.msra.mxu0 0.0
    %4193 = vmatprep.subr.mxu0 0.0
    %4194 = vmatpush1.xpose.msra.mxu0 0.0
    %4195 = vmatprep.subr.mxu0 0.0
    %4196 = vmatpush1.xpose.msra.mxu0 0.0
    %4197 = vmatprep.subr.mxu0 0.0
    %4198 = vmatpush1.xpose.msra.mxu0 0.0
    %4199 = vmatprep.subr.mxu0 0.0
    %4200 = vmatpush1.xpose.msra.mxu0 0.0
    %4201 = vmatprep.subr.mxu0 0.0
    %4202 = vmatpush1.xpose.msra.mxu0 0.0
    %4203 = vmatprep.subr.mxu0 0.0
    %4204 = vmatpush1.xpose.msra.mxu0 0.0
    %4205 = vmatprep.subr.mxu0 0.0
    %4206 = vmatpush1.xpose.msra.mxu0 0.0
    %4207 = vmatprep.subr.mxu0 0.0
    %4208 = vmatpush1.xpose.msra.mxu0 0.0
    %4209 = vmatprep.subr.mxu0 0.0
    %4210 = vmatpush1.xpose.msra.mxu0 0.0
    %4211 = vmatprep.mubr.f32.mxu0 0.0
    %4212 = vmatmul.mubr.f32.gmra.mrb[0].mxu0 %v4143
    %v4213 = vpop.f32.mrb[0].mxu0
    %v4214 = vadd.f32 0.0, %v4213
    %v4215 = vpop.f32.mrb[0].mxu0
    %4216 = vdwg.mxu0
    %v4217 = vmul.f32 %v4214, 0.35355338
    %v4218 = vsel %vm262, %v4217, -inf
    %4219 = vmax.xlane.f32.xlu0 %v4218
    %v4220 = vpop.xlane.xlu0 %4219
    %v4221 = vsub.f32 %v4217, %v4220
    %v4222 = vmul.f32 %v4221, 1.442695
    %v4223 = vpow.pop %v4222
    %v4224 = vsel %vm262, %v4223, 0.0
    %4225 = vadd.xlane.f32.xlu0 %v4224
    %v4226 = vpop.xlane.xlu0 %4225
    %v4227 = vrcp.pop %v4226
    %v4228 = vmul.f32 %v4223, %v4227
    %v4230 = vsel %vm262, %v4228, 0
    %4232 = vmatprep.subr.mxu0 0.0
    %4233 = vmatpush1.msra.mxu0 %v4137
    %4234 = vmatprep.subr.mxu0 0.0
    %4235 = vmatpush1.msra.mxu0 0.0
    %4236 = vmatprep.subr.mxu0 0.0
    %4237 = vmatpush1.msra.mxu0 0.0
    %4238 = vmatprep.subr.mxu0 0.0
    %4239 = vmatpush1.msra.mxu0 0.0
    %4240 = vmatprep.subr.mxu0 0.0
    %4241 = vmatpush1.msra.mxu0 0.0
    %4242 = vmatprep.subr.mxu0 0.0
    %4243 = vmatpush1.msra.mxu0 0.0
    %4244 = vmatprep.subr.mxu0 0.0
    %4245 = vmatpush1.msra.mxu0 0.0
    %4246 = vmatprep.subr.mxu0 0.0
    %4247 = vmatpush1.msra.mxu0 0.0
    %4248 = vmatprep.subr.mxu0 0.0
    %4249 = vmatpush1.msra.mxu0 0.0
    %4250 = vmatprep.subr.mxu0 0.0
    %4251 = vmatpush1.msra.mxu0 0.0
    %4252 = vmatprep.subr.mxu0 0.0
    %4253 = vmatpush1.msra.mxu0 0.0
    %4254 = vmatprep.subr.mxu0 0.0
    %4255 = vmatpush1.msra.mxu0 0.0
    %4256 = vmatprep.subr.mxu0 0.0
    %4257 = vmatpush1.msra.mxu0 0.0
    %4258 = vmatprep.subr.mxu0 0.0
    %4259 = vmatpush1.msra.mxu0 0.0
    %4260 = vmatprep.subr.mxu0 0.0
    %4261 = vmatpush1.msra.mxu0 0.0
    %4262 = vmatprep.subr.mxu0 0.0
    %4263 = vmatpush1.msra.mxu0 0.0
    %4264 = vmatprep.subr.mxu0 0.0
    %4265 = vmatpush1.msra.mxu0 0.0
    %4266 = vmatprep.subr.mxu0 0.0
    %4267 = vmatpush1.msra.mxu0 0.0
    %4268 = vmatprep.subr.mxu0 0.0
    %4269 = vmatpush1.msra.mxu0 0.0
    %4270 = vmatprep.subr.mxu0 0.0
    %4271 = vmatpush1.msra.mxu0 0.0
    %4272 = vmatprep.subr.mxu0 0.0
    %4273 = vmatpush1.msra.mxu0 0.0
    %4274 = vmatprep.subr.mxu0 0.0
    %4275 = vmatpush1.msra.mxu0 0.0
    %4276 = vmatprep.subr.mxu0 0.0
    %4277 = vmatpush1.msra.mxu0 0.0
    %4278 = vmatprep.subr.mxu0 0.0
    %4279 = vmatpush1.msra.mxu0 0.0
    %4280 = vmatprep.subr.mxu0 0.0
    %4281 = vmatpush1.msra.mxu0 0.0
    %4282 = vmatprep.subr.mxu0 0.0
    %4283 = vmatpush1.msra.mxu0 0.0
    %4284 = vmatprep.subr.mxu0 0.0
    %4285 = vmatpush1.msra.mxu0 0.0
    %4286 = vmatprep.subr.mxu0 0.0
    %4287 = vmatpush1.msra.mxu0 0.0
    %4288 = vmatprep.subr.mxu0 0.0
    %4289 = vmatpush1.msra.mxu0 0.0
    %4290 = vmatprep.subr.mxu0 0.0
    %4291 = vmatpush1.msra.mxu0 0.0
    %4292 = vmatprep.subr.mxu0 0.0
    %4293 = vmatpush1.msra.mxu0 0.0
    %4294 = vmatprep.subr.mxu0 0.0
    %4295 = vmatpush1.msra.mxu0 0.0
    %4296 = vmatprep.mubr.f32.mxu0 0.0
    %4297 = vmatmul.mubr.f32.gmra.mrb[0].mxu0 %v4230
    %v4298 = vpop.f32.mrb[0].mxu0
    %v4299 = vadd.f32 0.0, %v4298
    %v4300 = vpop.f32.mrb[0].mxu0
    %4301 = vdwg.mxu0
    %4302 = vrot.lane.b32.xlu0 %v4059, 120
    %v4303 = vpop.permute.xlu0 %4302
    %4304 = vrot.lane.b32.xlu0 %v4059, 88
    %v4305 = vpop.permute.xlu0 %4304
    %v4306 = vsel %vm262, %v4303, 0
    %v4308 = vsel %vm262, %v4305, 0
    %4310 = vmatprep.subr.mxu0 0.0
    %4311 = vmatpush1.xpose.msra.mxu0 %v4308
    %4312 = vmatprep.subr.mxu0 0.0
    %4313 = vmatpush1.xpose.msra.mxu0 0.0
    %4314 = vmatprep.subr.mxu0 0.0
    %4315 = vmatpush1.xpose.msra.mxu0 0.0
    %4316 = vmatprep.subr.mxu0 0.0
    %4317 = vmatpush1.xpose.msra.mxu0 0.0
    %4318 = vmatprep.subr.mxu0 0.0
    %4319 = vmatpush1.xpose.msra.mxu0 0.0
    %4320 = vmatprep.subr.mxu0 0.0
    %4321 = vmatpush1.xpose.msra.mxu0 0.0
    %4322 = vmatprep.subr.mxu0 0.0
    %4323 = vmatpush1.xpose.msra.mxu0 0.0
    %4324 = vmatprep.subr.mxu0 0.0
    %4325 = vmatpush1.xpose.msra.mxu0 0.0
    %4326 = vmatprep.subr.mxu0 0.0
    %4327 = vmatpush1.xpose.msra.mxu0 0.0
    %4328 = vmatprep.subr.mxu0 0.0
    %4329 = vmatpush1.xpose.msra.mxu0 0.0
    %4330 = vmatprep.subr.mxu0 0.0
    %4331 = vmatpush1.xpose.msra.mxu0 0.0
    %4332 = vmatprep.subr.mxu0 0.0
    %4333 = vmatpush1.xpose.msra.mxu0 0.0
    %4334 = vmatprep.subr.mxu0 0.0
    %4335 = vmatpush1.xpose.msra.mxu0 0.0
    %4336 = vmatprep.subr.mxu0 0.0
    %4337 = vmatpush1.xpose.msra.mxu0 0.0
    %4338 = vmatprep.subr.mxu0 0.0
    %4339 = vmatpush1.xpose.msra.mxu0 0.0
    %4340 = vmatprep.subr.mxu0 0.0
    %4341 = vmatpush1.xpose.msra.mxu0 0.0
    %4342 = vmatprep.subr.mxu0 0.0
    %4343 = vmatpush1.xpose.msra.mxu0 0.0
    %4344 = vmatprep.subr.mxu0 0.0
    %4345 = vmatpush1.xpose.msra.mxu0 0.0
    %4346 = vmatprep.subr.mxu0 0.0
    %4347 = vmatpush1.xpose.msra.mxu0 0.0
    %4348 = vmatprep.subr.mxu0 0.0
    %4349 = vmatpush1.xpose.msra.mxu0 0.0
    %4350 = vmatprep.subr.mxu0 0.0
    %4351 = vmatpush1.xpose.msra.mxu0 0.0
    %4352 = vmatprep.subr.mxu0 0.0
    %4353 = vmatpush1.xpose.msra.mxu0 0.0
    %4354 = vmatprep.subr.mxu0 0.0
    %4355 = vmatpush1.xpose.msra.mxu0 0.0
    %4356 = vmatprep.subr.mxu0 0.0
    %4357 = vmatpush1.xpose.msra.mxu0 0.0
    %4358 = vmatprep.subr.mxu0 0.0
    %4359 = vmatpush1.xpose.msra.mxu0 0.0
    %4360 = vmatprep.subr.mxu0 0.0
    %4361 = vmatpush1.xpose.msra.mxu0 0.0
    %4362 = vmatprep.subr.mxu0 0.0
    %4363 = vmatpush1.xpose.msra.mxu0 0.0
    %4364 = vmatprep.subr.mxu0 0.0
    %4365 = vmatpush1.xpose.msra.mxu0 0.0
    %4366 = vmatprep.subr.mxu0 0.0
    %4367 = vmatpush1.xpose.msra.mxu0 0.0
    %4368 = vmatprep.subr.mxu0 0.0
    %4369 = vmatpush1.xpose.msra.mxu0 0.0
    %4370 = vmatprep.subr.mxu0 0.0
    %4371 = vmatpush1.xpose.msra.mxu0 0.0
    %4372 = vmatprep.subr.mxu0 0.0
    %4373 = vmatpush1.xpose.msra.mxu0 0.0
    %4374 = vmatprep.mubr.f32.mxu0 0.0
    %4375 = vmatmul.mubr.f32.gmra.mrb[0].mxu0 %v4306
    %v4376 = vpop.f32.mrb[0].mxu0
    %v4377 = vadd.f32 0.0, %v4376
    %v4378 = vpop.f32.mrb[0].mxu0
    %4379 = vdwg.mxu0
    %v4380 = vmul.f32 %v4377, 0.35355338
    %v4381 = vsel %vm262, %v4380, -inf
    %4382 = vmax.xlane.f32.xlu0 %v4381
    %v4383 = vpop.xlane.xlu0 %4382
    %v4384 = vsub.f32 %v4380, %v4383
    %v4385 = vmul.f32 %v4384, 1.442695
    %v4386 = vpow.pop %v4385
    %v4387 = vsel %vm262, %v4386, 0.0
    %4388 = vadd.xlane.f32.xlu0 %v4387
    %v4389 = vpop.xlane.xlu0 %4388
    %v4390 = vrcp.pop %v4389
    %v4391 = vmul.f32 %v4386, %v4390
    %4393 = vrot.lane.b32.xlu0 %v4137, 120
    %v4394 = vpop.permute.xlu0 %4393
    %v4397 = vsel %vm262, %v4391, 0
    %4399 = vmatprep.subr.mxu0 0.0
    %4400 = vmatpush1.msra.mxu0 %v4394
    %4401 = vmatprep.subr.mxu0 0.0
    %4402 = vmatpush1.msra.mxu0 0.0
    %4403 = vmatprep.subr.mxu0 0.0
    %4404 = vmatpush1.msra.mxu0 0.0
    %4405 = vmatprep.subr.mxu0 0.0
    %4406 = vmatpush1.msra.mxu0 0.0
    %4407 = vmatprep.subr.mxu0 0.0
    %4408 = vmatpush1.msra.mxu0 0.0
    %4409 = vmatprep.subr.mxu0 0.0
    %4410 = vmatpush1.msra.mxu0 0.0
    %4411 = vmatprep.subr.mxu0 0.0
    %4412 = vmatpush1.msra.mxu0 0.0
    %4413 = vmatprep.subr.mxu0 0.0
    %4414 = vmatpush1.msra.mxu0 0.0
    %4415 = vmatprep.subr.mxu0 0.0
    %4416 = vmatpush1.msra.mxu0 0.0
    %4417 = vmatprep.subr.mxu0 0.0
    %4418 = vmatpush1.msra.mxu0 0.0
    %4419 = vmatprep.subr.mxu0 0.0
    %4420 = vmatpush1.msra.mxu0 0.0
    %4421 = vmatprep.subr.mxu0 0.0
    %4422 = vmatpush1.msra.mxu0 0.0
    %4423 = vmatprep.subr.mxu0 0.0
    %4424 = vmatpush1.msra.mxu0 0.0
    %4425 = vmatprep.subr.mxu0 0.0
    %4426 = vmatpush1.msra.mxu0 0.0
    %4427 = vmatprep.subr.mxu0 0.0
    %4428 = vmatpush1.msra.mxu0 0.0
    %4429 = vmatprep.subr.mxu0 0.0
    %4430 = vmatpush1.msra.mxu0 0.0
    %4431 = vmatprep.subr.mxu0 0.0
    %4432 = vmatpush1.msra.mxu0 0.0
    %4433 = vmatprep.subr.mxu0 0.0
    %4434 = vmatpush1.msra.mxu0 0.0
    %4435 = vmatprep.subr.mxu0 0.0
    %4436 = vmatpush1.msra.mxu0 0.0
    %4437 = vmatprep.subr.mxu0 0.0
    %4438 = vmatpush1.msra.mxu0 0.0
    %4439 = vmatprep.subr.mxu0 0.0
    %4440 = vmatpush1.msra.mxu0 0.0
    %4441 = vmatprep.subr.mxu0 0.0
    %4442 = vmatpush1.msra.mxu0 0.0
    %4443 = vmatprep.subr.mxu0 0.0
    %4444 = vmatpush1.msra.mxu0 0.0
    %4445 = vmatprep.subr.mxu0 0.0
    %4446 = vmatpush1.msra.mxu0 0.0
    %4447 = vmatprep.subr.mxu0 0.0
    %4448 = vmatpush1.msra.mxu0 0.0
    %4449 = vmatprep.subr.mxu0 0.0
    %4450 = vmatpush1.msra.mxu0 0.0
    %4451 = vmatprep.subr.mxu0 0.0
    %4452 = vmatpush1.msra.mxu0 0.0
    %4453 = vmatprep.subr.mxu0 0.0
    %4454 = vmatpush1.msra.mxu0 0.0
    %4455 = vmatprep.subr.mxu0 0.0
    %4456 = vmatpush1.msra.mxu0 0.0
    %4457 = vmatprep.subr.mxu0 0.0
    %4458 = vmatpush1.msra.mxu0 0.0
    %4459 = vmatprep.subr.mxu0 0.0
    %4460 = vmatpush1.msra.mxu0 0.0
    %4461 = vmatprep.subr.mxu0 0.0
    %4462 = vmatpush1.msra.mxu0 0.0
    %4463 = vmatprep.mubr.f32.mxu0 0.0
    %4464 = vmatmul.mubr.f32.gmra.mrb[0].mxu0 %v4397
    %v4465 = vpop.f32.mrb[0].mxu0
    %v4466 = vadd.f32 0.0, %v4465
    %v4467 = vpop.f32.mrb[0].mxu0
    %4468 = vdwg.mxu0
    %4469 = vrot.lane.b32.xlu0 %v4059, 112
    %v4470 = vpop.permute.xlu0 %4469
    %4471 = vrot.lane.b32.xlu0 %v4059, 80
    %v4472 = vpop.permute.xlu0 %4471
    %v4473 = vsel %vm262, %v4470, 0
    %v4475 = vsel %vm262, %v4472, 0
    %4477 = vmatprep.subr.mxu0 0.0
    %4478 = vmatpush1.xpose.msra.mxu0 %v4475
    %4479 = vmatprep.subr.mxu0 0.0
    %4480 = vmatpush1.xpose.msra.mxu0 0.0
    %4481 = vmatprep.subr.mxu0 0.0
    %4482 = vmatpush1.xpose.msra.mxu0 0.0
    %4483 = vmatprep.subr.mxu0 0.0
    %4484 = vmatpush1.xpose.msra.mxu0 0.0
    %4485 = vmatprep.subr.mxu0 0.0
    %4486 = vmatpush1.xpose.msra.mxu0 0.0
    %4487 = vmatprep.subr.mxu0 0.0
    %4488 = vmatpush1.xpose.msra.mxu0 0.0
    %4489 = vmatprep.subr.mxu0 0.0
    %4490 = vmatpush1.xpose.msra.mxu0 0.0
    %4491 = vmatprep.subr.mxu0 0.0
    %4492 = vmatpush1.xpose.msra.mxu0 0.0
    %4493 = vmatprep.subr.mxu0 0.0
    %4494 = vmatpush1.xpose.msra.mxu0 0.0
    %4495 = vmatprep.subr.mxu0 0.0
    %4496 = vmatpush1.xpose.msra.mxu0 0.0
    %4497 = vmatprep.subr.mxu0 0.0
    %4498 = vmatpush1.xpose.msra.mxu0 0.0
    %4499 = vmatprep.subr.mxu0 0.0
    %4500 = vmatpush1.xpose.msra.mxu0 0.0
    %4501 = vmatprep.subr.mxu0 0.0
    %4502 = vmatpush1.xpose.msra.mxu0 0.0
    %4503 = vmatprep.subr.mxu0 0.0
    %4504 = vmatpush1.xpose.msra.mxu0 0.0
    %4505 = vmatprep.subr.mxu0 0.0
    %4506 = vmatpush1.xpose.msra.mxu0 0.0
    %4507 = vmatprep.subr.mxu0 0.0
    %4508 = vmatpush1.xpose.msra.mxu0 0.0
    %4509 = vmatprep.subr.mxu0 0.0
    %4510 = vmatpush1.xpose.msra.mxu0 0.0
    %4511 = vmatprep.subr.mxu0 0.0
    %4512 = vmatpush1.xpose.msra.mxu0 0.0
    %4513 = vmatprep.subr.mxu0 0.0
    %4514 = vmatpush1.xpose.msra.mxu0 0.0
    %4515 = vmatprep.subr.mxu0 0.0
    %4516 = vmatpush1.xpose.msra.mxu0 0.0
    %4517 = vmatprep.subr.mxu0 0.0
    %4518 = vmatpush1.xpose.msra.mxu0 0.0
    %4519 = vmatprep.subr.mxu0 0.0
    %4520 = vmatpush1.xpose.msra.mxu0 0.0
    %4521 = vmatprep.subr.mxu0 0.0
    %4522 = vmatpush1.xpose.msra.mxu0 0.0
    %4523 = vmatprep.subr.mxu0 0.0
    %4524 = vmatpush1.xpose.msra.mxu0 0.0
    %4525 = vmatprep.subr.mxu0 0.0
    %4526 = vmatpush1.xpose.msra.mxu0 0.0
    %4527 = vmatprep.subr.mxu0 0.0
    %4528 = vmatpush1.xpose.msra.mxu0 0.0
    %4529 = vmatprep.subr.mxu0 0.0
    %4530 = vmatpush1.xpose.msra.mxu0 0.0
    %4531 = vmatprep.subr.mxu0 0.0
    %4532 = vmatpush1.xpose.msra.mxu0 0.0
    %4533 = vmatprep.subr.mxu0 0.0
    %4534 = vmatpush1.xpose.msra.mxu0 0.0
    %4535 = vmatprep.subr.mxu0 0.0
    %4536 = vmatpush1.xpose.msra.mxu0 0.0
    %4537 = vmatprep.subr.mxu0 0.0
    %4538 = vmatpush1.xpose.msra.mxu0 0.0
    %4539 = vmatprep.subr.mxu0 0.0
    %4540 = vmatpush1.xpose.msra.mxu0 0.0
    %4541 = vmatprep.mubr.f32.mxu0 0.0
    %4542 = vmatmul.mubr.f32.gmra.mrb[0].mxu0 %v4473
    %v4543 = vpop.f32.mrb[0].mxu0
    %v4544 = vadd.f32 0.0, %v4543
    %v4545 = vpop.f32.mrb[0].mxu0
    %4546 = vdwg.mxu0
    %v4547 = vmul.f32 %v4544, 0.35355338
    %v4548 = vsel %vm262, %v4547, -inf
    %4549 = vmax.xlane.f32.xlu0 %v4548
    %v4550 = vpop.xlane.xlu0 %4549
    %v4551 = vsub.f32 %v4547, %v4550
    %v4552 = vmul.f32 %v4551, 1.442695
    %v4553 = vpow.pop %v4552
    %v4554 = vsel %vm262, %v4553, 0.0
    %4555 = vadd.xlane.f32.xlu0 %v4554
    %v4556 = vpop.xlane.xlu0 %4555
    %v4557 = vrcp.pop %v4556
    %v4558 = vmul.f32 %v4553, %v4557
    %4559 = vrot.lane.b32.xlu0 %v4137, 112
    %v4560 = vpop.permute.xlu0 %4559
    %v4563 = vsel %vm262, %v4558, 0
    %4565 = vmatprep.subr.mxu0 0.0
    %4566 = vmatpush1.msra.mxu0 %v4560
    %4567 = vmatprep.subr.mxu0 0.0
    %4568 = vmatpush1.msra.mxu0 0.0
    %4569 = vmatprep.subr.mxu0 0.0
    %4570 = vmatpush1.msra.mxu0 0.0
    %4571 = vmatprep.subr.mxu0 0.0
    %4572 = vmatpush1.msra.mxu0 0.0
    %4573 = vmatprep.subr.mxu0 0.0
    %4574 = vmatpush1.msra.mxu0 0.0
    %4575 = vmatprep.subr.mxu0 0.0
    %4576 = vmatpush1.msra.mxu0 0.0
    %4577 = vmatprep.subr.mxu0 0.0
    %4578 = vmatpush1.msra.mxu0 0.0
    %4579 = vmatprep.subr.mxu0 0.0
    %4580 = vmatpush1.msra.mxu0 0.0
    %4581 = vmatprep.subr.mxu0 0.0
    %4582 = vmatpush1.msra.mxu0 0.0
    %4583 = vmatprep.subr.mxu0 0.0
    %4584 = vmatpush1.msra.mxu0 0.0
    %4585 = vmatprep.subr.mxu0 0.0
    %4586 = vmatpush1.msra.mxu0 0.0
    %4587 = vmatprep.subr.mxu0 0.0
    %4588 = vmatpush1.msra.mxu0 0.0
    %4589 = vmatprep.subr.mxu0 0.0
    %4590 = vmatpush1.msra.mxu0 0.0
    %4591 = vmatprep.subr.mxu0 0.0
    %4592 = vmatpush1.msra.mxu0 0.0
    %4593 = vmatprep.subr.mxu0 0.0
    %4594 = vmatpush1.msra.mxu0 0.0
    %4595 = vmatprep.subr.mxu0 0.0
    %4596 = vmatpush1.msra.mxu0 0.0
    %4597 = vmatprep.subr.mxu0 0.0
    %4598 = vmatpush1.msra.mxu0 0.0
    %4599 = vmatprep.subr.mxu0 0.0
    %4600 = vmatpush1.msra.mxu0 0.0
    %4601 = vmatprep.subr.mxu0 0.0
    %4602 = vmatpush1.msra.mxu0 0.0
    %4603 = vmatprep.subr.mxu0 0.0
    %4604 = vmatpush1.msra.mxu0 0.0
    %4605 = vmatprep.subr.mxu0 0.0
    %4606 = vmatpush1.msra.mxu0 0.0
    %4607 = vmatprep.subr.mxu0 0.0
    %4608 = vmatpush1.msra.mxu0 0.0
    %4609 = vmatprep.subr.mxu0 0.0
    %4610 = vmatpush1.msra.mxu0 0.0
    %4611 = vmatprep.subr.mxu0 0.0
    %4612 = vmatpush1.msra.mxu0 0.0
    %4613 = vmatprep.subr.mxu0 0.0
    %4614 = vmatpush1.msra.mxu0 0.0
    %4615 = vmatprep.subr.mxu0 0.0
    %4616 = vmatpush1.msra.mxu0 0.0
    %4617 = vmatprep.subr.mxu0 0.0
    %4618 = vmatpush1.msra.mxu0 0.0
    %4619 = vmatprep.subr.mxu0 0.0
    %4620 = vmatpush1.msra.mxu0 0.0
    %4621 = vmatprep.subr.mxu0 0.0
    %4622 = vmatpush1.msra.mxu0 0.0
    %4623 = vmatprep.subr.mxu0 0.0
    %4624 = vmatpush1.msra.mxu0 0.0
    %4625 = vmatprep.subr.mxu0 0.0
    %4626 = vmatpush1.msra.mxu0 0.0
    %4627 = vmatprep.subr.mxu0 0.0
    %4628 = vmatpush1.msra.mxu0 0.0
    %4629 = vmatprep.mubr.f32.mxu0 0.0
    %4630 = vmatmul.mubr.f32.gmra.mrb[0].mxu0 %v4563
    %v4631 = vpop.f32.mrb[0].mxu0
    %v4632 = vadd.f32 0.0, %v4631
    %v4633 = vpop.f32.mrb[0].mxu0
    %4634 = vdwg.mxu0
    %4635 = vrot.lane.b32.xlu0 %v4059, 104
    %v4636 = vpop.permute.xlu0 %4635
    %4637 = vrot.lane.b32.xlu0 %v4059, 72
    %v4638 = vpop.permute.xlu0 %4637
    %v4639 = vsel %vm262, %v4636, 0
    %v4641 = vsel %vm262, %v4638, 0
    %4643 = vmatprep.subr.mxu0 0.0
    %4644 = vmatpush1.xpose.msra.mxu0 %v4641
    %4645 = vmatprep.subr.mxu0 0.0
    %4646 = vmatpush1.xpose.msra.mxu0 0.0
    %4647 = vmatprep.subr.mxu0 0.0
    %4648 = vmatpush1.xpose.msra.mxu0 0.0
    %4649 = vmatprep.subr.mxu0 0.0
    %4650 = vmatpush1.xpose.msra.mxu0 0.0
    %4651 = vmatprep.subr.mxu0 0.0
    %4652 = vmatpush1.xpose.msra.mxu0 0.0
    %4653 = vmatprep.subr.mxu0 0.0
    %4654 = vmatpush1.xpose.msra.mxu0 0.0
    %4655 = vmatprep.subr.mxu0 0.0
    %4656 = vmatpush1.xpose.msra.mxu0 0.0
    %4657 = vmatprep.subr.mxu0 0.0
    %4658 = vmatpush1.xpose.msra.mxu0 0.0
    %4659 = vmatprep.subr.mxu0 0.0
    %4660 = vmatpush1.xpose.msra.mxu0 0.0
    %4661 = vmatprep.subr.mxu0 0.0
    %4662 = vmatpush1.xpose.msra.mxu0 0.0
    %4663 = vmatprep.subr.mxu0 0.0
    %4664 = vmatpush1.xpose.msra.mxu0 0.0
    %4665 = vmatprep.subr.mxu0 0.0
    %4666 = vmatpush1.xpose.msra.mxu0 0.0
    %4667 = vmatprep.subr.mxu0 0.0
    %4668 = vmatpush1.xpose.msra.mxu0 0.0
    %4669 = vmatprep.subr.mxu0 0.0
    %4670 = vmatpush1.xpose.msra.mxu0 0.0
    %4671 = vmatprep.subr.mxu0 0.0
    %4672 = vmatpush1.xpose.msra.mxu0 0.0
    %4673 = vmatprep.subr.mxu0 0.0
    %4674 = vmatpush1.xpose.msra.mxu0 0.0
    %4675 = vmatprep.subr.mxu0 0.0
    %4676 = vmatpush1.xpose.msra.mxu0 0.0
    %4677 = vmatprep.subr.mxu0 0.0
    %4678 = vmatpush1.xpose.msra.mxu0 0.0
    %4679 = vmatprep.subr.mxu0 0.0
    %4680 = vmatpush1.xpose.msra.mxu0 0.0
    %4681 = vmatprep.subr.mxu0 0.0
    %4682 = vmatpush1.xpose.msra.mxu0 0.0
    %4683 = vmatprep.subr.mxu0 0.0
    %4684 = vmatpush1.xpose.msra.mxu0 0.0
    %4685 = vmatprep.subr.mxu0 0.0
    %4686 = vmatpush1.xpose.msra.mxu0 0.0
    %4687 = vmatprep.subr.mxu0 0.0
    %4688 = vmatpush1.xpose.msra.mxu0 0.0
    %4689 = vmatprep.subr.mxu0 0.0
    %4690 = vmatpush1.xpose.msra.mxu0 0.0
    %4691 = vmatprep.subr.mxu0 0.0
    %4692 = vmatpush1.xpose.msra.mxu0 0.0
    %4693 = vmatprep.subr.mxu0 0.0
    %4694 = vmatpush1.xpose.msra.mxu0 0.0
    %4695 = vmatprep.subr.mxu0 0.0
    %4696 = vmatpush1.xpose.msra.mxu0 0.0
    %4697 = vmatprep.subr.mxu0 0.0
    %4698 = vmatpush1.xpose.msra.mxu0 0.0
    %4699 = vmatprep.subr.mxu0 0.0
    %4700 = vmatpush1.xpose.msra.mxu0 0.0
    %4701 = vmatprep.subr.mxu0 0.0
    %4702 = vmatpush1.xpose.msra.mxu0 0.0
    %4703 = vmatprep.subr.mxu0 0.0
    %4704 = vmatpush1.xpose.msra.mxu0 0.0
    %4705 = vmatprep.subr.mxu0 0.0
    %4706 = vmatpush1.xpose.msra.mxu0 0.0
    %4707 = vmatprep.mubr.f32.mxu0 0.0
    %4708 = vmatmul.mubr.f32.gmra.mrb[0].mxu0 %v4639
    %v4709 = vpop.f32.mrb[0].mxu0
    %v4710 = vadd.f32 0.0, %v4709
    %v4711 = vpop.f32.mrb[0].mxu0
    %4712 = vdwg.mxu0
    %v4713 = vmul.f32 %v4710, 0.35355338
    %v4714 = vsel %vm262, %v4713, -inf
    %4715 = vmax.xlane.f32.xlu0 %v4714
    %v4716 = vpop.xlane.xlu0 %4715
    %v4717 = vsub.f32 %v4713, %v4716
    %v4718 = vmul.f32 %v4717, 1.442695
    %v4719 = vpow.pop %v4718
    %v4720 = vsel %vm262, %v4719, 0.0
    %4721 = vadd.xlane.f32.xlu0 %v4720
    %v4722 = vpop.xlane.xlu0 %4721
    %v4723 = vrcp.pop %v4722
    %v4724 = vmul.f32 %v4719, %v4723
    %4725 = vrot.lane.b32.xlu0 %v4137, 104
    %v4726 = vpop.permute.xlu0 %4725
    %v4729 = vsel %vm262, %v4724, 0
    %4731 = vmatprep.subr.mxu0 0.0
    %4732 = vmatpush1.msra.mxu0 %v4726
    %4733 = vmatprep.subr.mxu0 0.0
    %4734 = vmatpush1.msra.mxu0 0.0
    %4735 = vmatprep.subr.mxu0 0.0
    %4736 = vmatpush1.msra.mxu0 0.0
    %4737 = vmatprep.subr.mxu0 0.0
    %4738 = vmatpush1.msra.mxu0 0.0
    %4739 = vmatprep.subr.mxu0 0.0
    %4740 = vmatpush1.msra.mxu0 0.0
    %4741 = vmatprep.subr.mxu0 0.0
    %4742 = vmatpush1.msra.mxu0 0.0
    %4743 = vmatprep.subr.mxu0 0.0
    %4744 = vmatpush1.msra.mxu0 0.0
    %4745 = vmatprep.subr.mxu0 0.0
    %4746 = vmatpush1.msra.mxu0 0.0
    %4747 = vmatprep.subr.mxu0 0.0
    %4748 = vmatpush1.msra.mxu0 0.0
    %4749 = vmatprep.subr.mxu0 0.0
    %4750 = vmatpush1.msra.mxu0 0.0
    %4751 = vmatprep.subr.mxu0 0.0
    %4752 = vmatpush1.msra.mxu0 0.0
    %4753 = vmatprep.subr.mxu0 0.0
    %4754 = vmatpush1.msra.mxu0 0.0
    %4755 = vmatprep.subr.mxu0 0.0
    %4756 = vmatpush1.msra.mxu0 0.0
    %4757 = vmatprep.subr.mxu0 0.0
    %4758 = vmatpush1.msra.mxu0 0.0
    %4759 = vmatprep.subr.mxu0 0.0
    %4760 = vmatpush1.msra.mxu0 0.0
    %4761 = vmatprep.subr.mxu0 0.0
    %4762 = vmatpush1.msra.mxu0 0.0
    %4763 = vmatprep.subr.mxu0 0.0
    %4764 = vmatpush1.msra.mxu0 0.0
    %4765 = vmatprep.subr.mxu0 0.0
    %4766 = vmatpush1.msra.mxu0 0.0
    %4767 = vmatprep.subr.mxu0 0.0
    %4768 = vmatpush1.msra.mxu0 0.0
    %4769 = vmatprep.subr.mxu0 0.0
    %4770 = vmatpush1.msra.mxu0 0.0
    %4771 = vmatprep.subr.mxu0 0.0
    %4772 = vmatpush1.msra.mxu0 0.0
    %4773 = vmatprep.subr.mxu0 0.0
    %4774 = vmatpush1.msra.mxu0 0.0
    %4775 = vmatprep.subr.mxu0 0.0
    %4776 = vmatpush1.msra.mxu0 0.0
    %4777 = vmatprep.subr.mxu0 0.0
    %4778 = vmatpush1.msra.mxu0 0.0
    %4779 = vmatprep.subr.mxu0 0.0
    %4780 = vmatpush1.msra.mxu0 0.0
    %4781 = vmatprep.subr.mxu0 0.0
    %4782 = vmatpush1.msra.mxu0 0.0
    %4783 = vmatprep.subr.mxu0 0.0
    %4784 = vmatpush1.msra.mxu0 0.0
    %4785 = vmatprep.subr.mxu0 0.0
    %4786 = vmatpush1.msra.mxu0 0.0
    %4787 = vmatprep.subr.mxu0 0.0
    %4788 = vmatpush1.msra.mxu0 0.0
    %4789 = vmatprep.subr.mxu0 0.0
    %4790 = vmatpush1.msra.mxu0 0.0
    %4791 = vmatprep.subr.mxu0 0.0
    %4792 = vmatpush1.msra.mxu0 0.0
    %4793 = vmatprep.subr.mxu0 0.0
    %4794 = vmatpush1.msra.mxu0 0.0
    %4795 = vmatprep.mubr.f32.mxu0 0.0
    %4796 = vmatmul.mubr.f32.gmra.mrb[0].mxu0 %v4729
    %v4797 = vpop.f32.mrb[0].mxu0
    %v4798 = vadd.f32 0.0, %v4797
    %v4799 = vpop.f32.mrb[0].mxu0
    %4800 = vdwg.mxu0
    %4802 = vrot.lane.b32.xlu0 %v4466, 8
    %v4803 = vpop.permute.xlu0 %4802
    %4806 = vrot.lane.b32.xlu0 %v4632, 16
    %v4807 = vpop.permute.xlu0 %4806
    %4810 = vrot.lane.b32.xlu0 %v4798, 24
    %v4811 = vpop.permute.xlu0 %4810
    %v4813 = vsel %vm262, %v4299, %v4803
    %v4814 = vsel %vm3288, %v4813, %v4807
    %v4815 = vsel %vm3290, %v4814, %v4811
    %s4816 = scalar_lea.vmem %s45, 32
    %v4817 = vld [vmem:[%s4816] sm:$0xff]
    %v4818 = vld [vmem:[%s4816 + $0x8] sm:$0xff]
    %v4819 = vld [vmem:[%s4816 + $0x10] sm:$0xff]
    %v4820 = vld [vmem:[%s4816 + $0x18] sm:$0xff]
    %s4821 = scalar_lea.vmem %s47, 1
    %v4822 = vld [vmem:[%s4821] sm:$0x1]
    %v4824 = vlaneseq
    %v4825 = vshrl.u32 %v4824, 7
    %v4826 = vsub.s32 0, %v4825
    %v4827 = vrot.slane %v4822, %v4826
    %v4830 = vsel %vm352, %v4815, 0
    %4832 = vmatprep.subr.mxu0 0.0
    %4833 = vmatpush1.msra.mxu0 %v4817
    %4834 = vmatprep.subr.mxu0 0.0
    %4835 = vmatpush1.msra.mxu0 %v4818
    %4836 = vmatprep.subr.mxu0 0.0
    %4837 = vmatpush1.msra.mxu0 %v4819
    %4838 = vmatprep.subr.mxu0 0.0
    %4839 = vmatpush1.msra.mxu0 %v4820
    %4840 = vmatprep.subr.mxu0 0.0
    %4841 = vmatpush1.msra.mxu0 0.0
    %4842 = vmatprep.subr.mxu0 0.0
    %4843 = vmatpush1.msra.mxu0 0.0
    %4844 = vmatprep.subr.mxu0 0.0
    %4845 = vmatpush1.msra.mxu0 0.0
    %4846 = vmatprep.subr.mxu0 0.0
    %4847 = vmatpush1.msra.mxu0 0.0
    %4848 = vmatprep.subr.mxu0 0.0
    %4849 = vmatpush1.msra.mxu0 0.0
    %4850 = vmatprep.subr.mxu0 0.0
    %4851 = vmatpush1.msra.mxu0 0.0
    %4852 = vmatprep.subr.mxu0 0.0
    %4853 = vmatpush1.msra.mxu0 0.0
    %4854 = vmatprep.subr.mxu0 0.0
    %4855 = vmatpush1.msra.mxu0 0.0
    %4856 = vmatprep.subr.mxu0 0.0
    %4857 = vmatpush1.msra.mxu0 0.0
    %4858 = vmatprep.subr.mxu0 0.0
    %4859 = vmatpush1.msra.mxu0 0.0
    %4860 = vmatprep.subr.mxu0 0.0
    %4861 = vmatpush1.msra.mxu0 0.0
    %4862 = vmatprep.subr.mxu0 0.0
    %4863 = vmatpush1.msra.mxu0 0.0
    %4864 = vmatprep.subr.mxu0 0.0
    %4865 = vmatpush1.msra.mxu0 0.0
    %4866 = vmatprep.subr.mxu0 0.0
    %4867 = vmatpush1.msra.mxu0 0.0
    %4868 = vmatprep.subr.mxu0 0.0
    %4869 = vmatpush1.msra.mxu0 0.0
    %4870 = vmatprep.subr.mxu0 0.0
    %4871 = vmatpush1.msra.mxu0 0.0
    %4872 = vmatprep.subr.mxu0 0.0
    %4873 = vmatpush1.msra.mxu0 0.0
    %4874 = vmatprep.subr.mxu0 0.0
    %4875 = vmatpush1.msra.mxu0 0.0
    %4876 = vmatprep.subr.mxu0 0.0
    %4877 = vmatpush1.msra.mxu0 0.0
    %4878 = vmatprep.subr.mxu0 0.0
    %4879 = vmatpush1.msra.mxu0 0.0
    %4880 = vmatprep.subr.mxu0 0.0
    %4881 = vmatpush1.msra.mxu0 0.0
    %4882 = vmatprep.subr.mxu0 0.0
    %4883 = vmatpush1.msra.mxu0 0.0
    %4884 = vmatprep.subr.mxu0 0.0
    %4885 = vmatpush1.msra.mxu0 0.0
    %4886 = vmatprep.subr.mxu0 0.0
    %4887 = vmatpush1.msra.mxu0 0.0
    %4888 = vmatprep.subr.mxu0 0.0
    %4889 = vmatpush1.msra.mxu0 0.0
    %4890 = vmatprep.subr.mxu0 0.0
    %4891 = vmatpush1.msra.mxu0 0.0
    %4892 = vmatprep.subr.mxu0 0.0
    %4893 = vmatpush1.msra.mxu0 0.0
    %4894 = vmatprep.subr.mxu0 0.0
    %4895 = vmatpush1.msra.mxu0 0.0
    %4896 = vmatprep.mubr.f32.mxu0 0.0
    %4897 = vmatmul.mubr.f32.gmra.mrb[0].mxu0 %v4830
    %v4898 = vpop.f32.mrb[0].mxu0
    %v4899 = vadd.f32 %v4827, %v4898
    %v4900 = vpop.f32.mrb[0].mxu0
    %4901 = vdwg.mxu0
    %v4902 = vadd.f32 %v3583, %v4899
    %s4903 = scalar_lea.vmem %s57, 1
    %v4904 = vld [vmem:[%s4903] sm:$0x1]
    %v4906 = vlaneseq
    %v4907 = vshrl.u32 %v4906, 7
    %v4908 = vsub.s32 0, %v4907
    %v4909 = vrot.slane %v4904, %v4908
    %v4911 = vmul.f32 %v4902, %v4909
    %s4912 = scalar_lea.vmem %s59, 1
    %v4913 = vld [vmem:[%s4912] sm:$0x1]
    %v4915 = vlaneseq
    %v4916 = vshrl.u32 %v4915, 7
    %v4917 = vsub.s32 0, %v4916
    %v4918 = vrot.slane %v4913, %v4917
    %v4920 = vadd.f32 %v4911, %v4918
    %s4921 = scalar_lea.vmem %s49, 32
    %v4922 = vld [vmem:[%s4921] sm:$0xff]
    %v4923 = vld [vmem:[%s4921 + $0x8] sm:$0xff]
    %v4924 = vld [vmem:[%s4921 + $0x10] sm:$0xff]
    %v4925 = vld [vmem:[%s4921 + $0x18] sm:$0xff]
    %s4926 = scalar_lea.vmem %s51, 1
    %v4927 = vld [vmem:[%s4926] sm:$0x1]
    %v4929 = vlaneseq
    %v4930 = vshrl.u32 %v4929, 7
    %v4931 = vsub.s32 0, %v4930
    %v4932 = vrot.slane %v4927, %v4931
    %v4935 = vsel %vm352, %v4920, 0
    %4937 = vmatprep.subr.mxu0 0.0
    %4938 = vmatpush1.msra.mxu0 %v4922
    %4939 = vmatprep.subr.mxu0 0.0
    %4940 = vmatpush1.msra.mxu0 %v4923
    %4941 = vmatprep.subr.mxu0 0.0
    %4942 = vmatpush1.msra.mxu0 %v4924
    %4943 = vmatprep.subr.mxu0 0.0
    %4944 = vmatpush1.msra.mxu0 %v4925
    %4945 = vmatprep.subr.mxu0 0.0
    %4946 = vmatpush1.msra.mxu0 0.0
    %4947 = vmatprep.subr.mxu0 0.0
    %4948 = vmatpush1.msra.mxu0 0.0
    %4949 = vmatprep.subr.mxu0 0.0
    %4950 = vmatpush1.msra.mxu0 0.0
    %4951 = vmatprep.subr.mxu0 0.0
    %4952 = vmatpush1.msra.mxu0 0.0
    %4953 = vmatprep.subr.mxu0 0.0
    %4954 = vmatpush1.msra.mxu0 0.0
    %4955 = vmatprep.subr.mxu0 0.0
    %4956 = vmatpush1.msra.mxu0 0.0
    %4957 = vmatprep.subr.mxu0 0.0
    %4958 = vmatpush1.msra.mxu0 0.0
    %4959 = vmatprep.subr.mxu0 0.0
    %4960 = vmatpush1.msra.mxu0 0.0
    %4961 = vmatprep.subr.mxu0 0.0
    %4962 = vmatpush1.msra.mxu0 0.0
    %4963 = vmatprep.subr.mxu0 0.0
    %4964 = vmatpush1.msra.mxu0 0.0
    %4965 = vmatprep.subr.mxu0 0.0
    %4966 = vmatpush1.msra.mxu0 0.0
    %4967 = vmatprep.subr.mxu0 0.0
    %4968 = vmatpush1.msra.mxu0 0.0
    %4969 = vmatprep.subr.mxu0 0.0
    %4970 = vmatpush1.msra.mxu0 0.0
    %4971 = vmatprep.subr.mxu0 0.0
    %4972 = vmatpush1.msra.mxu0 0.0
    %4973 = vmatprep.subr.mxu0 0.0
    %4974 = vmatpush1.msra.mxu0 0.0
    %4975 = vmatprep.subr.mxu0 0.0
    %4976 = vmatpush1.msra.mxu0 0.0
    %4977 = vmatprep.subr.mxu0 0.0
    %4978 = vmatpush1.msra.mxu0 0.0
    %4979 = vmatprep.subr.mxu0 0.0
    %4980 = vmatpush1.msra.mxu0 0.0
    %4981 = vmatprep.subr.mxu0 0.0
    %4982 = vmatpush1.msra.mxu0 0.0
    %4983 = vmatprep.subr.mxu0 0.0
    %4984 = vmatpush1.msra.mxu0 0.0
    %4985 = vmatprep.subr.mxu0 0.0
    %4986 = vmatpush1.msra.mxu0 0.0
    %4987 = vmatprep.subr.mxu0 0.0
    %4988 = vmatpush1.msra.mxu0 0.0
    %4989 = vmatprep.subr.mxu0 0.0
    %4990 = vmatpush1.msra.mxu0 0.0
    %4991 = vmatprep.subr.mxu0 0.0
    %4992 = vmatpush1.msra.mxu0 0.0
    %4993 = vmatprep.subr.mxu0 0.0
    %4994 = vmatpush1.msra.mxu0 0.0
    %4995 = vmatprep.subr.mxu0 0.0
    %4996 = vmatpush1.msra.mxu0 0.0
    %4997 = vmatprep.subr.mxu0 0.0
    %4998 = vmatpush1.msra.mxu0 0.0
    %4999 = vmatprep.subr.mxu0 0.0
    %5000 = vmatpush1.msra.mxu0 0.0
    %5001 = vmatprep.mubr.f32.mxu0 0.0
    %5002 = vmatmul.mubr.f32.gmra.mrb[0].mxu0 %v4935
    %v5003 = vpop.f32.mrb[0].mxu0
    %v5004 = vadd.f32 %v4932, %v5003
    %v5005 = vpop.f32.mrb[0].mxu0
    %5006 = vdwg.mxu0
    %v5007 = vmax.f32 %v5004, 0.0
    %s5008 = scalar_lea.vmem %s53, 64
    %v5009 = vld [vmem:[%s5008] sm:$0xff]
    %v5010 = vld [vmem:[%s5008 + $0x8] sm:$0xff]
    %v5011 = vld [vmem:[%s5008 + $0x10] sm:$0xff]
    %v5012 = vld [vmem:[%s5008 + $0x18] sm:$0xff]
    %v5013 = vld [vmem:[%s5008 + $0x20] sm:$0xff]
    %v5014 = vld [vmem:[%s5008 + $0x28] sm:$0xff]
    %v5015 = vld [vmem:[%s5008 + $0x30] sm:$0xff]
    %v5016 = vld [vmem:[%s5008 + $0x38] sm:$0xff]
    %s5017 = scalar_lea.vmem %s55, 1
    %v5018 = vld [vmem:[%s5017] sm:$0x1]
    %v5020 = vlaneseq
    %v5021 = vshrl.u32 %v5020, 7
    %v5022 = vsub.s32 0, %v5021
    %v5023 = vrot.slane %v5018, %v5022
    %v5026 = vsel %vm3493, %v5007, 0
    %5028 = vmatprep.subr.mxu0 0.0
    %5029 = vmatpush1.msra.mxu0 %v5009
    %5030 = vmatprep.subr.mxu0 0.0
    %5031 = vmatpush1.msra.mxu0 %v5010
    %5032 = vmatprep.subr.mxu0 0.0
    %5033 = vmatpush1.msra.mxu0 %v5011
    %5034 = vmatprep.subr.mxu0 0.0
    %5035 = vmatpush1.msra.mxu0 %v5012
    %5036 = vmatprep.subr.mxu0 0.0
    %5037 = vmatpush1.msra.mxu0 %v5013
    %5038 = vmatprep.subr.mxu0 0.0
    %5039 = vmatpush1.msra.mxu0 %v5014
    %5040 = vmatprep.subr.mxu0 0.0
    %5041 = vmatpush1.msra.mxu0 %v5015
    %5042 = vmatprep.subr.mxu0 0.0
    %5043 = vmatpush1.msra.mxu0 %v5016
    %5044 = vmatprep.subr.mxu0 0.0
    %5045 = vmatpush1.msra.mxu0 0.0
    %5046 = vmatprep.subr.mxu0 0.0
    %5047 = vmatpush1.msra.mxu0 0.0
    %5048 = vmatprep.subr.mxu0 0.0
    %5049 = vmatpush1.msra.mxu0 0.0
    %5050 = vmatprep.subr.mxu0 0.0
    %5051 = vmatpush1.msra.mxu0 0.0
    %5052 = vmatprep.subr.mxu0 0.0
    %5053 = vmatpush1.msra.mxu0 0.0
    %5054 = vmatprep.subr.mxu0 0.0
    %5055 = vmatpush1.msra.mxu0 0.0
    %5056 = vmatprep.subr.mxu0 0.0
    %5057 = vmatpush1.msra.mxu0 0.0
    %5058 = vmatprep.subr.mxu0 0.0
    %5059 = vmatpush1.msra.mxu0 0.0
    %5060 = vmatprep.subr.mxu0 0.0
    %5061 = vmatpush1.msra.mxu0 0.0
    %5062 = vmatprep.subr.mxu0 0.0
    %5063 = vmatpush1.msra.mxu0 0.0
    %5064 = vmatprep.subr.mxu0 0.0
    %5065 = vmatpush1.msra.mxu0 0.0
    %5066 = vmatprep.subr.mxu0 0.0
    %5067 = vmatpush1.msra.mxu0 0.0
    %5068 = vmatprep.subr.mxu0 0.0
    %5069 = vmatpush1.msra.mxu0 0.0
    %5070 = vmatprep.subr.mxu0 0.0
    %5071 = vmatpush1.msra.mxu0 0.0
    %5072 = vmatprep.subr.mxu0 0.0
    %5073 = vmatpush1.msra.mxu0 0.0
    %5074 = vmatprep.subr.mxu0 0.0
    %5075 = vmatpush1.msra.mxu0 0.0
    %5076 = vmatprep.subr.mxu0 0.0
    %5077 = vmatpush1.msra.mxu0 0.0
    %5078 = vmatprep.subr.mxu0 0.0
    %5079 = vmatpush1.msra.mxu0 0.0
    %5080 = vmatprep.subr.mxu0 0.0
    %5081 = vmatpush1.msra.mxu0 0.0
    %5082 = vmatprep.subr.mxu0 0.0
    %5083 = vmatpush1.msra.mxu0 0.0
    %5084 = vmatprep.subr.mxu0 0.0
    %5085 = vmatpush1.msra.mxu0 0.0
    %5086 = vmatprep.subr.mxu0 0.0
    %5087 = vmatpush1.msra.mxu0 0.0
    %5088 = vmatprep.subr.mxu0 0.0
    %5089 = vmatpush1.msra.mxu0 0.0
    %5090 = vmatprep.subr.mxu0 0.0
    %5091 = vmatpush1.msra.mxu0 0.0
    %5092 = vmatprep.mubr.f32.mxu0 0.0
    %5093 = vmatmul.mubr.f32.gmra.mrb[0].mxu0 %v5026
    %v5094 = vpop.f32.mrb[0].mxu0
    %v5095 = vadd.f32 %v5023, %v5094
    %v5096 = vpop.f32.mrb[0].mxu0
    %5097 = vdwg.mxu0
    %v5098 = vadd.f32 %v4920, %v5095
    %s5099 = scalar_lea.vmem %s61, 1
    %v5100 = vld [vmem:[%s5099] sm:$0x1]
    %v5102 = vlaneseq
    %v5103 = vshrl.u32 %v5102, 7
    %v5104 = vsub.s32 0, %v5103
    %v5105 = vrot.slane %v5100, %v5104
    %v5107 = vmul.f32 %v5098, %v5105
    %s5108 = scalar_lea.vmem %s63, 1
    %v5109 = vld [vmem:[%s5108] sm:$0x1]
    %v5111 = vlaneseq
    %v5112 = vshrl.u32 %v5111, 7
    %v5113 = vsub.s32 0, %v5112
    %v5114 = vrot.slane %v5109, %v5113
    %v5116 = vadd.f32 %v5107, %v5114
    %v5117 = vld [vmem:[%s65] sm:$0xff]
    %v5118 = vld [vmem:[%s65 + $0x8] sm:$0xff]
    %v5119 = vld [vmem:[%s65 + $0x10] sm:$0xff]
    %v5120 = vld [vmem:[%s65 + $0x18] sm:$0xff]
    %v5121 = vld [vmem:[%s67] sm:$0x1]
    %v5123 = vlaneseq
    %v5124 = vshrl.u32 %v5123, 7
    %v5125 = vsub.s32 0, %v5124
    %v5126 = vrot.slane %v5121, %v5125
    %v5129 = vsel %vm352, %v2059, 0
    %5131 = vmatprep.subr.mxu0 0.0
    %5132 = vmatpush1.msra.mxu0 %v5117
    %5133 = vmatprep.subr.mxu0 0.0
    %5134 = vmatpush1.msra.mxu0 %v5118
    %5135 = vmatprep.subr.mxu0 0.0
    %5136 = vmatpush1.msra.mxu0 %v5119
    %5137 = vmatprep.subr.mxu0 0.0
    %5138 = vmatpush1.msra.mxu0 %v5120
    %5139 = vmatprep.subr.mxu0 0.0
    %5140 = vmatpush1.msra.mxu0 0.0
    %5141 = vmatprep.subr.mxu0 0.0
    %5142 = vmatpush1.msra.mxu0 0.0
    %5143 = vmatprep.subr.mxu0 0.0
    %5144 = vmatpush1.msra.mxu0 0.0
    %5145 = vmatprep.subr.mxu0 0.0
    %5146 = vmatpush1.msra.mxu0 0.0
    %5147 = vmatprep.subr.mxu0 0.0
    %5148 = vmatpush1.msra.mxu0 0.0
    %5149 = vmatprep.subr.mxu0 0.0
    %5150 = vmatpush1.msra.mxu0 0.0
    %5151 = vmatprep.subr.mxu0 0.0
    %5152 = vmatpush1.msra.mxu0 0.0
    %5153 = vmatprep.subr.mxu0 0.0
    %5154 = vmatpush1.msra.mxu0 0.0
    %5155 = vmatprep.subr.mxu0 0.0
    %5156 = vmatpush1.msra.mxu0 0.0
    %5157 = vmatprep.subr.mxu0 0.0
    %5158 = vmatpush1.msra.mxu0 0.0
    %5159 = vmatprep.subr.mxu0 0.0
    %5160 = vmatpush1.msra.mxu0 0.0
    %5161 = vmatprep.subr.mxu0 0.0
    %5162 = vmatpush1.msra.mxu0 0.0
    %5163 = vmatprep.subr.mxu0 0.0
    %5164 = vmatpush1.msra.mxu0 0.0
    %5165 = vmatprep.subr.mxu0 0.0
    %5166 = vmatpush1.msra.mxu0 0.0
    %5167 = vmatprep.subr.mxu0 0.0
    %5168 = vmatpush1.msra.mxu0 0.0
    %5169 = vmatprep.subr.mxu0 0.0
    %5170 = vmatpush1.msra.mxu0 0.0
    %5171 = vmatprep.subr.mxu0 0.0
    %5172 = vmatpush1.msra.mxu0 0.0
    %5173 = vmatprep.subr.mxu0 0.0
    %5174 = vmatpush1.msra.mxu0 0.0
    %5175 = vmatprep.subr.mxu0 0.0
    %5176 = vmatpush1.msra.mxu0 0.0
    %5177 = vmatprep.subr.mxu0 0.0
    %5178 = vmatpush1.msra.mxu0 0.0
    %5179 = vmatprep.subr.mxu0 0.0
    %5180 = vmatpush1.msra.mxu0 0.0
    %5181 = vmatprep.subr.mxu0 0.0
    %5182 = vmatpush1.msra.mxu0 0.0
    %5183 = vmatprep.subr.mxu0 0.0
    %5184 = vmatpush1.msra.mxu0 0.0
    %5185 = vmatprep.subr.mxu0 0.0
    %5186 = vmatpush1.msra.mxu0 0.0
    %5187 = vmatprep.subr.mxu0 0.0
    %5188 = vmatpush1.msra.mxu0 0.0
    %5189 = vmatprep.subr.mxu0 0.0
    %5190 = vmatpush1.msra.mxu0 0.0
    %5191 = vmatprep.subr.mxu0 0.0
    %5192 = vmatpush1.msra.mxu0 0.0
    %5193 = vmatprep.subr.mxu0 0.0
    %5194 = vmatpush1.msra.mxu0 0.0
    %5195 = vmatprep.mubr.f32.mxu0 0.0
    %5196 = vmatmul.mubr.f32.gmra.mrb[0].mxu0 %v5129
    %v5197 = vpop.f32.mrb[0].mxu0
    %v5198 = vadd.f32 %v5126, %v5197
    %v5199 = vpop.f32.mrb[0].mxu0
    %5200 = vdwg.mxu0
    %v5201 = vmul.f32 %v5198, %v5198
    %v5202 = vsel %vm262, %v5201, 0.0
    %v5203 = vrot.slane %v5202, 4
    %v5204 = vadd.f32 %v5202, %v5203
    %v5205 = vrot.slane %v5204, 2
    %v5206 = vadd.f32 %v5204, %v5205
    %v5207 = vrot.slane %v5206, 1
    %v5208 = vadd.f32 %v5206, %v5207
    %v5209 = vrsqrt.pop %v5208
    %v5210 = vmul.f32 %v5208, %v5209
    %vm5211 = vcmp.eq.f32.partialorder %v5208, inf
    %v5212 = vsel %vm5211, %v5208, %v5210
    %vm5213 = vcmp.eq.f32.partialorder %v5208, 0.0
    %v5214 = vand.u32 %v5208, 2147483648
    %v5215 = vsel %vm5213, %v5214, %v5212
    %v5216 = vsel %vm262, %v5198, 0.0
    %v5217 = vrot.slane %v5216, 4
    %v5218 = vadd.f32 %v5216, %v5217
    %v5219 = vrot.slane %v5218, 2
    %v5220 = vadd.f32 %v5218, %v5219
    %v5221 = vrot.slane %v5220, 1
    %v5222 = vadd.f32 %v5220, %v5221
    %v5223 = vmul.f32 %v5222, 0.125
    %v5224 = vsub.f32 %v5198, %v5223
    %v5225 = vadd.f32 %v5215, 1e-12
    %v5226 = vrcp.pop %v5225
    %v5227 = vmul.f32 %v5224, %v5226
    %v5228 = vld [vmem:[%s69] sm:$0xff]
    %v5229 = vld [vmem:[%s69 + $0x8] sm:$0xff]
    %v5230 = vld [vmem:[%s69 + $0x10] sm:$0xff]
    %v5231 = vld [vmem:[%s69 + $0x18] sm:$0xff]
    %v5232 = vld [vmem:[%s71] sm:$0xff]
    %v5234 = vsel %vm262, %v5227, 0
    %5236 = vmatprep.subr.mxu0 0.0
    %5237 = vmatpush1.msra.mxu0 %v5232
    %5238 = vmatprep.subr.mxu0 0.0
    %5239 = vmatpush1.msra.mxu0 0.0
    %5240 = vmatprep.subr.mxu0 0.0
    %5241 = vmatpush1.msra.mxu0 0.0
    %5242 = vmatprep.subr.mxu0 0.0
    %5243 = vmatpush1.msra.mxu0 0.0
    %5244 = vmatprep.subr.mxu0 0.0
    %5245 = vmatpush1.msra.mxu0 0.0
    %5246 = vmatprep.subr.mxu0 0.0
    %5247 = vmatpush1.msra.mxu0 0.0
    %5248 = vmatprep.subr.mxu0 0.0
    %5249 = vmatpush1.msra.mxu0 0.0
    %5250 = vmatprep.subr.mxu0 0.0
    %5251 = vmatpush1.msra.mxu0 0.0
    %5252 = vmatprep.subr.mxu0 0.0
    %5253 = vmatpush1.msra.mxu0 0.0
    %5254 = vmatprep.subr.mxu0 0.0
    %5255 = vmatpush1.msra.mxu0 0.0
    %5256 = vmatprep.subr.mxu0 0.0
    %5257 = vmatpush1.msra.mxu0 0.0
    %5258 = vmatprep.subr.mxu0 0.0
    %5259 = vmatpush1.msra.mxu0 0.0
    %5260 = vmatprep.subr.mxu0 0.0
    %5261 = vmatpush1.msra.mxu0 0.0
    %5262 = vmatprep.subr.mxu0 0.0
    %5263 = vmatpush1.msra.mxu0 0.0
    %5264 = vmatprep.subr.mxu0 0.0
    %5265 = vmatpush1.msra.mxu0 0.0
    %5266 = vmatprep.subr.mxu0 0.0
    %5267 = vmatpush1.msra.mxu0 0.0
    %5268 = vmatprep.subr.mxu0 0.0
    %5269 = vmatpush1.msra.mxu0 0.0
    %5270 = vmatprep.subr.mxu0 0.0
    %5271 = vmatpush1.msra.mxu0 0.0
    %5272 = vmatprep.subr.mxu0 0.0
    %5273 = vmatpush1.msra.mxu0 0.0
    %5274 = vmatprep.subr.mxu0 0.0
    %5275 = vmatpush1.msra.mxu0 0.0
    %5276 = vmatprep.subr.mxu0 0.0
    %5277 = vmatpush1.msra.mxu0 0.0
    %5278 = vmatprep.subr.mxu0 0.0
    %5279 = vmatpush1.msra.mxu0 0.0
    %5280 = vmatprep.subr.mxu0 0.0
    %5281 = vmatpush1.msra.mxu0 0.0
    %5282 = vmatprep.subr.mxu0 0.0
    %5283 = vmatpush1.msra.mxu0 0.0
    %5284 = vmatprep.subr.mxu0 0.0
    %5285 = vmatpush1.msra.mxu0 0.0
    %5286 = vmatprep.subr.mxu0 0.0
    %5287 = vmatpush1.msra.mxu0 0.0
    %5288 = vmatprep.subr.mxu0 0.0
    %5289 = vmatpush1.msra.mxu0 0.0
    %5290 = vmatprep.subr.mxu0 0.0
    %5291 = vmatpush1.msra.mxu0 0.0
    %5292 = vmatprep.subr.mxu0 0.0
    %5293 = vmatpush1.msra.mxu0 0.0
    %5294 = vmatprep.subr.mxu0 0.0
    %5295 = vmatpush1.msra.mxu0 0.0
    %5296 = vmatprep.subr.mxu0 0.0
    %5297 = vmatpush1.msra.mxu0 0.0
    %5298 = vmatprep.subr.mxu0 0.0
    %5299 = vmatpush1.msra.mxu0 0.0
    %5300 = vmatprep.mubr.f32.mxu0 0.0
    %5301 = vmatmul.mubr.f32.gmra.mrb[0].mxu0 %v5234
    %v5302 = vpop.f32.mrb[0].mxu0
    %v5303 = vadd.f32 0.0, %v5302
    %v5304 = vpop.f32.mrb[0].mxu0
    %5305 = vdwg.mxu0
    %v5307 = vsel %vm352, %v5116, 0
    %5309 = vmatprep.subr.mxu0 0.0
    %5310 = vmatpush1.msra.mxu0 %v5228
    %5311 = vmatprep.subr.mxu0 0.0
    %5312 = vmatpush1.msra.mxu0 %v5229
    %5313 = vmatprep.subr.mxu0 0.0
    %5314 = vmatpush1.msra.mxu0 %v5230
    %5315 = vmatprep.subr.mxu0 0.0
    %5316 = vmatpush1.msra.mxu0 %v5231
    %5317 = vmatprep.subr.mxu0 0.0
    %5318 = vmatpush1.msra.mxu0 0.0
    %5319 = vmatprep.subr.mxu0 0.0
    %5320 = vmatpush1.msra.mxu0 0.0
    %5321 = vmatprep.subr.mxu0 0.0
    %5322 = vmatpush1.msra.mxu0 0.0
    %5323 = vmatprep.subr.mxu0 0.0
    %5324 = vmatpush1.msra.mxu0 0.0
    %5325 = vmatprep.subr.mxu0 0.0
    %5326 = vmatpush1.msra.mxu0 0.0
    %5327 = vmatprep.subr.mxu0 0.0
    %5328 = vmatpush1.msra.mxu0 0.0
    %5329 = vmatprep.subr.mxu0 0.0
    %5330 = vmatpush1.msra.mxu0 0.0
    %5331 = vmatprep.subr.mxu0 0.0
    %5332 = vmatpush1.msra.mxu0 0.0
    %5333 = vmatprep.subr.mxu0 0.0
    %5334 = vmatpush1.msra.mxu0 0.0
    %5335 = vmatprep.subr.mxu0 0.0
    %5336 = vmatpush1.msra.mxu0 0.0
    %5337 = vmatprep.subr.mxu0 0.0
    %5338 = vmatpush1.msra.mxu0 0.0
    %5339 = vmatprep.subr.mxu0 0.0
    %5340 = vmatpush1.msra.mxu0 0.0
    %5341 = vmatprep.subr.mxu0 0.0
    %5342 = vmatpush1.msra.mxu0 0.0
    %5343 = vmatprep.subr.mxu0 0.0
    %5344 = vmatpush1.msra.mxu0 0.0
    %5345 = vmatprep.subr.mxu0 0.0
    %5346 = vmatpush1.msra.mxu0 0.0
    %5347 = vmatprep.subr.mxu0 0.0
    %5348 = vmatpush1.msra.mxu0 0.0
    %5349 = vmatprep.subr.mxu0 0.0
    %5350 = vmatpush1.msra.mxu0 0.0
    %5351 = vmatprep.subr.mxu0 0.0
    %5352 = vmatpush1.msra.mxu0 0.0
    %5353 = vmatprep.subr.mxu0 0.0
    %5354 = vmatpush1.msra.mxu0 0.0
    %5355 = vmatprep.subr.mxu0 0.0
    %5356 = vmatpush1.msra.mxu0 0.0
    %5357 = vmatprep.subr.mxu0 0.0
    %5358 = vmatpush1.msra.mxu0 0.0
    %5359 = vmatprep.subr.mxu0 0.0
    %5360 = vmatpush1.msra.mxu0 0.0
    %5361 = vmatprep.subr.mxu0 0.0
    %5362 = vmatpush1.msra.mxu0 0.0
    %5363 = vmatprep.subr.mxu0 0.0
    %5364 = vmatpush1.msra.mxu0 0.0
    %5365 = vmatprep.subr.mxu0 0.0
    %5366 = vmatpush1.msra.mxu0 0.0
    %5367 = vmatprep.subr.mxu0 0.0
    %5368 = vmatpush1.msra.mxu0 0.0
    %5369 = vmatprep.subr.mxu0 0.0
    %5370 = vmatpush1.msra.mxu0 0.0
    %5371 = vmatprep.subr.mxu0 0.0
    %5372 = vmatpush1.msra.mxu0 0.0
    %5373 = vmatprep.mubr.f32.mxu0 0.0
    %5374 = vmatmul.mubr.f32.gmra.mrb[0].mxu0 %v5307
    %v5375 = vpop.f32.mrb[0].mxu0
    %v5376 = vadd.f32 %v5303, %v5375
    %v5377 = vpop.f32.mrb[0].mxu0
    %5378 = vdwg.mxu0
    %v5379 = vld [vmem:[%s73] sm:$0x1]
    %v5381 = vlaneseq
    %v5382 = vshrl.u32 %v5381, 7
    %v5383 = vsub.s32 0, %v5382
    %v5384 = vrot.slane %v5379, %v5383
    %v5386 = vadd.f32 %v5376, %v5384
    %v5387 = vsel %vm352, %v5386, 0.0
    %v5388 = vrot.slane %v5387, 4
    %v5389 = vadd.f32 %v5387, %v5388
    %v5390 = vrot.slane %v5389, 2
    %v5391 = vadd.f32 %v5389, %v5390
    %v5392 = vrot.slane %v5391, 1
    %v5393 = vadd.f32 %v5391, %v5392
    %v5394 = vmul.f32 %v5393, 0.125
    %v5395 = vld [vmem:[%s75] sm:$0xff]
    %v5396 = vld [vmem:[%s75 + $0x8] sm:$0xff]
    %v5397 = vld [vmem:[%s75 + $0x10] sm:$0xff]
    %v5398 = vld [vmem:[%s75 + $0x18] sm:$0xff]
    %v5399 = vld [vmem:[%s77] sm:$0x1]
    %v5401 = vsel %vm352, %v5394, 0
    %5403 = vmatprep.subr.mxu0 0.0
    %5404 = vmatpush1.msra.mxu0 %v5395
    %5405 = vmatprep.subr.mxu0 0.0
    %5406 = vmatpush1.msra.mxu0 %v5396
    %5407 = vmatprep.subr.mxu0 0.0
    %5408 = vmatpush1.msra.mxu0 %v5397
    %5409 = vmatprep.subr.mxu0 0.0
    %5410 = vmatpush1.msra.mxu0 %v5398
    %5411 = vmatprep.subr.mxu0 0.0
    %5412 = vmatpush1.msra.mxu0 0.0
    %5413 = vmatprep.subr.mxu0 0.0
    %5414 = vmatpush1.msra.mxu0 0.0
    %5415 = vmatprep.subr.mxu0 0.0
    %5416 = vmatpush1.msra.mxu0 0.0
    %5417 = vmatprep.subr.mxu0 0.0
    %5418 = vmatpush1.msra.mxu0 0.0
    %5419 = vmatprep.subr.mxu0 0.0
    %5420 = vmatpush1.msra.mxu0 0.0
    %5421 = vmatprep.subr.mxu0 0.0
    %5422 = vmatpush1.msra.mxu0 0.0
    %5423 = vmatprep.subr.mxu0 0.0
    %5424 = vmatpush1.msra.mxu0 0.0
    %5425 = vmatprep.subr.mxu0 0.0
    %5426 = vmatpush1.msra.mxu0 0.0
    %5427 = vmatprep.subr.mxu0 0.0
    %5428 = vmatpush1.msra.mxu0 0.0
    %5429 = vmatprep.subr.mxu0 0.0
    %5430 = vmatpush1.msra.mxu0 0.0
    %5431 = vmatprep.subr.mxu0 0.0
    %5432 = vmatpush1.msra.mxu0 0.0
    %5433 = vmatprep.subr.mxu0 0.0
    %5434 = vmatpush1.msra.mxu0 0.0
    %5435 = vmatprep.subr.mxu0 0.0
    %5436 = vmatpush1.msra.mxu0 0.0
    %5437 = vmatprep.subr.mxu0 0.0
    %5438 = vmatpush1.msra.mxu0 0.0
    %5439 = vmatprep.subr.mxu0 0.0
    %5440 = vmatpush1.msra.mxu0 0.0
    %5441 = vmatprep.subr.mxu0 0.0
    %5442 = vmatpush1.msra.mxu0 0.0
    %5443 = vmatprep.subr.mxu0 0.0
    %5444 = vmatpush1.msra.mxu0 0.0
    %5445 = vmatprep.subr.mxu0 0.0
    %5446 = vmatpush1.msra.mxu0 0.0
    %5447 = vmatprep.subr.mxu0 0.0
    %5448 = vmatpush1.msra.mxu0 0.0
    %5449 = vmatprep.subr.mxu0 0.0
    %5450 = vmatpush1.msra.mxu0 0.0
    %5451 = vmatprep.subr.mxu0 0.0
    %5452 = vmatpush1.msra.mxu0 0.0
    %5453 = vmatprep.subr.mxu0 0.0
    %5454 = vmatpush1.msra.mxu0 0.0
    %5455 = vmatprep.subr.mxu0 0.0
    %5456 = vmatpush1.msra.mxu0 0.0
    %5457 = vmatprep.subr.mxu0 0.0
    %5458 = vmatpush1.msra.mxu0 0.0
    %5459 = vmatprep.subr.mxu0 0.0
    %5460 = vmatpush1.msra.mxu0 0.0
    %5461 = vmatprep.subr.mxu0 0.0
    %5462 = vmatpush1.msra.mxu0 0.0
    %5463 = vmatprep.subr.mxu0 0.0
    %5464 = vmatpush1.msra.mxu0 0.0
    %5465 = vmatprep.subr.mxu0 0.0
    %5466 = vmatpush1.msra.mxu0 0.0
    %5467 = vmatprep.mubr.f32.mxu0 0.0
    %5468 = vmatmul.mubr.f32.gmra.mrb[0].mxu0 %v5401
    %v5469 = vpop.f32.mrb[0].mxu0
    %v5470 = vadd.f32 %v5399, %v5469
    %v5471 = vpop.f32.mrb[0].mxu0
    %5472 = vdwg.mxu0
    %v5473 = vmax.f32 %v5470, 0.0
    %v5474 = vld [vmem:[%s79] sm:$0xff]
    %v5475 = vld [vmem:[%s79 + $0x8] sm:$0xff]
    %v5476 = vld [vmem:[%s81] sm:$0x1]
    %v5478 = vsel %vm3288, %v5473, 0
    %5480 = vmatprep.subr.mxu0 0.0
    %5481 = vmatpush1.msra.mxu0 %v5474
    %5482 = vmatprep.subr.mxu0 0.0
    %5483 = vmatpush1.msra.mxu0 %v5475
    %5484 = vmatprep.subr.mxu0 0.0
    %5485 = vmatpush1.msra.mxu0 0.0
    %5486 = vmatprep.subr.mxu0 0.0
    %5487 = vmatpush1.msra.mxu0 0.0
    %5488 = vmatprep.subr.mxu0 0.0
    %5489 = vmatpush1.msra.mxu0 0.0
    %5490 = vmatprep.subr.mxu0 0.0
    %5491 = vmatpush1.msra.mxu0 0.0
    %5492 = vmatprep.subr.mxu0 0.0
    %5493 = vmatpush1.msra.mxu0 0.0
    %5494 = vmatprep.subr.mxu0 0.0
    %5495 = vmatpush1.msra.mxu0 0.0
    %5496 = vmatprep.subr.mxu0 0.0
    %5497 = vmatpush1.msra.mxu0 0.0
    %5498 = vmatprep.subr.mxu0 0.0
    %5499 = vmatpush1.msra.mxu0 0.0
    %5500 = vmatprep.subr.mxu0 0.0
    %5501 = vmatpush1.msra.mxu0 0.0
    %5502 = vmatprep.subr.mxu0 0.0
    %5503 = vmatpush1.msra.mxu0 0.0
    %5504 = vmatprep.subr.mxu0 0.0
    %5505 = vmatpush1.msra.mxu0 0.0
    %5506 = vmatprep.subr.mxu0 0.0
    %5507 = vmatpush1.msra.mxu0 0.0
    %5508 = vmatprep.subr.mxu0 0.0
    %5509 = vmatpush1.msra.mxu0 0.0
    %5510 = vmatprep.subr.mxu0 0.0
    %5511 = vmatpush1.msra.mxu0 0.0
    %5512 = vmatprep.subr.mxu0 0.0
    %5513 = vmatpush1.msra.mxu0 0.0
    %5514 = vmatprep.subr.mxu0 0.0
    %5515 = vmatpush1.msra.mxu0 0.0
    %5516 = vmatprep.subr.mxu0 0.0
    %5517 = vmatpush1.msra.mxu0 0.0
    %5518 = vmatprep.subr.mxu0 0.0
    %5519 = vmatpush1.msra.mxu0 0.0
    %5520 = vmatprep.subr.mxu0 0.0
    %5521 = vmatpush1.msra.mxu0 0.0
    %5522 = vmatprep.subr.mxu0 0.0
    %5523 = vmatpush1.msra.mxu0 0.0
    %5524 = vmatprep.subr.mxu0 0.0
    %5525 = vmatpush1.msra.mxu0 0.0
    %5526 = vmatprep.subr.mxu0 0.0
    %5527 = vmatpush1.msra.mxu0 0.0
    %5528 = vmatprep.subr.mxu0 0.0
    %5529 = vmatpush1.msra.mxu0 0.0
    %5530 = vmatprep.subr.mxu0 0.0
    %5531 = vmatpush1.msra.mxu0 0.0
    %5532 = vmatprep.subr.mxu0 0.0
    %5533 = vmatpush1.msra.mxu0 0.0
    %5534 = vmatprep.subr.mxu0 0.0
    %5535 = vmatpush1.msra.mxu0 0.0
    %5536 = vmatprep.subr.mxu0 0.0
    %5537 = vmatpush1.msra.mxu0 0.0
    %5538 = vmatprep.subr.mxu0 0.0
    %5539 = vmatpush1.msra.mxu0 0.0
    %5540 = vmatprep.subr.mxu0 0.0
    %5541 = vmatpush1.msra.mxu0 0.0
    %5542 = vmatprep.subr.mxu0 0.0
    %5543 = vmatpush1.msra.mxu0 0.0
    %5544 = vmatprep.mubr.f32.mxu0 0.0
    %5545 = vmatmul.mubr.f32.gmra.mrb[0].mxu0 %v5478
    %v5546 = vpop.f32.mrb[0].mxu0
    %v5547 = vadd.f32 %v5476, %v5546
    %v5548 = vpop.f32.mrb[0].mxu0
    %5549 = vdwg.mxu0
    %v5550 = vmax.f32 %v5547, 0.0
    %v5551 = vld [vmem:[%s83] sm:$0xff]
    %v5552 = vld [vmem:[#allocation2] sm:$0x1]
    %v5554 = vsel %vm262, %v5550, 0
    %5556 = vmatprep.subr.mxu0 0.0
    %5557 = vmatpush1.msra.mxu0 %v5551
    %5558 = vmatprep.subr.mxu0 0.0
    %5559 = vmatpush1.msra.mxu0 0.0
    %5560 = vmatprep.subr.mxu0 0.0
    %5561 = vmatpush1.msra.mxu0 0.0
    %5562 = vmatprep.subr.mxu0 0.0
    %5563 = vmatpush1.msra.mxu0 0.0
    %5564 = vmatprep.subr.mxu0 0.0
    %5565 = vmatpush1.msra.mxu0 0.0
    %5566 = vmatprep.subr.mxu0 0.0
    %5567 = vmatpush1.msra.mxu0 0.0
    %5568 = vmatprep.subr.mxu0 0.0
    %5569 = vmatpush1.msra.mxu0 0.0
    %5570 = vmatprep.subr.mxu0 0.0
    %5571 = vmatpush1.msra.mxu0 0.0
    %5572 = vmatprep.subr.mxu0 0.0
    %5573 = vmatpush1.msra.mxu0 0.0
    %5574 = vmatprep.subr.mxu0 0.0
    %5575 = vmatpush1.msra.mxu0 0.0
    %5576 = vmatprep.subr.mxu0 0.0
    %5577 = vmatpush1.msra.mxu0 0.0
    %5578 = vmatprep.subr.mxu0 0.0
    %5579 = vmatpush1.msra.mxu0 0.0
    %5580 = vmatprep.subr.mxu0 0.0
    %5581 = vmatpush1.msra.mxu0 0.0
    %5582 = vmatprep.subr.mxu0 0.0
    %5583 = vmatpush1.msra.mxu0 0.0
    %5584 = vmatprep.subr.mxu0 0.0
    %5585 = vmatpush1.msra.mxu0 0.0
    %5586 = vmatprep.subr.mxu0 0.0
    %5587 = vmatpush1.msra.mxu0 0.0
    %5588 = vmatprep.subr.mxu0 0.0
    %5589 = vmatpush1.msra.mxu0 0.0
    %5590 = vmatprep.subr.mxu0 0.0
    %5591 = vmatpush1.msra.mxu0 0.0
    %5592 = vmatprep.subr.mxu0 0.0
    %5593 = vmatpush1.msra.mxu0 0.0
    %5594 = vmatprep.subr.mxu0 0.0
    %5595 = vmatpush1.msra.mxu0 0.0
    %5596 = vmatprep.subr.mxu0 0.0
    %5597 = vmatpush1.msra.mxu0 0.0
    %5598 = vmatprep.subr.mxu0 0.0
    %5599 = vmatpush1.msra.mxu0 0.0
    %5600 = vmatprep.subr.mxu0 0.0
    %5601 = vmatpush1.msra.mxu0 0.0
    %5602 = vmatprep.subr.mxu0 0.0
    %5603 = vmatpush1.msra.mxu0 0.0
    %5604 = vmatprep.subr.mxu0 0.0
    %5605 = vmatpush1.msra.mxu0 0.0
    %5606 = vmatprep.subr.mxu0 0.0
    %5607 = vmatpush1.msra.mxu0 0.0
    %5608 = vmatprep.subr.mxu0 0.0
    %5609 = vmatpush1.msra.mxu0 0.0
    %5610 = vmatprep.subr.mxu0 0.0
    %5611 = vmatpush1.msra.mxu0 0.0
    %5612 = vmatprep.subr.mxu0 0.0
    %5613 = vmatpush1.msra.mxu0 0.0
    %5614 = vmatprep.subr.mxu0 0.0
    %5615 = vmatpush1.msra.mxu0 0.0
    %5616 = vmatprep.subr.mxu0 0.0
    %5617 = vmatpush1.msra.mxu0 0.0
    %5618 = vmatprep.subr.mxu0 0.0
    %5619 = vmatpush1.msra.mxu0 0.0
    %5620 = vmatprep.mubr.f32.mxu0 0.0
    %5621 = vmatmul.mubr.f32.gmra.mrb[0].mxu0 %v5554
    %v5622 = vpop.f32.mrb[0].mxu0
    %v5623 = vadd.f32 %v5552, %v5622
    %v5624 = vpop.f32.mrb[0].mxu0
    %5625 = vdwg.mxu0
    %vm5626 = vcmask 0
    %5627 = vst.msk [vmem:[#allocation3] sm:$0x1] %vm5626, %v5623
    %5628 = vst.msk [vmem:[#allocation5] sm:$0xff] %vm352, %v5386
    %5629 = vst.msk [vmem:[#allocation7] sm:$0xff] %vm262, %v5227
    // Predicated region
    $region174: #{forward.1} parent=1 // pred_check
      _
    $region175: #{forward.1} parent=1 // pred_check_branch
      %5631 = sbr.rel (0) target = $region177
    $region176: #{forward.1} parent=1 // pred_region
      %s5633 = ssub.s32 16, 16
      %5634 = vsyncadd [#allocation4], %s5633
      %s5636 = sshll.u32 [#allocation3], 4
      %s5637 = int_to_ptr.vmem [resolvable:$true] %s5636
      %5639 = dma.vmem_to_hbm [thread:$0]  %s5637, 16, %s87, [#allocation4]
    $region177: #{forward.1} parent=1 // pred_fallthru
      _
    // Predicated region
    $region178: #{forward.1} parent=1 // pred_check
      _
    $region179: #{forward.1} parent=1 // pred_check_branch
      %5641 = sbr.rel (0) target = $region181
    $region180: #{forward.1} parent=1 // pred_region
      %s5643 = ssub.s32 128, 128
      %5644 = vsyncadd [#allocation6], %s5643
      %s5646 = sshll.u32 [#allocation5], 4
      %s5647 = int_to_ptr.vmem [resolvable:$true] %s5646
      %5649 = dma.vmem_to_hbm [thread:$0]  %s5647, 128, %s89, [#allocation6]
    $region181: #{forward.1} parent=1 // pred_fallthru
      _
    // Predicated region
    $region182: #{forward.1} parent=1 // pred_check
      _
    $region183: #{forward.1} parent=1 // pred_check_branch
      %5651 = sbr.rel (0) target = $region185
    $region184: #{forward.1} parent=1 // pred_region
      %s5653 = ssub.s32 128, 128
      %5654 = vsyncadd [#allocation6], %s5653
      %s5656 = sshll.u32 [#allocation7], 4
      %s5657 = int_to_ptr.vmem [resolvable:$true] %s5656
      %5659 = dma.vmem_to_hbm [thread:$0]  %s5657, 128, %s91, [#allocation6]
    $region185: #{forward.1} parent=1 // pred_fallthru
      _
    // Predicated region
    $region186: #{forward.1} parent=1 // pred_check
      _
    $region187: #{forward.1} parent=1 // pred_check_branch
      %5661 = sbr.rel (0) target = $region189
    $region188: #{forward.1} parent=1 // pred_region
      %5662 = dma.done [#allocation4], 16
    $region189: #{forward.1} parent=1 // pred_fallthru
      _
    // Predicated region
    $region190: #{forward.1} parent=1 // pred_check
      _
    $region191: #{forward.1} parent=1 // pred_check_branch
      %5664 = sbr.rel (0) target = $region193
    $region192: #{forward.1} parent=1 // pred_region
      %5665 = dma.done [#allocation6], 128
    $region193: #{forward.1} parent=1 // pred_fallthru
      _
    // Predicated region
    $region194: #{forward.1} parent=1 // pred_check
      _
    $region195: #{forward.1} parent=1 // pred_check_branch
      %5667 = sbr.rel (0) target = $region197
    $region196: #{forward.1} parent=1 // pred_region
      %5668 = dma.done [#allocation6], 128
    $region197: #{forward.1} parent=1 // pred_fallthru
      _
    %5669 = vsyncpa [#allocation4], 1
    %5670 = vsyncpa [#allocation6], 1

</llo_original>
